<compile_context>
chip_gen: v7x
topology: tpu7x:2x2x1
jax: 0.10.0
libtpu: 0.0.40
codegen_flags: <defaults>
</compile_context>

<pallas_src>
import jax
import jax.numpy as jnp
from jax.experimental import pallas as pl
from jax.experimental.pallas import tpu as pltpu

EPS = 1e-5          # nn.BatchNorm2d default eps
NEG_SLOPE = 0.01    # F.leaky_relu default negative_slope
CP = 128            # every channel / feature axis is padded to 128 lanes


def _vmem_spec():
    return pl.BlockSpec(memory_space=pltpu.MemorySpace.VMEM)


# ----------------------------- fused kernel --------------------------------

def _build_forward_kernel(N, H1, W1, num_classes):
    """Whole-network kernel for one (ConvLayer + 2 ResNetLayer) block."""
    M1 = N * H1 * W1            # rows of every post-stride-2 activation matrix
    inv_m = 1.0 / M1

    def bn_lrelu(acc, gamma, beta):
        # Training-mode batch statistics over the (N*H*W) row axis, per channel.
        # Two-pass (centered) variance to avoid catastrophic cancellation.
        mean = jnp.sum(acc, axis=0, keepdims=True) * inv_m
        cen = acc - mean
        var = jnp.sum(cen * cen, axis=0, keepdims=True) * inv_m
        y = cen * jax.lax.rsqrt(var + EPS) * gamma + beta
        return jnp.where(y > 0, y, NEG_SLOPE * y)

    def kernel(p0_ref, w0_ref, b0_ref,
               w1_ref, g1_ref, b1_ref,
               w2_ref, g2_ref, b2_ref,
               w3_ref, g3_ref, b3_ref,
               fcw_ref, fcb_ref,
               out_ref, s0_ref, s1_ref):
        # ---- halo-only zeroing (the interiors are fully overwritten) -------
        # s0 only needs a top row + left column halo (stride-2 parity taps).
        s0_ref[:, 0:1, :, :] = jnp.zeros((4 * N, 1, W1 + 1, CP), jnp.bfloat16)
        s0_ref[:, :, 0:1, :] = jnp.zeros((4 * N, H1 + 1, 1, CP), jnp.bfloat16)
        # s1 needs a 1-element halo on all four sides (stride-1 3x3, pad 1).
        s1_ref[:, 0:1, :, :] = jnp.zeros((N, 1, W1 + 2, CP), jnp.bfloat16)
        s1_ref[:, H1 + 1:H1 + 2, :, :] = jnp.zeros((N, 1, W1 + 2, CP), jnp.bfloat16)
        s1_ref[:, :, 0:1, :] = jnp.zeros((N, H1 + 2, 1, CP), jnp.bfloat16)
        s1_ref[:, :, W1 + 1:W1 + 2, :] = jnp.zeros((N, H1 + 2, 1, CP), jnp.bfloat16)

        # ---- conv0: 5x5 / stride 1 / pad 2, bias, no activation ------------
        # p0 rows are ordered (row-parity, col-parity, n, oh, ow); all 4 parity
        # planes go through ONE fused MXU dot, then 4 parity stores into s0.
        acc0 = jnp.dot(p0_ref[...], w0_ref[...],
                       preferred_element_type=jnp.float32) + b0_ref[...]
        acc0 = acc0.astype(jnp.bfloat16)
        for p in range(4):
            s0_ref[p * N:(p + 1) * N, 1:1 + H1, 1:1 + W1, :] = (
                acc0[p * M1:(p + 1) * M1, :].reshape(N, H1, W1, CP))

        # ---- ConvLayer: 3x3 / stride 2 / pad 1 -> BN -> leaky_relu ---------
        # The 9 taps are folded along K into one (M1, 1152) x (1152, 128) dot.
        taps = []
        for di in range(3):
            ph = 0 if di == 1 else 1          # input-row parity of this tap
            ro = -1 if di == 0 else 0         # row offset inside that parity
            for dj in range(3):
                pw = 0 if dj == 1 else 1
                co = -1 if dj == 0 else 0
                p = ph * 2 + pw
                v = s0_ref[p * N:(p + 1) * N,
                           1 + ro:1 + ro + H1,
                           1 + co:1 + co + W1, :]
                taps.append(v.reshape(M1, CP))
        acc1 = jnp.dot(jnp.concatenate(taps, axis=1), w1_ref[...],
                       preferred_element_type=jnp.float32)
        z = bn_lrelu(acc1, g1_ref[...], b1_ref[...])
        s1_ref[:, 1:1 + H1, 1:1 + W1, :] = (
            z.astype(jnp.bfloat16).reshape(N, H1, W1, CP))

        # ---- ResNetLayer: x + leaky_relu(BN(conv3x3_s1(x))) ----------------
        # Residual is taken from the f32 value already live in registers.
        def resnet_layer(w_ref, g_ref, b_ref, resid, store):
            tps = [s1_ref[:, di:di + H1, dj:dj + W1, :].reshape(M1, CP)
                   for di in range(3) for dj in range(3)]
            acc = jnp.dot(jnp.concatenate(tps, axis=1), w_ref[...],
                          preferred_element_type=jnp.float32)
            znew = resid + bn_lrelu(acc, g_ref[...], b_ref[...])
            if store:   # last layer's output feeds only the pool -> no store
                s1_ref[:, 1:1 + H1, 1:1 + W1, :] = (
                    znew.astype(jnp.bfloat16).reshape(N, H1, W1, CP))
            return znew

        z2 = resnet_layer(w2_ref, g2_ref, b2_ref, z, store=True)
        z3 = resnet_layer(w3_ref, g3_ref, b3_ref, z2, store=False)

        # ---- head: adaptive_max_pool2d(1) -> Linear -> log_softmax ---------
        pooled = jnp.max(z3.reshape(N, H1 * W1, CP), axis=1)          # (N, CP)
        logits = jnp.dot(pooled.astype(jnp.bfloat16), fcw_ref[...],
                         preferred_element_type=jnp.float32) + fcb_ref[...]
        lane = jax.lax.broadcasted_iota(jnp.int32, logits.shape, 1)
        valid = lane < num_classes                # mask padded class lanes
        logits = jnp.where(valid, logits, -1e30)
        m = jnp.max(logits, axis=-1, keepdims=True)
        e = jnp.where(valid, jnp.exp(logits - m), 0.0)
        lse = jnp.log(jnp.sum(e, axis=-1, keepdims=True)) + m
        out_ref[...] = jnp.where(valid, logits - lse, 0.0)

    return kernel


# ------------------- JAX glue: layout, padding, im2col ---------------------

def _conv0_patches(x, kh, kw, pad):
    """NHWC input -> parity-major im2col rows (4*N*(H//2)*(W//2), CP), bf16."""
    N, H, W, C = x.shape
    xp = jnp.pad(x, ((0, 0), (pad, pad), (pad, pad), (0, 0))).astype(jnp.bfloat16)
    cols = []
    for i in range(kh):
        for j in range(kw):
            cols.append(jax.lax.slice(xp, (0, i, j, 0), (N, i + H, j + W, C)))
    patches = jnp.concatenate(cols, axis=-1)               # (N, H, W, kh*kw*C)
    K = kh * kw * C
    assert K <= CP
    p = patches.reshape(N, H // 2, 2, W // 2, 2, K)
    p = jnp.transpose(p, (2, 4, 0, 1, 3, 5))               # (ph, pw, n, i, j, K)
    p = p.reshape(4 * N * (H // 2) * (W // 2), K)
    return jnp.pad(p, ((0, 0), (0, CP - K)))                # bf16


def _pad_taps(w):
    """(KH, KW, Cin, Cout) conv weight -> (KH*KW*CP, CP) bf16, K-folded."""
    kh, kw, cin, cout = w.shape
    wt = w.reshape(kh * kw, cin, cout)
    wt = jnp.pad(wt, ((0, 0), (0, CP - cin), (0, CP - cout)))
    return wt.reshape(kh * kw * CP, CP).astype(jnp.bfloat16)


def _pad_row(v):
    """(C,) vector -> (1, CP) f32, zero padded."""
    return jnp.pad(v, (0, CP - v.shape[0])).reshape(1, CP).astype(jnp.float32)


def simple_resnet_forward(params, x_nchw):
    x = jnp.transpose(x_nchw, (0, 2, 3, 1)).astype(jnp.float32)  # NCHW -> NHWC
    N, H0, W0, _ = x.shape
    assert H0 % 2 == 0 and W0 % 2 == 0
    # TODO(synk): the fused kernel covers exactly one (ConvLayer, ResNetLayer,
    # ResNetLayer) block; multi-block `layers` configs would need per-block
    # space-to-depth in-kernel (or one fused pallas_call per block).
    assert len(params["layers1"]) == 1
    H1, W1 = H0 // 2, W0 // 2
    num_classes = params["fc_w"].shape[1]

    # conv0 im2col (pure data movement on the raw HBM input), parity-ordered.
    # TODO(synk): this im2col is still an XLA pre-pass; doing it in-kernel
    # would need either 25 K=128 tap dots (MXU-wasteful) or a lane-packed
    # image layout — revisit for large images.
    kh, kw, cin, c0 = params["conv0_w"].shape
    p0 = _conv0_patches(x, kh, kw, (kh - 1) // 2)
    k0 = kh * kw * cin
    w0p = jnp.pad(params["conv0_w"].reshape(k0, c0),
                  ((0, CP - k0), (0, CP - c0))).astype(jnp.bfloat16)
    b0p = _pad_row(params["conv0_b"])

    l1 = params["layers1"][0]
    l2 = params["layers2"][0]
    l3 = params["layers3"][0]
    w1p, g1p, be1p = _pad_taps(l1["w"]), _pad_row(l1["gamma"]), _pad_row(l1["beta"])
    w2p, g2p, be2p = _pad_taps(l2["w"]), _pad_row(l2["gamma"]), _pad_row(l2["beta"])
    w3p, g3p, be3p = _pad_taps(l3["w"]), _pad_row(l3["gamma"]), _pad_row(l3["beta"])

    cf = params["fc_w"].shape[0]
    fcwp = jnp.pad(params["fc_w"],
                   ((0, CP - cf), (0, CP - num_classes))).astype(jnp.bfloat16)
    fcbp = _pad_row(params["fc_b"])

    args = (p0, w0p, b0p, w1p, g1p, be1p, w2p, g2p, be2p, w3p, g3p, be3p,
            fcwp, fcbp)

    # Explicit VMEM budget (bf16 scratch + inputs + output), with headroom,
    # capped at v7x's 64 MiB physical VMEM.
    scratch_bytes = (4 * N * (H1 + 1) * (W1 + 1) * CP * 2
                     + N * (H1 + 2) * (W1 + 2) * CP * 2)
    arg_bytes = sum(int(a.size) * a.dtype.itemsize for a in args)
    est = arg_bytes + scratch_bytes + N * CP * 4
    vmem_limit = int(min(64 * 2 ** 20, max(32 * 2 ** 20, 3 * est)))

    kernel = _build_forward_kernel(N, H1, W1, num_classes)
    # TODO(synk): no batch-parallel grid — training-mode BatchNorm needs
    # whole-batch statistics in one pass; a grid would require a two-pass
    # (stats then normalize) structure.
    out = pl.pallas_call(
        kernel,
        out_shape=jax.ShapeDtypeStruct((N, CP), jnp.float32),
        in_specs=[_vmem_spec()] * len(args),
        out_specs=_vmem_spec(),
        scratch_shapes=[
            # parity-split (space-to-depth) conv0 output, 1-elem top/left halo
            pltpu.VMEM((4 * N, H1 + 1, W1 + 1, CP), jnp.bfloat16),
            # residual-block activation, 1-elem halo on all sides
            pltpu.VMEM((N, H1 + 2, W1 + 2, CP), jnp.bfloat16),
        ],
        compiler_params=pltpu.CompilerParams(vmem_limit_bytes=vmem_limit),
    )(*args)
    return out[:, :num_classes]


# ---------------- Parameters (fresh module, training-mode BN) --------------

def init_params(key, layers, num_classes):
    keys = iter(jax.random.split(key, 64))

    def conv_w(cin, cout, ks):
        fan_in = cin * ks * ks
        return (jax.random.normal(next(keys), (ks, ks, cin, cout), jnp.float32)
                / jnp.sqrt(float(fan_in)))

    assert max(max(layers), num_classes) <= CP
    params = {
        "conv0_w": conv_w(3, layers[0], 5),
        "conv0_b": 0.1 * jax.random.normal(next(keys), (layers[0],), jnp.float32),
        "layers1": [], "layers2": [], "layers3": [],
        "fc_w": (jax.random.normal(next(keys), (layers[-1], num_classes), jnp.float32)
                 / jnp.sqrt(float(layers[-1]))),
        "fc_b": jnp.zeros((num_classes,), jnp.float32),
    }
    for ni, nf in zip(layers[:-1], layers[1:]):   # pairs(layers)
        params["layers1"].append(dict(
            w=conv_w(ni, nf, 3),
            gamma=jnp.ones((nf,), jnp.float32),
            beta=jnp.zeros((nf,), jnp.float32)))
    for c in layers[1:]:
        for name in ("layers2", "layers3"):
            params[name].append(dict(
                w=conv_w(c, c, 3),
                gamma=jnp.ones((c,), jnp.float32),
                beta=jnp.zeros((c,), jnp.float32)))
    return params


if __name__ == "__main__":
    key = jax.random.PRNGKey(0)
    kx, kp = jax.random.split(key)

    layers = [10, 16]      # layers[0] must equal first conv's out_channels (10)
    num_classes = 5
    x = jax.random.normal(kx, (2, 3, 16, 16), jnp.float32)  # NCHW, like PyTorch
    params = init_params(kp, layers, num_classes)

    out = jax.jit(simple_resnet_forward)(params, x)
    out = jax.block_until_ready(out)
    assert out.shape == (2, num_classes)
    assert bool(jnp.all(jnp.isfinite(out)))
    # log_softmax rows must exponentiate-sum to ~1
    assert jnp.allclose(jnp.exp(out).sum(axis=-1), 1.0, atol=1e-2)
    print("KERNEL_OK")
</pallas_src>

<mosaic_0001>
module attributes {stable_mosaic.version = 11 : i64} {
  func.func @kernel(%arg0: memref<512x128xbf16, #tpu.memory_space<vmem>>, %arg1: memref<128x128xbf16, #tpu.memory_space<vmem>>, %arg2: memref<1x128xf32, #tpu.memory_space<vmem>>, %arg3: memref<1152x128xbf16, #tpu.memory_space<vmem>>, %arg4: memref<1x128xf32, #tpu.memory_space<vmem>>, %arg5: memref<1x128xf32, #tpu.memory_space<vmem>>, %arg6: memref<1152x128xbf16, #tpu.memory_space<vmem>>, %arg7: memref<1x128xf32, #tpu.memory_space<vmem>>, %arg8: memref<1x128xf32, #tpu.memory_space<vmem>>, %arg9: memref<1152x128xbf16, #tpu.memory_space<vmem>>, %arg10: memref<1x128xf32, #tpu.memory_space<vmem>>, %arg11: memref<1x128xf32, #tpu.memory_space<vmem>>, %arg12: memref<128x128xbf16, #tpu.memory_space<vmem>>, %arg13: memref<1x128xf32, #tpu.memory_space<vmem>>, %arg14: memref<2x128xf32, #tpu.memory_space<vmem>>, %arg15: memref<8x9x9x128xbf16, #tpu.memory_space<vmem>>, %arg16: memref<2x10x10x128xbf16, #tpu.memory_space<vmem>>) attributes {dimension_semantics = [], scalar_prefetch = 0 : i64, scratch_operands = 2 : i64, tpu.core_type = #tpu.core_type<tc>} {
    %cst = arith.constant 0.000000e+00 : bf16
    %0 = vector.broadcast %cst : bf16 to vector<8x1x9x128xbf16>
    %c0 = arith.constant 0 : index
    %c0_0 = arith.constant 0 : index
    %c0_1 = arith.constant 0 : index
    %c0_2 = arith.constant 0 : index
    %1 = vector.load %arg15[%c0, %c0_0, %c0_1, %c0_2] : memref<8x9x9x128xbf16, #tpu.memory_space<vmem>>, vector<8x1x9x128xbf16>
    tpu.vector_store %arg15[%c0, %c0_0, %c0_1, %c0_2], %0 {strides = array<i32>} : memref<8x9x9x128xbf16, #tpu.memory_space<vmem>>, vector<8x1x9x128xbf16>,
    %cst_3 = arith.constant 0.000000e+00 : bf16
    %2 = vector.broadcast %cst_3 : bf16 to vector<8x9x1x128xbf16>
    %c0_4 = arith.constant 0 : index
    %c0_5 = arith.constant 0 : index
    %c0_6 = arith.constant 0 : index
    %c0_7 = arith.constant 0 : index
    %3 = vector.load %arg15[%c0_4, %c0_5, %c0_6, %c0_7] : memref<8x9x9x128xbf16, #tpu.memory_space<vmem>>, vector<8x9x1x128xbf16>
    tpu.vector_store %arg15[%c0_4, %c0_5, %c0_6, %c0_7], %2 {strides = array<i32>} : memref<8x9x9x128xbf16, #tpu.memory_space<vmem>>, vector<8x9x1x128xbf16>,
    %cst_8 = arith.constant 0.000000e+00 : bf16
    %4 = vector.broadcast %cst_8 : bf16 to vector<2x1x10x128xbf16>
    %c0_9 = arith.constant 0 : index
    %c0_10 = arith.constant 0 : index
    %c0_11 = arith.constant 0 : index
    %c0_12 = arith.constant 0 : index
    %5 = vector.load %arg16[%c0_9, %c0_10, %c0_11, %c0_12] : memref<2x10x10x128xbf16, #tpu.memory_space<vmem>>, vector<2x1x10x128xbf16>
    tpu.vector_store %arg16[%c0_9, %c0_10, %c0_11, %c0_12], %4 {strides = array<i32>} : memref<2x10x10x128xbf16, #tpu.memory_space<vmem>>, vector<2x1x10x128xbf16>,
    %cst_13 = arith.constant 0.000000e+00 : bf16
    %6 = vector.broadcast %cst_13 : bf16 to vector<2x1x10x128xbf16>
    %c0_14 = arith.constant 0 : index
    %c9 = arith.constant 9 : index
    %c0_15 = arith.constant 0 : index
    %c0_16 = arith.constant 0 : index
    %7 = vector.load %arg16[%c0_14, %c9, %c0_15, %c0_16] : memref<2x10x10x128xbf16, #tpu.memory_space<vmem>>, vector<2x1x10x128xbf16>
    tpu.vector_store %arg16[%c0_14, %c9, %c0_15, %c0_16], %6 {strides = array<i32>} : memref<2x10x10x128xbf16, #tpu.memory_space<vmem>>, vector<2x1x10x128xbf16>,
    %cst_17 = arith.constant 0.000000e+00 : bf16
    %8 = vector.broadcast %cst_17 : bf16 to vector<2x10x1x128xbf16>
    %c0_18 = arith.constant 0 : index
    %c0_19 = arith.constant 0 : index
    %c0_20 = arith.constant 0 : index
    %c0_21 = arith.constant 0 : index
    %9 = vector.load %arg16[%c0_18, %c0_19, %c0_20, %c0_21] : memref<2x10x10x128xbf16, #tpu.memory_space<vmem>>, vector<2x10x1x128xbf16>
    tpu.vector_store %arg16[%c0_18, %c0_19, %c0_20, %c0_21], %8 {strides = array<i32>} : memref<2x10x10x128xbf16, #tpu.memory_space<vmem>>, vector<2x10x1x128xbf16>,
    %cst_22 = arith.constant 0.000000e+00 : bf16
    %10 = vector.broadcast %cst_22 : bf16 to vector<2x10x1x128xbf16>
    %c0_23 = arith.constant 0 : index
    %c0_24 = arith.constant 0 : index
    %c9_25 = arith.constant 9 : index
    %c0_26 = arith.constant 0 : index
    %11 = vector.load %arg16[%c0_23, %c0_24, %c9_25, %c0_26] : memref<2x10x10x128xbf16, #tpu.memory_space<vmem>>, vector<2x10x1x128xbf16>
    tpu.vector_store %arg16[%c0_23, %c0_24, %c9_25, %c0_26], %10 {strides = array<i32>} : memref<2x10x10x128xbf16, #tpu.memory_space<vmem>>, vector<2x10x1x128xbf16>,
    %c0_27 = arith.constant 0 : index
    %c0_28 = arith.constant 0 : index
    %12 = vector.load %arg0[%c0_27, %c0_28] : memref<512x128xbf16, #tpu.memory_space<vmem>>, vector<512x128xbf16>
    %c0_29 = arith.constant 0 : index
    %c0_30 = arith.constant 0 : index
    %13 = vector.load %arg1[%c0_29, %c0_30] : memref<128x128xbf16, #tpu.memory_space<vmem>>, vector<128x128xbf16>
    %cst_31 = arith.constant dense<0.000000e+00> : vector<512x128xf32>
    %14 = tpu.matmul %12, %13, %cst_31 {dimension_numbers = #tpu.dot_dimension_numbers<[1], [0], [0], [1], [0, 0, 1, 1], [], []>} : vector<512x128xbf16>, vector<128x128xbf16>, vector<512x128xf32> -> vector<512x128xf32>
    %c0_32 = arith.constant 0 : index
    %c0_33 = arith.constant 0 : index
    %15 = vector.load %arg2[%c0_32, %c0_33] : memref<1x128xf32, #tpu.memory_space<vmem>>, vector<1x128xf32>
    %16 = vector.broadcast %15 : vector<1x128xf32> to vector<512x128xf32>
    %17 = arith.addf %14, %16 : vector<512x128xf32>
    %18 = arith.truncf %17 : vector<512x128xf32> to vector<512x128xbf16>
    %19 = vector.extract_strided_slice %18 {offsets = [0, 0], sizes = [128, 128], strides = [1, 1]} : vector<512x128xbf16> to vector<128x128xbf16>
    %20 = vector.shape_cast %19 : vector<128x128xbf16> to vector<2x8x8x128xbf16>
    %c0_34 = arith.constant 0 : index
    %c1 = arith.constant 1 : index
    %c1_35 = arith.constant 1 : index
    %c0_36 = arith.constant 0 : index
    %21 = vector.load %arg15[%c0_34, %c1, %c1_35, %c0_36] : memref<8x9x9x128xbf16, #tpu.memory_space<vmem>>, vector<2x8x8x128xbf16>
    tpu.vector_store %arg15[%c0_34, %c1, %c1_35, %c0_36], %20 {strides = array<i32>} : memref<8x9x9x128xbf16, #tpu.memory_space<vmem>>, vector<2x8x8x128xbf16>,
    %22 = vector.extract_strided_slice %18 {offsets = [128, 0], sizes = [128, 128], strides = [1, 1]} : vector<512x128xbf16> to vector<128x128xbf16>
    %23 = vector.shape_cast %22 : vector<128x128xbf16> to vector<2x8x8x128xbf16>
    %c2 = arith.constant 2 : index
    %c1_37 = arith.constant 1 : index
    %c1_38 = arith.constant 1 : index
    %c0_39 = arith.constant 0 : index
    %24 = vector.load %arg15[%c2, %c1_37, %c1_38, %c0_39] : memref<8x9x9x128xbf16, #tpu.memory_space<vmem>>, vector<2x8x8x128xbf16>
    tpu.vector_store %arg15[%c2, %c1_37, %c1_38, %c0_39], %23 {strides = array<i32>} : memref<8x9x9x128xbf16, #tpu.memory_space<vmem>>, vector<2x8x8x128xbf16>,
    %25 = vector.extract_strided_slice %18 {offsets = [256, 0], sizes = [128, 128], strides = [1, 1]} : vector<512x128xbf16> to vector<128x128xbf16>
    %26 = vector.shape_cast %25 : vector<128x128xbf16> to vector<2x8x8x128xbf16>
    %c4 = arith.constant 4 : index
    %c1_40 = arith.constant 1 : index
    %c1_41 = arith.constant 1 : index
    %c0_42 = arith.constant 0 : index
    %27 = vector.load %arg15[%c4, %c1_40, %c1_41, %c0_42] : memref<8x9x9x128xbf16, #tpu.memory_space<vmem>>, vector<2x8x8x128xbf16>
    tpu.vector_store %arg15[%c4, %c1_40, %c1_41, %c0_42], %26 {strides = array<i32>} : memref<8x9x9x128xbf16, #tpu.memory_space<vmem>>, vector<2x8x8x128xbf16>,
    %28 = vector.extract_strided_slice %18 {offsets = [384, 0], sizes = [128, 128], strides = [1, 1]} : vector<512x128xbf16> to vector<128x128xbf16>
    %29 = vector.shape_cast %28 : vector<128x128xbf16> to vector<2x8x8x128xbf16>
    %c6 = arith.constant 6 : index
    %c1_43 = arith.constant 1 : index
    %c1_44 = arith.constant 1 : index
    %c0_45 = arith.constant 0 : index
    %30 = vector.load %arg15[%c6, %c1_43, %c1_44, %c0_45] : memref<8x9x9x128xbf16, #tpu.memory_space<vmem>>, vector<2x8x8x128xbf16>
    tpu.vector_store %arg15[%c6, %c1_43, %c1_44, %c0_45], %29 {strides = array<i32>} : memref<8x9x9x128xbf16, #tpu.memory_space<vmem>>, vector<2x8x8x128xbf16>,
    %c6_46 = arith.constant 6 : index
    %c0_47 = arith.constant 0 : index
    %c0_48 = arith.constant 0 : index
    %c0_49 = arith.constant 0 : index
    %31 = vector.load %arg15[%c6_46, %c0_47, %c0_48, %c0_49] : memref<8x9x9x128xbf16, #tpu.memory_space<vmem>>, vector<2x8x8x128xbf16>
    %32 = vector.shape_cast %31 : vector<2x8x8x128xbf16> to vector<128x128xbf16>
    %c4_50 = arith.constant 4 : index
    %c0_51 = arith.constant 0 : index
    %c1_52 = arith.constant 1 : index
    %c0_53 = arith.constant 0 : index
    %33 = vector.load %arg15[%c4_50, %c0_51, %c1_52, %c0_53] : memref<8x9x9x128xbf16, #tpu.memory_space<vmem>>, vector<2x8x8x128xbf16>
    %34 = vector.shape_cast %33 : vector<2x8x8x128xbf16> to vector<128x128xbf16>
    %c6_54 = arith.constant 6 : index
    %c0_55 = arith.constant 0 : index
    %c1_56 = arith.constant 1 : index
    %c0_57 = arith.constant 0 : index
    %35 = vector.load %arg15[%c6_54, %c0_55, %c1_56, %c0_57] : memref<8x9x9x128xbf16, #tpu.memory_space<vmem>>, vector<2x8x8x128xbf16>
    %36 = vector.shape_cast %35 : vector<2x8x8x128xbf16> to vector<128x128xbf16>
    %c2_58 = arith.constant 2 : index
    %c1_59 = arith.constant 1 : index
    %c0_60 = arith.constant 0 : index
    %c0_61 = arith.constant 0 : index
    %37 = vector.load %arg15[%c2_58, %c1_59, %c0_60, %c0_61] : memref<8x9x9x128xbf16, #tpu.memory_space<vmem>>, vector<2x8x8x128xbf16>
    %38 = vector.shape_cast %37 : vector<2x8x8x128xbf16> to vector<128x128xbf16>
    %c0_62 = arith.constant 0 : index
    %c1_63 = arith.constant 1 : index
    %c1_64 = arith.constant 1 : index
    %c0_65 = arith.constant 0 : index
    %39 = vector.load %arg15[%c0_62, %c1_63, %c1_64, %c0_65] : memref<8x9x9x128xbf16, #tpu.memory_space<vmem>>, vector<2x8x8x128xbf16>
    %40 = vector.shape_cast %39 : vector<2x8x8x128xbf16> to vector<128x128xbf16>
    %c2_66 = arith.constant 2 : index
    %c1_67 = arith.constant 1 : index
    %c1_68 = arith.constant 1 : index
    %c0_69 = arith.constant 0 : index
    %41 = vector.load %arg15[%c2_66, %c1_67, %c1_68, %c0_69] : memref<8x9x9x128xbf16, #tpu.memory_space<vmem>>, vector<2x8x8x128xbf16>
    %42 = vector.shape_cast %41 : vector<2x8x8x128xbf16> to vector<128x128xbf16>
    %c6_70 = arith.constant 6 : index
    %c1_71 = arith.constant 1 : index
    %c0_72 = arith.constant 0 : index
    %c0_73 = arith.constant 0 : index
    %43 = vector.load %arg15[%c6_70, %c1_71, %c0_72, %c0_73] : memref<8x9x9x128xbf16, #tpu.memory_space<vmem>>, vector<2x8x8x128xbf16>
    %44 = vector.shape_cast %43 : vector<2x8x8x128xbf16> to vector<128x128xbf16>
    %c4_74 = arith.constant 4 : index
    %c1_75 = arith.constant 1 : index
    %c1_76 = arith.constant 1 : index
    %c0_77 = arith.constant 0 : index
    %45 = vector.load %arg15[%c4_74, %c1_75, %c1_76, %c0_77] : memref<8x9x9x128xbf16, #tpu.memory_space<vmem>>, vector<2x8x8x128xbf16>
    %46 = vector.shape_cast %45 : vector<2x8x8x128xbf16> to vector<128x128xbf16>
    %c6_78 = arith.constant 6 : index
    %c1_79 = arith.constant 1 : index
    %c1_80 = arith.constant 1 : index
    %c0_81 = arith.constant 0 : index
    %47 = vector.load %arg15[%c6_78, %c1_79, %c1_80, %c0_81] : memref<8x9x9x128xbf16, #tpu.memory_space<vmem>>, vector<2x8x8x128xbf16>
    %48 = vector.shape_cast %47 : vector<2x8x8x128xbf16> to vector<128x128xbf16>
    %49 = tpu.concatenate %32, %34, %36, %38, %40, %42, %44, %46, %48 in 1 : vector<128x128xbf16>, vector<128x128xbf16>, vector<128x128xbf16>, vector<128x128xbf16>, vector<128x128xbf16>, vector<128x128xbf16>, vector<128x128xbf16>, vector<128x128xbf16>, vector<128x128xbf16> -> vector<128x1152xbf16>
    %c0_82 = arith.constant 0 : index
    %c0_83 = arith.constant 0 : index
    %50 = vector.load %arg3[%c0_82, %c0_83] : memref<1152x128xbf16, #tpu.memory_space<vmem>>, vector<1152x128xbf16>
    %cst_84 = arith.constant dense<0.000000e+00> : vector<128x128xf32>
    %51 = tpu.matmul %49, %50, %cst_84 {dimension_numbers = #tpu.dot_dimension_numbers<[1], [0], [0], [1], [0, 0, 1, 1], [], []>} : vector<128x1152xbf16>, vector<1152x128xbf16>, vector<128x128xf32> -> vector<128x128xf32>
    %c0_85 = arith.constant 0 : index
    %c0_86 = arith.constant 0 : index
    %52 = vector.load %arg4[%c0_85, %c0_86] : memref<1x128xf32, #tpu.memory_space<vmem>>, vector<1x128xf32>
    %c0_87 = arith.constant 0 : index
    %c0_88 = arith.constant 0 : index
    %53 = vector.load %arg5[%c0_87, %c0_88] : memref<1x128xf32, #tpu.memory_space<vmem>>, vector<1x128xf32>
    %cst_89 = arith.constant dense<0.000000e+00> : vector<128xf32>
    %54 = vector.multi_reduction <add>, %51, %cst_89 [0] : vector<128x128xf32> to vector<128xf32>
    %55 = vector.shape_cast %54 : vector<128xf32> to vector<1x128xf32>
    %cst_90 = arith.constant 7.812500e-03 : f32
    %56 = vector.broadcast %cst_90 : f32 to vector<1x128xf32>
    %57 = arith.mulf %55, %56 : vector<1x128xf32>
    %58 = vector.broadcast %57 : vector<1x128xf32> to vector<128x128xf32>
    %59 = arith.subf %51, %58 : vector<128x128xf32>
    %60 = arith.mulf %59, %59 : vector<128x128xf32>
    %cst_91 = arith.constant dense<0.000000e+00> : vector<128xf32>
    %61 = vector.multi_reduction <add>, %60, %cst_91 [0] : vector<128x128xf32> to vector<128xf32>
    %62 = vector.shape_cast %61 : vector<128xf32> to vector<1x128xf32>
    %cst_92 = arith.constant 7.812500e-03 : f32
    %63 = vector.broadcast %cst_92 : f32 to vector<1x128xf32>
    %64 = arith.mulf %62, %63 : vector<1x128xf32>
    %cst_93 = arith.constant 9.99999974E-6 : f32
    %65 = vector.broadcast %cst_93 : f32 to vector<1x128xf32>
    %66 = arith.addf %64, %65 : vector<1x128xf32>
    %67 = math.rsqrt %66 : vector<1x128xf32>
    %68 = vector.broadcast %67 : vector<1x128xf32> to vector<128x128xf32>
    %69 = arith.mulf %59, %68 : vector<128x128xf32>
    %70 = vector.broadcast %52 : vector<1x128xf32> to vector<128x128xf32>
    %71 = arith.mulf %69, %70 : vector<128x128xf32>
    %72 = vector.broadcast %53 : vector<1x128xf32> to vector<128x128xf32>
    %73 = arith.addf %71, %72 : vector<128x128xf32>
    %cst_94 = arith.constant 0.000000e+00 : f32
    %74 = vector.broadcast %cst_94 : f32 to vector<128x128xf32>
    %75 = arith.cmpf ogt, %73, %74 : vector<128x128xf32>
    %cst_95 = arith.constant 0.00999999977 : f32
    %76 = vector.broadcast %cst_95 : f32 to vector<128x128xf32>
    %77 = arith.mulf %76, %73 : vector<128x128xf32>
    %78 = arith.select %75, %73, %77 : vector<128x128xi1>, vector<128x128xf32>
    %79 = arith.truncf %78 : vector<128x128xf32> to vector<128x128xbf16>
    %80 = vector.shape_cast %79 : vector<128x128xbf16> to vector<2x8x8x128xbf16>
    %c0_96 = arith.constant 0 : index
    %c1_97 = arith.constant 1 : index
    %c1_98 = arith.constant 1 : index
    %c0_99 = arith.constant 0 : index
    %81 = vector.load %arg16[%c0_96, %c1_97, %c1_98, %c0_99] : memref<2x10x10x128xbf16, #tpu.memory_space<vmem>>, vector<2x8x8x128xbf16>
    tpu.vector_store %arg16[%c0_96, %c1_97, %c1_98, %c0_99], %80 {strides = array<i32>} : memref<2x10x10x128xbf16, #tpu.memory_space<vmem>>, vector<2x8x8x128xbf16>,
    %c0_100 = arith.constant 0 : index
    %c0_101 = arith.constant 0 : index
    %c0_102 = arith.constant 0 : index
    %c0_103 = arith.constant 0 : index
    %82 = vector.load %arg16[%c0_100, %c0_101, %c0_102, %c0_103] : memref<2x10x10x128xbf16, #tpu.memory_space<vmem>>, vector<2x8x8x128xbf16>
    %83 = vector.shape_cast %82 : vector<2x8x8x128xbf16> to vector<128x128xbf16>
    %c0_104 = arith.constant 0 : index
    %c0_105 = arith.constant 0 : index
    %c1_106 = arith.constant 1 : index
    %c0_107 = arith.constant 0 : index
    %84 = vector.load %arg16[%c0_104, %c0_105, %c1_106, %c0_107] : memref<2x10x10x128xbf16, #tpu.memory_space<vmem>>, vector<2x8x8x128xbf16>
    %85 = vector.shape_cast %84 : vector<2x8x8x128xbf16> to vector<128x128xbf16>
    %c0_108 = arith.constant 0 : index
    %c0_109 = arith.constant 0 : index
    %c2_110 = arith.constant 2 : index
    %c0_111 = arith.constant 0 : index
    %86 = vector.load %arg16[%c0_108, %c0_109, %c2_110, %c0_111] : memref<2x10x10x128xbf16, #tpu.memory_space<vmem>>, vector<2x8x8x128xbf16>
    %87 = vector.shape_cast %86 : vector<2x8x8x128xbf16> to vector<128x128xbf16>
    %c0_112 = arith.constant 0 : index
    %c1_113 = arith.constant 1 : index
    %c0_114 = arith.constant 0 : index
    %c0_115 = arith.constant 0 : index
    %88 = vector.load %arg16[%c0_112, %c1_113, %c0_114, %c0_115] : memref<2x10x10x128xbf16, #tpu.memory_space<vmem>>, vector<2x8x8x128xbf16>
    %89 = vector.shape_cast %88 : vector<2x8x8x128xbf16> to vector<128x128xbf16>
    %c0_116 = arith.constant 0 : index
    %c1_117 = arith.constant 1 : index
    %c1_118 = arith.constant 1 : index
    %c0_119 = arith.constant 0 : index
    %90 = vector.load %arg16[%c0_116, %c1_117, %c1_118, %c0_119] : memref<2x10x10x128xbf16, #tpu.memory_space<vmem>>, vector<2x8x8x128xbf16>
    %91 = vector.shape_cast %90 : vector<2x8x8x128xbf16> to vector<128x128xbf16>
    %c0_120 = arith.constant 0 : index
    %c1_121 = arith.constant 1 : index
    %c2_122 = arith.constant 2 : index
    %c0_123 = arith.constant 0 : index
    %92 = vector.load %arg16[%c0_120, %c1_121, %c2_122, %c0_123] : memref<2x10x10x128xbf16, #tpu.memory_space<vmem>>, vector<2x8x8x128xbf16>
    %93 = vector.shape_cast %92 : vector<2x8x8x128xbf16> to vector<128x128xbf16>
    %c0_124 = arith.constant 0 : index
    %c2_125 = arith.constant 2 : index
    %c0_126 = arith.constant 0 : index
    %c0_127 = arith.constant 0 : index
    %94 = vector.load %arg16[%c0_124, %c2_125, %c0_126, %c0_127] : memref<2x10x10x128xbf16, #tpu.memory_space<vmem>>, vector<2x8x8x128xbf16>
    %95 = vector.shape_cast %94 : vector<2x8x8x128xbf16> to vector<128x128xbf16>
    %c0_128 = arith.constant 0 : index
    %c2_129 = arith.constant 2 : index
    %c1_130 = arith.constant 1 : index
    %c0_131 = arith.constant 0 : index
    %96 = vector.load %arg16[%c0_128, %c2_129, %c1_130, %c0_131] : memref<2x10x10x128xbf16, #tpu.memory_space<vmem>>, vector<2x8x8x128xbf16>
    %97 = vector.shape_cast %96 : vector<2x8x8x128xbf16> to vector<128x128xbf16>
    %c0_132 = arith.constant 0 : index
    %c2_133 = arith.constant 2 : index
    %c2_134 = arith.constant 2 : index
    %c0_135 = arith.constant 0 : index
    %98 = vector.load %arg16[%c0_132, %c2_133, %c2_134, %c0_135] : memref<2x10x10x128xbf16, #tpu.memory_space<vmem>>, vector<2x8x8x128xbf16>
    %99 = vector.shape_cast %98 : vector<2x8x8x128xbf16> to vector<128x128xbf16>
    %100 = tpu.concatenate %83, %85, %87, %89, %91, %93, %95, %97, %99 in 1 : vector<128x128xbf16>, vector<128x128xbf16>, vector<128x128xbf16>, vector<128x128xbf16>, vector<128x128xbf16>, vector<128x128xbf16>, vector<128x128xbf16>, vector<128x128xbf16>, vector<128x128xbf16> -> vector<128x1152xbf16>
    %c0_136 = arith.constant 0 : index
    %c0_137 = arith.constant 0 : index
    %101 = vector.load %arg6[%c0_136, %c0_137] : memref<1152x128xbf16, #tpu.memory_space<vmem>>, vector<1152x128xbf16>
    %cst_138 = arith.constant dense<0.000000e+00> : vector<128x128xf32>
    %102 = tpu.matmul %100, %101, %cst_138 {dimension_numbers = #tpu.dot_dimension_numbers<[1], [0], [0], [1], [0, 0, 1, 1], [], []>} : vector<128x1152xbf16>, vector<1152x128xbf16>, vector<128x128xf32> -> vector<128x128xf32>
    %c0_139 = arith.constant 0 : index
    %c0_140 = arith.constant 0 : index
    %103 = vector.load %arg7[%c0_139, %c0_140] : memref<1x128xf32, #tpu.memory_space<vmem>>, vector<1x128xf32>
    %c0_141 = arith.constant 0 : index
    %c0_142 = arith.constant 0 : index
    %104 = vector.load %arg8[%c0_141, %c0_142] : memref<1x128xf32, #tpu.memory_space<vmem>>, vector<1x128xf32>
    %cst_143 = arith.constant dense<0.000000e+00> : vector<128xf32>
    %105 = vector.multi_reduction <add>, %102, %cst_143 [0] : vector<128x128xf32> to vector<128xf32>
    %106 = vector.shape_cast %105 : vector<128xf32> to vector<1x128xf32>
    %cst_144 = arith.constant 7.812500e-03 : f32
    %107 = vector.broadcast %cst_144 : f32 to vector<1x128xf32>
    %108 = arith.mulf %106, %107 : vector<1x128xf32>
    %109 = vector.broadcast %108 : vector<1x128xf32> to vector<128x128xf32>
    %110 = arith.subf %102, %109 : vector<128x128xf32>
    %111 = arith.mulf %110, %110 : vector<128x128xf32>
    %cst_145 = arith.constant dense<0.000000e+00> : vector<128xf32>
    %112 = vector.multi_reduction <add>, %111, %cst_145 [0] : vector<128x128xf32> to vector<128xf32>
    %113 = vector.shape_cast %112 : vector<128xf32> to vector<1x128xf32>
    %cst_146 = arith.constant 7.812500e-03 : f32
    %114 = vector.broadcast %cst_146 : f32 to vector<1x128xf32>
    %115 = arith.mulf %113, %114 : vector<1x128xf32>
    %cst_147 = arith.constant 9.99999974E-6 : f32
    %116 = vector.broadcast %cst_147 : f32 to vector<1x128xf32>
    %117 = arith.addf %115, %116 : vector<1x128xf32>
    %118 = math.rsqrt %117 : vector<1x128xf32>
    %119 = vector.broadcast %118 : vector<1x128xf32> to vector<128x128xf32>
    %120 = arith.mulf %110, %119 : vector<128x128xf32>
    %121 = vector.broadcast %103 : vector<1x128xf32> to vector<128x128xf32>
    %122 = arith.mulf %120, %121 : vector<128x128xf32>
    %123 = vector.broadcast %104 : vector<1x128xf32> to vector<128x128xf32>
    %124 = arith.addf %122, %123 : vector<128x128xf32>
    %cst_148 = arith.constant 0.000000e+00 : f32
    %125 = vector.broadcast %cst_148 : f32 to vector<128x128xf32>
    %126 = arith.cmpf ogt, %124, %125 : vector<128x128xf32>
    %cst_149 = arith.constant 0.00999999977 : f32
    %127 = vector.broadcast %cst_149 : f32 to vector<128x128xf32>
    %128 = arith.mulf %127, %124 : vector<128x128xf32>
    %129 = arith.select %126, %124, %128 : vector<128x128xi1>, vector<128x128xf32>
    %130 = arith.addf %78, %129 : vector<128x128xf32>
    %131 = arith.truncf %130 : vector<128x128xf32> to vector<128x128xbf16>
    %132 = vector.shape_cast %131 : vector<128x128xbf16> to vector<2x8x8x128xbf16>
    %c0_150 = arith.constant 0 : index
    %c1_151 = arith.constant 1 : index
    %c1_152 = arith.constant 1 : index
    %c0_153 = arith.constant 0 : index
    %133 = vector.load %arg16[%c0_150, %c1_151, %c1_152, %c0_153] : memref<2x10x10x128xbf16, #tpu.memory_space<vmem>>, vector<2x8x8x128xbf16>
    tpu.vector_store %arg16[%c0_150, %c1_151, %c1_152, %c0_153], %132 {strides = array<i32>} : memref<2x10x10x128xbf16, #tpu.memory_space<vmem>>, vector<2x8x8x128xbf16>,
    %c0_154 = arith.constant 0 : index
    %c0_155 = arith.constant 0 : index
    %c0_156 = arith.constant 0 : index
    %c0_157 = arith.constant 0 : index
    %134 = vector.load %arg16[%c0_154, %c0_155, %c0_156, %c0_157] : memref<2x10x10x128xbf16, #tpu.memory_space<vmem>>, vector<2x8x8x128xbf16>
    %135 = vector.shape_cast %134 : vector<2x8x8x128xbf16> to vector<128x128xbf16>
    %c0_158 = arith.constant 0 : index
    %c0_159 = arith.constant 0 : index
    %c1_160 = arith.constant 1 : index
    %c0_161 = arith.constant 0 : index
    %136 = vector.load %arg16[%c0_158, %c0_159, %c1_160, %c0_161] : memref<2x10x10x128xbf16, #tpu.memory_space<vmem>>, vector<2x8x8x128xbf16>
    %137 = vector.shape_cast %136 : vector<2x8x8x128xbf16> to vector<128x128xbf16>
    %c0_162 = arith.constant 0 : index
    %c0_163 = arith.constant 0 : index
    %c2_164 = arith.constant 2 : index
    %c0_165 = arith.constant 0 : index
    %138 = vector.load %arg16[%c0_162, %c0_163, %c2_164, %c0_165] : memref<2x10x10x128xbf16, #tpu.memory_space<vmem>>, vector<2x8x8x128xbf16>
    %139 = vector.shape_cast %138 : vector<2x8x8x128xbf16> to vector<128x128xbf16>
    %c0_166 = arith.constant 0 : index
    %c1_167 = arith.constant 1 : index
    %c0_168 = arith.constant 0 : index
    %c0_169 = arith.constant 0 : index
    %140 = vector.load %arg16[%c0_166, %c1_167, %c0_168, %c0_169] : memref<2x10x10x128xbf16, #tpu.memory_space<vmem>>, vector<2x8x8x128xbf16>
    %141 = vector.shape_cast %140 : vector<2x8x8x128xbf16> to vector<128x128xbf16>
    %c0_170 = arith.constant 0 : index
    %c1_171 = arith.constant 1 : index
    %c1_172 = arith.constant 1 : index
    %c0_173 = arith.constant 0 : index
    %142 = vector.load %arg16[%c0_170, %c1_171, %c1_172, %c0_173] : memref<2x10x10x128xbf16, #tpu.memory_space<vmem>>, vector<2x8x8x128xbf16>
    %143 = vector.shape_cast %142 : vector<2x8x8x128xbf16> to vector<128x128xbf16>
    %c0_174 = arith.constant 0 : index
    %c1_175 = arith.constant 1 : index
    %c2_176 = arith.constant 2 : index
    %c0_177 = arith.constant 0 : index
    %144 = vector.load %arg16[%c0_174, %c1_175, %c2_176, %c0_177] : memref<2x10x10x128xbf16, #tpu.memory_space<vmem>>, vector<2x8x8x128xbf16>
    %145 = vector.shape_cast %144 : vector<2x8x8x128xbf16> to vector<128x128xbf16>
    %c0_178 = arith.constant 0 : index
    %c2_179 = arith.constant 2 : index
    %c0_180 = arith.constant 0 : index
    %c0_181 = arith.constant 0 : index
    %146 = vector.load %arg16[%c0_178, %c2_179, %c0_180, %c0_181] : memref<2x10x10x128xbf16, #tpu.memory_space<vmem>>, vector<2x8x8x128xbf16>
    %147 = vector.shape_cast %146 : vector<2x8x8x128xbf16> to vector<128x128xbf16>
    %c0_182 = arith.constant 0 : index
    %c2_183 = arith.constant 2 : index
    %c1_184 = arith.constant 1 : index
    %c0_185 = arith.constant 0 : index
    %148 = vector.load %arg16[%c0_182, %c2_183, %c1_184, %c0_185] : memref<2x10x10x128xbf16, #tpu.memory_space<vmem>>, vector<2x8x8x128xbf16>
    %149 = vector.shape_cast %148 : vector<2x8x8x128xbf16> to vector<128x128xbf16>
    %c0_186 = arith.constant 0 : index
    %c2_187 = arith.constant 2 : index
    %c2_188 = arith.constant 2 : index
    %c0_189 = arith.constant 0 : index
    %150 = vector.load %arg16[%c0_186, %c2_187, %c2_188, %c0_189] : memref<2x10x10x128xbf16, #tpu.memory_space<vmem>>, vector<2x8x8x128xbf16>
    %151 = vector.shape_cast %150 : vector<2x8x8x128xbf16> to vector<128x128xbf16>
    %152 = tpu.concatenate %135, %137, %139, %141, %143, %145, %147, %149, %151 in 1 : vector<128x128xbf16>, vector<128x128xbf16>, vector<128x128xbf16>, vector<128x128xbf16>, vector<128x128xbf16>, vector<128x128xbf16>, vector<128x128xbf16>, vector<128x128xbf16>, vector<128x128xbf16> -> vector<128x1152xbf16>
    %c0_190 = arith.constant 0 : index
    %c0_191 = arith.constant 0 : index
    %153 = vector.load %arg9[%c0_190, %c0_191] : memref<1152x128xbf16, #tpu.memory_space<vmem>>, vector<1152x128xbf16>
    %cst_192 = arith.constant dense<0.000000e+00> : vector<128x128xf32>
    %154 = tpu.matmul %152, %153, %cst_192 {dimension_numbers = #tpu.dot_dimension_numbers<[1], [0], [0], [1], [0, 0, 1, 1], [], []>} : vector<128x1152xbf16>, vector<1152x128xbf16>, vector<128x128xf32> -> vector<128x128xf32>
    %c0_193 = arith.constant 0 : index
    %c0_194 = arith.constant 0 : index
    %155 = vector.load %arg10[%c0_193, %c0_194] : memref<1x128xf32, #tpu.memory_space<vmem>>, vector<1x128xf32>
    %c0_195 = arith.constant 0 : index
    %c0_196 = arith.constant 0 : index
    %156 = vector.load %arg11[%c0_195, %c0_196] : memref<1x128xf32, #tpu.memory_space<vmem>>, vector<1x128xf32>
    %cst_197 = arith.constant dense<0.000000e+00> : vector<128xf32>
    %157 = vector.multi_reduction <add>, %154, %cst_197 [0] : vector<128x128xf32> to vector<128xf32>
    %158 = vector.shape_cast %157 : vector<128xf32> to vector<1x128xf32>
    %cst_198 = arith.constant 7.812500e-03 : f32
    %159 = vector.broadcast %cst_198 : f32 to vector<1x128xf32>
    %160 = arith.mulf %158, %159 : vector<1x128xf32>
    %161 = vector.broadcast %160 : vector<1x128xf32> to vector<128x128xf32>
    %162 = arith.subf %154, %161 : vector<128x128xf32>
    %163 = arith.mulf %162, %162 : vector<128x128xf32>
    %cst_199 = arith.constant dense<0.000000e+00> : vector<128xf32>
    %164 = vector.multi_reduction <add>, %163, %cst_199 [0] : vector<128x128xf32> to vector<128xf32>
    %165 = vector.shape_cast %164 : vector<128xf32> to vector<1x128xf32>
    %cst_200 = arith.constant 7.812500e-03 : f32
    %166 = vector.broadcast %cst_200 : f32 to vector<1x128xf32>
    %167 = arith.mulf %165, %166 : vector<1x128xf32>
    %cst_201 = arith.constant 9.99999974E-6 : f32
    %168 = vector.broadcast %cst_201 : f32 to vector<1x128xf32>
    %169 = arith.addf %167, %168 : vector<1x128xf32>
    %170 = math.rsqrt %169 : vector<1x128xf32>
    %171 = vector.broadcast %170 : vector<1x128xf32> to vector<128x128xf32>
    %172 = arith.mulf %162, %171 : vector<128x128xf32>
    %173 = vector.broadcast %155 : vector<1x128xf32> to vector<128x128xf32>
    %174 = arith.mulf %172, %173 : vector<128x128xf32>
    %175 = vector.broadcast %156 : vector<1x128xf32> to vector<128x128xf32>
    %176 = arith.addf %174, %175 : vector<128x128xf32>
    %cst_202 = arith.constant 0.000000e+00 : f32
    %177 = vector.broadcast %cst_202 : f32 to vector<128x128xf32>
    %178 = arith.cmpf ogt, %176, %177 : vector<128x128xf32>
    %cst_203 = arith.constant 0.00999999977 : f32
    %179 = vector.broadcast %cst_203 : f32 to vector<128x128xf32>
    %180 = arith.mulf %179, %176 : vector<128x128xf32>
    %181 = arith.select %178, %176, %180 : vector<128x128xi1>, vector<128x128xf32>
    %182 = arith.addf %130, %181 : vector<128x128xf32>
    %183 = vector.shape_cast %182 : vector<128x128xf32> to vector<2x64x128xf32>
    %cst_204 = arith.constant dense<0xFF800000> : vector<2x128xf32>
    %184 = vector.multi_reduction <maximumf>, %183, %cst_204 [1] : vector<2x64x128xf32> to vector<2x128xf32>
    %185 = arith.truncf %184 : vector<2x128xf32> to vector<2x128xbf16>
    %c0_205 = arith.constant 0 : index
    %c0_206 = arith.constant 0 : index
    %186 = vector.load %arg12[%c0_205, %c0_206] : memref<128x128xbf16, #tpu.memory_space<vmem>>, vector<128x128xbf16>
    %cst_207 = arith.constant dense<0.000000e+00> : vector<2x128xf32>
    %187 = tpu.matmul %185, %186, %cst_207 {dimension_numbers = #tpu.dot_dimension_numbers<[1], [0], [0], [1], [0, 0, 1, 1], [], []>} : vector<2x128xbf16>, vector<128x128xbf16>, vector<2x128xf32> -> vector<2x128xf32>
    %c0_208 = arith.constant 0 : index
    %c0_209 = arith.constant 0 : index
    %188 = vector.load %arg13[%c0_208, %c0_209] : memref<1x128xf32, #tpu.memory_space<vmem>>, vector<1x128xf32>
    %189 = vector.broadcast %188 : vector<1x128xf32> to vector<2x128xf32>
    %190 = arith.addf %187, %189 : vector<2x128xf32>
    %191 = tpu.iota {dimensions = array<i32: 1>} : vector<2x128xi32>
    %c5_i32 = arith.constant 5 : i32
    %192 = vector.broadcast %c5_i32 : i32 to vector<2x128xi32>
    %193 = arith.cmpi slt, %191, %192 : vector<2x128xi32>
    %cst_210 = arith.constant -1.000000e+30 : f32
    %194 = vector.broadcast %cst_210 : f32 to vector<2x128xf32>
    %195 = arith.select %193, %190, %194 : vector<2x128xi1>, vector<2x128xf32>
    %cst_211 = arith.constant dense<0xFF800000> : vector<2xf32>
    %196 = vector.multi_reduction <maximumf>, %195, %cst_211 [1] : vector<2x128xf32> to vector<2xf32>
    %197 = vector.shape_cast %196 : vector<2xf32> to vector<2x1xf32>
    %198 = vector.broadcast %197 : vector<2x1xf32> to vector<2x128xf32>
    %199 = arith.subf %195, %198 : vector<2x128xf32>
    %200 = math.exp %199 : vector<2x128xf32>
    %cst_212 = arith.constant 0.000000e+00 : f32
    %201 = vector.broadcast %cst_212 : f32 to vector<2x128xf32>
    %202 = arith.select %193, %200, %201 : vector<2x128xi1>, vector<2x128xf32>
    %cst_213 = arith.constant dense<0.000000e+00> : vector<2xf32>
    %203 = vector.multi_reduction <add>, %202, %cst_213 [1] : vector<2x128xf32> to vector<2xf32>
    %204 = vector.shape_cast %203 : vector<2xf32> to vector<2x1xf32>
    %205 = math.log %204 : vector<2x1xf32>
    %206 = arith.addf %205, %197 : vector<2x1xf32>
    %207 = vector.broadcast %206 : vector<2x1xf32> to vector<2x128xf32>
    %208 = arith.subf %195, %207 : vector<2x128xf32>
    %cst_214 = arith.constant 0.000000e+00 : f32
    %209 = vector.broadcast %cst_214 : f32 to vector<2x128xf32>
    %210 = arith.select %193, %208, %209 : vector<2x128xi1>, vector<2x128xf32>
    %c0_215 = arith.constant 0 : index
    %c0_216 = arith.constant 0 : index
    %211 = vector.load %arg14[%c0_215, %c0_216] : memref<2x128xf32, #tpu.memory_space<vmem>>, vector<2x128xf32>
    tpu.vector_store %arg14[%c0_215, %c0_216], %210 {strides = array<i32>} : memref<2x128xf32, #tpu.memory_space<vmem>>, vector<2x128xf32>,
    return
  }
}

</mosaic_0001>

<llo_original>
// kernel: simple_resnet_forward.1
$region0: #{simple_resnet_forward.1}
  #allocation0 [shape = 'u32[]', space=smem, size = 0x4, offset = 0x4, fixed_abs, tag = 'smem constant byte address 0x4 - core index']
  #allocation1 [shape = 'u32[144,128]{1,0:T(1,128)}', space=vmem, size = 0x12000, scoped, tag = 'internal scratch']
  #allocation2 [shape = 'bf16[8,9,9,128]{3,2,1,0:T(8,128)(2,1)}', space=vmem, size = 0x48000, scoped, tag = 'scratch operand']
  #allocation3 [shape = 'bf16[2,10,10,128]{3,2,1,0:T(8,128)(2,1)}', space=vmem, size = 0x14000, scoped, tag = 'scratch operand']
  %s0 = inlined_call_operand.vmem [shape: bf16[512,128], index: 0, kind: input, shape index: {}]
  %s1 = inlined_call_operand.vmem [shape: bf16[128,128], index: 1, kind: input, shape index: {}]
  %s2 = inlined_call_operand.vmem [shape: f32[1,128], index: 2, kind: input, shape index: {}]
  %s3 = inlined_call_operand.vmem [shape: bf16[1152,128], index: 3, kind: input, shape index: {}]
  %s4 = inlined_call_operand.vmem [shape: f32[1,128], index: 4, kind: input, shape index: {}]
  %s5 = inlined_call_operand.vmem [shape: f32[1,128], index: 5, kind: input, shape index: {}]
  %s6 = inlined_call_operand.vmem [shape: bf16[1152,128], index: 6, kind: input, shape index: {}]
  %s7 = inlined_call_operand.vmem [shape: f32[1,128], index: 7, kind: input, shape index: {}]
  %s8 = inlined_call_operand.vmem [shape: f32[1,128], index: 8, kind: input, shape index: {}]
  %s9 = inlined_call_operand.vmem [shape: bf16[1152,128], index: 9, kind: input, shape index: {}]
  %s10 = inlined_call_operand.vmem [shape: f32[1,128], index: 10, kind: input, shape index: {}]
  %s11 = inlined_call_operand.vmem [shape: f32[1,128], index: 11, kind: input, shape index: {}]
  %s12 = inlined_call_operand.vmem [shape: bf16[128,128], index: 12, kind: input, shape index: {}]
  %s13 = inlined_call_operand.vmem [shape: f32[1,128], index: 13, kind: input, shape index: {}]
  %s14 = inlined_call_operand.hbm [shape: f32[2,128], index: 14, kind: output, shape index: {}]
  %s15 = sld [smem:[#allocation0]]
  $region66: #{simple_resnet_forward.1} parent=0
    _
  %s17 = ssub.s32 1, %s15
  %s18 = scalar_select 0, %s17, %s15
  $region1: #{simple_resnet_forward.1} parent=0
    #allocation4 [shape = 'u8[1024]{0}', space=vmem, size = 0x400, scoped, tag = 'output window, operand 0, single buffered']
    #allocation5 [shape = 's32[1]{0}', space=sflag, size = 0x4, scoped, tag = 'scoped memory for simple_resnet_forward.1']
    %19 = vsyncpa [#allocation5], 0
    // Predicated region
    $region2: #{simple_resnet_forward.1} parent=1 // pred_check
      _
    $region3: #{simple_resnet_forward.1} parent=1 // pred_check_branch
      %21 = sbr.rel (0) target = $region5
    $region4: #{simple_resnet_forward.1} parent=1 // pred_region
      _
    $region5: #{simple_resnet_forward.1} parent=1 // pred_fallthru
      _
    // Predicated region
    $region6: #{simple_resnet_forward.1} parent=1 // pred_check
      _
    $region7: #{simple_resnet_forward.1} parent=1 // pred_check_branch
      %23 = sbr.rel (0) target = $region9
    $region8: #{simple_resnet_forward.1} parent=1 // pred_region
      _
    $region9: #{simple_resnet_forward.1} parent=1 // pred_fallthru
      _
    // Predicated region
    $region10: #{simple_resnet_forward.1} parent=1 // pred_check
      _
    $region11: #{simple_resnet_forward.1} parent=1 // pred_check_branch
      %25 = sbr.rel (0) target = $region13
    $region12: #{simple_resnet_forward.1} parent=1 // pred_region
      _
    $region13: #{simple_resnet_forward.1} parent=1 // pred_fallthru
      _
    // Predicated region
    $region14: #{simple_resnet_forward.1} parent=1 // pred_check
      _
    $region15: #{simple_resnet_forward.1} parent=1 // pred_check_branch
      %27 = sbr.rel (0) target = $region17
    $region16: #{simple_resnet_forward.1} parent=1 // pred_region
      _
    $region17: #{simple_resnet_forward.1} parent=1 // pred_fallthru
      _
    // Predicated region
    $region18: #{simple_resnet_forward.1} parent=1 // pred_check
      _
    $region19: #{simple_resnet_forward.1} parent=1 // pred_check_branch
      %29 = sbr.rel (0) target = $region21
    $region20: #{simple_resnet_forward.1} parent=1 // pred_region
      _
    $region21: #{simple_resnet_forward.1} parent=1 // pred_fallthru
      _
    // Predicated region
    $region22: #{simple_resnet_forward.1} parent=1 // pred_check
      _
    $region23: #{simple_resnet_forward.1} parent=1 // pred_check_branch
      %31 = sbr.rel (0) target = $region25
    $region24: #{simple_resnet_forward.1} parent=1 // pred_region
      _
    $region25: #{simple_resnet_forward.1} parent=1 // pred_fallthru
      _
    // Predicated region
    $region26: #{simple_resnet_forward.1} parent=1 // pred_check
      _
    $region27: #{simple_resnet_forward.1} parent=1 // pred_check_branch
      %33 = sbr.rel (0) target = $region29
    $region28: #{simple_resnet_forward.1} parent=1 // pred_region
      _
    $region29: #{simple_resnet_forward.1} parent=1 // pred_fallthru
      _
    // Predicated region
    $region30: #{simple_resnet_forward.1} parent=1 // pred_check
      _
    $region31: #{simple_resnet_forward.1} parent=1 // pred_check_branch
      %35 = sbr.rel (0) target = $region33
    $region32: #{simple_resnet_forward.1} parent=1 // pred_region
      _
    $region33: #{simple_resnet_forward.1} parent=1 // pred_fallthru
      _
    // Predicated region
    $region34: #{simple_resnet_forward.1} parent=1 // pred_check
      _
    $region35: #{simple_resnet_forward.1} parent=1 // pred_check_branch
      %37 = sbr.rel (0) target = $region37
    $region36: #{simple_resnet_forward.1} parent=1 // pred_region
      _
    $region37: #{simple_resnet_forward.1} parent=1 // pred_fallthru
      _
    // Predicated region
    $region38: #{simple_resnet_forward.1} parent=1 // pred_check
      _
    $region39: #{simple_resnet_forward.1} parent=1 // pred_check_branch
      %39 = sbr.rel (0) target = $region41
    $region40: #{simple_resnet_forward.1} parent=1 // pred_region
      _
    $region41: #{simple_resnet_forward.1} parent=1 // pred_fallthru
      _
    // Predicated region
    $region42: #{simple_resnet_forward.1} parent=1 // pred_check
      _
    $region43: #{simple_resnet_forward.1} parent=1 // pred_check_branch
      %41 = sbr.rel (0) target = $region45
    $region44: #{simple_resnet_forward.1} parent=1 // pred_region
      _
    $region45: #{simple_resnet_forward.1} parent=1 // pred_fallthru
      _
    // Predicated region
    $region46: #{simple_resnet_forward.1} parent=1 // pred_check
      _
    $region47: #{simple_resnet_forward.1} parent=1 // pred_check_branch
      %43 = sbr.rel (0) target = $region49
    $region48: #{simple_resnet_forward.1} parent=1 // pred_region
      _
    $region49: #{simple_resnet_forward.1} parent=1 // pred_fallthru
      _
    // Predicated region
    $region50: #{simple_resnet_forward.1} parent=1 // pred_check
      _
    $region51: #{simple_resnet_forward.1} parent=1 // pred_check_branch
      %45 = sbr.rel (0) target = $region53
    $region52: #{simple_resnet_forward.1} parent=1 // pred_region
      _
    $region53: #{simple_resnet_forward.1} parent=1 // pred_fallthru
      _
    // Predicated region
    $region54: #{simple_resnet_forward.1} parent=1 // pred_check
      _
    $region55: #{simple_resnet_forward.1} parent=1 // pred_check_branch
      %47 = sbr.rel (0) target = $region57
    $region56: #{simple_resnet_forward.1} parent=1 // pred_region
      _
    $region57: #{simple_resnet_forward.1} parent=1 // pred_fallthru
      _
    %49 = vst [vmem:[#allocation2] sm:$0xf] 0
    %vm50 = vcmask 1040384
    %vm51 = vsmask.f32 256
    %vm52 = vmand %vm50, %vm51
    %v53 = vld [vmem:[#allocation2 + $0x4] sm:$0x1]
    %v54 = vsel %vm52, 0, %v53
    %55 = vst [vmem:[#allocation2 + $0x4] sm:$0x1] %v54
    %56 = vst [vmem:[#allocation2 + $0x48] sm:$0xf] 0
    %v57 = vld [vmem:[#allocation2 + $0x4c] sm:$0x1]
    %v58 = vsel %vm52, 0, %v57
    %59 = vst [vmem:[#allocation2 + $0x4c] sm:$0x1] %v58
    %60 = vst [vmem:[#allocation2 + $0x90] sm:$0xf] 0
    %v61 = vld [vmem:[#allocation2 + $0x94] sm:$0x1]
    %v62 = vsel %vm52, 0, %v61
    %63 = vst [vmem:[#allocation2 + $0x94] sm:$0x1] %v62
    %64 = vst [vmem:[#allocation2 + $0xd8] sm:$0xf] 0
    %v65 = vld [vmem:[#allocation2 + $0xdc] sm:$0x1]
    %v66 = vsel %vm52, 0, %v65
    %67 = vst [vmem:[#allocation2 + $0xdc] sm:$0x1] %v66
    %68 = vst [vmem:[#allocation2 + $0x120] sm:$0xf] 0
    %v69 = vld [vmem:[#allocation2 + $0x124] sm:$0x1]
    %v70 = vsel %vm52, 0, %v69
    %71 = vst [vmem:[#allocation2 + $0x124] sm:$0x1] %v70
    %72 = vst [vmem:[#allocation2 + $0x168] sm:$0xf] 0
    %v73 = vld [vmem:[#allocation2 + $0x16c] sm:$0x1]
    %v74 = vsel %vm52, 0, %v73
    %75 = vst [vmem:[#allocation2 + $0x16c] sm:$0x1] %v74
    %76 = vst [vmem:[#allocation2 + $0x1b0] sm:$0xf] 0
    %v77 = vld [vmem:[#allocation2 + $0x1b4] sm:$0x1]
    %v78 = vsel %vm52, 0, %v77
    %79 = vst [vmem:[#allocation2 + $0x1b4] sm:$0x1] %v78
    %80 = vst [vmem:[#allocation2 + $0x1f8] sm:$0xf] 0
    %v81 = vld [vmem:[#allocation2 + $0x1fc] sm:$0x1]
    %v82 = vsel %vm52, 0, %v81
    %83 = vst [vmem:[#allocation2 + $0x1fc] sm:$0x1] %v82
    %v84 = vld [vmem:[#allocation2] sm:$0x1]
    %v85 = vsel %vm52, 0, %v84
    %86 = vst [vmem:[#allocation2] sm:$0x1] %v85
    %v87 = vld [vmem:[#allocation2 + $0x8] sm:$0x1]
    %v88 = vsel %vm52, 0, %v87
    %89 = vst [vmem:[#allocation2 + $0x8] sm:$0x1] %v88
    %v90 = vld [vmem:[#allocation2 + $0x10] sm:$0x1]
    %v91 = vsel %vm52, 0, %v90
    %92 = vst [vmem:[#allocation2 + $0x10] sm:$0x1] %v91
    %v93 = vld [vmem:[#allocation2 + $0x18] sm:$0x1]
    %v94 = vsel %vm52, 0, %v93
    %95 = vst [vmem:[#allocation2 + $0x18] sm:$0x1] %v94
    %v96 = vld [vmem:[#allocation2 + $0x20] sm:$0x1]
    %v97 = vsel %vm52, 0, %v96
    %98 = vst [vmem:[#allocation2 + $0x20] sm:$0x1] %v97
    %v99 = vld [vmem:[#allocation2 + $0x28] sm:$0x1]
    %v100 = vsel %vm52, 0, %v99
    %101 = vst [vmem:[#allocation2 + $0x28] sm:$0x1] %v100
    %v102 = vld [vmem:[#allocation2 + $0x30] sm:$0x1]
    %v103 = vsel %vm52, 0, %v102
    %104 = vst [vmem:[#allocation2 + $0x30] sm:$0x1] %v103
    %v105 = vld [vmem:[#allocation2 + $0x38] sm:$0x1]
    %v106 = vsel %vm52, 0, %v105
    %107 = vst [vmem:[#allocation2 + $0x38] sm:$0x1] %v106
    %v108 = vld [vmem:[#allocation2 + $0x40] sm:$0x1]
    %v109 = vsel %vm52, 0, %v108
    %110 = vst [vmem:[#allocation2 + $0x40] sm:$0x1] %v109
    %v111 = vld [vmem:[#allocation2 + $0x48] sm:$0x1]
    %v112 = vsel %vm52, 0, %v111
    %113 = vst [vmem:[#allocation2 + $0x48] sm:$0x1] %v112
    %v114 = vld [vmem:[#allocation2 + $0x50] sm:$0x1]
    %v115 = vsel %vm52, 0, %v114
    %116 = vst [vmem:[#allocation2 + $0x50] sm:$0x1] %v115
    %v117 = vld [vmem:[#allocation2 + $0x58] sm:$0x1]
    %v118 = vsel %vm52, 0, %v117
    %119 = vst [vmem:[#allocation2 + $0x58] sm:$0x1] %v118
    %v120 = vld [vmem:[#allocation2 + $0x60] sm:$0x1]
    %v121 = vsel %vm52, 0, %v120
    %122 = vst [vmem:[#allocation2 + $0x60] sm:$0x1] %v121
    %v123 = vld [vmem:[#allocation2 + $0x68] sm:$0x1]
    %v124 = vsel %vm52, 0, %v123
    %125 = vst [vmem:[#allocation2 + $0x68] sm:$0x1] %v124
    %v126 = vld [vmem:[#allocation2 + $0x70] sm:$0x1]
    %v127 = vsel %vm52, 0, %v126
    %128 = vst [vmem:[#allocation2 + $0x70] sm:$0x1] %v127
    %v129 = vld [vmem:[#allocation2 + $0x78] sm:$0x1]
    %v130 = vsel %vm52, 0, %v129
    %131 = vst [vmem:[#allocation2 + $0x78] sm:$0x1] %v130
    %v132 = vld [vmem:[#allocation2 + $0x80] sm:$0x1]
    %v133 = vsel %vm52, 0, %v132
    %134 = vst [vmem:[#allocation2 + $0x80] sm:$0x1] %v133
    %v135 = vld [vmem:[#allocation2 + $0x88] sm:$0x1]
    %v136 = vsel %vm52, 0, %v135
    %137 = vst [vmem:[#allocation2 + $0x88] sm:$0x1] %v136
    %v138 = vld [vmem:[#allocation2 + $0x90] sm:$0x1]
    %v139 = vsel %vm52, 0, %v138
    %140 = vst [vmem:[#allocation2 + $0x90] sm:$0x1] %v139
    %v141 = vld [vmem:[#allocation2 + $0x98] sm:$0x1]
    %v142 = vsel %vm52, 0, %v141
    %143 = vst [vmem:[#allocation2 + $0x98] sm:$0x1] %v142
    %v144 = vld [vmem:[#allocation2 + $0xa0] sm:$0x1]
    %v145 = vsel %vm52, 0, %v144
    %146 = vst [vmem:[#allocation2 + $0xa0] sm:$0x1] %v145
    %v147 = vld [vmem:[#allocation2 + $0xa8] sm:$0x1]
    %v148 = vsel %vm52, 0, %v147
    %149 = vst [vmem:[#allocation2 + $0xa8] sm:$0x1] %v148
    %v150 = vld [vmem:[#allocation2 + $0xb0] sm:$0x1]
    %v151 = vsel %vm52, 0, %v150
    %152 = vst [vmem:[#allocation2 + $0xb0] sm:$0x1] %v151
    %v153 = vld [vmem:[#allocation2 + $0xb8] sm:$0x1]
    %v154 = vsel %vm52, 0, %v153
    %155 = vst [vmem:[#allocation2 + $0xb8] sm:$0x1] %v154
    %v156 = vld [vmem:[#allocation2 + $0xc0] sm:$0x1]
    %v157 = vsel %vm52, 0, %v156
    %158 = vst [vmem:[#allocation2 + $0xc0] sm:$0x1] %v157
    %v159 = vld [vmem:[#allocation2 + $0xc8] sm:$0x1]
    %v160 = vsel %vm52, 0, %v159
    %161 = vst [vmem:[#allocation2 + $0xc8] sm:$0x1] %v160
    %v162 = vld [vmem:[#allocation2 + $0xd0] sm:$0x1]
    %v163 = vsel %vm52, 0, %v162
    %164 = vst [vmem:[#allocation2 + $0xd0] sm:$0x1] %v163
    %v165 = vld [vmem:[#allocation2 + $0xd8] sm:$0x1]
    %v166 = vsel %vm52, 0, %v165
    %167 = vst [vmem:[#allocation2 + $0xd8] sm:$0x1] %v166
    %v168 = vld [vmem:[#allocation2 + $0xe0] sm:$0x1]
    %v169 = vsel %vm52, 0, %v168
    %170 = vst [vmem:[#allocation2 + $0xe0] sm:$0x1] %v169
    %v171 = vld [vmem:[#allocation2 + $0xe8] sm:$0x1]
    %v172 = vsel %vm52, 0, %v171
    %173 = vst [vmem:[#allocation2 + $0xe8] sm:$0x1] %v172
    %v174 = vld [vmem:[#allocation2 + $0xf0] sm:$0x1]
    %v175 = vsel %vm52, 0, %v174
    %176 = vst [vmem:[#allocation2 + $0xf0] sm:$0x1] %v175
    %v177 = vld [vmem:[#allocation2 + $0xf8] sm:$0x1]
    %v178 = vsel %vm52, 0, %v177
    %179 = vst [vmem:[#allocation2 + $0xf8] sm:$0x1] %v178
    %v180 = vld [vmem:[#allocation2 + $0x100] sm:$0x1]
    %v181 = vsel %vm52, 0, %v180
    %182 = vst [vmem:[#allocation2 + $0x100] sm:$0x1] %v181
    %v183 = vld [vmem:[#allocation2 + $0x108] sm:$0x1]
    %v184 = vsel %vm52, 0, %v183
    %185 = vst [vmem:[#allocation2 + $0x108] sm:$0x1] %v184
    %v186 = vld [vmem:[#allocation2 + $0x110] sm:$0x1]
    %v187 = vsel %vm52, 0, %v186
    %188 = vst [vmem:[#allocation2 + $0x110] sm:$0x1] %v187
    %v189 = vld [vmem:[#allocation2 + $0x118] sm:$0x1]
    %v190 = vsel %vm52, 0, %v189
    %191 = vst [vmem:[#allocation2 + $0x118] sm:$0x1] %v190
    %v192 = vld [vmem:[#allocation2 + $0x120] sm:$0x1]
    %v193 = vsel %vm52, 0, %v192
    %194 = vst [vmem:[#allocation2 + $0x120] sm:$0x1] %v193
    %v195 = vld [vmem:[#allocation2 + $0x128] sm:$0x1]
    %v196 = vsel %vm52, 0, %v195
    %197 = vst [vmem:[#allocation2 + $0x128] sm:$0x1] %v196
    %v198 = vld [vmem:[#allocation2 + $0x130] sm:$0x1]
    %v199 = vsel %vm52, 0, %v198
    %200 = vst [vmem:[#allocation2 + $0x130] sm:$0x1] %v199
    %v201 = vld [vmem:[#allocation2 + $0x138] sm:$0x1]
    %v202 = vsel %vm52, 0, %v201
    %203 = vst [vmem:[#allocation2 + $0x138] sm:$0x1] %v202
    %v204 = vld [vmem:[#allocation2 + $0x140] sm:$0x1]
    %v205 = vsel %vm52, 0, %v204
    %206 = vst [vmem:[#allocation2 + $0x140] sm:$0x1] %v205
    %v207 = vld [vmem:[#allocation2 + $0x148] sm:$0x1]
    %v208 = vsel %vm52, 0, %v207
    %209 = vst [vmem:[#allocation2 + $0x148] sm:$0x1] %v208
    %v210 = vld [vmem:[#allocation2 + $0x150] sm:$0x1]
    %v211 = vsel %vm52, 0, %v210
    %212 = vst [vmem:[#allocation2 + $0x150] sm:$0x1] %v211
    %v213 = vld [vmem:[#allocation2 + $0x158] sm:$0x1]
    %v214 = vsel %vm52, 0, %v213
    %215 = vst [vmem:[#allocation2 + $0x158] sm:$0x1] %v214
    %v216 = vld [vmem:[#allocation2 + $0x160] sm:$0x1]
    %v217 = vsel %vm52, 0, %v216
    %218 = vst [vmem:[#allocation2 + $0x160] sm:$0x1] %v217
    %v219 = vld [vmem:[#allocation2 + $0x168] sm:$0x1]
    %v220 = vsel %vm52, 0, %v219
    %221 = vst [vmem:[#allocation2 + $0x168] sm:$0x1] %v220
    %v222 = vld [vmem:[#allocation2 + $0x170] sm:$0x1]
    %v223 = vsel %vm52, 0, %v222
    %224 = vst [vmem:[#allocation2 + $0x170] sm:$0x1] %v223
    %v225 = vld [vmem:[#allocation2 + $0x178] sm:$0x1]
    %v226 = vsel %vm52, 0, %v225
    %227 = vst [vmem:[#allocation2 + $0x178] sm:$0x1] %v226
    %v228 = vld [vmem:[#allocation2 + $0x180] sm:$0x1]
    %v229 = vsel %vm52, 0, %v228
    %230 = vst [vmem:[#allocation2 + $0x180] sm:$0x1] %v229
    %v231 = vld [vmem:[#allocation2 + $0x188] sm:$0x1]
    %v232 = vsel %vm52, 0, %v231
    %233 = vst [vmem:[#allocation2 + $0x188] sm:$0x1] %v232
    %v234 = vld [vmem:[#allocation2 + $0x190] sm:$0x1]
    %v235 = vsel %vm52, 0, %v234
    %236 = vst [vmem:[#allocation2 + $0x190] sm:$0x1] %v235
    %v237 = vld [vmem:[#allocation2 + $0x198] sm:$0x1]
    %v238 = vsel %vm52, 0, %v237
    %239 = vst [vmem:[#allocation2 + $0x198] sm:$0x1] %v238
    %v240 = vld [vmem:[#allocation2 + $0x1a0] sm:$0x1]
    %v241 = vsel %vm52, 0, %v240
    %242 = vst [vmem:[#allocation2 + $0x1a0] sm:$0x1] %v241
    %v243 = vld [vmem:[#allocation2 + $0x1a8] sm:$0x1]
    %v244 = vsel %vm52, 0, %v243
    %245 = vst [vmem:[#allocation2 + $0x1a8] sm:$0x1] %v244
    %v246 = vld [vmem:[#allocation2 + $0x1b0] sm:$0x1]
    %v247 = vsel %vm52, 0, %v246
    %248 = vst [vmem:[#allocation2 + $0x1b0] sm:$0x1] %v247
    %v249 = vld [vmem:[#allocation2 + $0x1b8] sm:$0x1]
    %v250 = vsel %vm52, 0, %v249
    %251 = vst [vmem:[#allocation2 + $0x1b8] sm:$0x1] %v250
    %v252 = vld [vmem:[#allocation2 + $0x1c0] sm:$0x1]
    %v253 = vsel %vm52, 0, %v252
    %254 = vst [vmem:[#allocation2 + $0x1c0] sm:$0x1] %v253
    %v255 = vld [vmem:[#allocation2 + $0x1c8] sm:$0x1]
    %v256 = vsel %vm52, 0, %v255
    %257 = vst [vmem:[#allocation2 + $0x1c8] sm:$0x1] %v256
    %v258 = vld [vmem:[#allocation2 + $0x1d0] sm:$0x1]
    %v259 = vsel %vm52, 0, %v258
    %260 = vst [vmem:[#allocation2 + $0x1d0] sm:$0x1] %v259
    %v261 = vld [vmem:[#allocation2 + $0x1d8] sm:$0x1]
    %v262 = vsel %vm52, 0, %v261
    %263 = vst [vmem:[#allocation2 + $0x1d8] sm:$0x1] %v262
    %v264 = vld [vmem:[#allocation2 + $0x1e0] sm:$0x1]
    %v265 = vsel %vm52, 0, %v264
    %266 = vst [vmem:[#allocation2 + $0x1e0] sm:$0x1] %v265
    %v267 = vld [vmem:[#allocation2 + $0x1e8] sm:$0x1]
    %v268 = vsel %vm52, 0, %v267
    %269 = vst [vmem:[#allocation2 + $0x1e8] sm:$0x1] %v268
    %v270 = vld [vmem:[#allocation2 + $0x1f0] sm:$0x1]
    %v271 = vsel %vm52, 0, %v270
    %272 = vst [vmem:[#allocation2 + $0x1f0] sm:$0x1] %v271
    %v273 = vld [vmem:[#allocation2 + $0x1f8] sm:$0x1]
    %v274 = vsel %vm52, 0, %v273
    %275 = vst [vmem:[#allocation2 + $0x1f8] sm:$0x1] %v274
    %v276 = vld [vmem:[#allocation2 + $0x200] sm:$0x1]
    %v277 = vsel %vm52, 0, %v276
    %278 = vst [vmem:[#allocation2 + $0x200] sm:$0x1] %v277
    %v279 = vld [vmem:[#allocation2 + $0x208] sm:$0x1]
    %v280 = vsel %vm52, 0, %v279
    %281 = vst [vmem:[#allocation2 + $0x208] sm:$0x1] %v280
    %v282 = vld [vmem:[#allocation2 + $0x210] sm:$0x1]
    %v283 = vsel %vm52, 0, %v282
    %284 = vst [vmem:[#allocation2 + $0x210] sm:$0x1] %v283
    %v285 = vld [vmem:[#allocation2 + $0x218] sm:$0x1]
    %v286 = vsel %vm52, 0, %v285
    %287 = vst [vmem:[#allocation2 + $0x218] sm:$0x1] %v286
    %v288 = vld [vmem:[#allocation2 + $0x220] sm:$0x1]
    %v289 = vsel %vm52, 0, %v288
    %290 = vst [vmem:[#allocation2 + $0x220] sm:$0x1] %v289
    %v291 = vld [vmem:[#allocation2 + $0x228] sm:$0x1]
    %v292 = vsel %vm52, 0, %v291
    %293 = vst [vmem:[#allocation2 + $0x228] sm:$0x1] %v292
    %v294 = vld [vmem:[#allocation2 + $0x230] sm:$0x1]
    %v295 = vsel %vm52, 0, %v294
    %296 = vst [vmem:[#allocation2 + $0x230] sm:$0x1] %v295
    %v297 = vld [vmem:[#allocation2 + $0x238] sm:$0x1]
    %v298 = vsel %vm52, 0, %v297
    %299 = vst [vmem:[#allocation2 + $0x238] sm:$0x1] %v298
    %300 = vst [vmem:[#allocation3] sm:$0xf] 0
    %301 = vst [vmem:[#allocation3 + $0x4] sm:$0x1] 0
    %302 = vst [vmem:[#allocation3 + $0x50] sm:$0xf] 0
    %303 = vst [vmem:[#allocation3 + $0x54] sm:$0x1] 0
    %s304 = scalar_lea.vmem [#allocation3], 72
    %305 = vst [vmem:[%s304] sm:$0xf] 0
    %306 = vst [vmem:[%s304 + $0x4] sm:$0x1] 0
    %307 = vst [vmem:[%s304 + $0x50] sm:$0xf] 0
    %308 = vst [vmem:[%s304 + $0x54] sm:$0x1] 0
    %v309 = vld [vmem:[#allocation3] sm:$0x1]
    %v310 = vsel %vm52, 0, %v309
    %311 = vst [vmem:[#allocation3] sm:$0x1] %v310
    %v312 = vld [vmem:[#allocation3 + $0x8] sm:$0x1]
    %v313 = vsel %vm52, 0, %v312
    %314 = vst [vmem:[#allocation3 + $0x8] sm:$0x1] %v313
    %v315 = vld [vmem:[#allocation3 + $0x10] sm:$0x1]
    %v316 = vsel %vm52, 0, %v315
    %317 = vst [vmem:[#allocation3 + $0x10] sm:$0x1] %v316
    %v318 = vld [vmem:[#allocation3 + $0x18] sm:$0x1]
    %v319 = vsel %vm52, 0, %v318
    %320 = vst [vmem:[#allocation3 + $0x18] sm:$0x1] %v319
    %v321 = vld [vmem:[#allocation3 + $0x20] sm:$0x1]
    %v322 = vsel %vm52, 0, %v321
    %323 = vst [vmem:[#allocation3 + $0x20] sm:$0x1] %v322
    %v324 = vld [vmem:[#allocation3 + $0x28] sm:$0x1]
    %v325 = vsel %vm52, 0, %v324
    %326 = vst [vmem:[#allocation3 + $0x28] sm:$0x1] %v325
    %v327 = vld [vmem:[#allocation3 + $0x30] sm:$0x1]
    %v328 = vsel %vm52, 0, %v327
    %329 = vst [vmem:[#allocation3 + $0x30] sm:$0x1] %v328
    %v330 = vld [vmem:[#allocation3 + $0x38] sm:$0x1]
    %v331 = vsel %vm52, 0, %v330
    %332 = vst [vmem:[#allocation3 + $0x38] sm:$0x1] %v331
    %v333 = vld [vmem:[#allocation3 + $0x40] sm:$0x1]
    %v334 = vsel %vm52, 0, %v333
    %335 = vst [vmem:[#allocation3 + $0x40] sm:$0x1] %v334
    %v336 = vld [vmem:[#allocation3 + $0x48] sm:$0x1]
    %v337 = vsel %vm52, 0, %v336
    %338 = vst [vmem:[#allocation3 + $0x48] sm:$0x1] %v337
    %v339 = vld [vmem:[#allocation3 + $0x50] sm:$0x1]
    %v340 = vsel %vm52, 0, %v339
    %341 = vst [vmem:[#allocation3 + $0x50] sm:$0x1] %v340
    %v342 = vld [vmem:[#allocation3 + $0x58] sm:$0x1]
    %v343 = vsel %vm52, 0, %v342
    %344 = vst [vmem:[#allocation3 + $0x58] sm:$0x1] %v343
    %v345 = vld [vmem:[#allocation3 + $0x60] sm:$0x1]
    %v346 = vsel %vm52, 0, %v345
    %347 = vst [vmem:[#allocation3 + $0x60] sm:$0x1] %v346
    %v348 = vld [vmem:[#allocation3 + $0x68] sm:$0x1]
    %v349 = vsel %vm52, 0, %v348
    %350 = vst [vmem:[#allocation3 + $0x68] sm:$0x1] %v349
    %v351 = vld [vmem:[#allocation3 + $0x70] sm:$0x1]
    %v352 = vsel %vm52, 0, %v351
    %353 = vst [vmem:[#allocation3 + $0x70] sm:$0x1] %v352
    %v354 = vld [vmem:[#allocation3 + $0x78] sm:$0x1]
    %v355 = vsel %vm52, 0, %v354
    %356 = vst [vmem:[#allocation3 + $0x78] sm:$0x1] %v355
    %v357 = vld [vmem:[#allocation3 + $0x80] sm:$0x1]
    %v358 = vsel %vm52, 0, %v357
    %359 = vst [vmem:[#allocation3 + $0x80] sm:$0x1] %v358
    %v360 = vld [vmem:[#allocation3 + $0x88] sm:$0x1]
    %v361 = vsel %vm52, 0, %v360
    %362 = vst [vmem:[#allocation3 + $0x88] sm:$0x1] %v361
    %v363 = vld [vmem:[#allocation3 + $0x90] sm:$0x1]
    %v364 = vsel %vm52, 0, %v363
    %365 = vst [vmem:[#allocation3 + $0x90] sm:$0x1] %v364
    %v366 = vld [vmem:[#allocation3 + $0x98] sm:$0x1]
    %v367 = vsel %vm52, 0, %v366
    %368 = vst [vmem:[#allocation3 + $0x98] sm:$0x1] %v367
    %vm369 = vsmask.f32 7938
    %vm370 = vmand %vm50, %vm369
    %v371 = vld [vmem:[#allocation3 + $0x4] sm:$0x1]
    %v372 = vsel %vm370, 0, %v371
    %373 = vst [vmem:[#allocation3 + $0x4] sm:$0x1] %v372
    %v374 = vld [vmem:[#allocation3 + $0xc] sm:$0x1]
    %v375 = vsel %vm370, 0, %v374
    %376 = vst [vmem:[#allocation3 + $0xc] sm:$0x1] %v375
    %v377 = vld [vmem:[#allocation3 + $0x14] sm:$0x1]
    %v378 = vsel %vm370, 0, %v377
    %379 = vst [vmem:[#allocation3 + $0x14] sm:$0x1] %v378
    %v380 = vld [vmem:[#allocation3 + $0x1c] sm:$0x1]
    %v381 = vsel %vm370, 0, %v380
    %382 = vst [vmem:[#allocation3 + $0x1c] sm:$0x1] %v381
    %v383 = vld [vmem:[#allocation3 + $0x24] sm:$0x1]
    %v384 = vsel %vm370, 0, %v383
    %385 = vst [vmem:[#allocation3 + $0x24] sm:$0x1] %v384
    %v386 = vld [vmem:[#allocation3 + $0x2c] sm:$0x1]
    %v387 = vsel %vm370, 0, %v386
    %388 = vst [vmem:[#allocation3 + $0x2c] sm:$0x1] %v387
    %v389 = vld [vmem:[#allocation3 + $0x34] sm:$0x1]
    %v390 = vsel %vm370, 0, %v389
    %391 = vst [vmem:[#allocation3 + $0x34] sm:$0x1] %v390
    %v392 = vld [vmem:[#allocation3 + $0x3c] sm:$0x1]
    %v393 = vsel %vm370, 0, %v392
    %394 = vst [vmem:[#allocation3 + $0x3c] sm:$0x1] %v393
    %v395 = vld [vmem:[#allocation3 + $0x44] sm:$0x1]
    %v396 = vsel %vm370, 0, %v395
    %397 = vst [vmem:[#allocation3 + $0x44] sm:$0x1] %v396
    %v398 = vld [vmem:[#allocation3 + $0x4c] sm:$0x1]
    %v399 = vsel %vm370, 0, %v398
    %400 = vst [vmem:[#allocation3 + $0x4c] sm:$0x1] %v399
    %v401 = vld [vmem:[#allocation3 + $0x54] sm:$0x1]
    %v402 = vsel %vm370, 0, %v401
    %403 = vst [vmem:[#allocation3 + $0x54] sm:$0x1] %v402
    %v404 = vld [vmem:[#allocation3 + $0x5c] sm:$0x1]
    %v405 = vsel %vm370, 0, %v404
    %406 = vst [vmem:[#allocation3 + $0x5c] sm:$0x1] %v405
    %v407 = vld [vmem:[#allocation3 + $0x64] sm:$0x1]
    %v408 = vsel %vm370, 0, %v407
    %409 = vst [vmem:[#allocation3 + $0x64] sm:$0x1] %v408
    %v410 = vld [vmem:[#allocation3 + $0x6c] sm:$0x1]
    %v411 = vsel %vm370, 0, %v410
    %412 = vst [vmem:[#allocation3 + $0x6c] sm:$0x1] %v411
    %v413 = vld [vmem:[#allocation3 + $0x74] sm:$0x1]
    %v414 = vsel %vm370, 0, %v413
    %415 = vst [vmem:[#allocation3 + $0x74] sm:$0x1] %v414
    %v416 = vld [vmem:[#allocation3 + $0x7c] sm:$0x1]
    %v417 = vsel %vm370, 0, %v416
    %418 = vst [vmem:[#allocation3 + $0x7c] sm:$0x1] %v417
    %v419 = vld [vmem:[#allocation3 + $0x84] sm:$0x1]
    %v420 = vsel %vm370, 0, %v419
    %421 = vst [vmem:[#allocation3 + $0x84] sm:$0x1] %v420
    %v422 = vld [vmem:[#allocation3 + $0x8c] sm:$0x1]
    %v423 = vsel %vm370, 0, %v422
    %424 = vst [vmem:[#allocation3 + $0x8c] sm:$0x1] %v423
    %v425 = vld [vmem:[#allocation3 + $0x94] sm:$0x1]
    %v426 = vsel %vm370, 0, %v425
    %427 = vst [vmem:[#allocation3 + $0x94] sm:$0x1] %v426
    %v428 = vld [vmem:[#allocation3 + $0x9c] sm:$0x1]
    %v429 = vsel %vm370, 0, %v428
    %430 = vst [vmem:[#allocation3 + $0x9c] sm:$0x1] %v429
    %v431 = vld [vmem:[%s0] sm:$0xf]
    %v432 = vld [vmem:[%s0 + $0x4] sm:$0xf]
    %v433 = vld [vmem:[%s0 + $0x8] sm:$0xf]
    %v434 = vld [vmem:[%s0 + $0xc] sm:$0xf]
    %v435 = vld [vmem:[%s0 + $0x10] sm:$0xf]
    %v436 = vld [vmem:[%s0 + $0x14] sm:$0xf]
    %v437 = vld [vmem:[%s0 + $0x18] sm:$0xf]
    %v438 = vld [vmem:[%s0 + $0x1c] sm:$0xf]
    %v439 = vld [vmem:[%s0 + $0x20] sm:$0xf]
    %v440 = vld [vmem:[%s0 + $0x24] sm:$0xf]
    %v441 = vld [vmem:[%s0 + $0x28] sm:$0xf]
    %v442 = vld [vmem:[%s0 + $0x2c] sm:$0xf]
    %v443 = vld [vmem:[%s0 + $0x30] sm:$0xf]
    %v444 = vld [vmem:[%s0 + $0x34] sm:$0xf]
    %v445 = vld [vmem:[%s0 + $0x38] sm:$0xf]
    %v446 = vld [vmem:[%s0 + $0x3c] sm:$0xf]
    %v447 = vld [vmem:[%s0 + $0x40] sm:$0xf]
    %v448 = vld [vmem:[%s0 + $0x44] sm:$0xf]
    %v449 = vld [vmem:[%s0 + $0x48] sm:$0xf]
    %v450 = vld [vmem:[%s0 + $0x4c] sm:$0xf]
    %v451 = vld [vmem:[%s0 + $0x50] sm:$0xf]
    %v452 = vld [vmem:[%s0 + $0x54] sm:$0xf]
    %v453 = vld [vmem:[%s0 + $0x58] sm:$0xf]
    %v454 = vld [vmem:[%s0 + $0x5c] sm:$0xf]
    %v455 = vld [vmem:[%s0 + $0x60] sm:$0xf]
    %v456 = vld [vmem:[%s0 + $0x64] sm:$0xf]
    %v457 = vld [vmem:[%s0 + $0x68] sm:$0xf]
    %v458 = vld [vmem:[%s0 + $0x6c] sm:$0xf]
    %v459 = vld [vmem:[%s0 + $0x70] sm:$0xf]
    %v460 = vld [vmem:[%s0 + $0x74] sm:$0xf]
    %v461 = vld [vmem:[%s0 + $0x78] sm:$0xf]
    %v462 = vld [vmem:[%s0 + $0x7c] sm:$0xf]
    %v463 = vld [vmem:[%s0 + $0x80] sm:$0xf]
    %v464 = vld [vmem:[%s0 + $0x84] sm:$0xf]
    %v465 = vld [vmem:[%s0 + $0x88] sm:$0xf]
    %v466 = vld [vmem:[%s0 + $0x8c] sm:$0xf]
    %v467 = vld [vmem:[%s0 + $0x90] sm:$0xf]
    %v468 = vld [vmem:[%s0 + $0x94] sm:$0xf]
    %v469 = vld [vmem:[%s0 + $0x98] sm:$0xf]
    %v470 = vld [vmem:[%s0 + $0x9c] sm:$0xf]
    %v471 = vld [vmem:[%s0 + $0xa0] sm:$0xf]
    %v472 = vld [vmem:[%s0 + $0xa4] sm:$0xf]
    %v473 = vld [vmem:[%s0 + $0xa8] sm:$0xf]
    %v474 = vld [vmem:[%s0 + $0xac] sm:$0xf]
    %v475 = vld [vmem:[%s0 + $0xb0] sm:$0xf]
    %v476 = vld [vmem:[%s0 + $0xb4] sm:$0xf]
    %v477 = vld [vmem:[%s0 + $0xb8] sm:$0xf]
    %v478 = vld [vmem:[%s0 + $0xbc] sm:$0xf]
    %v479 = vld [vmem:[%s0 + $0xc0] sm:$0xf]
    %v480 = vld [vmem:[%s0 + $0xc4] sm:$0xf]
    %v481 = vld [vmem:[%s0 + $0xc8] sm:$0xf]
    %v482 = vld [vmem:[%s0 + $0xcc] sm:$0xf]
    %v483 = vld [vmem:[%s0 + $0xd0] sm:$0xf]
    %v484 = vld [vmem:[%s0 + $0xd4] sm:$0xf]
    %v485 = vld [vmem:[%s0 + $0xd8] sm:$0xf]
    %v486 = vld [vmem:[%s0 + $0xdc] sm:$0xf]
    %v487 = vld [vmem:[%s0 + $0xe0] sm:$0xf]
    %v488 = vld [vmem:[%s0 + $0xe4] sm:$0xf]
    %v489 = vld [vmem:[%s0 + $0xe8] sm:$0xf]
    %v490 = vld [vmem:[%s0 + $0xec] sm:$0xf]
    %v491 = vld [vmem:[%s0 + $0xf0] sm:$0xf]
    %v492 = vld [vmem:[%s0 + $0xf4] sm:$0xf]
    %v493 = vld [vmem:[%s0 + $0xf8] sm:$0xf]
    %v494 = vld [vmem:[%s0 + $0xfc] sm:$0xf]
    %v495 = vld [vmem:[%s1] sm:$0xf]
    %v496 = vld [vmem:[%s1 + $0x4] sm:$0xf]
    %v497 = vld [vmem:[%s1 + $0x8] sm:$0xf]
    %v498 = vld [vmem:[%s1 + $0xc] sm:$0xf]
    %v499 = vld [vmem:[%s1 + $0x10] sm:$0xf]
    %v500 = vld [vmem:[%s1 + $0x14] sm:$0xf]
    %v501 = vld [vmem:[%s1 + $0x18] sm:$0xf]
    %v502 = vld [vmem:[%s1 + $0x1c] sm:$0xf]
    %v503 = vld [vmem:[%s1 + $0x20] sm:$0xf]
    %v504 = vld [vmem:[%s1 + $0x24] sm:$0xf]
    %v505 = vld [vmem:[%s1 + $0x28] sm:$0xf]
    %v506 = vld [vmem:[%s1 + $0x2c] sm:$0xf]
    %v507 = vld [vmem:[%s1 + $0x30] sm:$0xf]
    %v508 = vld [vmem:[%s1 + $0x34] sm:$0xf]
    %v509 = vld [vmem:[%s1 + $0x38] sm:$0xf]
    %v510 = vld [vmem:[%s1 + $0x3c] sm:$0xf]
    %v511 = vld [vmem:[%s2] sm:$0x1]
    %v513 = vlaneseq
    %v514 = vshrl.u32 %v513, 7
    %v515 = vsub.s32 0, %v514
    %v516 = vrot.slane %v511, %v515
    %v582 = vunpack.c.l.b16 %v431
    %v583 = vunpack.c.l.b16 %v432
    %v584 = vunpack.c.l.b16 %v433
    %v585 = vunpack.c.l.b16 %v434
    %v586 = vunpack.c.l.b16 %v435
    %v587 = vunpack.c.l.b16 %v436
    %v588 = vunpack.c.l.b16 %v437
    %v589 = vunpack.c.l.b16 %v438
    %v590 = vunpack.c.l.b16 %v439
    %v591 = vunpack.c.l.b16 %v440
    %v592 = vunpack.c.l.b16 %v441
    %v593 = vunpack.c.l.b16 %v442
    %v594 = vunpack.c.l.b16 %v443
    %v595 = vunpack.c.l.b16 %v444
    %v596 = vunpack.c.l.b16 %v445
    %v597 = vunpack.c.l.b16 %v446
    %v598 = vunpack.c.l.b16 %v447
    %v599 = vunpack.c.l.b16 %v448
    %v600 = vunpack.c.l.b16 %v449
    %v601 = vunpack.c.l.b16 %v450
    %v602 = vunpack.c.l.b16 %v451
    %v603 = vunpack.c.l.b16 %v452
    %v604 = vunpack.c.l.b16 %v453
    %v605 = vunpack.c.l.b16 %v454
    %v606 = vunpack.c.l.b16 %v455
    %v607 = vunpack.c.l.b16 %v456
    %v608 = vunpack.c.l.b16 %v457
    %v609 = vunpack.c.l.b16 %v458
    %v610 = vunpack.c.l.b16 %v459
    %v611 = vunpack.c.l.b16 %v460
    %v612 = vunpack.c.l.b16 %v461
    %v613 = vunpack.c.l.b16 %v462
    %v614 = vunpack.c.l.b16 %v463
    %v615 = vunpack.c.l.b16 %v464
    %v616 = vunpack.c.l.b16 %v465
    %v617 = vunpack.c.l.b16 %v466
    %v618 = vunpack.c.l.b16 %v467
    %v619 = vunpack.c.l.b16 %v468
    %v620 = vunpack.c.l.b16 %v469
    %v621 = vunpack.c.l.b16 %v470
    %v622 = vunpack.c.l.b16 %v471
    %v623 = vunpack.c.l.b16 %v472
    %v624 = vunpack.c.l.b16 %v473
    %v625 = vunpack.c.l.b16 %v474
    %v626 = vunpack.c.l.b16 %v475
    %v627 = vunpack.c.l.b16 %v476
    %v628 = vunpack.c.l.b16 %v477
    %v629 = vunpack.c.l.b16 %v478
    %v630 = vunpack.c.l.b16 %v479
    %v631 = vunpack.c.l.b16 %v480
    %v632 = vunpack.c.l.b16 %v481
    %v633 = vunpack.c.l.b16 %v482
    %v634 = vunpack.c.l.b16 %v483
    %v635 = vunpack.c.l.b16 %v484
    %v636 = vunpack.c.l.b16 %v485
    %v637 = vunpack.c.l.b16 %v486
    %v638 = vunpack.c.l.b16 %v487
    %v639 = vunpack.c.l.b16 %v488
    %v640 = vunpack.c.l.b16 %v489
    %v641 = vunpack.c.l.b16 %v490
    %v642 = vunpack.c.l.b16 %v491
    %v643 = vunpack.c.l.b16 %v492
    %v644 = vunpack.c.l.b16 %v493
    %v645 = vunpack.c.l.b16 %v494
    %v646 = vpack.c.b16 %v583, %v582
    %v647 = vpack.c.b16 %v585, %v584
    %v648 = vpack.c.b16 %v587, %v586
    %v649 = vpack.c.b16 %v589, %v588
    %v650 = vpack.c.b16 %v591, %v590
    %v651 = vpack.c.b16 %v593, %v592
    %v652 = vpack.c.b16 %v595, %v594
    %v653 = vpack.c.b16 %v597, %v596
    %v654 = vpack.c.b16 %v599, %v598
    %v655 = vpack.c.b16 %v601, %v600
    %v656 = vpack.c.b16 %v603, %v602
    %v657 = vpack.c.b16 %v605, %v604
    %v658 = vpack.c.b16 %v607, %v606
    %v659 = vpack.c.b16 %v609, %v608
    %v660 = vpack.c.b16 %v611, %v610
    %v661 = vpack.c.b16 %v613, %v612
    %v662 = vpack.c.b16 %v615, %v614
    %v663 = vpack.c.b16 %v617, %v616
    %v664 = vpack.c.b16 %v619, %v618
    %v665 = vpack.c.b16 %v621, %v620
    %v666 = vpack.c.b16 %v623, %v622
    %v667 = vpack.c.b16 %v625, %v624
    %v668 = vpack.c.b16 %v627, %v626
    %v669 = vpack.c.b16 %v629, %v628
    %v670 = vpack.c.b16 %v631, %v630
    %v671 = vpack.c.b16 %v633, %v632
    %v672 = vpack.c.b16 %v635, %v634
    %v673 = vpack.c.b16 %v637, %v636
    %v674 = vpack.c.b16 %v639, %v638
    %v675 = vpack.c.b16 %v641, %v640
    %v676 = vpack.c.b16 %v643, %v642
    %v677 = vpack.c.b16 %v645, %v644
    %v726 = vunpack.c.l.b16 %v495
    %v727 = vunpack.c.l.b16 %v496
    %v728 = vunpack.c.l.b16 %v497
    %v729 = vunpack.c.l.b16 %v498
    %v730 = vunpack.c.l.b16 %v499
    %v731 = vunpack.c.l.b16 %v500
    %v732 = vunpack.c.l.b16 %v501
    %v733 = vunpack.c.l.b16 %v502
    %v734 = vunpack.c.l.b16 %v503
    %v735 = vunpack.c.l.b16 %v504
    %v736 = vunpack.c.l.b16 %v505
    %v737 = vunpack.c.l.b16 %v506
    %v738 = vunpack.c.l.b16 %v507
    %v739 = vunpack.c.l.b16 %v508
    %v740 = vunpack.c.l.b16 %v509
    %v741 = vunpack.c.l.b16 %v510
    %v742 = vpack.c.b16 %v727, %v726
    %v743 = vpack.c.b16 %v729, %v728
    %v744 = vpack.c.b16 %v731, %v730
    %v745 = vpack.c.b16 %v733, %v732
    %v746 = vpack.c.b16 %v735, %v734
    %v747 = vpack.c.b16 %v737, %v736
    %v748 = vpack.c.b16 %v739, %v738
    %v749 = vpack.c.b16 %v741, %v740
    %758 = vmatprep.subr.bf16.mxu0 0
    %759 = vmatpush1.bf16.msra.mxu0 %v742
    %760 = vmatprep.subr.bf16.mxu0 0
    %761 = vmatpush1.bf16.msra.mxu0 %v743
    %762 = vmatprep.subr.bf16.mxu0 0
    %763 = vmatpush1.bf16.msra.mxu0 %v744
    %764 = vmatprep.subr.bf16.mxu0 0
    %765 = vmatpush1.bf16.msra.mxu0 %v745
    %766 = vmatprep.subr.bf16.mxu0 0
    %767 = vmatpush1.bf16.msra.mxu0 %v746
    %768 = vmatprep.subr.bf16.mxu0 0
    %769 = vmatpush1.bf16.msra.mxu0 %v747
    %770 = vmatprep.subr.bf16.mxu0 0
    %771 = vmatpush1.bf16.msra.mxu0 %v748
    %772 = vmatprep.subr.bf16.mxu0 0
    %773 = vmatpush1.bf16.msra.mxu0 %v749
    %774 = vmatprep.subr.bf16.mxu0 0
    %775 = vmatpush1.bf16.msra.mxu0 0
    %776 = vmatprep.subr.bf16.mxu0 0
    %777 = vmatpush1.bf16.msra.mxu0 0
    %778 = vmatprep.subr.bf16.mxu0 0
    %779 = vmatpush1.bf16.msra.mxu0 0
    %780 = vmatprep.subr.bf16.mxu0 0
    %781 = vmatpush1.bf16.msra.mxu0 0
    %782 = vmatprep.subr.bf16.mxu0 0
    %783 = vmatpush1.bf16.msra.mxu0 0
    %784 = vmatprep.subr.bf16.mxu0 0
    %785 = vmatpush1.bf16.msra.mxu0 0
    %786 = vmatprep.subr.bf16.mxu0 0
    %787 = vmatpush1.bf16.msra.mxu0 0
    %788 = vmatprep.subr.bf16.mxu0 0
    %789 = vmatpush1.bf16.msra.mxu0 0
    %790 = vmatprep.mubr.bf16.mxu0 0
    %791 = vmatmul.mubr.bf16.gmra.mrb[0].mxu0 %v646
    %v792 = vpop.f32.mrb[0].mxu0
    %v793 = vadd.f32 %v516, %v792
    %v794 = vpop.f32.mrb[0].mxu0
    %v795 = vpop.f32.mrb[0].mxu0
    %v796 = vadd.f32 %v516, %v795
    %v797 = vpop.f32.mrb[0].mxu0
    %798 = vmatprep.mubr.bf16.mxu0 0
    %799 = vmatmul.mubr.bf16.gmra.mrb[0].mxu0 %v647
    %v800 = vpop.f32.mrb[0].mxu0
    %v801 = vadd.f32 %v516, %v800
    %v802 = vpop.f32.mrb[0].mxu0
    %v803 = vpop.f32.mrb[0].mxu0
    %v804 = vadd.f32 %v516, %v803
    %v805 = vpop.f32.mrb[0].mxu0
    %806 = vmatprep.mubr.bf16.mxu0 0
    %807 = vmatmul.mubr.bf16.gmra.mrb[0].mxu0 %v648
    %v808 = vpop.f32.mrb[0].mxu0
    %v809 = vadd.f32 %v516, %v808
    %v810 = vpop.f32.mrb[0].mxu0
    %v811 = vpop.f32.mrb[0].mxu0
    %v812 = vadd.f32 %v516, %v811
    %v813 = vpop.f32.mrb[0].mxu0
    %814 = vmatprep.mubr.bf16.mxu0 0
    %815 = vmatmul.mubr.bf16.gmra.mrb[0].mxu0 %v649
    %v816 = vpop.f32.mrb[0].mxu0
    %v817 = vadd.f32 %v516, %v816
    %v818 = vpop.f32.mrb[0].mxu0
    %v819 = vpop.f32.mrb[0].mxu0
    %v820 = vadd.f32 %v516, %v819
    %v821 = vpop.f32.mrb[0].mxu0
    %822 = vmatprep.mubr.bf16.mxu0 0
    %823 = vmatmul.mubr.bf16.gmra.mrb[0].mxu0 %v650
    %v824 = vpop.f32.mrb[0].mxu0
    %v825 = vadd.f32 %v516, %v824
    %v826 = vpop.f32.mrb[0].mxu0
    %v827 = vpop.f32.mrb[0].mxu0
    %v828 = vadd.f32 %v516, %v827
    %v829 = vpop.f32.mrb[0].mxu0
    %830 = vmatprep.mubr.bf16.mxu0 0
    %831 = vmatmul.mubr.bf16.gmra.mrb[0].mxu0 %v651
    %v832 = vpop.f32.mrb[0].mxu0
    %v833 = vadd.f32 %v516, %v832
    %v834 = vpop.f32.mrb[0].mxu0
    %v835 = vpop.f32.mrb[0].mxu0
    %v836 = vadd.f32 %v516, %v835
    %v837 = vpop.f32.mrb[0].mxu0
    %838 = vmatprep.mubr.bf16.mxu0 0
    %839 = vmatmul.mubr.bf16.gmra.mrb[0].mxu0 %v652
    %v840 = vpop.f32.mrb[0].mxu0
    %v841 = vadd.f32 %v516, %v840
    %v842 = vpop.f32.mrb[0].mxu0
    %v843 = vpop.f32.mrb[0].mxu0
    %v844 = vadd.f32 %v516, %v843
    %v845 = vpop.f32.mrb[0].mxu0
    %846 = vmatprep.mubr.bf16.mxu0 0
    %847 = vmatmul.mubr.bf16.gmra.mrb[0].mxu0 %v653
    %v848 = vpop.f32.mrb[0].mxu0
    %v849 = vadd.f32 %v516, %v848
    %v850 = vpop.f32.mrb[0].mxu0
    %v851 = vpop.f32.mrb[0].mxu0
    %v852 = vadd.f32 %v516, %v851
    %v853 = vpop.f32.mrb[0].mxu0
    %854 = vmatprep.mubr.bf16.mxu0 0
    %855 = vmatmul.mubr.bf16.gmra.mrb[0].mxu0 %v654
    %v856 = vpop.f32.mrb[0].mxu0
    %v857 = vadd.f32 %v516, %v856
    %v858 = vpop.f32.mrb[0].mxu0
    %v859 = vpop.f32.mrb[0].mxu0
    %v860 = vadd.f32 %v516, %v859
    %v861 = vpop.f32.mrb[0].mxu0
    %862 = vmatprep.mubr.bf16.mxu0 0
    %863 = vmatmul.mubr.bf16.gmra.mrb[0].mxu0 %v655
    %v864 = vpop.f32.mrb[0].mxu0
    %v865 = vadd.f32 %v516, %v864
    %v866 = vpop.f32.mrb[0].mxu0
    %v867 = vpop.f32.mrb[0].mxu0
    %v868 = vadd.f32 %v516, %v867
    %v869 = vpop.f32.mrb[0].mxu0
    %870 = vmatprep.mubr.bf16.mxu0 0
    %871 = vmatmul.mubr.bf16.gmra.mrb[0].mxu0 %v656
    %v872 = vpop.f32.mrb[0].mxu0
    %v873 = vadd.f32 %v516, %v872
    %v874 = vpop.f32.mrb[0].mxu0
    %v875 = vpop.f32.mrb[0].mxu0
    %v876 = vadd.f32 %v516, %v875
    %v877 = vpop.f32.mrb[0].mxu0
    %878 = vmatprep.mubr.bf16.mxu0 0
    %879 = vmatmul.mubr.bf16.gmra.mrb[0].mxu0 %v657
    %v880 = vpop.f32.mrb[0].mxu0
    %v881 = vadd.f32 %v516, %v880
    %v882 = vpop.f32.mrb[0].mxu0
    %v883 = vpop.f32.mrb[0].mxu0
    %v884 = vadd.f32 %v516, %v883
    %v885 = vpop.f32.mrb[0].mxu0
    %886 = vmatprep.mubr.bf16.mxu0 0
    %887 = vmatmul.mubr.bf16.gmra.mrb[0].mxu0 %v658
    %v888 = vpop.f32.mrb[0].mxu0
    %v889 = vadd.f32 %v516, %v888
    %v890 = vpop.f32.mrb[0].mxu0
    %v891 = vpop.f32.mrb[0].mxu0
    %v892 = vadd.f32 %v516, %v891
    %v893 = vpop.f32.mrb[0].mxu0
    %894 = vmatprep.mubr.bf16.mxu0 0
    %895 = vmatmul.mubr.bf16.gmra.mrb[0].mxu0 %v659
    %v896 = vpop.f32.mrb[0].mxu0
    %v897 = vadd.f32 %v516, %v896
    %v898 = vpop.f32.mrb[0].mxu0
    %v899 = vpop.f32.mrb[0].mxu0
    %v900 = vadd.f32 %v516, %v899
    %v901 = vpop.f32.mrb[0].mxu0
    %902 = vmatprep.mubr.bf16.mxu0 0
    %903 = vmatmul.mubr.bf16.gmra.mrb[0].mxu0 %v660
    %v904 = vpop.f32.mrb[0].mxu0
    %v905 = vadd.f32 %v516, %v904
    %v906 = vpop.f32.mrb[0].mxu0
    %v907 = vpop.f32.mrb[0].mxu0
    %v908 = vadd.f32 %v516, %v907
    %v909 = vpop.f32.mrb[0].mxu0
    %910 = vmatprep.mubr.bf16.mxu0 0
    %911 = vmatmul.mubr.bf16.gmra.mrb[0].mxu0 %v661
    %v912 = vpop.f32.mrb[0].mxu0
    %v913 = vadd.f32 %v516, %v912
    %v914 = vpop.f32.mrb[0].mxu0
    %v915 = vpop.f32.mrb[0].mxu0
    %v916 = vadd.f32 %v516, %v915
    %v917 = vpop.f32.mrb[0].mxu0
    %918 = vmatprep.mubr.bf16.mxu0 0
    %919 = vmatmul.mubr.bf16.gmra.mrb[0].mxu0 %v662
    %v920 = vpop.f32.mrb[0].mxu0
    %v921 = vadd.f32 %v516, %v920
    %v922 = vpop.f32.mrb[0].mxu0
    %v923 = vpop.f32.mrb[0].mxu0
    %v924 = vadd.f32 %v516, %v923
    %v925 = vpop.f32.mrb[0].mxu0
    %926 = vmatprep.mubr.bf16.mxu0 0
    %927 = vmatmul.mubr.bf16.gmra.mrb[0].mxu0 %v663
    %v928 = vpop.f32.mrb[0].mxu0
    %v929 = vadd.f32 %v516, %v928
    %v930 = vpop.f32.mrb[0].mxu0
    %v931 = vpop.f32.mrb[0].mxu0
    %v932 = vadd.f32 %v516, %v931
    %v933 = vpop.f32.mrb[0].mxu0
    %934 = vmatprep.mubr.bf16.mxu0 0
    %935 = vmatmul.mubr.bf16.gmra.mrb[0].mxu0 %v664
    %v936 = vpop.f32.mrb[0].mxu0
    %v937 = vadd.f32 %v516, %v936
    %v938 = vpop.f32.mrb[0].mxu0
    %v939 = vpop.f32.mrb[0].mxu0
    %v940 = vadd.f32 %v516, %v939
    %v941 = vpop.f32.mrb[0].mxu0
    %942 = vmatprep.mubr.bf16.mxu0 0
    %943 = vmatmul.mubr.bf16.gmra.mrb[0].mxu0 %v665
    %v944 = vpop.f32.mrb[0].mxu0
    %v945 = vadd.f32 %v516, %v944
    %v946 = vpop.f32.mrb[0].mxu0
    %v947 = vpop.f32.mrb[0].mxu0
    %v948 = vadd.f32 %v516, %v947
    %v949 = vpop.f32.mrb[0].mxu0
    %950 = vmatprep.mubr.bf16.mxu0 0
    %951 = vmatmul.mubr.bf16.gmra.mrb[0].mxu0 %v666
    %v952 = vpop.f32.mrb[0].mxu0
    %v953 = vadd.f32 %v516, %v952
    %v954 = vpop.f32.mrb[0].mxu0
    %v955 = vpop.f32.mrb[0].mxu0
    %v956 = vadd.f32 %v516, %v955
    %v957 = vpop.f32.mrb[0].mxu0
    %958 = vmatprep.mubr.bf16.mxu0 0
    %959 = vmatmul.mubr.bf16.gmra.mrb[0].mxu0 %v667
    %v960 = vpop.f32.mrb[0].mxu0
    %v961 = vadd.f32 %v516, %v960
    %v962 = vpop.f32.mrb[0].mxu0
    %v963 = vpop.f32.mrb[0].mxu0
    %v964 = vadd.f32 %v516, %v963
    %v965 = vpop.f32.mrb[0].mxu0
    %966 = vmatprep.mubr.bf16.mxu0 0
    %967 = vmatmul.mubr.bf16.gmra.mrb[0].mxu0 %v668
    %v968 = vpop.f32.mrb[0].mxu0
    %v969 = vadd.f32 %v516, %v968
    %v970 = vpop.f32.mrb[0].mxu0
    %v971 = vpop.f32.mrb[0].mxu0
    %v972 = vadd.f32 %v516, %v971
    %v973 = vpop.f32.mrb[0].mxu0
    %974 = vmatprep.mubr.bf16.mxu0 0
    %975 = vmatmul.mubr.bf16.gmra.mrb[0].mxu0 %v669
    %v976 = vpop.f32.mrb[0].mxu0
    %v977 = vadd.f32 %v516, %v976
    %v978 = vpop.f32.mrb[0].mxu0
    %v979 = vpop.f32.mrb[0].mxu0
    %v980 = vadd.f32 %v516, %v979
    %v981 = vpop.f32.mrb[0].mxu0
    %982 = vmatprep.mubr.bf16.mxu0 0
    %983 = vmatmul.mubr.bf16.gmra.mrb[0].mxu0 %v670
    %v984 = vpop.f32.mrb[0].mxu0
    %v985 = vadd.f32 %v516, %v984
    %v986 = vpop.f32.mrb[0].mxu0
    %v987 = vpop.f32.mrb[0].mxu0
    %v988 = vadd.f32 %v516, %v987
    %v989 = vpop.f32.mrb[0].mxu0
    %990 = vmatprep.mubr.bf16.mxu0 0
    %991 = vmatmul.mubr.bf16.gmra.mrb[0].mxu0 %v671
    %v992 = vpop.f32.mrb[0].mxu0
    %v993 = vadd.f32 %v516, %v992
    %v994 = vpop.f32.mrb[0].mxu0
    %v995 = vpop.f32.mrb[0].mxu0
    %v996 = vadd.f32 %v516, %v995
    %v997 = vpop.f32.mrb[0].mxu0
    %998 = vmatprep.mubr.bf16.mxu0 0
    %999 = vmatmul.mubr.bf16.gmra.mrb[0].mxu0 %v672
    %v1000 = vpop.f32.mrb[0].mxu0
    %v1001 = vadd.f32 %v516, %v1000
    %v1002 = vpop.f32.mrb[0].mxu0
    %v1003 = vpop.f32.mrb[0].mxu0
    %v1004 = vadd.f32 %v516, %v1003
    %v1005 = vpop.f32.mrb[0].mxu0
    %1006 = vmatprep.mubr.bf16.mxu0 0
    %1007 = vmatmul.mubr.bf16.gmra.mrb[0].mxu0 %v673
    %v1008 = vpop.f32.mrb[0].mxu0
    %v1009 = vadd.f32 %v516, %v1008
    %v1010 = vpop.f32.mrb[0].mxu0
    %v1011 = vpop.f32.mrb[0].mxu0
    %v1012 = vadd.f32 %v516, %v1011
    %v1013 = vpop.f32.mrb[0].mxu0
    %1014 = vmatprep.mubr.bf16.mxu0 0
    %1015 = vmatmul.mubr.bf16.gmra.mrb[0].mxu0 %v674
    %v1016 = vpop.f32.mrb[0].mxu0
    %v1017 = vadd.f32 %v516, %v1016
    %v1018 = vpop.f32.mrb[0].mxu0
    %v1019 = vpop.f32.mrb[0].mxu0
    %v1020 = vadd.f32 %v516, %v1019
    %v1021 = vpop.f32.mrb[0].mxu0
    %1022 = vmatprep.mubr.bf16.mxu0 0
    %1023 = vmatmul.mubr.bf16.gmra.mrb[0].mxu0 %v675
    %v1024 = vpop.f32.mrb[0].mxu0
    %v1025 = vadd.f32 %v516, %v1024
    %v1026 = vpop.f32.mrb[0].mxu0
    %v1027 = vpop.f32.mrb[0].mxu0
    %v1028 = vadd.f32 %v516, %v1027
    %v1029 = vpop.f32.mrb[0].mxu0
    %1030 = vmatprep.mubr.bf16.mxu0 0
    %1031 = vmatmul.mubr.bf16.gmra.mrb[0].mxu0 %v676
    %v1032 = vpop.f32.mrb[0].mxu0
    %v1033 = vadd.f32 %v516, %v1032
    %v1034 = vpop.f32.mrb[0].mxu0
    %v1035 = vpop.f32.mrb[0].mxu0
    %v1036 = vadd.f32 %v516, %v1035
    %v1037 = vpop.f32.mrb[0].mxu0
    %1038 = vmatprep.mubr.bf16.mxu0 0
    %1039 = vmatmul.mubr.bf16.gmra.mrb[0].mxu0 %v677
    %v1040 = vpop.f32.mrb[0].mxu0
    %v1041 = vadd.f32 %v516, %v1040
    %v1042 = vpop.f32.mrb[0].mxu0
    %v1043 = vpop.f32.mrb[0].mxu0
    %v1044 = vadd.f32 %v516, %v1043
    %v1045 = vpop.f32.mrb[0].mxu0
    %1046 = vdwg.mxu0
    %v1047 = vpack.c.bf16 %v796, %v793
    %v1048 = vpack.c.bf16 %v804, %v801
    %v1049 = vpack.c.bf16 %v812, %v809
    %v1050 = vpack.c.bf16 %v820, %v817
    %v1051 = vpack.c.bf16 %v828, %v825
    %v1052 = vpack.c.bf16 %v836, %v833
    %v1053 = vpack.c.bf16 %v844, %v841
    %v1054 = vpack.c.bf16 %v852, %v849
    %v1055 = vpack.c.bf16 %v860, %v857
    %v1056 = vpack.c.bf16 %v868, %v865
    %v1057 = vpack.c.bf16 %v876, %v873
    %v1058 = vpack.c.bf16 %v884, %v881
    %v1059 = vpack.c.bf16 %v892, %v889
    %v1060 = vpack.c.bf16 %v900, %v897
    %v1061 = vpack.c.bf16 %v908, %v905
    %v1062 = vpack.c.bf16 %v916, %v913
    %v1063 = vpack.c.bf16 %v924, %v921
    %v1064 = vpack.c.bf16 %v932, %v929
    %v1065 = vpack.c.bf16 %v940, %v937
    %v1066 = vpack.c.bf16 %v948, %v945
    %v1067 = vpack.c.bf16 %v956, %v953
    %v1068 = vpack.c.bf16 %v964, %v961
    %v1069 = vpack.c.bf16 %v972, %v969
    %v1070 = vpack.c.bf16 %v980, %v977
    %v1071 = vpack.c.bf16 %v988, %v985
    %v1072 = vpack.c.bf16 %v996, %v993
    %v1073 = vpack.c.bf16 %v1004, %v1001
    %v1074 = vpack.c.bf16 %v1012, %v1009
    %v1075 = vpack.c.bf16 %v1020, %v1017
    %v1076 = vpack.c.bf16 %v1028, %v1025
    %v1077 = vpack.c.bf16 %v1036, %v1033
    %v1078 = vpack.c.bf16 %v1044, %v1041
    %v1087 = vunpack.c.l.b16 %v1047
    %v1088 = vunpack.c.h.b16 %v1047
    %v1089 = vunpack.c.l.b16 %v1048
    %v1090 = vunpack.c.h.b16 %v1048
    %v1091 = vunpack.c.l.b16 %v1049
    %v1092 = vunpack.c.h.b16 %v1049
    %v1093 = vunpack.c.l.b16 %v1050
    %v1094 = vunpack.c.h.b16 %v1050
    %v1095 = vunpack.c.l.b16 %v1051
    %v1096 = vunpack.c.h.b16 %v1051
    %v1097 = vunpack.c.l.b16 %v1052
    %v1098 = vunpack.c.h.b16 %v1052
    %v1099 = vunpack.c.l.b16 %v1053
    %v1100 = vunpack.c.h.b16 %v1053
    %v1101 = vunpack.c.l.b16 %v1054
    %v1102 = vunpack.c.h.b16 %v1054
    %v1103 = vpack.c.b16 %v1087, %v1087
    %v1104 = vpack.c.b16 %v1088, %v1088
    %v1105 = vpack.c.b16 %v1089, %v1089
    %v1106 = vpack.c.b16 %v1090, %v1090
    %v1107 = vpack.c.b16 %v1091, %v1091
    %v1108 = vpack.c.b16 %v1092, %v1092
    %v1109 = vpack.c.b16 %v1093, %v1093
    %v1110 = vpack.c.b16 %v1094, %v1094
    %v1111 = vpack.c.b16 %v1095, %v1095
    %v1112 = vpack.c.b16 %v1096, %v1096
    %v1113 = vpack.c.b16 %v1097, %v1097
    %v1114 = vpack.c.b16 %v1098, %v1098
    %v1115 = vpack.c.b16 %v1099, %v1099
    %v1116 = vpack.c.b16 %v1100, %v1100
    %v1117 = vpack.c.b16 %v1101, %v1101
    %v1118 = vpack.c.b16 %v1102, %v1102
    %v1120 = vshrl.u32 %v1103, 16
    %v1122 = vrot.slane %v1120, 7
    %v1123 = vshll.u32 %v1103, 16
    %v1125 = vor.u32 %v1122, %v1123
    %v1126 = vrot.slane %v1122, 4
    %v1128 = vshrl.u32 %v1104, 16
    %v1130 = vrot.slane %v1128, 7
    %v1131 = vshll.u32 %v1104, 16
    %v1133 = vor.u32 %v1130, %v1131
    %v1134 = vrot.slane %v1130, 4
    %v1136 = vshrl.u32 %v1105, 16
    %v1138 = vrot.slane %v1136, 7
    %v1139 = vshll.u32 %v1105, 16
    %v1141 = vor.u32 %v1138, %v1139
    %v1142 = vrot.slane %v1138, 4
    %v1144 = vshrl.u32 %v1106, 16
    %v1146 = vrot.slane %v1144, 7
    %v1147 = vshll.u32 %v1106, 16
    %v1149 = vor.u32 %v1146, %v1147
    %v1150 = vrot.slane %v1146, 4
    %v1152 = vshrl.u32 %v1107, 16
    %v1154 = vrot.slane %v1152, 7
    %v1155 = vshll.u32 %v1107, 16
    %v1157 = vor.u32 %v1154, %v1155
    %v1158 = vrot.slane %v1154, 4
    %v1160 = vshrl.u32 %v1108, 16
    %v1162 = vrot.slane %v1160, 7
    %v1163 = vshll.u32 %v1108, 16
    %v1165 = vor.u32 %v1162, %v1163
    %v1166 = vrot.slane %v1162, 4
    %v1168 = vshrl.u32 %v1109, 16
    %v1170 = vrot.slane %v1168, 7
    %v1171 = vshll.u32 %v1109, 16
    %v1173 = vor.u32 %v1170, %v1171
    %v1174 = vrot.slane %v1170, 4
    %v1176 = vshrl.u32 %v1110, 16
    %v1178 = vrot.slane %v1176, 7
    %v1179 = vshll.u32 %v1110, 16
    %v1181 = vor.u32 %v1178, %v1179
    %v1182 = vrot.slane %v1178, 4
    %v1184 = vshrl.u32 %v1111, 16
    %v1186 = vrot.slane %v1184, 7
    %v1187 = vshll.u32 %v1111, 16
    %v1189 = vor.u32 %v1186, %v1187
    %v1190 = vrot.slane %v1186, 4
    %v1192 = vshrl.u32 %v1112, 16
    %v1194 = vrot.slane %v1192, 7
    %v1195 = vshll.u32 %v1112, 16
    %v1197 = vor.u32 %v1194, %v1195
    %v1198 = vrot.slane %v1194, 4
    %v1200 = vshrl.u32 %v1113, 16
    %v1202 = vrot.slane %v1200, 7
    %v1203 = vshll.u32 %v1113, 16
    %v1205 = vor.u32 %v1202, %v1203
    %v1206 = vrot.slane %v1202, 4
    %v1208 = vshrl.u32 %v1114, 16
    %v1210 = vrot.slane %v1208, 7
    %v1211 = vshll.u32 %v1114, 16
    %v1213 = vor.u32 %v1210, %v1211
    %v1214 = vrot.slane %v1210, 4
    %v1216 = vshrl.u32 %v1115, 16
    %v1218 = vrot.slane %v1216, 7
    %v1219 = vshll.u32 %v1115, 16
    %v1221 = vor.u32 %v1218, %v1219
    %v1222 = vrot.slane %v1218, 4
    %v1224 = vshrl.u32 %v1116, 16
    %v1226 = vrot.slane %v1224, 7
    %v1227 = vshll.u32 %v1116, 16
    %v1229 = vor.u32 %v1226, %v1227
    %v1230 = vrot.slane %v1226, 4
    %v1232 = vshrl.u32 %v1117, 16
    %v1234 = vrot.slane %v1232, 7
    %v1235 = vshll.u32 %v1117, 16
    %v1237 = vor.u32 %v1234, %v1235
    %v1238 = vrot.slane %v1234, 4
    %v1240 = vshrl.u32 %v1118, 16
    %v1242 = vrot.slane %v1240, 7
    %v1243 = vshll.u32 %v1118, 16
    %v1245 = vor.u32 %v1242, %v1243
    %v1246 = vrot.slane %v1242, 4
    %s1279 = scalar_lea.vmem [#allocation2], 8
    %vm1280 = vcmask 1043456
    %vm1281 = vmand %vm1280, %vm369
    %v1282 = vld [vmem:[%s1279] sm:$0xf]
    %v1283 = vsel %vm1281, %v1125, %v1282
    %1284 = vst [vmem:[%s1279] sm:$0xf] %v1283
    %v1285 = vld [vmem:[%s1279 + $0x4] sm:$0x1]
    %v1286 = vsel %vm52, %v1126, %v1285
    %1287 = vst [vmem:[%s1279 + $0x4] sm:$0x1] %v1286
    %v1288 = vld [vmem:[%s1279 + $0x8] sm:$0xf]
    %v1289 = vsel %vm1281, %v1133, %v1288
    %1290 = vst [vmem:[%s1279 + $0x8] sm:$0xf] %v1289
    %v1291 = vld [vmem:[%s1279 + $0xc] sm:$0x1]
    %v1292 = vsel %vm52, %v1134, %v1291
    %1293 = vst [vmem:[%s1279 + $0xc] sm:$0x1] %v1292
    %v1294 = vld [vmem:[%s1279 + $0x10] sm:$0xf]
    %v1295 = vsel %vm1281, %v1141, %v1294
    %1296 = vst [vmem:[%s1279 + $0x10] sm:$0xf] %v1295
    %v1297 = vld [vmem:[%s1279 + $0x14] sm:$0x1]
    %v1298 = vsel %vm52, %v1142, %v1297
    %1299 = vst [vmem:[%s1279 + $0x14] sm:$0x1] %v1298
    %v1300 = vld [vmem:[%s1279 + $0x18] sm:$0xf]
    %v1301 = vsel %vm1281, %v1149, %v1300
    %1302 = vst [vmem:[%s1279 + $0x18] sm:$0xf] %v1301
    %v1303 = vld [vmem:[%s1279 + $0x1c] sm:$0x1]
    %v1304 = vsel %vm52, %v1150, %v1303
    %1305 = vst [vmem:[%s1279 + $0x1c] sm:$0x1] %v1304
    %v1306 = vld [vmem:[%s1279 + $0x20] sm:$0xf]
    %v1307 = vsel %vm1281, %v1157, %v1306
    %1308 = vst [vmem:[%s1279 + $0x20] sm:$0xf] %v1307
    %v1309 = vld [vmem:[%s1279 + $0x24] sm:$0x1]
    %v1310 = vsel %vm52, %v1158, %v1309
    %1311 = vst [vmem:[%s1279 + $0x24] sm:$0x1] %v1310
    %v1312 = vld [vmem:[%s1279 + $0x28] sm:$0xf]
    %v1313 = vsel %vm1281, %v1165, %v1312
    %1314 = vst [vmem:[%s1279 + $0x28] sm:$0xf] %v1313
    %v1315 = vld [vmem:[%s1279 + $0x2c] sm:$0x1]
    %v1316 = vsel %vm52, %v1166, %v1315
    %1317 = vst [vmem:[%s1279 + $0x2c] sm:$0x1] %v1316
    %v1318 = vld [vmem:[%s1279 + $0x30] sm:$0xf]
    %v1319 = vsel %vm1281, %v1173, %v1318
    %1320 = vst [vmem:[%s1279 + $0x30] sm:$0xf] %v1319
    %v1321 = vld [vmem:[%s1279 + $0x34] sm:$0x1]
    %v1322 = vsel %vm52, %v1174, %v1321
    %1323 = vst [vmem:[%s1279 + $0x34] sm:$0x1] %v1322
    %v1324 = vld [vmem:[%s1279 + $0x38] sm:$0xf]
    %v1325 = vsel %vm1281, %v1181, %v1324
    %1326 = vst [vmem:[%s1279 + $0x38] sm:$0xf] %v1325
    %v1327 = vld [vmem:[%s1279 + $0x3c] sm:$0x1]
    %v1328 = vsel %vm52, %v1182, %v1327
    %1329 = vst [vmem:[%s1279 + $0x3c] sm:$0x1] %v1328
    %v1330 = vld [vmem:[%s1279 + $0x48] sm:$0xf]
    %v1331 = vsel %vm1281, %v1189, %v1330
    %1332 = vst [vmem:[%s1279 + $0x48] sm:$0xf] %v1331
    %v1333 = vld [vmem:[%s1279 + $0x4c] sm:$0x1]
    %v1334 = vsel %vm52, %v1190, %v1333
    %1335 = vst [vmem:[%s1279 + $0x4c] sm:$0x1] %v1334
    %v1336 = vld [vmem:[%s1279 + $0x50] sm:$0xf]
    %v1337 = vsel %vm1281, %v1197, %v1336
    %1338 = vst [vmem:[%s1279 + $0x50] sm:$0xf] %v1337
    %v1339 = vld [vmem:[%s1279 + $0x54] sm:$0x1]
    %v1340 = vsel %vm52, %v1198, %v1339
    %1341 = vst [vmem:[%s1279 + $0x54] sm:$0x1] %v1340
    %v1342 = vld [vmem:[%s1279 + $0x58] sm:$0xf]
    %v1343 = vsel %vm1281, %v1205, %v1342
    %1344 = vst [vmem:[%s1279 + $0x58] sm:$0xf] %v1343
    %v1345 = vld [vmem:[%s1279 + $0x5c] sm:$0x1]
    %v1346 = vsel %vm52, %v1206, %v1345
    %1347 = vst [vmem:[%s1279 + $0x5c] sm:$0x1] %v1346
    %v1348 = vld [vmem:[%s1279 + $0x60] sm:$0xf]
    %v1349 = vsel %vm1281, %v1213, %v1348
    %1350 = vst [vmem:[%s1279 + $0x60] sm:$0xf] %v1349
    %v1351 = vld [vmem:[%s1279 + $0x64] sm:$0x1]
    %v1352 = vsel %vm52, %v1214, %v1351
    %1353 = vst [vmem:[%s1279 + $0x64] sm:$0x1] %v1352
    %v1354 = vld [vmem:[%s1279 + $0x68] sm:$0xf]
    %v1355 = vsel %vm1281, %v1221, %v1354
    %1356 = vst [vmem:[%s1279 + $0x68] sm:$0xf] %v1355
    %v1357 = vld [vmem:[%s1279 + $0x6c] sm:$0x1]
    %v1358 = vsel %vm52, %v1222, %v1357
    %1359 = vst [vmem:[%s1279 + $0x6c] sm:$0x1] %v1358
    %v1360 = vld [vmem:[%s1279 + $0x70] sm:$0xf]
    %v1361 = vsel %vm1281, %v1229, %v1360
    %1362 = vst [vmem:[%s1279 + $0x70] sm:$0xf] %v1361
    %v1363 = vld [vmem:[%s1279 + $0x74] sm:$0x1]
    %v1364 = vsel %vm52, %v1230, %v1363
    %1365 = vst [vmem:[%s1279 + $0x74] sm:$0x1] %v1364
    %v1366 = vld [vmem:[%s1279 + $0x78] sm:$0xf]
    %v1367 = vsel %vm1281, %v1237, %v1366
    %1368 = vst [vmem:[%s1279 + $0x78] sm:$0xf] %v1367
    %v1369 = vld [vmem:[%s1279 + $0x7c] sm:$0x1]
    %v1370 = vsel %vm52, %v1238, %v1369
    %1371 = vst [vmem:[%s1279 + $0x7c] sm:$0x1] %v1370
    %v1372 = vld [vmem:[%s1279 + $0x80] sm:$0xf]
    %v1373 = vsel %vm1281, %v1245, %v1372
    %1374 = vst [vmem:[%s1279 + $0x80] sm:$0xf] %v1373
    %v1375 = vld [vmem:[%s1279 + $0x84] sm:$0x1]
    %v1376 = vsel %vm52, %v1246, %v1375
    %1377 = vst [vmem:[%s1279 + $0x84] sm:$0x1] %v1376
    %v1386 = vunpack.c.l.b16 %v1055
    %v1387 = vunpack.c.h.b16 %v1055
    %v1388 = vunpack.c.l.b16 %v1056
    %v1389 = vunpack.c.h.b16 %v1056
    %v1390 = vunpack.c.l.b16 %v1057
    %v1391 = vunpack.c.h.b16 %v1057
    %v1392 = vunpack.c.l.b16 %v1058
    %v1393 = vunpack.c.h.b16 %v1058
    %v1394 = vunpack.c.l.b16 %v1059
    %v1395 = vunpack.c.h.b16 %v1059
    %v1396 = vunpack.c.l.b16 %v1060
    %v1397 = vunpack.c.h.b16 %v1060
    %v1398 = vunpack.c.l.b16 %v1061
    %v1399 = vunpack.c.h.b16 %v1061
    %v1400 = vunpack.c.l.b16 %v1062
    %v1401 = vunpack.c.h.b16 %v1062
    %v1402 = vpack.c.b16 %v1386, %v1386
    %v1403 = vpack.c.b16 %v1387, %v1387
    %v1404 = vpack.c.b16 %v1388, %v1388
    %v1405 = vpack.c.b16 %v1389, %v1389
    %v1406 = vpack.c.b16 %v1390, %v1390
    %v1407 = vpack.c.b16 %v1391, %v1391
    %v1408 = vpack.c.b16 %v1392, %v1392
    %v1409 = vpack.c.b16 %v1393, %v1393
    %v1410 = vpack.c.b16 %v1394, %v1394
    %v1411 = vpack.c.b16 %v1395, %v1395
    %v1412 = vpack.c.b16 %v1396, %v1396
    %v1413 = vpack.c.b16 %v1397, %v1397
    %v1414 = vpack.c.b16 %v1398, %v1398
    %v1415 = vpack.c.b16 %v1399, %v1399
    %v1416 = vpack.c.b16 %v1400, %v1400
    %v1417 = vpack.c.b16 %v1401, %v1401
    %v1419 = vshrl.u32 %v1402, 16
    %v1421 = vrot.slane %v1419, 7
    %v1422 = vshll.u32 %v1402, 16
    %v1424 = vor.u32 %v1421, %v1422
    %v1425 = vrot.slane %v1421, 4
    %v1427 = vshrl.u32 %v1403, 16
    %v1429 = vrot.slane %v1427, 7
    %v1430 = vshll.u32 %v1403, 16
    %v1432 = vor.u32 %v1429, %v1430
    %v1433 = vrot.slane %v1429, 4
    %v1435 = vshrl.u32 %v1404, 16
    %v1437 = vrot.slane %v1435, 7
    %v1438 = vshll.u32 %v1404, 16
    %v1440 = vor.u32 %v1437, %v1438
    %v1441 = vrot.slane %v1437, 4
    %v1443 = vshrl.u32 %v1405, 16
    %v1445 = vrot.slane %v1443, 7
    %v1446 = vshll.u32 %v1405, 16
    %v1448 = vor.u32 %v1445, %v1446
    %v1449 = vrot.slane %v1445, 4
    %v1451 = vshrl.u32 %v1406, 16
    %v1453 = vrot.slane %v1451, 7
    %v1454 = vshll.u32 %v1406, 16
    %v1456 = vor.u32 %v1453, %v1454
    %v1457 = vrot.slane %v1453, 4
    %v1459 = vshrl.u32 %v1407, 16
    %v1461 = vrot.slane %v1459, 7
    %v1462 = vshll.u32 %v1407, 16
    %v1464 = vor.u32 %v1461, %v1462
    %v1465 = vrot.slane %v1461, 4
    %v1467 = vshrl.u32 %v1408, 16
    %v1469 = vrot.slane %v1467, 7
    %v1470 = vshll.u32 %v1408, 16
    %v1472 = vor.u32 %v1469, %v1470
    %v1473 = vrot.slane %v1469, 4
    %v1475 = vshrl.u32 %v1409, 16
    %v1477 = vrot.slane %v1475, 7
    %v1478 = vshll.u32 %v1409, 16
    %v1480 = vor.u32 %v1477, %v1478
    %v1481 = vrot.slane %v1477, 4
    %v1483 = vshrl.u32 %v1410, 16
    %v1485 = vrot.slane %v1483, 7
    %v1486 = vshll.u32 %v1410, 16
    %v1488 = vor.u32 %v1485, %v1486
    %v1489 = vrot.slane %v1485, 4
    %v1491 = vshrl.u32 %v1411, 16
    %v1493 = vrot.slane %v1491, 7
    %v1494 = vshll.u32 %v1411, 16
    %v1496 = vor.u32 %v1493, %v1494
    %v1497 = vrot.slane %v1493, 4
    %v1499 = vshrl.u32 %v1412, 16
    %v1501 = vrot.slane %v1499, 7
    %v1502 = vshll.u32 %v1412, 16
    %v1504 = vor.u32 %v1501, %v1502
    %v1505 = vrot.slane %v1501, 4
    %v1507 = vshrl.u32 %v1413, 16
    %v1509 = vrot.slane %v1507, 7
    %v1510 = vshll.u32 %v1413, 16
    %v1512 = vor.u32 %v1509, %v1510
    %v1513 = vrot.slane %v1509, 4
    %v1515 = vshrl.u32 %v1414, 16
    %v1517 = vrot.slane %v1515, 7
    %v1518 = vshll.u32 %v1414, 16
    %v1520 = vor.u32 %v1517, %v1518
    %v1521 = vrot.slane %v1517, 4
    %v1523 = vshrl.u32 %v1415, 16
    %v1525 = vrot.slane %v1523, 7
    %v1526 = vshll.u32 %v1415, 16
    %v1528 = vor.u32 %v1525, %v1526
    %v1529 = vrot.slane %v1525, 4
    %v1531 = vshrl.u32 %v1416, 16
    %v1533 = vrot.slane %v1531, 7
    %v1534 = vshll.u32 %v1416, 16
    %v1536 = vor.u32 %v1533, %v1534
    %v1537 = vrot.slane %v1533, 4
    %v1539 = vshrl.u32 %v1417, 16
    %v1541 = vrot.slane %v1539, 7
    %v1542 = vshll.u32 %v1417, 16
    %v1544 = vor.u32 %v1541, %v1542
    %v1545 = vrot.slane %v1541, 4
    %s1578 = scalar_lea.vmem [#allocation2], 152
    %v1579 = vld [vmem:[%s1578] sm:$0xf]
    %v1580 = vsel %vm1281, %v1424, %v1579
    %1581 = vst [vmem:[%s1578] sm:$0xf] %v1580
    %v1582 = vld [vmem:[%s1578 + $0x4] sm:$0x1]
    %v1583 = vsel %vm52, %v1425, %v1582
    %1584 = vst [vmem:[%s1578 + $0x4] sm:$0x1] %v1583
    %v1585 = vld [vmem:[%s1578 + $0x8] sm:$0xf]
    %v1586 = vsel %vm1281, %v1432, %v1585
    %1587 = vst [vmem:[%s1578 + $0x8] sm:$0xf] %v1586
    %v1588 = vld [vmem:[%s1578 + $0xc] sm:$0x1]
    %v1589 = vsel %vm52, %v1433, %v1588
    %1590 = vst [vmem:[%s1578 + $0xc] sm:$0x1] %v1589
    %v1591 = vld [vmem:[%s1578 + $0x10] sm:$0xf]
    %v1592 = vsel %vm1281, %v1440, %v1591
    %1593 = vst [vmem:[%s1578 + $0x10] sm:$0xf] %v1592
    %v1594 = vld [vmem:[%s1578 + $0x14] sm:$0x1]
    %v1595 = vsel %vm52, %v1441, %v1594
    %1596 = vst [vmem:[%s1578 + $0x14] sm:$0x1] %v1595
    %v1597 = vld [vmem:[%s1578 + $0x18] sm:$0xf]
    %v1598 = vsel %vm1281, %v1448, %v1597
    %1599 = vst [vmem:[%s1578 + $0x18] sm:$0xf] %v1598
    %v1600 = vld [vmem:[%s1578 + $0x1c] sm:$0x1]
    %v1601 = vsel %vm52, %v1449, %v1600
    %1602 = vst [vmem:[%s1578 + $0x1c] sm:$0x1] %v1601
    %v1603 = vld [vmem:[%s1578 + $0x20] sm:$0xf]
    %v1604 = vsel %vm1281, %v1456, %v1603
    %1605 = vst [vmem:[%s1578 + $0x20] sm:$0xf] %v1604
    %v1606 = vld [vmem:[%s1578 + $0x24] sm:$0x1]
    %v1607 = vsel %vm52, %v1457, %v1606
    %1608 = vst [vmem:[%s1578 + $0x24] sm:$0x1] %v1607
    %v1609 = vld [vmem:[%s1578 + $0x28] sm:$0xf]
    %v1610 = vsel %vm1281, %v1464, %v1609
    %1611 = vst [vmem:[%s1578 + $0x28] sm:$0xf] %v1610
    %v1612 = vld [vmem:[%s1578 + $0x2c] sm:$0x1]
    %v1613 = vsel %vm52, %v1465, %v1612
    %1614 = vst [vmem:[%s1578 + $0x2c] sm:$0x1] %v1613
    %v1615 = vld [vmem:[%s1578 + $0x30] sm:$0xf]
    %v1616 = vsel %vm1281, %v1472, %v1615
    %1617 = vst [vmem:[%s1578 + $0x30] sm:$0xf] %v1616
    %v1618 = vld [vmem:[%s1578 + $0x34] sm:$0x1]
    %v1619 = vsel %vm52, %v1473, %v1618
    %1620 = vst [vmem:[%s1578 + $0x34] sm:$0x1] %v1619
    %v1621 = vld [vmem:[%s1578 + $0x38] sm:$0xf]
    %v1622 = vsel %vm1281, %v1480, %v1621
    %1623 = vst [vmem:[%s1578 + $0x38] sm:$0xf] %v1622
    %v1624 = vld [vmem:[%s1578 + $0x3c] sm:$0x1]
    %v1625 = vsel %vm52, %v1481, %v1624
    %1626 = vst [vmem:[%s1578 + $0x3c] sm:$0x1] %v1625
    %v1627 = vld [vmem:[%s1578 + $0x48] sm:$0xf]
    %v1628 = vsel %vm1281, %v1488, %v1627
    %1629 = vst [vmem:[%s1578 + $0x48] sm:$0xf] %v1628
    %v1630 = vld [vmem:[%s1578 + $0x4c] sm:$0x1]
    %v1631 = vsel %vm52, %v1489, %v1630
    %1632 = vst [vmem:[%s1578 + $0x4c] sm:$0x1] %v1631
    %v1633 = vld [vmem:[%s1578 + $0x50] sm:$0xf]
    %v1634 = vsel %vm1281, %v1496, %v1633
    %1635 = vst [vmem:[%s1578 + $0x50] sm:$0xf] %v1634
    %v1636 = vld [vmem:[%s1578 + $0x54] sm:$0x1]
    %v1637 = vsel %vm52, %v1497, %v1636
    %1638 = vst [vmem:[%s1578 + $0x54] sm:$0x1] %v1637
    %v1639 = vld [vmem:[%s1578 + $0x58] sm:$0xf]
    %v1640 = vsel %vm1281, %v1504, %v1639
    %1641 = vst [vmem:[%s1578 + $0x58] sm:$0xf] %v1640
    %v1642 = vld [vmem:[%s1578 + $0x5c] sm:$0x1]
    %v1643 = vsel %vm52, %v1505, %v1642
    %1644 = vst [vmem:[%s1578 + $0x5c] sm:$0x1] %v1643
    %v1645 = vld [vmem:[%s1578 + $0x60] sm:$0xf]
    %v1646 = vsel %vm1281, %v1512, %v1645
    %1647 = vst [vmem:[%s1578 + $0x60] sm:$0xf] %v1646
    %v1648 = vld [vmem:[%s1578 + $0x64] sm:$0x1]
    %v1649 = vsel %vm52, %v1513, %v1648
    %1650 = vst [vmem:[%s1578 + $0x64] sm:$0x1] %v1649
    %v1651 = vld [vmem:[%s1578 + $0x68] sm:$0xf]
    %v1652 = vsel %vm1281, %v1520, %v1651
    %1653 = vst [vmem:[%s1578 + $0x68] sm:$0xf] %v1652
    %v1654 = vld [vmem:[%s1578 + $0x6c] sm:$0x1]
    %v1655 = vsel %vm52, %v1521, %v1654
    %1656 = vst [vmem:[%s1578 + $0x6c] sm:$0x1] %v1655
    %v1657 = vld [vmem:[%s1578 + $0x70] sm:$0xf]
    %v1658 = vsel %vm1281, %v1528, %v1657
    %1659 = vst [vmem:[%s1578 + $0x70] sm:$0xf] %v1658
    %v1660 = vld [vmem:[%s1578 + $0x74] sm:$0x1]
    %v1661 = vsel %vm52, %v1529, %v1660
    %1662 = vst [vmem:[%s1578 + $0x74] sm:$0x1] %v1661
    %v1663 = vld [vmem:[%s1578 + $0x78] sm:$0xf]
    %v1664 = vsel %vm1281, %v1536, %v1663
    %1665 = vst [vmem:[%s1578 + $0x78] sm:$0xf] %v1664
    %v1666 = vld [vmem:[%s1578 + $0x7c] sm:$0x1]
    %v1667 = vsel %vm52, %v1537, %v1666
    %1668 = vst [vmem:[%s1578 + $0x7c] sm:$0x1] %v1667
    %v1669 = vld [vmem:[%s1578 + $0x80] sm:$0xf]
    %v1670 = vsel %vm1281, %v1544, %v1669
    %1671 = vst [vmem:[%s1578 + $0x80] sm:$0xf] %v1670
    %v1672 = vld [vmem:[%s1578 + $0x84] sm:$0x1]
    %v1673 = vsel %vm52, %v1545, %v1672
    %1674 = vst [vmem:[%s1578 + $0x84] sm:$0x1] %v1673
    %v1683 = vunpack.c.l.b16 %v1063
    %v1684 = vunpack.c.h.b16 %v1063
    %v1685 = vunpack.c.l.b16 %v1064
    %v1686 = vunpack.c.h.b16 %v1064
    %v1687 = vunpack.c.l.b16 %v1065
    %v1688 = vunpack.c.h.b16 %v1065
    %v1689 = vunpack.c.l.b16 %v1066
    %v1690 = vunpack.c.h.b16 %v1066
    %v1691 = vunpack.c.l.b16 %v1067
    %v1692 = vunpack.c.h.b16 %v1067
    %v1693 = vunpack.c.l.b16 %v1068
    %v1694 = vunpack.c.h.b16 %v1068
    %v1695 = vunpack.c.l.b16 %v1069
    %v1696 = vunpack.c.h.b16 %v1069
    %v1697 = vunpack.c.l.b16 %v1070
    %v1698 = vunpack.c.h.b16 %v1070
    %v1699 = vpack.c.b16 %v1683, %v1683
    %v1700 = vpack.c.b16 %v1684, %v1684
    %v1701 = vpack.c.b16 %v1685, %v1685
    %v1702 = vpack.c.b16 %v1686, %v1686
    %v1703 = vpack.c.b16 %v1687, %v1687
    %v1704 = vpack.c.b16 %v1688, %v1688
    %v1705 = vpack.c.b16 %v1689, %v1689
    %v1706 = vpack.c.b16 %v1690, %v1690
    %v1707 = vpack.c.b16 %v1691, %v1691
    %v1708 = vpack.c.b16 %v1692, %v1692
    %v1709 = vpack.c.b16 %v1693, %v1693
    %v1710 = vpack.c.b16 %v1694, %v1694
    %v1711 = vpack.c.b16 %v1695, %v1695
    %v1712 = vpack.c.b16 %v1696, %v1696
    %v1713 = vpack.c.b16 %v1697, %v1697
    %v1714 = vpack.c.b16 %v1698, %v1698
    %v1716 = vshrl.u32 %v1699, 16
    %v1718 = vrot.slane %v1716, 7
    %v1719 = vshll.u32 %v1699, 16
    %v1721 = vor.u32 %v1718, %v1719
    %v1722 = vrot.slane %v1718, 4
    %v1724 = vshrl.u32 %v1700, 16
    %v1726 = vrot.slane %v1724, 7
    %v1727 = vshll.u32 %v1700, 16
    %v1729 = vor.u32 %v1726, %v1727
    %v1730 = vrot.slane %v1726, 4
    %v1732 = vshrl.u32 %v1701, 16
    %v1734 = vrot.slane %v1732, 7
    %v1735 = vshll.u32 %v1701, 16
    %v1737 = vor.u32 %v1734, %v1735
    %v1738 = vrot.slane %v1734, 4
    %v1740 = vshrl.u32 %v1702, 16
    %v1742 = vrot.slane %v1740, 7
    %v1743 = vshll.u32 %v1702, 16
    %v1745 = vor.u32 %v1742, %v1743
    %v1746 = vrot.slane %v1742, 4
    %v1748 = vshrl.u32 %v1703, 16
    %v1750 = vrot.slane %v1748, 7
    %v1751 = vshll.u32 %v1703, 16
    %v1753 = vor.u32 %v1750, %v1751
    %v1754 = vrot.slane %v1750, 4
    %v1756 = vshrl.u32 %v1704, 16
    %v1758 = vrot.slane %v1756, 7
    %v1759 = vshll.u32 %v1704, 16
    %v1761 = vor.u32 %v1758, %v1759
    %v1762 = vrot.slane %v1758, 4
    %v1764 = vshrl.u32 %v1705, 16
    %v1766 = vrot.slane %v1764, 7
    %v1767 = vshll.u32 %v1705, 16
    %v1769 = vor.u32 %v1766, %v1767
    %v1770 = vrot.slane %v1766, 4
    %v1772 = vshrl.u32 %v1706, 16
    %v1774 = vrot.slane %v1772, 7
    %v1775 = vshll.u32 %v1706, 16
    %v1777 = vor.u32 %v1774, %v1775
    %v1778 = vrot.slane %v1774, 4
    %v1780 = vshrl.u32 %v1707, 16
    %v1782 = vrot.slane %v1780, 7
    %v1783 = vshll.u32 %v1707, 16
    %v1785 = vor.u32 %v1782, %v1783
    %v1786 = vrot.slane %v1782, 4
    %v1788 = vshrl.u32 %v1708, 16
    %v1790 = vrot.slane %v1788, 7
    %v1791 = vshll.u32 %v1708, 16
    %v1793 = vor.u32 %v1790, %v1791
    %v1794 = vrot.slane %v1790, 4
    %v1796 = vshrl.u32 %v1709, 16
    %v1798 = vrot.slane %v1796, 7
    %v1799 = vshll.u32 %v1709, 16
    %v1801 = vor.u32 %v1798, %v1799
    %v1802 = vrot.slane %v1798, 4
    %v1804 = vshrl.u32 %v1710, 16
    %v1806 = vrot.slane %v1804, 7
    %v1807 = vshll.u32 %v1710, 16
    %v1809 = vor.u32 %v1806, %v1807
    %v1810 = vrot.slane %v1806, 4
    %v1812 = vshrl.u32 %v1711, 16
    %v1814 = vrot.slane %v1812, 7
    %v1815 = vshll.u32 %v1711, 16
    %v1817 = vor.u32 %v1814, %v1815
    %v1818 = vrot.slane %v1814, 4
    %v1820 = vshrl.u32 %v1712, 16
    %v1822 = vrot.slane %v1820, 7
    %v1823 = vshll.u32 %v1712, 16
    %v1825 = vor.u32 %v1822, %v1823
    %v1826 = vrot.slane %v1822, 4
    %v1828 = vshrl.u32 %v1713, 16
    %v1830 = vrot.slane %v1828, 7
    %v1831 = vshll.u32 %v1713, 16
    %v1833 = vor.u32 %v1830, %v1831
    %v1834 = vrot.slane %v1830, 4
    %v1836 = vshrl.u32 %v1714, 16
    %v1838 = vrot.slane %v1836, 7
    %v1839 = vshll.u32 %v1714, 16
    %v1841 = vor.u32 %v1838, %v1839
    %v1842 = vrot.slane %v1838, 4
    %s1875 = scalar_lea.vmem [#allocation2], 296
    %v1876 = vld [vmem:[%s1875] sm:$0xf]
    %v1877 = vsel %vm1281, %v1721, %v1876
    %1878 = vst [vmem:[%s1875] sm:$0xf] %v1877
    %v1879 = vld [vmem:[%s1875 + $0x4] sm:$0x1]
    %v1880 = vsel %vm52, %v1722, %v1879
    %1881 = vst [vmem:[%s1875 + $0x4] sm:$0x1] %v1880
    %v1882 = vld [vmem:[%s1875 + $0x8] sm:$0xf]
    %v1883 = vsel %vm1281, %v1729, %v1882
    %1884 = vst [vmem:[%s1875 + $0x8] sm:$0xf] %v1883
    %v1885 = vld [vmem:[%s1875 + $0xc] sm:$0x1]
    %v1886 = vsel %vm52, %v1730, %v1885
    %1887 = vst [vmem:[%s1875 + $0xc] sm:$0x1] %v1886
    %v1888 = vld [vmem:[%s1875 + $0x10] sm:$0xf]
    %v1889 = vsel %vm1281, %v1737, %v1888
    %1890 = vst [vmem:[%s1875 + $0x10] sm:$0xf] %v1889
    %v1891 = vld [vmem:[%s1875 + $0x14] sm:$0x1]
    %v1892 = vsel %vm52, %v1738, %v1891
    %1893 = vst [vmem:[%s1875 + $0x14] sm:$0x1] %v1892
    %v1894 = vld [vmem:[%s1875 + $0x18] sm:$0xf]
    %v1895 = vsel %vm1281, %v1745, %v1894
    %1896 = vst [vmem:[%s1875 + $0x18] sm:$0xf] %v1895
    %v1897 = vld [vmem:[%s1875 + $0x1c] sm:$0x1]
    %v1898 = vsel %vm52, %v1746, %v1897
    %1899 = vst [vmem:[%s1875 + $0x1c] sm:$0x1] %v1898
    %v1900 = vld [vmem:[%s1875 + $0x20] sm:$0xf]
    %v1901 = vsel %vm1281, %v1753, %v1900
    %1902 = vst [vmem:[%s1875 + $0x20] sm:$0xf] %v1901
    %v1903 = vld [vmem:[%s1875 + $0x24] sm:$0x1]
    %v1904 = vsel %vm52, %v1754, %v1903
    %1905 = vst [vmem:[%s1875 + $0x24] sm:$0x1] %v1904
    %v1906 = vld [vmem:[%s1875 + $0x28] sm:$0xf]
    %v1907 = vsel %vm1281, %v1761, %v1906
    %1908 = vst [vmem:[%s1875 + $0x28] sm:$0xf] %v1907
    %v1909 = vld [vmem:[%s1875 + $0x2c] sm:$0x1]
    %v1910 = vsel %vm52, %v1762, %v1909
    %1911 = vst [vmem:[%s1875 + $0x2c] sm:$0x1] %v1910
    %v1912 = vld [vmem:[%s1875 + $0x30] sm:$0xf]
    %v1913 = vsel %vm1281, %v1769, %v1912
    %1914 = vst [vmem:[%s1875 + $0x30] sm:$0xf] %v1913
    %v1915 = vld [vmem:[%s1875 + $0x34] sm:$0x1]
    %v1916 = vsel %vm52, %v1770, %v1915
    %1917 = vst [vmem:[%s1875 + $0x34] sm:$0x1] %v1916
    %v1918 = vld [vmem:[%s1875 + $0x38] sm:$0xf]
    %v1919 = vsel %vm1281, %v1777, %v1918
    %1920 = vst [vmem:[%s1875 + $0x38] sm:$0xf] %v1919
    %v1921 = vld [vmem:[%s1875 + $0x3c] sm:$0x1]
    %v1922 = vsel %vm52, %v1778, %v1921
    %1923 = vst [vmem:[%s1875 + $0x3c] sm:$0x1] %v1922
    %v1924 = vld [vmem:[%s1875 + $0x48] sm:$0xf]
    %v1925 = vsel %vm1281, %v1785, %v1924
    %1926 = vst [vmem:[%s1875 + $0x48] sm:$0xf] %v1925
    %v1927 = vld [vmem:[%s1875 + $0x4c] sm:$0x1]
    %v1928 = vsel %vm52, %v1786, %v1927
    %1929 = vst [vmem:[%s1875 + $0x4c] sm:$0x1] %v1928
    %v1930 = vld [vmem:[%s1875 + $0x50] sm:$0xf]
    %v1931 = vsel %vm1281, %v1793, %v1930
    %1932 = vst [vmem:[%s1875 + $0x50] sm:$0xf] %v1931
    %v1933 = vld [vmem:[%s1875 + $0x54] sm:$0x1]
    %v1934 = vsel %vm52, %v1794, %v1933
    %1935 = vst [vmem:[%s1875 + $0x54] sm:$0x1] %v1934
    %v1936 = vld [vmem:[%s1875 + $0x58] sm:$0xf]
    %v1937 = vsel %vm1281, %v1801, %v1936
    %1938 = vst [vmem:[%s1875 + $0x58] sm:$0xf] %v1937
    %v1939 = vld [vmem:[%s1875 + $0x5c] sm:$0x1]
    %v1940 = vsel %vm52, %v1802, %v1939
    %1941 = vst [vmem:[%s1875 + $0x5c] sm:$0x1] %v1940
    %v1942 = vld [vmem:[%s1875 + $0x60] sm:$0xf]
    %v1943 = vsel %vm1281, %v1809, %v1942
    %1944 = vst [vmem:[%s1875 + $0x60] sm:$0xf] %v1943
    %v1945 = vld [vmem:[%s1875 + $0x64] sm:$0x1]
    %v1946 = vsel %vm52, %v1810, %v1945
    %1947 = vst [vmem:[%s1875 + $0x64] sm:$0x1] %v1946
    %v1948 = vld [vmem:[%s1875 + $0x68] sm:$0xf]
    %v1949 = vsel %vm1281, %v1817, %v1948
    %1950 = vst [vmem:[%s1875 + $0x68] sm:$0xf] %v1949
    %v1951 = vld [vmem:[%s1875 + $0x6c] sm:$0x1]
    %v1952 = vsel %vm52, %v1818, %v1951
    %1953 = vst [vmem:[%s1875 + $0x6c] sm:$0x1] %v1952
    %v1954 = vld [vmem:[%s1875 + $0x70] sm:$0xf]
    %v1955 = vsel %vm1281, %v1825, %v1954
    %1956 = vst [vmem:[%s1875 + $0x70] sm:$0xf] %v1955
    %v1957 = vld [vmem:[%s1875 + $0x74] sm:$0x1]
    %v1958 = vsel %vm52, %v1826, %v1957
    %1959 = vst [vmem:[%s1875 + $0x74] sm:$0x1] %v1958
    %v1960 = vld [vmem:[%s1875 + $0x78] sm:$0xf]
    %v1961 = vsel %vm1281, %v1833, %v1960
    %1962 = vst [vmem:[%s1875 + $0x78] sm:$0xf] %v1961
    %v1963 = vld [vmem:[%s1875 + $0x7c] sm:$0x1]
    %v1964 = vsel %vm52, %v1834, %v1963
    %1965 = vst [vmem:[%s1875 + $0x7c] sm:$0x1] %v1964
    %v1966 = vld [vmem:[%s1875 + $0x80] sm:$0xf]
    %v1967 = vsel %vm1281, %v1841, %v1966
    %1968 = vst [vmem:[%s1875 + $0x80] sm:$0xf] %v1967
    %v1969 = vld [vmem:[%s1875 + $0x84] sm:$0x1]
    %v1970 = vsel %vm52, %v1842, %v1969
    %1971 = vst [vmem:[%s1875 + $0x84] sm:$0x1] %v1970
    %v1980 = vunpack.c.l.b16 %v1071
    %v1981 = vunpack.c.h.b16 %v1071
    %v1982 = vunpack.c.l.b16 %v1072
    %v1983 = vunpack.c.h.b16 %v1072
    %v1984 = vunpack.c.l.b16 %v1073
    %v1985 = vunpack.c.h.b16 %v1073
    %v1986 = vunpack.c.l.b16 %v1074
    %v1987 = vunpack.c.h.b16 %v1074
    %v1988 = vunpack.c.l.b16 %v1075
    %v1989 = vunpack.c.h.b16 %v1075
    %v1990 = vunpack.c.l.b16 %v1076
    %v1991 = vunpack.c.h.b16 %v1076
    %v1992 = vunpack.c.l.b16 %v1077
    %v1993 = vunpack.c.h.b16 %v1077
    %v1994 = vunpack.c.l.b16 %v1078
    %v1995 = vunpack.c.h.b16 %v1078
    %v1996 = vpack.c.b16 %v1980, %v1980
    %v1997 = vpack.c.b16 %v1981, %v1981
    %v1998 = vpack.c.b16 %v1982, %v1982
    %v1999 = vpack.c.b16 %v1983, %v1983
    %v2000 = vpack.c.b16 %v1984, %v1984
    %v2001 = vpack.c.b16 %v1985, %v1985
    %v2002 = vpack.c.b16 %v1986, %v1986
    %v2003 = vpack.c.b16 %v1987, %v1987
    %v2004 = vpack.c.b16 %v1988, %v1988
    %v2005 = vpack.c.b16 %v1989, %v1989
    %v2006 = vpack.c.b16 %v1990, %v1990
    %v2007 = vpack.c.b16 %v1991, %v1991
    %v2008 = vpack.c.b16 %v1992, %v1992
    %v2009 = vpack.c.b16 %v1993, %v1993
    %v2010 = vpack.c.b16 %v1994, %v1994
    %v2011 = vpack.c.b16 %v1995, %v1995
    %v2013 = vshrl.u32 %v1996, 16
    %v2015 = vrot.slane %v2013, 7
    %v2016 = vshll.u32 %v1996, 16
    %v2018 = vor.u32 %v2015, %v2016
    %v2019 = vrot.slane %v2015, 4
    %v2021 = vshrl.u32 %v1997, 16
    %v2023 = vrot.slane %v2021, 7
    %v2024 = vshll.u32 %v1997, 16
    %v2026 = vor.u32 %v2023, %v2024
    %v2027 = vrot.slane %v2023, 4
    %v2029 = vshrl.u32 %v1998, 16
    %v2031 = vrot.slane %v2029, 7
    %v2032 = vshll.u32 %v1998, 16
    %v2034 = vor.u32 %v2031, %v2032
    %v2035 = vrot.slane %v2031, 4
    %v2037 = vshrl.u32 %v1999, 16
    %v2039 = vrot.slane %v2037, 7
    %v2040 = vshll.u32 %v1999, 16
    %v2042 = vor.u32 %v2039, %v2040
    %v2043 = vrot.slane %v2039, 4
    %v2045 = vshrl.u32 %v2000, 16
    %v2047 = vrot.slane %v2045, 7
    %v2048 = vshll.u32 %v2000, 16
    %v2050 = vor.u32 %v2047, %v2048
    %v2051 = vrot.slane %v2047, 4
    %v2053 = vshrl.u32 %v2001, 16
    %v2055 = vrot.slane %v2053, 7
    %v2056 = vshll.u32 %v2001, 16
    %v2058 = vor.u32 %v2055, %v2056
    %v2059 = vrot.slane %v2055, 4
    %v2061 = vshrl.u32 %v2002, 16
    %v2063 = vrot.slane %v2061, 7
    %v2064 = vshll.u32 %v2002, 16
    %v2066 = vor.u32 %v2063, %v2064
    %v2067 = vrot.slane %v2063, 4
    %v2069 = vshrl.u32 %v2003, 16
    %v2071 = vrot.slane %v2069, 7
    %v2072 = vshll.u32 %v2003, 16
    %v2074 = vor.u32 %v2071, %v2072
    %v2075 = vrot.slane %v2071, 4
    %v2077 = vshrl.u32 %v2004, 16
    %v2079 = vrot.slane %v2077, 7
    %v2080 = vshll.u32 %v2004, 16
    %v2082 = vor.u32 %v2079, %v2080
    %v2083 = vrot.slane %v2079, 4
    %v2085 = vshrl.u32 %v2005, 16
    %v2087 = vrot.slane %v2085, 7
    %v2088 = vshll.u32 %v2005, 16
    %v2090 = vor.u32 %v2087, %v2088
    %v2091 = vrot.slane %v2087, 4
    %v2093 = vshrl.u32 %v2006, 16
    %v2095 = vrot.slane %v2093, 7
    %v2096 = vshll.u32 %v2006, 16
    %v2098 = vor.u32 %v2095, %v2096
    %v2099 = vrot.slane %v2095, 4
    %v2101 = vshrl.u32 %v2007, 16
    %v2103 = vrot.slane %v2101, 7
    %v2104 = vshll.u32 %v2007, 16
    %v2106 = vor.u32 %v2103, %v2104
    %v2107 = vrot.slane %v2103, 4
    %v2109 = vshrl.u32 %v2008, 16
    %v2111 = vrot.slane %v2109, 7
    %v2112 = vshll.u32 %v2008, 16
    %v2114 = vor.u32 %v2111, %v2112
    %v2115 = vrot.slane %v2111, 4
    %v2117 = vshrl.u32 %v2009, 16
    %v2119 = vrot.slane %v2117, 7
    %v2120 = vshll.u32 %v2009, 16
    %v2122 = vor.u32 %v2119, %v2120
    %v2123 = vrot.slane %v2119, 4
    %v2125 = vshrl.u32 %v2010, 16
    %v2127 = vrot.slane %v2125, 7
    %v2128 = vshll.u32 %v2010, 16
    %v2130 = vor.u32 %v2127, %v2128
    %v2131 = vrot.slane %v2127, 4
    %v2133 = vshrl.u32 %v2011, 16
    %v2135 = vrot.slane %v2133, 7
    %v2136 = vshll.u32 %v2011, 16
    %v2138 = vor.u32 %v2135, %v2136
    %v2139 = vrot.slane %v2135, 4
    %s2172 = scalar_lea.vmem [#allocation2], 440
    %v2173 = vld [vmem:[%s2172] sm:$0xf]
    %v2174 = vsel %vm1281, %v2018, %v2173
    %2175 = vst [vmem:[%s2172] sm:$0xf] %v2174
    %v2176 = vld [vmem:[%s2172 + $0x4] sm:$0x1]
    %v2177 = vsel %vm52, %v2019, %v2176
    %2178 = vst [vmem:[%s2172 + $0x4] sm:$0x1] %v2177
    %v2179 = vld [vmem:[%s2172 + $0x8] sm:$0xf]
    %v2180 = vsel %vm1281, %v2026, %v2179
    %2181 = vst [vmem:[%s2172 + $0x8] sm:$0xf] %v2180
    %v2182 = vld [vmem:[%s2172 + $0xc] sm:$0x1]
    %v2183 = vsel %vm52, %v2027, %v2182
    %2184 = vst [vmem:[%s2172 + $0xc] sm:$0x1] %v2183
    %v2185 = vld [vmem:[%s2172 + $0x10] sm:$0xf]
    %v2186 = vsel %vm1281, %v2034, %v2185
    %2187 = vst [vmem:[%s2172 + $0x10] sm:$0xf] %v2186
    %v2188 = vld [vmem:[%s2172 + $0x14] sm:$0x1]
    %v2189 = vsel %vm52, %v2035, %v2188
    %2190 = vst [vmem:[%s2172 + $0x14] sm:$0x1] %v2189
    %v2191 = vld [vmem:[%s2172 + $0x18] sm:$0xf]
    %v2192 = vsel %vm1281, %v2042, %v2191
    %2193 = vst [vmem:[%s2172 + $0x18] sm:$0xf] %v2192
    %v2194 = vld [vmem:[%s2172 + $0x1c] sm:$0x1]
    %v2195 = vsel %vm52, %v2043, %v2194
    %2196 = vst [vmem:[%s2172 + $0x1c] sm:$0x1] %v2195
    %v2197 = vld [vmem:[%s2172 + $0x20] sm:$0xf]
    %v2198 = vsel %vm1281, %v2050, %v2197
    %2199 = vst [vmem:[%s2172 + $0x20] sm:$0xf] %v2198
    %v2200 = vld [vmem:[%s2172 + $0x24] sm:$0x1]
    %v2201 = vsel %vm52, %v2051, %v2200
    %2202 = vst [vmem:[%s2172 + $0x24] sm:$0x1] %v2201
    %v2203 = vld [vmem:[%s2172 + $0x28] sm:$0xf]
    %v2204 = vsel %vm1281, %v2058, %v2203
    %2205 = vst [vmem:[%s2172 + $0x28] sm:$0xf] %v2204
    %v2206 = vld [vmem:[%s2172 + $0x2c] sm:$0x1]
    %v2207 = vsel %vm52, %v2059, %v2206
    %2208 = vst [vmem:[%s2172 + $0x2c] sm:$0x1] %v2207
    %v2209 = vld [vmem:[%s2172 + $0x30] sm:$0xf]
    %v2210 = vsel %vm1281, %v2066, %v2209
    %2211 = vst [vmem:[%s2172 + $0x30] sm:$0xf] %v2210
    %v2212 = vld [vmem:[%s2172 + $0x34] sm:$0x1]
    %v2213 = vsel %vm52, %v2067, %v2212
    %2214 = vst [vmem:[%s2172 + $0x34] sm:$0x1] %v2213
    %v2215 = vld [vmem:[%s2172 + $0x38] sm:$0xf]
    %v2216 = vsel %vm1281, %v2074, %v2215
    %2217 = vst [vmem:[%s2172 + $0x38] sm:$0xf] %v2216
    %v2218 = vld [vmem:[%s2172 + $0x3c] sm:$0x1]
    %v2219 = vsel %vm52, %v2075, %v2218
    %2220 = vst [vmem:[%s2172 + $0x3c] sm:$0x1] %v2219
    %v2221 = vld [vmem:[%s2172 + $0x48] sm:$0xf]
    %v2222 = vsel %vm1281, %v2082, %v2221
    %2223 = vst [vmem:[%s2172 + $0x48] sm:$0xf] %v2222
    %v2224 = vld [vmem:[%s2172 + $0x4c] sm:$0x1]
    %v2225 = vsel %vm52, %v2083, %v2224
    %2226 = vst [vmem:[%s2172 + $0x4c] sm:$0x1] %v2225
    %v2227 = vld [vmem:[%s2172 + $0x50] sm:$0xf]
    %v2228 = vsel %vm1281, %v2090, %v2227
    %2229 = vst [vmem:[%s2172 + $0x50] sm:$0xf] %v2228
    %v2230 = vld [vmem:[%s2172 + $0x54] sm:$0x1]
    %v2231 = vsel %vm52, %v2091, %v2230
    %2232 = vst [vmem:[%s2172 + $0x54] sm:$0x1] %v2231
    %v2233 = vld [vmem:[%s2172 + $0x58] sm:$0xf]
    %v2234 = vsel %vm1281, %v2098, %v2233
    %2235 = vst [vmem:[%s2172 + $0x58] sm:$0xf] %v2234
    %v2236 = vld [vmem:[%s2172 + $0x5c] sm:$0x1]
    %v2237 = vsel %vm52, %v2099, %v2236
    %2238 = vst [vmem:[%s2172 + $0x5c] sm:$0x1] %v2237
    %v2239 = vld [vmem:[%s2172 + $0x60] sm:$0xf]
    %v2240 = vsel %vm1281, %v2106, %v2239
    %2241 = vst [vmem:[%s2172 + $0x60] sm:$0xf] %v2240
    %v2242 = vld [vmem:[%s2172 + $0x64] sm:$0x1]
    %v2243 = vsel %vm52, %v2107, %v2242
    %2244 = vst [vmem:[%s2172 + $0x64] sm:$0x1] %v2243
    %v2245 = vld [vmem:[%s2172 + $0x68] sm:$0xf]
    %v2246 = vsel %vm1281, %v2114, %v2245
    %2247 = vst [vmem:[%s2172 + $0x68] sm:$0xf] %v2246
    %v2248 = vld [vmem:[%s2172 + $0x6c] sm:$0x1]
    %v2249 = vsel %vm52, %v2115, %v2248
    %2250 = vst [vmem:[%s2172 + $0x6c] sm:$0x1] %v2249
    %v2251 = vld [vmem:[%s2172 + $0x70] sm:$0xf]
    %v2252 = vsel %vm1281, %v2122, %v2251
    %2253 = vst [vmem:[%s2172 + $0x70] sm:$0xf] %v2252
    %v2254 = vld [vmem:[%s2172 + $0x74] sm:$0x1]
    %v2255 = vsel %vm52, %v2123, %v2254
    %2256 = vst [vmem:[%s2172 + $0x74] sm:$0x1] %v2255
    %v2257 = vld [vmem:[%s2172 + $0x78] sm:$0xf]
    %v2258 = vsel %vm1281, %v2130, %v2257
    %2259 = vst [vmem:[%s2172 + $0x78] sm:$0xf] %v2258
    %v2260 = vld [vmem:[%s2172 + $0x7c] sm:$0x1]
    %v2261 = vsel %vm52, %v2131, %v2260
    %2262 = vst [vmem:[%s2172 + $0x7c] sm:$0x1] %v2261
    %v2263 = vld [vmem:[%s2172 + $0x80] sm:$0xf]
    %v2264 = vsel %vm1281, %v2138, %v2263
    %2265 = vst [vmem:[%s2172 + $0x80] sm:$0xf] %v2264
    %v2266 = vld [vmem:[%s2172 + $0x84] sm:$0x1]
    %v2267 = vsel %vm52, %v2139, %v2266
    %2268 = vst [vmem:[%s2172 + $0x84] sm:$0x1] %v2267
    %s2269 = scalar_lea.vmem [#allocation2], 432
    %v2270 = vld [vmem:[%s2269] sm:$0xf]
    %v2271 = vld [vmem:[%s2269 + $0x8] sm:$0xf]
    %v2272 = vld [vmem:[%s2269 + $0x10] sm:$0xf]
    %v2273 = vld [vmem:[%s2269 + $0x18] sm:$0xf]
    %v2274 = vld [vmem:[%s2269 + $0x20] sm:$0xf]
    %v2275 = vld [vmem:[%s2269 + $0x28] sm:$0xf]
    %v2276 = vld [vmem:[%s2269 + $0x30] sm:$0xf]
    %v2277 = vld [vmem:[%s2269 + $0x38] sm:$0xf]
    %v2278 = vld [vmem:[%s2269 + $0x48] sm:$0xf]
    %v2279 = vld [vmem:[%s2269 + $0x50] sm:$0xf]
    %v2280 = vld [vmem:[%s2269 + $0x58] sm:$0xf]
    %v2281 = vld [vmem:[%s2269 + $0x60] sm:$0xf]
    %v2282 = vld [vmem:[%s2269 + $0x68] sm:$0xf]
    %v2283 = vld [vmem:[%s2269 + $0x70] sm:$0xf]
    %v2284 = vld [vmem:[%s2269 + $0x78] sm:$0xf]
    %v2285 = vld [vmem:[%s2269 + $0x80] sm:$0xf]
    %s2286 = scalar_lea.vmem [#allocation2], 288
    %v2287 = vld [vmem:[%s2286] sm:$0xf]
    %v2288 = vld [vmem:[%s2286 + $0x4] sm:$0x1]
    %v2289 = vld [vmem:[%s2286 + $0x8] sm:$0xf]
    %v2290 = vld [vmem:[%s2286 + $0xc] sm:$0x1]
    %v2291 = vld [vmem:[%s2286 + $0x10] sm:$0xf]
    %v2292 = vld [vmem:[%s2286 + $0x14] sm:$0x1]
    %v2293 = vld [vmem:[%s2286 + $0x18] sm:$0xf]
    %v2294 = vld [vmem:[%s2286 + $0x1c] sm:$0x1]
    %v2295 = vld [vmem:[%s2286 + $0x20] sm:$0xf]
    %v2296 = vld [vmem:[%s2286 + $0x24] sm:$0x1]
    %v2297 = vld [vmem:[%s2286 + $0x28] sm:$0xf]
    %v2298 = vld [vmem:[%s2286 + $0x2c] sm:$0x1]
    %v2299 = vld [vmem:[%s2286 + $0x30] sm:$0xf]
    %v2300 = vld [vmem:[%s2286 + $0x34] sm:$0x1]
    %v2301 = vld [vmem:[%s2286 + $0x38] sm:$0xf]
    %v2302 = vld [vmem:[%s2286 + $0x3c] sm:$0x1]
    %v2303 = vld [vmem:[%s2286 + $0x48] sm:$0xf]
    %v2304 = vld [vmem:[%s2286 + $0x4c] sm:$0x1]
    %v2305 = vld [vmem:[%s2286 + $0x50] sm:$0xf]
    %v2306 = vld [vmem:[%s2286 + $0x54] sm:$0x1]
    %v2307 = vld [vmem:[%s2286 + $0x58] sm:$0xf]
    %v2308 = vld [vmem:[%s2286 + $0x5c] sm:$0x1]
    %v2309 = vld [vmem:[%s2286 + $0x60] sm:$0xf]
    %v2310 = vld [vmem:[%s2286 + $0x64] sm:$0x1]
    %v2311 = vld [vmem:[%s2286 + $0x68] sm:$0xf]
    %v2312 = vld [vmem:[%s2286 + $0x6c] sm:$0x1]
    %v2313 = vld [vmem:[%s2286 + $0x70] sm:$0xf]
    %v2314 = vld [vmem:[%s2286 + $0x74] sm:$0x1]
    %v2315 = vld [vmem:[%s2286 + $0x78] sm:$0xf]
    %v2316 = vld [vmem:[%s2286 + $0x7c] sm:$0x1]
    %v2317 = vld [vmem:[%s2286 + $0x80] sm:$0xf]
    %v2318 = vld [vmem:[%s2286 + $0x84] sm:$0x1]
    %vm2319 = vsmask.f32 3328
    %vm2320 = vsmask.f32 7440
    %vm2321 = vmor %vm2319, %vm2320
    %v2323 = vshrl.u32 %v2287, 16
    %v2325 = vrot.slane %v2323, 4
    %v2326 = vshll.u32 %v2287, 16
    %v2328 = vrot.slane %v2326, 5
    %v2329 = vor.u32 %v2325, %v2328
    %v2330 = vrot.slane %v2329, 4
    %v2332 = vshll.u32 %v2288, 16
    %v2334 = vrot.slane %v2332, 5
    %v2335 = vsel %vm2321, %v2330, %v2334
    %v2337 = vshrl.u32 %v2289, 16
    %v2339 = vrot.slane %v2337, 4
    %v2340 = vshll.u32 %v2289, 16
    %v2342 = vrot.slane %v2340, 5
    %v2343 = vor.u32 %v2339, %v2342
    %v2344 = vrot.slane %v2343, 4
    %v2346 = vshll.u32 %v2290, 16
    %v2348 = vrot.slane %v2346, 5
    %v2349 = vsel %vm2321, %v2344, %v2348
    %v2351 = vshrl.u32 %v2291, 16
    %v2353 = vrot.slane %v2351, 4
    %v2354 = vshll.u32 %v2291, 16
    %v2356 = vrot.slane %v2354, 5
    %v2357 = vor.u32 %v2353, %v2356
    %v2358 = vrot.slane %v2357, 4
    %v2360 = vshll.u32 %v2292, 16
    %v2362 = vrot.slane %v2360, 5
    %v2363 = vsel %vm2321, %v2358, %v2362
    %v2365 = vshrl.u32 %v2293, 16
    %v2367 = vrot.slane %v2365, 4
    %v2368 = vshll.u32 %v2293, 16
    %v2370 = vrot.slane %v2368, 5
    %v2371 = vor.u32 %v2367, %v2370
    %v2372 = vrot.slane %v2371, 4
    %v2374 = vshll.u32 %v2294, 16
    %v2376 = vrot.slane %v2374, 5
    %v2377 = vsel %vm2321, %v2372, %v2376
    %v2379 = vshrl.u32 %v2295, 16
    %v2381 = vrot.slane %v2379, 4
    %v2382 = vshll.u32 %v2295, 16
    %v2384 = vrot.slane %v2382, 5
    %v2385 = vor.u32 %v2381, %v2384
    %v2386 = vrot.slane %v2385, 4
    %v2388 = vshll.u32 %v2296, 16
    %v2390 = vrot.slane %v2388, 5
    %v2391 = vsel %vm2321, %v2386, %v2390
    %v2393 = vshrl.u32 %v2297, 16
    %v2395 = vrot.slane %v2393, 4
    %v2396 = vshll.u32 %v2297, 16
    %v2398 = vrot.slane %v2396, 5
    %v2399 = vor.u32 %v2395, %v2398
    %v2400 = vrot.slane %v2399, 4
    %v2402 = vshll.u32 %v2298, 16
    %v2404 = vrot.slane %v2402, 5
    %v2405 = vsel %vm2321, %v2400, %v2404
    %v2407 = vshrl.u32 %v2299, 16
    %v2409 = vrot.slane %v2407, 4
    %v2410 = vshll.u32 %v2299, 16
    %v2412 = vrot.slane %v2410, 5
    %v2413 = vor.u32 %v2409, %v2412
    %v2414 = vrot.slane %v2413, 4
    %v2416 = vshll.u32 %v2300, 16
    %v2418 = vrot.slane %v2416, 5
    %v2419 = vsel %vm2321, %v2414, %v2418
    %v2421 = vshrl.u32 %v2301, 16
    %v2423 = vrot.slane %v2421, 4
    %v2424 = vshll.u32 %v2301, 16
    %v2426 = vrot.slane %v2424, 5
    %v2427 = vor.u32 %v2423, %v2426
    %v2428 = vrot.slane %v2427, 4
    %v2430 = vshll.u32 %v2302, 16
    %v2432 = vrot.slane %v2430, 5
    %v2433 = vsel %vm2321, %v2428, %v2432
    %v2435 = vshrl.u32 %v2303, 16
    %v2437 = vrot.slane %v2435, 4
    %v2438 = vshll.u32 %v2303, 16
    %v2440 = vrot.slane %v2438, 5
    %v2441 = vor.u32 %v2437, %v2440
    %v2442 = vrot.slane %v2441, 4
    %v2444 = vshll.u32 %v2304, 16
    %v2446 = vrot.slane %v2444, 5
    %v2447 = vsel %vm2321, %v2442, %v2446
    %v2449 = vshrl.u32 %v2305, 16
    %v2451 = vrot.slane %v2449, 4
    %v2452 = vshll.u32 %v2305, 16
    %v2454 = vrot.slane %v2452, 5
    %v2455 = vor.u32 %v2451, %v2454
    %v2456 = vrot.slane %v2455, 4
    %v2458 = vshll.u32 %v2306, 16
    %v2460 = vrot.slane %v2458, 5
    %v2461 = vsel %vm2321, %v2456, %v2460
    %v2463 = vshrl.u32 %v2307, 16
    %v2465 = vrot.slane %v2463, 4
    %v2466 = vshll.u32 %v2307, 16
    %v2468 = vrot.slane %v2466, 5
    %v2469 = vor.u32 %v2465, %v2468
    %v2470 = vrot.slane %v2469, 4
    %v2472 = vshll.u32 %v2308, 16
    %v2474 = vrot.slane %v2472, 5
    %v2475 = vsel %vm2321, %v2470, %v2474
    %v2477 = vshrl.u32 %v2309, 16
    %v2479 = vrot.slane %v2477, 4
    %v2480 = vshll.u32 %v2309, 16
    %v2482 = vrot.slane %v2480, 5
    %v2483 = vor.u32 %v2479, %v2482
    %v2484 = vrot.slane %v2483, 4
    %v2486 = vshll.u32 %v2310, 16
    %v2488 = vrot.slane %v2486, 5
    %v2489 = vsel %vm2321, %v2484, %v2488
    %v2491 = vshrl.u32 %v2311, 16
    %v2493 = vrot.slane %v2491, 4
    %v2494 = vshll.u32 %v2311, 16
    %v2496 = vrot.slane %v2494, 5
    %v2497 = vor.u32 %v2493, %v2496
    %v2498 = vrot.slane %v2497, 4
    %v2500 = vshll.u32 %v2312, 16
    %v2502 = vrot.slane %v2500, 5
    %v2503 = vsel %vm2321, %v2498, %v2502
    %v2505 = vshrl.u32 %v2313, 16
    %v2507 = vrot.slane %v2505, 4
    %v2508 = vshll.u32 %v2313, 16
    %v2510 = vrot.slane %v2508, 5
    %v2511 = vor.u32 %v2507, %v2510
    %v2512 = vrot.slane %v2511, 4
    %v2514 = vshll.u32 %v2314, 16
    %v2516 = vrot.slane %v2514, 5
    %v2517 = vsel %vm2321, %v2512, %v2516
    %v2519 = vshrl.u32 %v2315, 16
    %v2521 = vrot.slane %v2519, 4
    %v2522 = vshll.u32 %v2315, 16
    %v2524 = vrot.slane %v2522, 5
    %v2525 = vor.u32 %v2521, %v2524
    %v2526 = vrot.slane %v2525, 4
    %v2528 = vshll.u32 %v2316, 16
    %v2530 = vrot.slane %v2528, 5
    %v2531 = vsel %vm2321, %v2526, %v2530
    %v2533 = vshrl.u32 %v2317, 16
    %v2535 = vrot.slane %v2533, 4
    %v2536 = vshll.u32 %v2317, 16
    %v2538 = vrot.slane %v2536, 5
    %v2539 = vor.u32 %v2535, %v2538
    %v2540 = vrot.slane %v2539, 4
    %v2542 = vshll.u32 %v2318, 16
    %v2544 = vrot.slane %v2542, 5
    %v2545 = vsel %vm2321, %v2540, %v2544
    %v2546 = vld [vmem:[%s2269 + $0x4] sm:$0x1]
    %v2547 = vld [vmem:[%s2269 + $0xc] sm:$0x1]
    %v2548 = vld [vmem:[%s2269 + $0x14] sm:$0x1]
    %v2549 = vld [vmem:[%s2269 + $0x1c] sm:$0x1]
    %v2550 = vld [vmem:[%s2269 + $0x24] sm:$0x1]
    %v2551 = vld [vmem:[%s2269 + $0x2c] sm:$0x1]
    %v2552 = vld [vmem:[%s2269 + $0x34] sm:$0x1]
    %v2553 = vld [vmem:[%s2269 + $0x3c] sm:$0x1]
    %v2554 = vld [vmem:[%s2269 + $0x4c] sm:$0x1]
    %v2555 = vld [vmem:[%s2269 + $0x54] sm:$0x1]
    %v2556 = vld [vmem:[%s2269 + $0x5c] sm:$0x1]
    %v2557 = vld [vmem:[%s2269 + $0x64] sm:$0x1]
    %v2558 = vld [vmem:[%s2269 + $0x6c] sm:$0x1]
    %v2559 = vld [vmem:[%s2269 + $0x74] sm:$0x1]
    %v2560 = vld [vmem:[%s2269 + $0x7c] sm:$0x1]
    %v2561 = vld [vmem:[%s2269 + $0x84] sm:$0x1]
    %v2563 = vshrl.u32 %v2270, 16
    %v2565 = vrot.slane %v2563, 4
    %v2566 = vshll.u32 %v2270, 16
    %v2568 = vrot.slane %v2566, 5
    %v2569 = vor.u32 %v2565, %v2568
    %v2570 = vrot.slane %v2569, 4
    %v2572 = vshll.u32 %v2546, 16
    %v2574 = vrot.slane %v2572, 5
    %v2575 = vsel %vm2321, %v2570, %v2574
    %v2577 = vshrl.u32 %v2271, 16
    %v2579 = vrot.slane %v2577, 4
    %v2580 = vshll.u32 %v2271, 16
    %v2582 = vrot.slane %v2580, 5
    %v2583 = vor.u32 %v2579, %v2582
    %v2584 = vrot.slane %v2583, 4
    %v2586 = vshll.u32 %v2547, 16
    %v2588 = vrot.slane %v2586, 5
    %v2589 = vsel %vm2321, %v2584, %v2588
    %v2591 = vshrl.u32 %v2272, 16
    %v2593 = vrot.slane %v2591, 4
    %v2594 = vshll.u32 %v2272, 16
    %v2596 = vrot.slane %v2594, 5
    %v2597 = vor.u32 %v2593, %v2596
    %v2598 = vrot.slane %v2597, 4
    %v2600 = vshll.u32 %v2548, 16
    %v2602 = vrot.slane %v2600, 5
    %v2603 = vsel %vm2321, %v2598, %v2602
    %v2605 = vshrl.u32 %v2273, 16
    %v2607 = vrot.slane %v2605, 4
    %v2608 = vshll.u32 %v2273, 16
    %v2610 = vrot.slane %v2608, 5
    %v2611 = vor.u32 %v2607, %v2610
    %v2612 = vrot.slane %v2611, 4
    %v2614 = vshll.u32 %v2549, 16
    %v2616 = vrot.slane %v2614, 5
    %v2617 = vsel %vm2321, %v2612, %v2616
    %v2619 = vshrl.u32 %v2274, 16
    %v2621 = vrot.slane %v2619, 4
    %v2622 = vshll.u32 %v2274, 16
    %v2624 = vrot.slane %v2622, 5
    %v2625 = vor.u32 %v2621, %v2624
    %v2626 = vrot.slane %v2625, 4
    %v2628 = vshll.u32 %v2550, 16
    %v2630 = vrot.slane %v2628, 5
    %v2631 = vsel %vm2321, %v2626, %v2630
    %v2633 = vshrl.u32 %v2275, 16
    %v2635 = vrot.slane %v2633, 4
    %v2636 = vshll.u32 %v2275, 16
    %v2638 = vrot.slane %v2636, 5
    %v2639 = vor.u32 %v2635, %v2638
    %v2640 = vrot.slane %v2639, 4
    %v2642 = vshll.u32 %v2551, 16
    %v2644 = vrot.slane %v2642, 5
    %v2645 = vsel %vm2321, %v2640, %v2644
    %v2647 = vshrl.u32 %v2276, 16
    %v2649 = vrot.slane %v2647, 4
    %v2650 = vshll.u32 %v2276, 16
    %v2652 = vrot.slane %v2650, 5
    %v2653 = vor.u32 %v2649, %v2652
    %v2654 = vrot.slane %v2653, 4
    %v2656 = vshll.u32 %v2552, 16
    %v2658 = vrot.slane %v2656, 5
    %v2659 = vsel %vm2321, %v2654, %v2658
    %v2661 = vshrl.u32 %v2277, 16
    %v2663 = vrot.slane %v2661, 4
    %v2664 = vshll.u32 %v2277, 16
    %v2666 = vrot.slane %v2664, 5
    %v2667 = vor.u32 %v2663, %v2666
    %v2668 = vrot.slane %v2667, 4
    %v2670 = vshll.u32 %v2553, 16
    %v2672 = vrot.slane %v2670, 5
    %v2673 = vsel %vm2321, %v2668, %v2672
    %v2675 = vshrl.u32 %v2278, 16
    %v2677 = vrot.slane %v2675, 4
    %v2678 = vshll.u32 %v2278, 16
    %v2680 = vrot.slane %v2678, 5
    %v2681 = vor.u32 %v2677, %v2680
    %v2682 = vrot.slane %v2681, 4
    %v2684 = vshll.u32 %v2554, 16
    %v2686 = vrot.slane %v2684, 5
    %v2687 = vsel %vm2321, %v2682, %v2686
    %v2689 = vshrl.u32 %v2279, 16
    %v2691 = vrot.slane %v2689, 4
    %v2692 = vshll.u32 %v2279, 16
    %v2694 = vrot.slane %v2692, 5
    %v2695 = vor.u32 %v2691, %v2694
    %v2696 = vrot.slane %v2695, 4
    %v2698 = vshll.u32 %v2555, 16
    %v2700 = vrot.slane %v2698, 5
    %v2701 = vsel %vm2321, %v2696, %v2700
    %v2703 = vshrl.u32 %v2280, 16
    %v2705 = vrot.slane %v2703, 4
    %v2706 = vshll.u32 %v2280, 16
    %v2708 = vrot.slane %v2706, 5
    %v2709 = vor.u32 %v2705, %v2708
    %v2710 = vrot.slane %v2709, 4
    %v2712 = vshll.u32 %v2556, 16
    %v2714 = vrot.slane %v2712, 5
    %v2715 = vsel %vm2321, %v2710, %v2714
    %v2717 = vshrl.u32 %v2281, 16
    %v2719 = vrot.slane %v2717, 4
    %v2720 = vshll.u32 %v2281, 16
    %v2722 = vrot.slane %v2720, 5
    %v2723 = vor.u32 %v2719, %v2722
    %v2724 = vrot.slane %v2723, 4
    %v2726 = vshll.u32 %v2557, 16
    %v2728 = vrot.slane %v2726, 5
    %v2729 = vsel %vm2321, %v2724, %v2728
    %v2731 = vshrl.u32 %v2282, 16
    %v2733 = vrot.slane %v2731, 4
    %v2734 = vshll.u32 %v2282, 16
    %v2736 = vrot.slane %v2734, 5
    %v2737 = vor.u32 %v2733, %v2736
    %v2738 = vrot.slane %v2737, 4
    %v2740 = vshll.u32 %v2558, 16
    %v2742 = vrot.slane %v2740, 5
    %v2743 = vsel %vm2321, %v2738, %v2742
    %v2745 = vshrl.u32 %v2283, 16
    %v2747 = vrot.slane %v2745, 4
    %v2748 = vshll.u32 %v2283, 16
    %v2750 = vrot.slane %v2748, 5
    %v2751 = vor.u32 %v2747, %v2750
    %v2752 = vrot.slane %v2751, 4
    %v2754 = vshll.u32 %v2559, 16
    %v2756 = vrot.slane %v2754, 5
    %v2757 = vsel %vm2321, %v2752, %v2756
    %v2759 = vshrl.u32 %v2284, 16
    %v2761 = vrot.slane %v2759, 4
    %v2762 = vshll.u32 %v2284, 16
    %v2764 = vrot.slane %v2762, 5
    %v2765 = vor.u32 %v2761, %v2764
    %v2766 = vrot.slane %v2765, 4
    %v2768 = vshll.u32 %v2560, 16
    %v2770 = vrot.slane %v2768, 5
    %v2771 = vsel %vm2321, %v2766, %v2770
    %v2773 = vshrl.u32 %v2285, 16
    %v2775 = vrot.slane %v2773, 4
    %v2776 = vshll.u32 %v2285, 16
    %v2778 = vrot.slane %v2776, 5
    %v2779 = vor.u32 %v2775, %v2778
    %v2780 = vrot.slane %v2779, 4
    %v2782 = vshll.u32 %v2561, 16
    %v2784 = vrot.slane %v2782, 5
    %v2785 = vsel %vm2321, %v2780, %v2784
    %v2786 = vld [vmem:[%s1578] sm:$0xf]
    %v2787 = vld [vmem:[%s1578 + $0x8] sm:$0xf]
    %v2788 = vld [vmem:[%s1578 + $0x10] sm:$0xf]
    %v2789 = vld [vmem:[%s1578 + $0x18] sm:$0xf]
    %v2790 = vld [vmem:[%s1578 + $0x20] sm:$0xf]
    %v2791 = vld [vmem:[%s1578 + $0x28] sm:$0xf]
    %v2792 = vld [vmem:[%s1578 + $0x30] sm:$0xf]
    %v2793 = vld [vmem:[%s1578 + $0x38] sm:$0xf]
    %v2794 = vld [vmem:[%s1578 + $0x48] sm:$0xf]
    %v2795 = vld [vmem:[%s1578 + $0x50] sm:$0xf]
    %v2796 = vld [vmem:[%s1578 + $0x58] sm:$0xf]
    %v2797 = vld [vmem:[%s1578 + $0x60] sm:$0xf]
    %v2798 = vld [vmem:[%s1578 + $0x68] sm:$0xf]
    %v2799 = vld [vmem:[%s1578 + $0x70] sm:$0xf]
    %v2800 = vld [vmem:[%s1578 + $0x78] sm:$0xf]
    %v2801 = vld [vmem:[%s1578 + $0x80] sm:$0xf]
    %v2802 = vld [vmem:[%s1279] sm:$0xf]
    %v2803 = vld [vmem:[%s1279 + $0x4] sm:$0x1]
    %v2804 = vld [vmem:[%s1279 + $0x8] sm:$0xf]
    %v2805 = vld [vmem:[%s1279 + $0xc] sm:$0x1]
    %v2806 = vld [vmem:[%s1279 + $0x10] sm:$0xf]
    %v2807 = vld [vmem:[%s1279 + $0x14] sm:$0x1]
    %v2808 = vld [vmem:[%s1279 + $0x18] sm:$0xf]
    %v2809 = vld [vmem:[%s1279 + $0x1c] sm:$0x1]
    %v2810 = vld [vmem:[%s1279 + $0x20] sm:$0xf]
    %v2811 = vld [vmem:[%s1279 + $0x24] sm:$0x1]
    %v2812 = vld [vmem:[%s1279 + $0x28] sm:$0xf]
    %v2813 = vld [vmem:[%s1279 + $0x2c] sm:$0x1]
    %v2814 = vld [vmem:[%s1279 + $0x30] sm:$0xf]
    %v2815 = vld [vmem:[%s1279 + $0x34] sm:$0x1]
    %v2816 = vld [vmem:[%s1279 + $0x38] sm:$0xf]
    %v2817 = vld [vmem:[%s1279 + $0x3c] sm:$0x1]
    %v2818 = vld [vmem:[%s1279 + $0x48] sm:$0xf]
    %v2819 = vld [vmem:[%s1279 + $0x4c] sm:$0x1]
    %v2820 = vld [vmem:[%s1279 + $0x50] sm:$0xf]
    %v2821 = vld [vmem:[%s1279 + $0x54] sm:$0x1]
    %v2822 = vld [vmem:[%s1279 + $0x58] sm:$0xf]
    %v2823 = vld [vmem:[%s1279 + $0x5c] sm:$0x1]
    %v2824 = vld [vmem:[%s1279 + $0x60] sm:$0xf]
    %v2825 = vld [vmem:[%s1279 + $0x64] sm:$0x1]
    %v2826 = vld [vmem:[%s1279 + $0x68] sm:$0xf]
    %v2827 = vld [vmem:[%s1279 + $0x6c] sm:$0x1]
    %v2828 = vld [vmem:[%s1279 + $0x70] sm:$0xf]
    %v2829 = vld [vmem:[%s1279 + $0x74] sm:$0x1]
    %v2830 = vld [vmem:[%s1279 + $0x78] sm:$0xf]
    %v2831 = vld [vmem:[%s1279 + $0x7c] sm:$0x1]
    %v2832 = vld [vmem:[%s1279 + $0x80] sm:$0xf]
    %v2833 = vld [vmem:[%s1279 + $0x84] sm:$0x1]
    %v2835 = vshrl.u32 %v2802, 16
    %v2837 = vrot.slane %v2835, 4
    %v2838 = vshll.u32 %v2802, 16
    %v2840 = vrot.slane %v2838, 5
    %v2841 = vor.u32 %v2837, %v2840
    %v2842 = vrot.slane %v2841, 4
    %v2844 = vshll.u32 %v2803, 16
    %v2846 = vrot.slane %v2844, 5
    %v2847 = vsel %vm2321, %v2842, %v2846
    %v2849 = vshrl.u32 %v2804, 16
    %v2851 = vrot.slane %v2849, 4
    %v2852 = vshll.u32 %v2804, 16
    %v2854 = vrot.slane %v2852, 5
    %v2855 = vor.u32 %v2851, %v2854
    %v2856 = vrot.slane %v2855, 4
    %v2858 = vshll.u32 %v2805, 16
    %v2860 = vrot.slane %v2858, 5
    %v2861 = vsel %vm2321, %v2856, %v2860
    %v2863 = vshrl.u32 %v2806, 16
    %v2865 = vrot.slane %v2863, 4
    %v2866 = vshll.u32 %v2806, 16
    %v2868 = vrot.slane %v2866, 5
    %v2869 = vor.u32 %v2865, %v2868
    %v2870 = vrot.slane %v2869, 4
    %v2872 = vshll.u32 %v2807, 16
    %v2874 = vrot.slane %v2872, 5
    %v2875 = vsel %vm2321, %v2870, %v2874
    %v2877 = vshrl.u32 %v2808, 16
    %v2879 = vrot.slane %v2877, 4
    %v2880 = vshll.u32 %v2808, 16
    %v2882 = vrot.slane %v2880, 5
    %v2883 = vor.u32 %v2879, %v2882
    %v2884 = vrot.slane %v2883, 4
    %v2886 = vshll.u32 %v2809, 16
    %v2888 = vrot.slane %v2886, 5
    %v2889 = vsel %vm2321, %v2884, %v2888
    %v2891 = vshrl.u32 %v2810, 16
    %v2893 = vrot.slane %v2891, 4
    %v2894 = vshll.u32 %v2810, 16
    %v2896 = vrot.slane %v2894, 5
    %v2897 = vor.u32 %v2893, %v2896
    %v2898 = vrot.slane %v2897, 4
    %v2900 = vshll.u32 %v2811, 16
    %v2902 = vrot.slane %v2900, 5
    %v2903 = vsel %vm2321, %v2898, %v2902
    %v2905 = vshrl.u32 %v2812, 16
    %v2907 = vrot.slane %v2905, 4
    %v2908 = vshll.u32 %v2812, 16
    %v2910 = vrot.slane %v2908, 5
    %v2911 = vor.u32 %v2907, %v2910
    %v2912 = vrot.slane %v2911, 4
    %v2914 = vshll.u32 %v2813, 16
    %v2916 = vrot.slane %v2914, 5
    %v2917 = vsel %vm2321, %v2912, %v2916
    %v2919 = vshrl.u32 %v2814, 16
    %v2921 = vrot.slane %v2919, 4
    %v2922 = vshll.u32 %v2814, 16
    %v2924 = vrot.slane %v2922, 5
    %v2925 = vor.u32 %v2921, %v2924
    %v2926 = vrot.slane %v2925, 4
    %v2928 = vshll.u32 %v2815, 16
    %v2930 = vrot.slane %v2928, 5
    %v2931 = vsel %vm2321, %v2926, %v2930
    %v2933 = vshrl.u32 %v2816, 16
    %v2935 = vrot.slane %v2933, 4
    %v2936 = vshll.u32 %v2816, 16
    %v2938 = vrot.slane %v2936, 5
    %v2939 = vor.u32 %v2935, %v2938
    %v2940 = vrot.slane %v2939, 4
    %v2942 = vshll.u32 %v2817, 16
    %v2944 = vrot.slane %v2942, 5
    %v2945 = vsel %vm2321, %v2940, %v2944
    %v2947 = vshrl.u32 %v2818, 16
    %v2949 = vrot.slane %v2947, 4
    %v2950 = vshll.u32 %v2818, 16
    %v2952 = vrot.slane %v2950, 5
    %v2953 = vor.u32 %v2949, %v2952
    %v2954 = vrot.slane %v2953, 4
    %v2956 = vshll.u32 %v2819, 16
    %v2958 = vrot.slane %v2956, 5
    %v2959 = vsel %vm2321, %v2954, %v2958
    %v2961 = vshrl.u32 %v2820, 16
    %v2963 = vrot.slane %v2961, 4
    %v2964 = vshll.u32 %v2820, 16
    %v2966 = vrot.slane %v2964, 5
    %v2967 = vor.u32 %v2963, %v2966
    %v2968 = vrot.slane %v2967, 4
    %v2970 = vshll.u32 %v2821, 16
    %v2972 = vrot.slane %v2970, 5
    %v2973 = vsel %vm2321, %v2968, %v2972
    %v2975 = vshrl.u32 %v2822, 16
    %v2977 = vrot.slane %v2975, 4
    %v2978 = vshll.u32 %v2822, 16
    %v2980 = vrot.slane %v2978, 5
    %v2981 = vor.u32 %v2977, %v2980
    %v2982 = vrot.slane %v2981, 4
    %v2984 = vshll.u32 %v2823, 16
    %v2986 = vrot.slane %v2984, 5
    %v2987 = vsel %vm2321, %v2982, %v2986
    %v2989 = vshrl.u32 %v2824, 16
    %v2991 = vrot.slane %v2989, 4
    %v2992 = vshll.u32 %v2824, 16
    %v2994 = vrot.slane %v2992, 5
    %v2995 = vor.u32 %v2991, %v2994
    %v2996 = vrot.slane %v2995, 4
    %v2998 = vshll.u32 %v2825, 16
    %v3000 = vrot.slane %v2998, 5
    %v3001 = vsel %vm2321, %v2996, %v3000
    %v3003 = vshrl.u32 %v2826, 16
    %v3005 = vrot.slane %v3003, 4
    %v3006 = vshll.u32 %v2826, 16
    %v3008 = vrot.slane %v3006, 5
    %v3009 = vor.u32 %v3005, %v3008
    %v3010 = vrot.slane %v3009, 4
    %v3012 = vshll.u32 %v2827, 16
    %v3014 = vrot.slane %v3012, 5
    %v3015 = vsel %vm2321, %v3010, %v3014
    %v3017 = vshrl.u32 %v2828, 16
    %v3019 = vrot.slane %v3017, 4
    %v3020 = vshll.u32 %v2828, 16
    %v3022 = vrot.slane %v3020, 5
    %v3023 = vor.u32 %v3019, %v3022
    %v3024 = vrot.slane %v3023, 4
    %v3026 = vshll.u32 %v2829, 16
    %v3028 = vrot.slane %v3026, 5
    %v3029 = vsel %vm2321, %v3024, %v3028
    %v3031 = vshrl.u32 %v2830, 16
    %v3033 = vrot.slane %v3031, 4
    %v3034 = vshll.u32 %v2830, 16
    %v3036 = vrot.slane %v3034, 5
    %v3037 = vor.u32 %v3033, %v3036
    %v3038 = vrot.slane %v3037, 4
    %v3040 = vshll.u32 %v2831, 16
    %v3042 = vrot.slane %v3040, 5
    %v3043 = vsel %vm2321, %v3038, %v3042
    %v3045 = vshrl.u32 %v2832, 16
    %v3047 = vrot.slane %v3045, 4
    %v3048 = vshll.u32 %v2832, 16
    %v3050 = vrot.slane %v3048, 5
    %v3051 = vor.u32 %v3047, %v3050
    %v3052 = vrot.slane %v3051, 4
    %v3054 = vshll.u32 %v2833, 16
    %v3056 = vrot.slane %v3054, 5
    %v3057 = vsel %vm2321, %v3052, %v3056
    %v3058 = vld [vmem:[%s1578 + $0x4] sm:$0x1]
    %v3059 = vld [vmem:[%s1578 + $0xc] sm:$0x1]
    %v3060 = vld [vmem:[%s1578 + $0x14] sm:$0x1]
    %v3061 = vld [vmem:[%s1578 + $0x1c] sm:$0x1]
    %v3062 = vld [vmem:[%s1578 + $0x24] sm:$0x1]
    %v3063 = vld [vmem:[%s1578 + $0x2c] sm:$0x1]
    %v3064 = vld [vmem:[%s1578 + $0x34] sm:$0x1]
    %v3065 = vld [vmem:[%s1578 + $0x3c] sm:$0x1]
    %v3066 = vld [vmem:[%s1578 + $0x4c] sm:$0x1]
    %v3067 = vld [vmem:[%s1578 + $0x54] sm:$0x1]
    %v3068 = vld [vmem:[%s1578 + $0x5c] sm:$0x1]
    %v3069 = vld [vmem:[%s1578 + $0x64] sm:$0x1]
    %v3070 = vld [vmem:[%s1578 + $0x6c] sm:$0x1]
    %v3071 = vld [vmem:[%s1578 + $0x74] sm:$0x1]
    %v3072 = vld [vmem:[%s1578 + $0x7c] sm:$0x1]
    %v3073 = vld [vmem:[%s1578 + $0x84] sm:$0x1]
    %v3075 = vshrl.u32 %v2786, 16
    %v3077 = vrot.slane %v3075, 4
    %v3078 = vshll.u32 %v2786, 16
    %v3080 = vrot.slane %v3078, 5
    %v3081 = vor.u32 %v3077, %v3080
    %v3082 = vrot.slane %v3081, 4
    %v3084 = vshll.u32 %v3058, 16
    %v3086 = vrot.slane %v3084, 5
    %v3087 = vsel %vm2321, %v3082, %v3086
    %v3089 = vshrl.u32 %v2787, 16
    %v3091 = vrot.slane %v3089, 4
    %v3092 = vshll.u32 %v2787, 16
    %v3094 = vrot.slane %v3092, 5
    %v3095 = vor.u32 %v3091, %v3094
    %v3096 = vrot.slane %v3095, 4
    %v3098 = vshll.u32 %v3059, 16
    %v3100 = vrot.slane %v3098, 5
    %v3101 = vsel %vm2321, %v3096, %v3100
    %v3103 = vshrl.u32 %v2788, 16
    %v3105 = vrot.slane %v3103, 4
    %v3106 = vshll.u32 %v2788, 16
    %v3108 = vrot.slane %v3106, 5
    %v3109 = vor.u32 %v3105, %v3108
    %v3110 = vrot.slane %v3109, 4
    %v3112 = vshll.u32 %v3060, 16
    %v3114 = vrot.slane %v3112, 5
    %v3115 = vsel %vm2321, %v3110, %v3114
    %v3117 = vshrl.u32 %v2789, 16
    %v3119 = vrot.slane %v3117, 4
    %v3120 = vshll.u32 %v2789, 16
    %v3122 = vrot.slane %v3120, 5
    %v3123 = vor.u32 %v3119, %v3122
    %v3124 = vrot.slane %v3123, 4
    %v3126 = vshll.u32 %v3061, 16
    %v3128 = vrot.slane %v3126, 5
    %v3129 = vsel %vm2321, %v3124, %v3128
    %v3131 = vshrl.u32 %v2790, 16
    %v3133 = vrot.slane %v3131, 4
    %v3134 = vshll.u32 %v2790, 16
    %v3136 = vrot.slane %v3134, 5
    %v3137 = vor.u32 %v3133, %v3136
    %v3138 = vrot.slane %v3137, 4
    %v3140 = vshll.u32 %v3062, 16
    %v3142 = vrot.slane %v3140, 5
    %v3143 = vsel %vm2321, %v3138, %v3142
    %v3145 = vshrl.u32 %v2791, 16
    %v3147 = vrot.slane %v3145, 4
    %v3148 = vshll.u32 %v2791, 16
    %v3150 = vrot.slane %v3148, 5
    %v3151 = vor.u32 %v3147, %v3150
    %v3152 = vrot.slane %v3151, 4
    %v3154 = vshll.u32 %v3063, 16
    %v3156 = vrot.slane %v3154, 5
    %v3157 = vsel %vm2321, %v3152, %v3156
    %v3159 = vshrl.u32 %v2792, 16
    %v3161 = vrot.slane %v3159, 4
    %v3162 = vshll.u32 %v2792, 16
    %v3164 = vrot.slane %v3162, 5
    %v3165 = vor.u32 %v3161, %v3164
    %v3166 = vrot.slane %v3165, 4
    %v3168 = vshll.u32 %v3064, 16
    %v3170 = vrot.slane %v3168, 5
    %v3171 = vsel %vm2321, %v3166, %v3170
    %v3173 = vshrl.u32 %v2793, 16
    %v3175 = vrot.slane %v3173, 4
    %v3176 = vshll.u32 %v2793, 16
    %v3178 = vrot.slane %v3176, 5
    %v3179 = vor.u32 %v3175, %v3178
    %v3180 = vrot.slane %v3179, 4
    %v3182 = vshll.u32 %v3065, 16
    %v3184 = vrot.slane %v3182, 5
    %v3185 = vsel %vm2321, %v3180, %v3184
    %v3187 = vshrl.u32 %v2794, 16
    %v3189 = vrot.slane %v3187, 4
    %v3190 = vshll.u32 %v2794, 16
    %v3192 = vrot.slane %v3190, 5
    %v3193 = vor.u32 %v3189, %v3192
    %v3194 = vrot.slane %v3193, 4
    %v3196 = vshll.u32 %v3066, 16
    %v3198 = vrot.slane %v3196, 5
    %v3199 = vsel %vm2321, %v3194, %v3198
    %v3201 = vshrl.u32 %v2795, 16
    %v3203 = vrot.slane %v3201, 4
    %v3204 = vshll.u32 %v2795, 16
    %v3206 = vrot.slane %v3204, 5
    %v3207 = vor.u32 %v3203, %v3206
    %v3208 = vrot.slane %v3207, 4
    %v3210 = vshll.u32 %v3067, 16
    %v3212 = vrot.slane %v3210, 5
    %v3213 = vsel %vm2321, %v3208, %v3212
    %v3215 = vshrl.u32 %v2796, 16
    %v3217 = vrot.slane %v3215, 4
    %v3218 = vshll.u32 %v2796, 16
    %v3220 = vrot.slane %v3218, 5
    %v3221 = vor.u32 %v3217, %v3220
    %v3222 = vrot.slane %v3221, 4
    %v3224 = vshll.u32 %v3068, 16
    %v3226 = vrot.slane %v3224, 5
    %v3227 = vsel %vm2321, %v3222, %v3226
    %v3229 = vshrl.u32 %v2797, 16
    %v3231 = vrot.slane %v3229, 4
    %v3232 = vshll.u32 %v2797, 16
    %v3234 = vrot.slane %v3232, 5
    %v3235 = vor.u32 %v3231, %v3234
    %v3236 = vrot.slane %v3235, 4
    %v3238 = vshll.u32 %v3069, 16
    %v3240 = vrot.slane %v3238, 5
    %v3241 = vsel %vm2321, %v3236, %v3240
    %v3243 = vshrl.u32 %v2798, 16
    %v3245 = vrot.slane %v3243, 4
    %v3246 = vshll.u32 %v2798, 16
    %v3248 = vrot.slane %v3246, 5
    %v3249 = vor.u32 %v3245, %v3248
    %v3250 = vrot.slane %v3249, 4
    %v3252 = vshll.u32 %v3070, 16
    %v3254 = vrot.slane %v3252, 5
    %v3255 = vsel %vm2321, %v3250, %v3254
    %v3257 = vshrl.u32 %v2799, 16
    %v3259 = vrot.slane %v3257, 4
    %v3260 = vshll.u32 %v2799, 16
    %v3262 = vrot.slane %v3260, 5
    %v3263 = vor.u32 %v3259, %v3262
    %v3264 = vrot.slane %v3263, 4
    %v3266 = vshll.u32 %v3071, 16
    %v3268 = vrot.slane %v3266, 5
    %v3269 = vsel %vm2321, %v3264, %v3268
    %v3271 = vshrl.u32 %v2800, 16
    %v3273 = vrot.slane %v3271, 4
    %v3274 = vshll.u32 %v2800, 16
    %v3276 = vrot.slane %v3274, 5
    %v3277 = vor.u32 %v3273, %v3276
    %v3278 = vrot.slane %v3277, 4
    %v3280 = vshll.u32 %v3072, 16
    %v3282 = vrot.slane %v3280, 5
    %v3283 = vsel %vm2321, %v3278, %v3282
    %v3285 = vshrl.u32 %v2801, 16
    %v3287 = vrot.slane %v3285, 4
    %v3288 = vshll.u32 %v2801, 16
    %v3290 = vrot.slane %v3288, 5
    %v3291 = vor.u32 %v3287, %v3290
    %v3292 = vrot.slane %v3291, 4
    %v3294 = vshll.u32 %v3073, 16
    %v3296 = vrot.slane %v3294, 5
    %v3297 = vsel %vm2321, %v3292, %v3296
    %v3298 = vld [vmem:[%s2172] sm:$0xf]
    %v3299 = vld [vmem:[%s2172 + $0x8] sm:$0xf]
    %v3300 = vld [vmem:[%s2172 + $0x10] sm:$0xf]
    %v3301 = vld [vmem:[%s2172 + $0x18] sm:$0xf]
    %v3302 = vld [vmem:[%s2172 + $0x20] sm:$0xf]
    %v3303 = vld [vmem:[%s2172 + $0x28] sm:$0xf]
    %v3304 = vld [vmem:[%s2172 + $0x30] sm:$0xf]
    %v3305 = vld [vmem:[%s2172 + $0x38] sm:$0xf]
    %v3306 = vld [vmem:[%s2172 + $0x48] sm:$0xf]
    %v3307 = vld [vmem:[%s2172 + $0x50] sm:$0xf]
    %v3308 = vld [vmem:[%s2172 + $0x58] sm:$0xf]
    %v3309 = vld [vmem:[%s2172 + $0x60] sm:$0xf]
    %v3310 = vld [vmem:[%s2172 + $0x68] sm:$0xf]
    %v3311 = vld [vmem:[%s2172 + $0x70] sm:$0xf]
    %v3312 = vld [vmem:[%s2172 + $0x78] sm:$0xf]
    %v3313 = vld [vmem:[%s2172 + $0x80] sm:$0xf]
    %v3314 = vld [vmem:[%s1875] sm:$0xf]
    %v3315 = vld [vmem:[%s1875 + $0x4] sm:$0x1]
    %v3316 = vld [vmem:[%s1875 + $0x8] sm:$0xf]
    %v3317 = vld [vmem:[%s1875 + $0xc] sm:$0x1]
    %v3318 = vld [vmem:[%s1875 + $0x10] sm:$0xf]
    %v3319 = vld [vmem:[%s1875 + $0x14] sm:$0x1]
    %v3320 = vld [vmem:[%s1875 + $0x18] sm:$0xf]
    %v3321 = vld [vmem:[%s1875 + $0x1c] sm:$0x1]
    %v3322 = vld [vmem:[%s1875 + $0x20] sm:$0xf]
    %v3323 = vld [vmem:[%s1875 + $0x24] sm:$0x1]
    %v3324 = vld [vmem:[%s1875 + $0x28] sm:$0xf]
    %v3325 = vld [vmem:[%s1875 + $0x2c] sm:$0x1]
    %v3326 = vld [vmem:[%s1875 + $0x30] sm:$0xf]
    %v3327 = vld [vmem:[%s1875 + $0x34] sm:$0x1]
    %v3328 = vld [vmem:[%s1875 + $0x38] sm:$0xf]
    %v3329 = vld [vmem:[%s1875 + $0x3c] sm:$0x1]
    %v3330 = vld [vmem:[%s1875 + $0x48] sm:$0xf]
    %v3331 = vld [vmem:[%s1875 + $0x4c] sm:$0x1]
    %v3332 = vld [vmem:[%s1875 + $0x50] sm:$0xf]
    %v3333 = vld [vmem:[%s1875 + $0x54] sm:$0x1]
    %v3334 = vld [vmem:[%s1875 + $0x58] sm:$0xf]
    %v3335 = vld [vmem:[%s1875 + $0x5c] sm:$0x1]
    %v3336 = vld [vmem:[%s1875 + $0x60] sm:$0xf]
    %v3337 = vld [vmem:[%s1875 + $0x64] sm:$0x1]
    %v3338 = vld [vmem:[%s1875 + $0x68] sm:$0xf]
    %v3339 = vld [vmem:[%s1875 + $0x6c] sm:$0x1]
    %v3340 = vld [vmem:[%s1875 + $0x70] sm:$0xf]
    %v3341 = vld [vmem:[%s1875 + $0x74] sm:$0x1]
    %v3342 = vld [vmem:[%s1875 + $0x78] sm:$0xf]
    %v3343 = vld [vmem:[%s1875 + $0x7c] sm:$0x1]
    %v3344 = vld [vmem:[%s1875 + $0x80] sm:$0xf]
    %v3345 = vld [vmem:[%s1875 + $0x84] sm:$0x1]
    %v3347 = vshrl.u32 %v3314, 16
    %v3349 = vrot.slane %v3347, 4
    %v3350 = vshll.u32 %v3314, 16
    %v3352 = vrot.slane %v3350, 5
    %v3353 = vor.u32 %v3349, %v3352
    %v3354 = vrot.slane %v3353, 4
    %v3356 = vshll.u32 %v3315, 16
    %v3358 = vrot.slane %v3356, 5
    %v3359 = vsel %vm2321, %v3354, %v3358
    %v3361 = vshrl.u32 %v3316, 16
    %v3363 = vrot.slane %v3361, 4
    %v3364 = vshll.u32 %v3316, 16
    %v3366 = vrot.slane %v3364, 5
    %v3367 = vor.u32 %v3363, %v3366
    %v3368 = vrot.slane %v3367, 4
    %v3370 = vshll.u32 %v3317, 16
    %v3372 = vrot.slane %v3370, 5
    %v3373 = vsel %vm2321, %v3368, %v3372
    %v3375 = vshrl.u32 %v3318, 16
    %v3377 = vrot.slane %v3375, 4
    %v3378 = vshll.u32 %v3318, 16
    %v3380 = vrot.slane %v3378, 5
    %v3381 = vor.u32 %v3377, %v3380
    %v3382 = vrot.slane %v3381, 4
    %v3384 = vshll.u32 %v3319, 16
    %v3386 = vrot.slane %v3384, 5
    %v3387 = vsel %vm2321, %v3382, %v3386
    %v3389 = vshrl.u32 %v3320, 16
    %v3391 = vrot.slane %v3389, 4
    %v3392 = vshll.u32 %v3320, 16
    %v3394 = vrot.slane %v3392, 5
    %v3395 = vor.u32 %v3391, %v3394
    %v3396 = vrot.slane %v3395, 4
    %v3398 = vshll.u32 %v3321, 16
    %v3400 = vrot.slane %v3398, 5
    %v3401 = vsel %vm2321, %v3396, %v3400
    %v3403 = vshrl.u32 %v3322, 16
    %v3405 = vrot.slane %v3403, 4
    %v3406 = vshll.u32 %v3322, 16
    %v3408 = vrot.slane %v3406, 5
    %v3409 = vor.u32 %v3405, %v3408
    %v3410 = vrot.slane %v3409, 4
    %v3412 = vshll.u32 %v3323, 16
    %v3414 = vrot.slane %v3412, 5
    %v3415 = vsel %vm2321, %v3410, %v3414
    %v3417 = vshrl.u32 %v3324, 16
    %v3419 = vrot.slane %v3417, 4
    %v3420 = vshll.u32 %v3324, 16
    %v3422 = vrot.slane %v3420, 5
    %v3423 = vor.u32 %v3419, %v3422
    %v3424 = vrot.slane %v3423, 4
    %v3426 = vshll.u32 %v3325, 16
    %v3428 = vrot.slane %v3426, 5
    %v3429 = vsel %vm2321, %v3424, %v3428
    %v3431 = vshrl.u32 %v3326, 16
    %v3433 = vrot.slane %v3431, 4
    %v3434 = vshll.u32 %v3326, 16
    %v3436 = vrot.slane %v3434, 5
    %v3437 = vor.u32 %v3433, %v3436
    %v3438 = vrot.slane %v3437, 4
    %v3440 = vshll.u32 %v3327, 16
    %v3442 = vrot.slane %v3440, 5
    %v3443 = vsel %vm2321, %v3438, %v3442
    %v3445 = vshrl.u32 %v3328, 16
    %v3447 = vrot.slane %v3445, 4
    %v3448 = vshll.u32 %v3328, 16
    %v3450 = vrot.slane %v3448, 5
    %v3451 = vor.u32 %v3447, %v3450
    %v3452 = vrot.slane %v3451, 4
    %v3454 = vshll.u32 %v3329, 16
    %v3456 = vrot.slane %v3454, 5
    %v3457 = vsel %vm2321, %v3452, %v3456
    %v3459 = vshrl.u32 %v3330, 16
    %v3461 = vrot.slane %v3459, 4
    %v3462 = vshll.u32 %v3330, 16
    %v3464 = vrot.slane %v3462, 5
    %v3465 = vor.u32 %v3461, %v3464
    %v3466 = vrot.slane %v3465, 4
    %v3468 = vshll.u32 %v3331, 16
    %v3470 = vrot.slane %v3468, 5
    %v3471 = vsel %vm2321, %v3466, %v3470
    %v3473 = vshrl.u32 %v3332, 16
    %v3475 = vrot.slane %v3473, 4
    %v3476 = vshll.u32 %v3332, 16
    %v3478 = vrot.slane %v3476, 5
    %v3479 = vor.u32 %v3475, %v3478
    %v3480 = vrot.slane %v3479, 4
    %v3482 = vshll.u32 %v3333, 16
    %v3484 = vrot.slane %v3482, 5
    %v3485 = vsel %vm2321, %v3480, %v3484
    %v3487 = vshrl.u32 %v3334, 16
    %v3489 = vrot.slane %v3487, 4
    %v3490 = vshll.u32 %v3334, 16
    %v3492 = vrot.slane %v3490, 5
    %v3493 = vor.u32 %v3489, %v3492
    %v3494 = vrot.slane %v3493, 4
    %v3496 = vshll.u32 %v3335, 16
    %v3498 = vrot.slane %v3496, 5
    %v3499 = vsel %vm2321, %v3494, %v3498
    %v3501 = vshrl.u32 %v3336, 16
    %v3503 = vrot.slane %v3501, 4
    %v3504 = vshll.u32 %v3336, 16
    %v3506 = vrot.slane %v3504, 5
    %v3507 = vor.u32 %v3503, %v3506
    %v3508 = vrot.slane %v3507, 4
    %v3510 = vshll.u32 %v3337, 16
    %v3512 = vrot.slane %v3510, 5
    %v3513 = vsel %vm2321, %v3508, %v3512
    %v3515 = vshrl.u32 %v3338, 16
    %v3517 = vrot.slane %v3515, 4
    %v3518 = vshll.u32 %v3338, 16
    %v3520 = vrot.slane %v3518, 5
    %v3521 = vor.u32 %v3517, %v3520
    %v3522 = vrot.slane %v3521, 4
    %v3524 = vshll.u32 %v3339, 16
    %v3526 = vrot.slane %v3524, 5
    %v3527 = vsel %vm2321, %v3522, %v3526
    %v3529 = vshrl.u32 %v3340, 16
    %v3531 = vrot.slane %v3529, 4
    %v3532 = vshll.u32 %v3340, 16
    %v3534 = vrot.slane %v3532, 5
    %v3535 = vor.u32 %v3531, %v3534
    %v3536 = vrot.slane %v3535, 4
    %v3538 = vshll.u32 %v3341, 16
    %v3540 = vrot.slane %v3538, 5
    %v3541 = vsel %vm2321, %v3536, %v3540
    %v3543 = vshrl.u32 %v3342, 16
    %v3545 = vrot.slane %v3543, 4
    %v3546 = vshll.u32 %v3342, 16
    %v3548 = vrot.slane %v3546, 5
    %v3549 = vor.u32 %v3545, %v3548
    %v3550 = vrot.slane %v3549, 4
    %v3552 = vshll.u32 %v3343, 16
    %v3554 = vrot.slane %v3552, 5
    %v3555 = vsel %vm2321, %v3550, %v3554
    %v3557 = vshrl.u32 %v3344, 16
    %v3559 = vrot.slane %v3557, 4
    %v3560 = vshll.u32 %v3344, 16
    %v3562 = vrot.slane %v3560, 5
    %v3563 = vor.u32 %v3559, %v3562
    %v3564 = vrot.slane %v3563, 4
    %v3566 = vshll.u32 %v3345, 16
    %v3568 = vrot.slane %v3566, 5
    %v3569 = vsel %vm2321, %v3564, %v3568
    %v3570 = vld [vmem:[%s2172 + $0x4] sm:$0x1]
    %v3571 = vld [vmem:[%s2172 + $0xc] sm:$0x1]
    %v3572 = vld [vmem:[%s2172 + $0x14] sm:$0x1]
    %v3573 = vld [vmem:[%s2172 + $0x1c] sm:$0x1]
    %v3574 = vld [vmem:[%s2172 + $0x24] sm:$0x1]
    %v3575 = vld [vmem:[%s2172 + $0x2c] sm:$0x1]
    %v3576 = vld [vmem:[%s2172 + $0x34] sm:$0x1]
    %v3577 = vld [vmem:[%s2172 + $0x3c] sm:$0x1]
    %v3578 = vld [vmem:[%s2172 + $0x4c] sm:$0x1]
    %v3579 = vld [vmem:[%s2172 + $0x54] sm:$0x1]
    %v3580 = vld [vmem:[%s2172 + $0x5c] sm:$0x1]
    %v3581 = vld [vmem:[%s2172 + $0x64] sm:$0x1]
    %v3582 = vld [vmem:[%s2172 + $0x6c] sm:$0x1]
    %v3583 = vld [vmem:[%s2172 + $0x74] sm:$0x1]
    %v3584 = vld [vmem:[%s2172 + $0x7c] sm:$0x1]
    %v3585 = vld [vmem:[%s2172 + $0x84] sm:$0x1]
    %v3587 = vshrl.u32 %v3298, 16
    %v3589 = vrot.slane %v3587, 4
    %v3590 = vshll.u32 %v3298, 16
    %v3592 = vrot.slane %v3590, 5
    %v3593 = vor.u32 %v3589, %v3592
    %v3594 = vrot.slane %v3593, 4
    %v3596 = vshll.u32 %v3570, 16
    %v3598 = vrot.slane %v3596, 5
    %v3599 = vsel %vm2321, %v3594, %v3598
    %v3601 = vshrl.u32 %v3299, 16
    %v3603 = vrot.slane %v3601, 4
    %v3604 = vshll.u32 %v3299, 16
    %v3606 = vrot.slane %v3604, 5
    %v3607 = vor.u32 %v3603, %v3606
    %v3608 = vrot.slane %v3607, 4
    %v3610 = vshll.u32 %v3571, 16
    %v3612 = vrot.slane %v3610, 5
    %v3613 = vsel %vm2321, %v3608, %v3612
    %v3615 = vshrl.u32 %v3300, 16
    %v3617 = vrot.slane %v3615, 4
    %v3618 = vshll.u32 %v3300, 16
    %v3620 = vrot.slane %v3618, 5
    %v3621 = vor.u32 %v3617, %v3620
    %v3622 = vrot.slane %v3621, 4
    %v3624 = vshll.u32 %v3572, 16
    %v3626 = vrot.slane %v3624, 5
    %v3627 = vsel %vm2321, %v3622, %v3626
    %v3629 = vshrl.u32 %v3301, 16
    %v3631 = vrot.slane %v3629, 4
    %v3632 = vshll.u32 %v3301, 16
    %v3634 = vrot.slane %v3632, 5
    %v3635 = vor.u32 %v3631, %v3634
    %v3636 = vrot.slane %v3635, 4
    %v3638 = vshll.u32 %v3573, 16
    %v3640 = vrot.slane %v3638, 5
    %v3641 = vsel %vm2321, %v3636, %v3640
    %v3643 = vshrl.u32 %v3302, 16
    %v3645 = vrot.slane %v3643, 4
    %v3646 = vshll.u32 %v3302, 16
    %v3648 = vrot.slane %v3646, 5
    %v3649 = vor.u32 %v3645, %v3648
    %v3650 = vrot.slane %v3649, 4
    %v3652 = vshll.u32 %v3574, 16
    %v3654 = vrot.slane %v3652, 5
    %v3655 = vsel %vm2321, %v3650, %v3654
    %v3657 = vshrl.u32 %v3303, 16
    %v3659 = vrot.slane %v3657, 4
    %v3660 = vshll.u32 %v3303, 16
    %v3662 = vrot.slane %v3660, 5
    %v3663 = vor.u32 %v3659, %v3662
    %v3664 = vrot.slane %v3663, 4
    %v3666 = vshll.u32 %v3575, 16
    %v3668 = vrot.slane %v3666, 5
    %v3669 = vsel %vm2321, %v3664, %v3668
    %v3671 = vshrl.u32 %v3304, 16
    %v3673 = vrot.slane %v3671, 4
    %v3674 = vshll.u32 %v3304, 16
    %v3676 = vrot.slane %v3674, 5
    %v3677 = vor.u32 %v3673, %v3676
    %v3678 = vrot.slane %v3677, 4
    %v3680 = vshll.u32 %v3576, 16
    %v3682 = vrot.slane %v3680, 5
    %v3683 = vsel %vm2321, %v3678, %v3682
    %v3685 = vshrl.u32 %v3305, 16
    %v3687 = vrot.slane %v3685, 4
    %v3688 = vshll.u32 %v3305, 16
    %v3690 = vrot.slane %v3688, 5
    %v3691 = vor.u32 %v3687, %v3690
    %v3692 = vrot.slane %v3691, 4
    %v3694 = vshll.u32 %v3577, 16
    %v3696 = vrot.slane %v3694, 5
    %v3697 = vsel %vm2321, %v3692, %v3696
    %v3699 = vshrl.u32 %v3306, 16
    %v3701 = vrot.slane %v3699, 4
    %v3702 = vshll.u32 %v3306, 16
    %v3704 = vrot.slane %v3702, 5
    %v3705 = vor.u32 %v3701, %v3704
    %v3706 = vrot.slane %v3705, 4
    %v3708 = vshll.u32 %v3578, 16
    %v3710 = vrot.slane %v3708, 5
    %v3711 = vsel %vm2321, %v3706, %v3710
    %v3713 = vshrl.u32 %v3307, 16
    %v3715 = vrot.slane %v3713, 4
    %v3716 = vshll.u32 %v3307, 16
    %v3718 = vrot.slane %v3716, 5
    %v3719 = vor.u32 %v3715, %v3718
    %v3720 = vrot.slane %v3719, 4
    %v3722 = vshll.u32 %v3579, 16
    %v3724 = vrot.slane %v3722, 5
    %v3725 = vsel %vm2321, %v3720, %v3724
    %v3727 = vshrl.u32 %v3308, 16
    %v3729 = vrot.slane %v3727, 4
    %v3730 = vshll.u32 %v3308, 16
    %v3732 = vrot.slane %v3730, 5
    %v3733 = vor.u32 %v3729, %v3732
    %v3734 = vrot.slane %v3733, 4
    %v3736 = vshll.u32 %v3580, 16
    %v3738 = vrot.slane %v3736, 5
    %v3739 = vsel %vm2321, %v3734, %v3738
    %v3741 = vshrl.u32 %v3309, 16
    %v3743 = vrot.slane %v3741, 4
    %v3744 = vshll.u32 %v3309, 16
    %v3746 = vrot.slane %v3744, 5
    %v3747 = vor.u32 %v3743, %v3746
    %v3748 = vrot.slane %v3747, 4
    %v3750 = vshll.u32 %v3581, 16
    %v3752 = vrot.slane %v3750, 5
    %v3753 = vsel %vm2321, %v3748, %v3752
    %v3755 = vshrl.u32 %v3310, 16
    %v3757 = vrot.slane %v3755, 4
    %v3758 = vshll.u32 %v3310, 16
    %v3760 = vrot.slane %v3758, 5
    %v3761 = vor.u32 %v3757, %v3760
    %v3762 = vrot.slane %v3761, 4
    %v3764 = vshll.u32 %v3582, 16
    %v3766 = vrot.slane %v3764, 5
    %v3767 = vsel %vm2321, %v3762, %v3766
    %v3769 = vshrl.u32 %v3311, 16
    %v3771 = vrot.slane %v3769, 4
    %v3772 = vshll.u32 %v3311, 16
    %v3774 = vrot.slane %v3772, 5
    %v3775 = vor.u32 %v3771, %v3774
    %v3776 = vrot.slane %v3775, 4
    %v3778 = vshll.u32 %v3583, 16
    %v3780 = vrot.slane %v3778, 5
    %v3781 = vsel %vm2321, %v3776, %v3780
    %v3783 = vshrl.u32 %v3312, 16
    %v3785 = vrot.slane %v3783, 4
    %v3786 = vshll.u32 %v3312, 16
    %v3788 = vrot.slane %v3786, 5
    %v3789 = vor.u32 %v3785, %v3788
    %v3790 = vrot.slane %v3789, 4
    %v3792 = vshll.u32 %v3584, 16
    %v3794 = vrot.slane %v3792, 5
    %v3795 = vsel %vm2321, %v3790, %v3794
    %v3797 = vshrl.u32 %v3313, 16
    %v3799 = vrot.slane %v3797, 4
    %v3800 = vshll.u32 %v3313, 16
    %v3802 = vrot.slane %v3800, 5
    %v3803 = vor.u32 %v3799, %v3802
    %v3804 = vrot.slane %v3803, 4
    %v3806 = vshll.u32 %v3585, 16
    %v3808 = vrot.slane %v3806, 5
    %v3809 = vsel %vm2321, %v3804, %v3808
    %v3826 = vunpack.c.l.b16 %v2270
    %v3827 = vunpack.c.l.b16 %v2271
    %v3828 = vunpack.c.l.b16 %v2272
    %v3829 = vunpack.c.l.b16 %v2273
    %v3830 = vunpack.c.l.b16 %v2274
    %v3831 = vunpack.c.l.b16 %v2275
    %v3832 = vunpack.c.l.b16 %v2276
    %v3833 = vunpack.c.l.b16 %v2277
    %v3834 = vunpack.c.l.b16 %v2278
    %v3835 = vunpack.c.l.b16 %v2279
    %v3836 = vunpack.c.l.b16 %v2280
    %v3837 = vunpack.c.l.b16 %v2281
    %v3838 = vunpack.c.l.b16 %v2282
    %v3839 = vunpack.c.l.b16 %v2283
    %v3840 = vunpack.c.l.b16 %v2284
    %v3841 = vunpack.c.l.b16 %v2285
    %v3842 = vpack.c.b16 %v3827, %v3826
    %v3843 = vpack.c.b16 %v3829, %v3828
    %v3844 = vpack.c.b16 %v3831, %v3830
    %v3845 = vpack.c.b16 %v3833, %v3832
    %v3846 = vpack.c.b16 %v3835, %v3834
    %v3847 = vpack.c.b16 %v3837, %v3836
    %v3848 = vpack.c.b16 %v3839, %v3838
    %v3849 = vpack.c.b16 %v3841, %v3840
    %v3858 = vunpack.c.l.b16 %v2335
    %v3859 = vunpack.c.l.b16 %v2349
    %v3860 = vunpack.c.l.b16 %v2363
    %v3861 = vunpack.c.l.b16 %v2377
    %v3862 = vunpack.c.l.b16 %v2391
    %v3863 = vunpack.c.l.b16 %v2405
    %v3864 = vunpack.c.l.b16 %v2419
    %v3865 = vunpack.c.l.b16 %v2433
    %v3866 = vunpack.c.l.b16 %v2447
    %v3867 = vunpack.c.l.b16 %v2461
    %v3868 = vunpack.c.l.b16 %v2475
    %v3869 = vunpack.c.l.b16 %v2489
    %v3870 = vunpack.c.l.b16 %v2503
    %v3871 = vunpack.c.l.b16 %v2517
    %v3872 = vunpack.c.l.b16 %v2531
    %v3873 = vunpack.c.l.b16 %v2545
    %v3874 = vpack.c.b16 %v3859, %v3858
    %v3875 = vpack.c.b16 %v3861, %v3860
    %v3876 = vpack.c.b16 %v3863, %v3862
    %v3877 = vpack.c.b16 %v3865, %v3864
    %v3878 = vpack.c.b16 %v3867, %v3866
    %v3879 = vpack.c.b16 %v3869, %v3868
    %v3880 = vpack.c.b16 %v3871, %v3870
    %v3881 = vpack.c.b16 %v3873, %v3872
    %v3890 = vunpack.c.l.b16 %v2575
    %v3891 = vunpack.c.l.b16 %v2589
    %v3892 = vunpack.c.l.b16 %v2603
    %v3893 = vunpack.c.l.b16 %v2617
    %v3894 = vunpack.c.l.b16 %v2631
    %v3895 = vunpack.c.l.b16 %v2645
    %v3896 = vunpack.c.l.b16 %v2659
    %v3897 = vunpack.c.l.b16 %v2673
    %v3898 = vunpack.c.l.b16 %v2687
    %v3899 = vunpack.c.l.b16 %v2701
    %v3900 = vunpack.c.l.b16 %v2715
    %v3901 = vunpack.c.l.b16 %v2729
    %v3902 = vunpack.c.l.b16 %v2743
    %v3903 = vunpack.c.l.b16 %v2757
    %v3904 = vunpack.c.l.b16 %v2771
    %v3905 = vunpack.c.l.b16 %v2785
    %v3906 = vpack.c.b16 %v3891, %v3890
    %v3907 = vpack.c.b16 %v3893, %v3892
    %v3908 = vpack.c.b16 %v3895, %v3894
    %v3909 = vpack.c.b16 %v3897, %v3896
    %v3910 = vpack.c.b16 %v3899, %v3898
    %v3911 = vpack.c.b16 %v3901, %v3900
    %v3912 = vpack.c.b16 %v3903, %v3902
    %v3913 = vpack.c.b16 %v3905, %v3904
    %v3938 = vunpack.c.l.b16 %v2786
    %v3939 = vunpack.c.l.b16 %v2787
    %v3940 = vunpack.c.l.b16 %v2788
    %v3941 = vunpack.c.l.b16 %v2789
    %v3942 = vunpack.c.l.b16 %v2790
    %v3943 = vunpack.c.l.b16 %v2791
    %v3944 = vunpack.c.l.b16 %v2792
    %v3945 = vunpack.c.l.b16 %v2793
    %v3946 = vunpack.c.l.b16 %v2794
    %v3947 = vunpack.c.l.b16 %v2795
    %v3948 = vunpack.c.l.b16 %v2796
    %v3949 = vunpack.c.l.b16 %v2797
    %v3950 = vunpack.c.l.b16 %v2798
    %v3951 = vunpack.c.l.b16 %v2799
    %v3952 = vunpack.c.l.b16 %v2800
    %v3953 = vunpack.c.l.b16 %v2801
    %v3954 = vpack.c.b16 %v3939, %v3938
    %v3955 = vpack.c.b16 %v3941, %v3940
    %v3956 = vpack.c.b16 %v3943, %v3942
    %v3957 = vpack.c.b16 %v3945, %v3944
    %v3958 = vpack.c.b16 %v3947, %v3946
    %v3959 = vpack.c.b16 %v3949, %v3948
    %v3960 = vpack.c.b16 %v3951, %v3950
    %v3961 = vpack.c.b16 %v3953, %v3952
    %v3970 = vunpack.c.l.b16 %v2847
    %v3971 = vunpack.c.l.b16 %v2861
    %v3972 = vunpack.c.l.b16 %v2875
    %v3973 = vunpack.c.l.b16 %v2889
    %v3974 = vunpack.c.l.b16 %v2903
    %v3975 = vunpack.c.l.b16 %v2917
    %v3976 = vunpack.c.l.b16 %v2931
    %v3977 = vunpack.c.l.b16 %v2945
    %v3978 = vunpack.c.l.b16 %v2959
    %v3979 = vunpack.c.l.b16 %v2973
    %v3980 = vunpack.c.l.b16 %v2987
    %v3981 = vunpack.c.l.b16 %v3001
    %v3982 = vunpack.c.l.b16 %v3015
    %v3983 = vunpack.c.l.b16 %v3029
    %v3984 = vunpack.c.l.b16 %v3043
    %v3985 = vunpack.c.l.b16 %v3057
    %v3986 = vpack.c.b16 %v3971, %v3970
    %v3987 = vpack.c.b16 %v3973, %v3972
    %v3988 = vpack.c.b16 %v3975, %v3974
    %v3989 = vpack.c.b16 %v3977, %v3976
    %v3990 = vpack.c.b16 %v3979, %v3978
    %v3991 = vpack.c.b16 %v3981, %v3980
    %v3992 = vpack.c.b16 %v3983, %v3982
    %v3993 = vpack.c.b16 %v3985, %v3984
    %v4002 = vunpack.c.l.b16 %v3087
    %v4003 = vunpack.c.l.b16 %v3101
    %v4004 = vunpack.c.l.b16 %v3115
    %v4005 = vunpack.c.l.b16 %v3129
    %v4006 = vunpack.c.l.b16 %v3143
    %v4007 = vunpack.c.l.b16 %v3157
    %v4008 = vunpack.c.l.b16 %v3171
    %v4009 = vunpack.c.l.b16 %v3185
    %v4010 = vunpack.c.l.b16 %v3199
    %v4011 = vunpack.c.l.b16 %v3213
    %v4012 = vunpack.c.l.b16 %v3227
    %v4013 = vunpack.c.l.b16 %v3241
    %v4014 = vunpack.c.l.b16 %v3255
    %v4015 = vunpack.c.l.b16 %v3269
    %v4016 = vunpack.c.l.b16 %v3283
    %v4017 = vunpack.c.l.b16 %v3297
    %v4018 = vpack.c.b16 %v4003, %v4002
    %v4019 = vpack.c.b16 %v4005, %v4004
    %v4020 = vpack.c.b16 %v4007, %v4006
    %v4021 = vpack.c.b16 %v4009, %v4008
    %v4022 = vpack.c.b16 %v4011, %v4010
    %v4023 = vpack.c.b16 %v4013, %v4012
    %v4024 = vpack.c.b16 %v4015, %v4014
    %v4025 = vpack.c.b16 %v4017, %v4016
    %v4050 = vunpack.c.l.b16 %v3298
    %v4051 = vunpack.c.l.b16 %v3299
    %v4052 = vunpack.c.l.b16 %v3300
    %v4053 = vunpack.c.l.b16 %v3301
    %v4054 = vunpack.c.l.b16 %v3302
    %v4055 = vunpack.c.l.b16 %v3303
    %v4056 = vunpack.c.l.b16 %v3304
    %v4057 = vunpack.c.l.b16 %v3305
    %v4058 = vunpack.c.l.b16 %v3306
    %v4059 = vunpack.c.l.b16 %v3307
    %v4060 = vunpack.c.l.b16 %v3308
    %v4061 = vunpack.c.l.b16 %v3309
    %v4062 = vunpack.c.l.b16 %v3310
    %v4063 = vunpack.c.l.b16 %v3311
    %v4064 = vunpack.c.l.b16 %v3312
    %v4065 = vunpack.c.l.b16 %v3313
    %v4066 = vpack.c.b16 %v4051, %v4050
    %v4067 = vpack.c.b16 %v4053, %v4052
    %v4068 = vpack.c.b16 %v4055, %v4054
    %v4069 = vpack.c.b16 %v4057, %v4056
    %v4070 = vpack.c.b16 %v4059, %v4058
    %v4071 = vpack.c.b16 %v4061, %v4060
    %v4072 = vpack.c.b16 %v4063, %v4062
    %v4073 = vpack.c.b16 %v4065, %v4064
    %v4082 = vunpack.c.l.b16 %v3359
    %v4083 = vunpack.c.l.b16 %v3373
    %v4084 = vunpack.c.l.b16 %v3387
    %v4085 = vunpack.c.l.b16 %v3401
    %v4086 = vunpack.c.l.b16 %v3415
    %v4087 = vunpack.c.l.b16 %v3429
    %v4088 = vunpack.c.l.b16 %v3443
    %v4089 = vunpack.c.l.b16 %v3457
    %v4090 = vunpack.c.l.b16 %v3471
    %v4091 = vunpack.c.l.b16 %v3485
    %v4092 = vunpack.c.l.b16 %v3499
    %v4093 = vunpack.c.l.b16 %v3513
    %v4094 = vunpack.c.l.b16 %v3527
    %v4095 = vunpack.c.l.b16 %v3541
    %v4096 = vunpack.c.l.b16 %v3555
    %v4097 = vunpack.c.l.b16 %v3569
    %v4098 = vpack.c.b16 %v4083, %v4082
    %v4099 = vpack.c.b16 %v4085, %v4084
    %v4100 = vpack.c.b16 %v4087, %v4086
    %v4101 = vpack.c.b16 %v4089, %v4088
    %v4102 = vpack.c.b16 %v4091, %v4090
    %v4103 = vpack.c.b16 %v4093, %v4092
    %v4104 = vpack.c.b16 %v4095, %v4094
    %v4105 = vpack.c.b16 %v4097, %v4096
    %v4114 = vunpack.c.l.b16 %v3599
    %v4115 = vunpack.c.l.b16 %v3613
    %v4116 = vunpack.c.l.b16 %v3627
    %v4117 = vunpack.c.l.b16 %v3641
    %v4118 = vunpack.c.l.b16 %v3655
    %v4119 = vunpack.c.l.b16 %v3669
    %v4120 = vunpack.c.l.b16 %v3683
    %v4121 = vunpack.c.l.b16 %v3697
    %v4122 = vunpack.c.l.b16 %v3711
    %v4123 = vunpack.c.l.b16 %v3725
    %v4124 = vunpack.c.l.b16 %v3739
    %v4125 = vunpack.c.l.b16 %v3753
    %v4126 = vunpack.c.l.b16 %v3767
    %v4127 = vunpack.c.l.b16 %v3781
    %v4128 = vunpack.c.l.b16 %v3795
    %v4129 = vunpack.c.l.b16 %v3809
    %v4130 = vpack.c.b16 %v4115, %v4114
    %v4131 = vpack.c.b16 %v4117, %v4116
    %v4132 = vpack.c.b16 %v4119, %v4118
    %v4133 = vpack.c.b16 %v4121, %v4120
    %v4134 = vpack.c.b16 %v4123, %v4122
    %v4135 = vpack.c.b16 %v4125, %v4124
    %v4136 = vpack.c.b16 %v4127, %v4126
    %v4137 = vpack.c.b16 %v4129, %v4128
    %v4146 = vld [vmem:[%s3] sm:$0xf]
    %v4147 = vld [vmem:[%s3 + $0x4] sm:$0xf]
    %v4148 = vld [vmem:[%s3 + $0x8] sm:$0xf]
    %v4149 = vld [vmem:[%s3 + $0xc] sm:$0xf]
    %v4150 = vld [vmem:[%s3 + $0x10] sm:$0xf]
    %v4151 = vld [vmem:[%s3 + $0x14] sm:$0xf]
    %v4152 = vld [vmem:[%s3 + $0x18] sm:$0xf]
    %v4153 = vld [vmem:[%s3 + $0x1c] sm:$0xf]
    %v4154 = vld [vmem:[%s3 + $0x20] sm:$0xf]
    %v4155 = vld [vmem:[%s3 + $0x24] sm:$0xf]
    %v4156 = vld [vmem:[%s3 + $0x28] sm:$0xf]
    %v4157 = vld [vmem:[%s3 + $0x2c] sm:$0xf]
    %v4158 = vld [vmem:[%s3 + $0x30] sm:$0xf]
    %v4159 = vld [vmem:[%s3 + $0x34] sm:$0xf]
    %v4160 = vld [vmem:[%s3 + $0x38] sm:$0xf]
    %v4161 = vld [vmem:[%s3 + $0x3c] sm:$0xf]
    %v4162 = vld [vmem:[%s3 + $0x40] sm:$0xf]
    %v4163 = vld [vmem:[%s3 + $0x44] sm:$0xf]
    %v4164 = vld [vmem:[%s3 + $0x48] sm:$0xf]
    %v4165 = vld [vmem:[%s3 + $0x4c] sm:$0xf]
    %v4166 = vld [vmem:[%s3 + $0x50] sm:$0xf]
    %v4167 = vld [vmem:[%s3 + $0x54] sm:$0xf]
    %v4168 = vld [vmem:[%s3 + $0x58] sm:$0xf]
    %v4169 = vld [vmem:[%s3 + $0x5c] sm:$0xf]
    %v4170 = vld [vmem:[%s3 + $0x60] sm:$0xf]
    %v4171 = vld [vmem:[%s3 + $0x64] sm:$0xf]
    %v4172 = vld [vmem:[%s3 + $0x68] sm:$0xf]
    %v4173 = vld [vmem:[%s3 + $0x6c] sm:$0xf]
    %v4174 = vld [vmem:[%s3 + $0x70] sm:$0xf]
    %v4175 = vld [vmem:[%s3 + $0x74] sm:$0xf]
    %v4176 = vld [vmem:[%s3 + $0x78] sm:$0xf]
    %v4177 = vld [vmem:[%s3 + $0x7c] sm:$0xf]
    %v4178 = vld [vmem:[%s3 + $0x80] sm:$0xf]
    %v4179 = vld [vmem:[%s3 + $0x84] sm:$0xf]
    %v4180 = vld [vmem:[%s3 + $0x88] sm:$0xf]
    %v4181 = vld [vmem:[%s3 + $0x8c] sm:$0xf]
    %v4182 = vld [vmem:[%s3 + $0x90] sm:$0xf]
    %v4183 = vld [vmem:[%s3 + $0x94] sm:$0xf]
    %v4184 = vld [vmem:[%s3 + $0x98] sm:$0xf]
    %v4185 = vld [vmem:[%s3 + $0x9c] sm:$0xf]
    %v4186 = vld [vmem:[%s3 + $0xa0] sm:$0xf]
    %v4187 = vld [vmem:[%s3 + $0xa4] sm:$0xf]
    %v4188 = vld [vmem:[%s3 + $0xa8] sm:$0xf]
    %v4189 = vld [vmem:[%s3 + $0xac] sm:$0xf]
    %v4190 = vld [vmem:[%s3 + $0xb0] sm:$0xf]
    %v4191 = vld [vmem:[%s3 + $0xb4] sm:$0xf]
    %v4192 = vld [vmem:[%s3 + $0xb8] sm:$0xf]
    %v4193 = vld [vmem:[%s3 + $0xbc] sm:$0xf]
    %v4194 = vld [vmem:[%s3 + $0xc0] sm:$0xf]
    %v4195 = vld [vmem:[%s3 + $0xc4] sm:$0xf]
    %v4196 = vld [vmem:[%s3 + $0xc8] sm:$0xf]
    %v4197 = vld [vmem:[%s3 + $0xcc] sm:$0xf]
    %v4198 = vld [vmem:[%s3 + $0xd0] sm:$0xf]
    %v4199 = vld [vmem:[%s3 + $0xd4] sm:$0xf]
    %v4200 = vld [vmem:[%s3 + $0xd8] sm:$0xf]
    %v4201 = vld [vmem:[%s3 + $0xdc] sm:$0xf]
    %v4202 = vld [vmem:[%s3 + $0xe0] sm:$0xf]
    %v4203 = vld [vmem:[%s3 + $0xe4] sm:$0xf]
    %v4204 = vld [vmem:[%s3 + $0xe8] sm:$0xf]
    %v4205 = vld [vmem:[%s3 + $0xec] sm:$0xf]
    %v4206 = vld [vmem:[%s3 + $0xf0] sm:$0xf]
    %v4207 = vld [vmem:[%s3 + $0xf4] sm:$0xf]
    %v4208 = vld [vmem:[%s3 + $0xf8] sm:$0xf]
    %v4209 = vld [vmem:[%s3 + $0xfc] sm:$0xf]
    %v4210 = vld [vmem:[%s3 + $0x100] sm:$0xf]
    %v4211 = vld [vmem:[%s3 + $0x104] sm:$0xf]
    %v4212 = vld [vmem:[%s3 + $0x108] sm:$0xf]
    %v4213 = vld [vmem:[%s3 + $0x10c] sm:$0xf]
    %v4214 = vld [vmem:[%s3 + $0x110] sm:$0xf]
    %v4215 = vld [vmem:[%s3 + $0x114] sm:$0xf]
    %v4216 = vld [vmem:[%s3 + $0x118] sm:$0xf]
    %v4217 = vld [vmem:[%s3 + $0x11c] sm:$0xf]
    %v4218 = vld [vmem:[%s3 + $0x120] sm:$0xf]
    %v4219 = vld [vmem:[%s3 + $0x124] sm:$0xf]
    %v4220 = vld [vmem:[%s3 + $0x128] sm:$0xf]
    %v4221 = vld [vmem:[%s3 + $0x12c] sm:$0xf]
    %v4222 = vld [vmem:[%s3 + $0x130] sm:$0xf]
    %v4223 = vld [vmem:[%s3 + $0x134] sm:$0xf]
    %v4224 = vld [vmem:[%s3 + $0x138] sm:$0xf]
    %v4225 = vld [vmem:[%s3 + $0x13c] sm:$0xf]
    %v4226 = vld [vmem:[%s3 + $0x140] sm:$0xf]
    %v4227 = vld [vmem:[%s3 + $0x144] sm:$0xf]
    %v4228 = vld [vmem:[%s3 + $0x148] sm:$0xf]
    %v4229 = vld [vmem:[%s3 + $0x14c] sm:$0xf]
    %v4230 = vld [vmem:[%s3 + $0x150] sm:$0xf]
    %v4231 = vld [vmem:[%s3 + $0x154] sm:$0xf]
    %v4232 = vld [vmem:[%s3 + $0x158] sm:$0xf]
    %v4233 = vld [vmem:[%s3 + $0x15c] sm:$0xf]
    %v4234 = vld [vmem:[%s3 + $0x160] sm:$0xf]
    %v4235 = vld [vmem:[%s3 + $0x164] sm:$0xf]
    %v4236 = vld [vmem:[%s3 + $0x168] sm:$0xf]
    %v4237 = vld [vmem:[%s3 + $0x16c] sm:$0xf]
    %v4238 = vld [vmem:[%s3 + $0x170] sm:$0xf]
    %v4239 = vld [vmem:[%s3 + $0x174] sm:$0xf]
    %v4240 = vld [vmem:[%s3 + $0x178] sm:$0xf]
    %v4241 = vld [vmem:[%s3 + $0x17c] sm:$0xf]
    %v4242 = vld [vmem:[%s3 + $0x180] sm:$0xf]
    %v4243 = vld [vmem:[%s3 + $0x184] sm:$0xf]
    %v4244 = vld [vmem:[%s3 + $0x188] sm:$0xf]
    %v4245 = vld [vmem:[%s3 + $0x18c] sm:$0xf]
    %v4246 = vld [vmem:[%s3 + $0x190] sm:$0xf]
    %v4247 = vld [vmem:[%s3 + $0x194] sm:$0xf]
    %v4248 = vld [vmem:[%s3 + $0x198] sm:$0xf]
    %v4249 = vld [vmem:[%s3 + $0x19c] sm:$0xf]
    %v4250 = vld [vmem:[%s3 + $0x1a0] sm:$0xf]
    %v4251 = vld [vmem:[%s3 + $0x1a4] sm:$0xf]
    %v4252 = vld [vmem:[%s3 + $0x1a8] sm:$0xf]
    %v4253 = vld [vmem:[%s3 + $0x1ac] sm:$0xf]
    %v4254 = vld [vmem:[%s3 + $0x1b0] sm:$0xf]
    %v4255 = vld [vmem:[%s3 + $0x1b4] sm:$0xf]
    %v4256 = vld [vmem:[%s3 + $0x1b8] sm:$0xf]
    %v4257 = vld [vmem:[%s3 + $0x1bc] sm:$0xf]
    %v4258 = vld [vmem:[%s3 + $0x1c0] sm:$0xf]
    %v4259 = vld [vmem:[%s3 + $0x1c4] sm:$0xf]
    %v4260 = vld [vmem:[%s3 + $0x1c8] sm:$0xf]
    %v4261 = vld [vmem:[%s3 + $0x1cc] sm:$0xf]
    %v4262 = vld [vmem:[%s3 + $0x1d0] sm:$0xf]
    %v4263 = vld [vmem:[%s3 + $0x1d4] sm:$0xf]
    %v4264 = vld [vmem:[%s3 + $0x1d8] sm:$0xf]
    %v4265 = vld [vmem:[%s3 + $0x1dc] sm:$0xf]
    %v4266 = vld [vmem:[%s3 + $0x1e0] sm:$0xf]
    %v4267 = vld [vmem:[%s3 + $0x1e4] sm:$0xf]
    %v4268 = vld [vmem:[%s3 + $0x1e8] sm:$0xf]
    %v4269 = vld [vmem:[%s3 + $0x1ec] sm:$0xf]
    %v4270 = vld [vmem:[%s3 + $0x1f0] sm:$0xf]
    %v4271 = vld [vmem:[%s3 + $0x1f4] sm:$0xf]
    %v4272 = vld [vmem:[%s3 + $0x1f8] sm:$0xf]
    %v4273 = vld [vmem:[%s3 + $0x1fc] sm:$0xf]
    %v4274 = vld [vmem:[%s3 + $0x200] sm:$0xf]
    %v4275 = vld [vmem:[%s3 + $0x204] sm:$0xf]
    %v4276 = vld [vmem:[%s3 + $0x208] sm:$0xf]
    %v4277 = vld [vmem:[%s3 + $0x20c] sm:$0xf]
    %v4278 = vld [vmem:[%s3 + $0x210] sm:$0xf]
    %v4279 = vld [vmem:[%s3 + $0x214] sm:$0xf]
    %v4280 = vld [vmem:[%s3 + $0x218] sm:$0xf]
    %v4281 = vld [vmem:[%s3 + $0x21c] sm:$0xf]
    %v4282 = vld [vmem:[%s3 + $0x220] sm:$0xf]
    %v4283 = vld [vmem:[%s3 + $0x224] sm:$0xf]
    %v4284 = vld [vmem:[%s3 + $0x228] sm:$0xf]
    %v4285 = vld [vmem:[%s3 + $0x22c] sm:$0xf]
    %v4286 = vld [vmem:[%s3 + $0x230] sm:$0xf]
    %v4287 = vld [vmem:[%s3 + $0x234] sm:$0xf]
    %v4288 = vld [vmem:[%s3 + $0x238] sm:$0xf]
    %v4289 = vld [vmem:[%s3 + $0x23c] sm:$0xf]
    %v4434 = vunpack.c.l.b16 %v4146
    %v4435 = vunpack.c.l.b16 %v4147
    %v4436 = vunpack.c.l.b16 %v4148
    %v4437 = vunpack.c.l.b16 %v4149
    %v4438 = vunpack.c.l.b16 %v4150
    %v4439 = vunpack.c.l.b16 %v4151
    %v4440 = vunpack.c.l.b16 %v4152
    %v4441 = vunpack.c.l.b16 %v4153
    %v4442 = vunpack.c.l.b16 %v4154
    %v4443 = vunpack.c.l.b16 %v4155
    %v4444 = vunpack.c.l.b16 %v4156
    %v4445 = vunpack.c.l.b16 %v4157
    %v4446 = vunpack.c.l.b16 %v4158
    %v4447 = vunpack.c.l.b16 %v4159
    %v4448 = vunpack.c.l.b16 %v4160
    %v4449 = vunpack.c.l.b16 %v4161
    %v4450 = vunpack.c.l.b16 %v4162
    %v4451 = vunpack.c.l.b16 %v4163
    %v4452 = vunpack.c.l.b16 %v4164
    %v4453 = vunpack.c.l.b16 %v4165
    %v4454 = vunpack.c.l.b16 %v4166
    %v4455 = vunpack.c.l.b16 %v4167
    %v4456 = vunpack.c.l.b16 %v4168
    %v4457 = vunpack.c.l.b16 %v4169
    %v4458 = vunpack.c.l.b16 %v4170
    %v4459 = vunpack.c.l.b16 %v4171
    %v4460 = vunpack.c.l.b16 %v4172
    %v4461 = vunpack.c.l.b16 %v4173
    %v4462 = vunpack.c.l.b16 %v4174
    %v4463 = vunpack.c.l.b16 %v4175
    %v4464 = vunpack.c.l.b16 %v4176
    %v4465 = vunpack.c.l.b16 %v4177
    %v4466 = vunpack.c.l.b16 %v4178
    %v4467 = vunpack.c.l.b16 %v4179
    %v4468 = vunpack.c.l.b16 %v4180
    %v4469 = vunpack.c.l.b16 %v4181
    %v4470 = vunpack.c.l.b16 %v4182
    %v4471 = vunpack.c.l.b16 %v4183
    %v4472 = vunpack.c.l.b16 %v4184
    %v4473 = vunpack.c.l.b16 %v4185
    %v4474 = vunpack.c.l.b16 %v4186
    %v4475 = vunpack.c.l.b16 %v4187
    %v4476 = vunpack.c.l.b16 %v4188
    %v4477 = vunpack.c.l.b16 %v4189
    %v4478 = vunpack.c.l.b16 %v4190
    %v4479 = vunpack.c.l.b16 %v4191
    %v4480 = vunpack.c.l.b16 %v4192
    %v4481 = vunpack.c.l.b16 %v4193
    %v4482 = vunpack.c.l.b16 %v4194
    %v4483 = vunpack.c.l.b16 %v4195
    %v4484 = vunpack.c.l.b16 %v4196
    %v4485 = vunpack.c.l.b16 %v4197
    %v4486 = vunpack.c.l.b16 %v4198
    %v4487 = vunpack.c.l.b16 %v4199
    %v4488 = vunpack.c.l.b16 %v4200
    %v4489 = vunpack.c.l.b16 %v4201
    %v4490 = vunpack.c.l.b16 %v4202
    %v4491 = vunpack.c.l.b16 %v4203
    %v4492 = vunpack.c.l.b16 %v4204
    %v4493 = vunpack.c.l.b16 %v4205
    %v4494 = vunpack.c.l.b16 %v4206
    %v4495 = vunpack.c.l.b16 %v4207
    %v4496 = vunpack.c.l.b16 %v4208
    %v4497 = vunpack.c.l.b16 %v4209
    %v4498 = vunpack.c.l.b16 %v4210
    %v4499 = vunpack.c.l.b16 %v4211
    %v4500 = vunpack.c.l.b16 %v4212
    %v4501 = vunpack.c.l.b16 %v4213
    %v4502 = vunpack.c.l.b16 %v4214
    %v4503 = vunpack.c.l.b16 %v4215
    %v4504 = vunpack.c.l.b16 %v4216
    %v4505 = vunpack.c.l.b16 %v4217
    %v4506 = vunpack.c.l.b16 %v4218
    %v4507 = vunpack.c.l.b16 %v4219
    %v4508 = vunpack.c.l.b16 %v4220
    %v4509 = vunpack.c.l.b16 %v4221
    %v4510 = vunpack.c.l.b16 %v4222
    %v4511 = vunpack.c.l.b16 %v4223
    %v4512 = vunpack.c.l.b16 %v4224
    %v4513 = vunpack.c.l.b16 %v4225
    %v4514 = vunpack.c.l.b16 %v4226
    %v4515 = vunpack.c.l.b16 %v4227
    %v4516 = vunpack.c.l.b16 %v4228
    %v4517 = vunpack.c.l.b16 %v4229
    %v4518 = vunpack.c.l.b16 %v4230
    %v4519 = vunpack.c.l.b16 %v4231
    %v4520 = vunpack.c.l.b16 %v4232
    %v4521 = vunpack.c.l.b16 %v4233
    %v4522 = vunpack.c.l.b16 %v4234
    %v4523 = vunpack.c.l.b16 %v4235
    %v4524 = vunpack.c.l.b16 %v4236
    %v4525 = vunpack.c.l.b16 %v4237
    %v4526 = vunpack.c.l.b16 %v4238
    %v4527 = vunpack.c.l.b16 %v4239
    %v4528 = vunpack.c.l.b16 %v4240
    %v4529 = vunpack.c.l.b16 %v4241
    %v4530 = vunpack.c.l.b16 %v4242
    %v4531 = vunpack.c.l.b16 %v4243
    %v4532 = vunpack.c.l.b16 %v4244
    %v4533 = vunpack.c.l.b16 %v4245
    %v4534 = vunpack.c.l.b16 %v4246
    %v4535 = vunpack.c.l.b16 %v4247
    %v4536 = vunpack.c.l.b16 %v4248
    %v4537 = vunpack.c.l.b16 %v4249
    %v4538 = vunpack.c.l.b16 %v4250
    %v4539 = vunpack.c.l.b16 %v4251
    %v4540 = vunpack.c.l.b16 %v4252
    %v4541 = vunpack.c.l.b16 %v4253
    %v4542 = vunpack.c.l.b16 %v4254
    %v4543 = vunpack.c.l.b16 %v4255
    %v4544 = vunpack.c.l.b16 %v4256
    %v4545 = vunpack.c.l.b16 %v4257
    %v4546 = vunpack.c.l.b16 %v4258
    %v4547 = vunpack.c.l.b16 %v4259
    %v4548 = vunpack.c.l.b16 %v4260
    %v4549 = vunpack.c.l.b16 %v4261
    %v4550 = vunpack.c.l.b16 %v4262
    %v4551 = vunpack.c.l.b16 %v4263
    %v4552 = vunpack.c.l.b16 %v4264
    %v4553 = vunpack.c.l.b16 %v4265
    %v4554 = vunpack.c.l.b16 %v4266
    %v4555 = vunpack.c.l.b16 %v4267
    %v4556 = vunpack.c.l.b16 %v4268
    %v4557 = vunpack.c.l.b16 %v4269
    %v4558 = vunpack.c.l.b16 %v4270
    %v4559 = vunpack.c.l.b16 %v4271
    %v4560 = vunpack.c.l.b16 %v4272
    %v4561 = vunpack.c.l.b16 %v4273
    %v4562 = vunpack.c.l.b16 %v4274
    %v4563 = vunpack.c.l.b16 %v4275
    %v4564 = vunpack.c.l.b16 %v4276
    %v4565 = vunpack.c.l.b16 %v4277
    %v4566 = vunpack.c.l.b16 %v4278
    %v4567 = vunpack.c.l.b16 %v4279
    %v4568 = vunpack.c.l.b16 %v4280
    %v4569 = vunpack.c.l.b16 %v4281
    %v4570 = vunpack.c.l.b16 %v4282
    %v4571 = vunpack.c.l.b16 %v4283
    %v4572 = vunpack.c.l.b16 %v4284
    %v4573 = vunpack.c.l.b16 %v4285
    %v4574 = vunpack.c.l.b16 %v4286
    %v4575 = vunpack.c.l.b16 %v4287
    %v4576 = vunpack.c.l.b16 %v4288
    %v4577 = vunpack.c.l.b16 %v4289
    %v4578 = vpack.c.b16 %v4435, %v4434
    %v4579 = vpack.c.b16 %v4437, %v4436
    %v4580 = vpack.c.b16 %v4439, %v4438
    %v4581 = vpack.c.b16 %v4441, %v4440
    %v4582 = vpack.c.b16 %v4443, %v4442
    %v4583 = vpack.c.b16 %v4445, %v4444
    %v4584 = vpack.c.b16 %v4447, %v4446
    %v4585 = vpack.c.b16 %v4449, %v4448
    %v4586 = vpack.c.b16 %v4451, %v4450
    %v4587 = vpack.c.b16 %v4453, %v4452
    %v4588 = vpack.c.b16 %v4455, %v4454
    %v4589 = vpack.c.b16 %v4457, %v4456
    %v4590 = vpack.c.b16 %v4459, %v4458
    %v4591 = vpack.c.b16 %v4461, %v4460
    %v4592 = vpack.c.b16 %v4463, %v4462
    %v4593 = vpack.c.b16 %v4465, %v4464
    %v4594 = vpack.c.b16 %v4467, %v4466
    %v4595 = vpack.c.b16 %v4469, %v4468
    %v4596 = vpack.c.b16 %v4471, %v4470
    %v4597 = vpack.c.b16 %v4473, %v4472
    %v4598 = vpack.c.b16 %v4475, %v4474
    %v4599 = vpack.c.b16 %v4477, %v4476
    %v4600 = vpack.c.b16 %v4479, %v4478
    %v4601 = vpack.c.b16 %v4481, %v4480
    %v4602 = vpack.c.b16 %v4483, %v4482
    %v4603 = vpack.c.b16 %v4485, %v4484
    %v4604 = vpack.c.b16 %v4487, %v4486
    %v4605 = vpack.c.b16 %v4489, %v4488
    %v4606 = vpack.c.b16 %v4491, %v4490
    %v4607 = vpack.c.b16 %v4493, %v4492
    %v4608 = vpack.c.b16 %v4495, %v4494
    %v4609 = vpack.c.b16 %v4497, %v4496
    %v4610 = vpack.c.b16 %v4499, %v4498
    %v4611 = vpack.c.b16 %v4501, %v4500
    %v4612 = vpack.c.b16 %v4503, %v4502
    %v4613 = vpack.c.b16 %v4505, %v4504
    %v4614 = vpack.c.b16 %v4507, %v4506
    %v4615 = vpack.c.b16 %v4509, %v4508
    %v4616 = vpack.c.b16 %v4511, %v4510
    %v4617 = vpack.c.b16 %v4513, %v4512
    %v4618 = vpack.c.b16 %v4515, %v4514
    %v4619 = vpack.c.b16 %v4517, %v4516
    %v4620 = vpack.c.b16 %v4519, %v4518
    %v4621 = vpack.c.b16 %v4521, %v4520
    %v4622 = vpack.c.b16 %v4523, %v4522
    %v4623 = vpack.c.b16 %v4525, %v4524
    %v4624 = vpack.c.b16 %v4527, %v4526
    %v4625 = vpack.c.b16 %v4529, %v4528
    %v4626 = vpack.c.b16 %v4531, %v4530
    %v4627 = vpack.c.b16 %v4533, %v4532
    %v4628 = vpack.c.b16 %v4535, %v4534
    %v4629 = vpack.c.b16 %v4537, %v4536
    %v4630 = vpack.c.b16 %v4539, %v4538
    %v4631 = vpack.c.b16 %v4541, %v4540
    %v4632 = vpack.c.b16 %v4543, %v4542
    %v4633 = vpack.c.b16 %v4545, %v4544
    %v4634 = vpack.c.b16 %v4547, %v4546
    %v4635 = vpack.c.b16 %v4549, %v4548
    %v4636 = vpack.c.b16 %v4551, %v4550
    %v4637 = vpack.c.b16 %v4553, %v4552
    %v4638 = vpack.c.b16 %v4555, %v4554
    %v4639 = vpack.c.b16 %v4557, %v4556
    %v4640 = vpack.c.b16 %v4559, %v4558
    %v4641 = vpack.c.b16 %v4561, %v4560
    %v4642 = vpack.c.b16 %v4563, %v4562
    %v4643 = vpack.c.b16 %v4565, %v4564
    %v4644 = vpack.c.b16 %v4567, %v4566
    %v4645 = vpack.c.b16 %v4569, %v4568
    %v4646 = vpack.c.b16 %v4571, %v4570
    %v4647 = vpack.c.b16 %v4573, %v4572
    %v4648 = vpack.c.b16 %v4575, %v4574
    %v4649 = vpack.c.b16 %v4577, %v4576
    %4722 = vmatprep.subr.bf16.mxu0 0
    %4723 = vmatpush1.bf16.msra.mxu0 %v4578
    %4724 = vmatprep.subr.bf16.mxu0 0
    %4725 = vmatpush1.bf16.msra.mxu0 %v4579
    %4726 = vmatprep.subr.bf16.mxu0 0
    %4727 = vmatpush1.bf16.msra.mxu0 %v4580
    %4728 = vmatprep.subr.bf16.mxu0 0
    %4729 = vmatpush1.bf16.msra.mxu0 %v4581
    %4730 = vmatprep.subr.bf16.mxu0 0
    %4731 = vmatpush1.bf16.msra.mxu0 %v4582
    %4732 = vmatprep.subr.bf16.mxu0 0
    %4733 = vmatpush1.bf16.msra.mxu0 %v4583
    %4734 = vmatprep.subr.bf16.mxu0 0
    %4735 = vmatpush1.bf16.msra.mxu0 %v4584
    %4736 = vmatprep.subr.bf16.mxu0 0
    %4737 = vmatpush1.bf16.msra.mxu0 %v4585
    %4738 = vmatprep.subr.bf16.mxu0 0
    %4739 = vmatpush1.bf16.msra.mxu0 %v4586
    %4740 = vmatprep.subr.bf16.mxu0 0
    %4741 = vmatpush1.bf16.msra.mxu0 %v4587
    %4742 = vmatprep.subr.bf16.mxu0 0
    %4743 = vmatpush1.bf16.msra.mxu0 %v4588
    %4744 = vmatprep.subr.bf16.mxu0 0
    %4745 = vmatpush1.bf16.msra.mxu0 %v4589
    %4746 = vmatprep.subr.bf16.mxu0 0
    %4747 = vmatpush1.bf16.msra.mxu0 %v4590
    %4748 = vmatprep.subr.bf16.mxu0 0
    %4749 = vmatpush1.bf16.msra.mxu0 %v4591
    %4750 = vmatprep.subr.bf16.mxu0 0
    %4751 = vmatpush1.bf16.msra.mxu0 %v4592
    %4752 = vmatprep.subr.bf16.mxu0 0
    %4753 = vmatpush1.bf16.msra.mxu0 %v4593
    %4754 = vmatprep.mubr.bf16.mxu0 %v3874
    %4755 = vmatmul.mubr.bf16.gmra.mrb[0].mxu0 %v3842
    %v4756 = vpop.f32.mrb[0].mxu0
    %v4757 = vadd.f32 0.0, %v4756
    %v4758 = vpop.f32.mrb[0].mxu0
    %v4759 = vpop.f32.mrb[0].mxu0
    %v4760 = vadd.f32 0.0, %v4759
    %v4761 = vpop.f32.mrb[0].mxu0
    %4762 = vmatprep.mubr.bf16.mxu0 %v3875
    %4763 = vmatmul.mubr.bf16.gmra.mrb[0].mxu0 %v3843
    %v4764 = vpop.f32.mrb[0].mxu0
    %v4765 = vadd.f32 0.0, %v4764
    %v4766 = vpop.f32.mrb[0].mxu0
    %v4767 = vpop.f32.mrb[0].mxu0
    %v4768 = vadd.f32 0.0, %v4767
    %v4769 = vpop.f32.mrb[0].mxu0
    %4770 = vmatprep.mubr.bf16.mxu0 %v3876
    %4771 = vmatmul.mubr.bf16.gmra.mrb[0].mxu0 %v3844
    %v4772 = vpop.f32.mrb[0].mxu0
    %v4773 = vadd.f32 0.0, %v4772
    %v4774 = vpop.f32.mrb[0].mxu0
    %v4775 = vpop.f32.mrb[0].mxu0
    %v4776 = vadd.f32 0.0, %v4775
    %v4777 = vpop.f32.mrb[0].mxu0
    %4778 = vmatprep.mubr.bf16.mxu0 %v3877
    %4779 = vmatmul.mubr.bf16.gmra.mrb[0].mxu0 %v3845
    %v4780 = vpop.f32.mrb[0].mxu0
    %v4781 = vadd.f32 0.0, %v4780
    %v4782 = vpop.f32.mrb[0].mxu0
    %v4783 = vpop.f32.mrb[0].mxu0
    %v4784 = vadd.f32 0.0, %v4783
    %v4785 = vpop.f32.mrb[0].mxu0
    %4786 = vmatprep.mubr.bf16.mxu0 %v3878
    %4787 = vmatmul.mubr.bf16.gmra.mrb[0].mxu0 %v3846
    %v4788 = vpop.f32.mrb[0].mxu0
    %v4789 = vadd.f32 0.0, %v4788
    %v4790 = vpop.f32.mrb[0].mxu0
    %v4791 = vpop.f32.mrb[0].mxu0
    %v4792 = vadd.f32 0.0, %v4791
    %v4793 = vpop.f32.mrb[0].mxu0
    %4794 = vmatprep.mubr.bf16.mxu0 %v3879
    %4795 = vmatmul.mubr.bf16.gmra.mrb[0].mxu0 %v3847
    %v4796 = vpop.f32.mrb[0].mxu0
    %v4797 = vadd.f32 0.0, %v4796
    %v4798 = vpop.f32.mrb[0].mxu0
    %v4799 = vpop.f32.mrb[0].mxu0
    %v4800 = vadd.f32 0.0, %v4799
    %v4801 = vpop.f32.mrb[0].mxu0
    %4802 = vmatprep.mubr.bf16.mxu0 %v3880
    %4803 = vmatmul.mubr.bf16.gmra.mrb[0].mxu0 %v3848
    %v4804 = vpop.f32.mrb[0].mxu0
    %v4805 = vadd.f32 0.0, %v4804
    %v4806 = vpop.f32.mrb[0].mxu0
    %v4807 = vpop.f32.mrb[0].mxu0
    %v4808 = vadd.f32 0.0, %v4807
    %v4809 = vpop.f32.mrb[0].mxu0
    %4810 = vmatprep.mubr.bf16.mxu0 %v3881
    %4811 = vmatmul.mubr.bf16.gmra.mrb[0].mxu0 %v3849
    %v4812 = vpop.f32.mrb[0].mxu0
    %v4813 = vadd.f32 0.0, %v4812
    %v4814 = vpop.f32.mrb[0].mxu0
    %v4815 = vpop.f32.mrb[0].mxu0
    %v4816 = vadd.f32 0.0, %v4815
    %v4817 = vpop.f32.mrb[0].mxu0
    %4818 = vdwg.mxu0
    %4819 = vmatprep.subr.bf16.mxu0 0
    %4820 = vmatpush1.bf16.msra.mxu0 %v4594
    %4821 = vmatprep.subr.bf16.mxu0 0
    %4822 = vmatpush1.bf16.msra.mxu0 %v4595
    %4823 = vmatprep.subr.bf16.mxu0 0
    %4824 = vmatpush1.bf16.msra.mxu0 %v4596
    %4825 = vmatprep.subr.bf16.mxu0 0
    %4826 = vmatpush1.bf16.msra.mxu0 %v4597
    %4827 = vmatprep.subr.bf16.mxu0 0
    %4828 = vmatpush1.bf16.msra.mxu0 %v4598
    %4829 = vmatprep.subr.bf16.mxu0 0
    %4830 = vmatpush1.bf16.msra.mxu0 %v4599
    %4831 = vmatprep.subr.bf16.mxu0 0
    %4832 = vmatpush1.bf16.msra.mxu0 %v4600
    %4833 = vmatprep.subr.bf16.mxu0 0
    %4834 = vmatpush1.bf16.msra.mxu0 %v4601
    %4835 = vmatprep.subr.bf16.mxu0 0
    %4836 = vmatpush1.bf16.msra.mxu0 %v4602
    %4837 = vmatprep.subr.bf16.mxu0 0
    %4838 = vmatpush1.bf16.msra.mxu0 %v4603
    %4839 = vmatprep.subr.bf16.mxu0 0
    %4840 = vmatpush1.bf16.msra.mxu0 %v4604
    %4841 = vmatprep.subr.bf16.mxu0 0
    %4842 = vmatpush1.bf16.msra.mxu0 %v4605
    %4843 = vmatprep.subr.bf16.mxu0 0
    %4844 = vmatpush1.bf16.msra.mxu0 %v4606
    %4845 = vmatprep.subr.bf16.mxu0 0
    %4846 = vmatpush1.bf16.msra.mxu0 %v4607
    %4847 = vmatprep.subr.bf16.mxu0 0
    %4848 = vmatpush1.bf16.msra.mxu0 %v4608
    %4849 = vmatprep.subr.bf16.mxu0 0
    %4850 = vmatpush1.bf16.msra.mxu0 %v4609
    %4851 = vmatprep.mubr.bf16.mxu0 %v3954
    %4852 = vmatmul.mubr.bf16.gmra.mrb[0].mxu0 %v3906
    %v4853 = vpop.f32.mrb[0].mxu0
    %v4854 = vadd.f32 %v4757, %v4853
    %v4855 = vpop.f32.mrb[0].mxu0
    %v4856 = vpop.f32.mrb[0].mxu0
    %v4857 = vadd.f32 %v4760, %v4856
    %v4858 = vpop.f32.mrb[0].mxu0
    %4859 = vmatprep.mubr.bf16.mxu0 %v3955
    %4860 = vmatmul.mubr.bf16.gmra.mrb[0].mxu0 %v3907
    %v4861 = vpop.f32.mrb[0].mxu0
    %v4862 = vadd.f32 %v4765, %v4861
    %v4863 = vpop.f32.mrb[0].mxu0
    %v4864 = vpop.f32.mrb[0].mxu0
    %v4865 = vadd.f32 %v4768, %v4864
    %v4866 = vpop.f32.mrb[0].mxu0
    %4867 = vmatprep.mubr.bf16.mxu0 %v3956
    %4868 = vmatmul.mubr.bf16.gmra.mrb[0].mxu0 %v3908
    %v4869 = vpop.f32.mrb[0].mxu0
    %v4870 = vadd.f32 %v4773, %v4869
    %v4871 = vpop.f32.mrb[0].mxu0
    %v4872 = vpop.f32.mrb[0].mxu0
    %v4873 = vadd.f32 %v4776, %v4872
    %v4874 = vpop.f32.mrb[0].mxu0
    %4875 = vmatprep.mubr.bf16.mxu0 %v3957
    %4876 = vmatmul.mubr.bf16.gmra.mrb[0].mxu0 %v3909
    %v4877 = vpop.f32.mrb[0].mxu0
    %v4878 = vadd.f32 %v4781, %v4877
    %v4879 = vpop.f32.mrb[0].mxu0
    %v4880 = vpop.f32.mrb[0].mxu0
    %v4881 = vadd.f32 %v4784, %v4880
    %v4882 = vpop.f32.mrb[0].mxu0
    %4883 = vmatprep.mubr.bf16.mxu0 %v3958
    %4884 = vmatmul.mubr.bf16.gmra.mrb[0].mxu0 %v3910
    %v4885 = vpop.f32.mrb[0].mxu0
    %v4886 = vadd.f32 %v4789, %v4885
    %v4887 = vpop.f32.mrb[0].mxu0
    %v4888 = vpop.f32.mrb[0].mxu0
    %v4889 = vadd.f32 %v4792, %v4888
    %v4890 = vpop.f32.mrb[0].mxu0
    %4891 = vmatprep.mubr.bf16.mxu0 %v3959
    %4892 = vmatmul.mubr.bf16.gmra.mrb[0].mxu0 %v3911
    %v4893 = vpop.f32.mrb[0].mxu0
    %v4894 = vadd.f32 %v4797, %v4893
    %v4895 = vpop.f32.mrb[0].mxu0
    %v4896 = vpop.f32.mrb[0].mxu0
    %v4897 = vadd.f32 %v4800, %v4896
    %v4898 = vpop.f32.mrb[0].mxu0
    %4899 = vmatprep.mubr.bf16.mxu0 %v3960
    %4900 = vmatmul.mubr.bf16.gmra.mrb[0].mxu0 %v3912
    %v4901 = vpop.f32.mrb[0].mxu0
    %v4902 = vadd.f32 %v4805, %v4901
    %v4903 = vpop.f32.mrb[0].mxu0
    %v4904 = vpop.f32.mrb[0].mxu0
    %v4905 = vadd.f32 %v4808, %v4904
    %v4906 = vpop.f32.mrb[0].mxu0
    %4907 = vmatprep.mubr.bf16.mxu0 %v3961
    %4908 = vmatmul.mubr.bf16.gmra.mrb[0].mxu0 %v3913
    %v4909 = vpop.f32.mrb[0].mxu0
    %v4910 = vadd.f32 %v4813, %v4909
    %v4911 = vpop.f32.mrb[0].mxu0
    %v4912 = vpop.f32.mrb[0].mxu0
    %v4913 = vadd.f32 %v4816, %v4912
    %v4914 = vpop.f32.mrb[0].mxu0
    %4915 = vdwg.mxu0
    %4916 = vmatprep.subr.bf16.mxu0 0
    %4917 = vmatpush1.bf16.msra.mxu0 %v4610
    %4918 = vmatprep.subr.bf16.mxu0 0
    %4919 = vmatpush1.bf16.msra.mxu0 %v4611
    %4920 = vmatprep.subr.bf16.mxu0 0
    %4921 = vmatpush1.bf16.msra.mxu0 %v4612
    %4922 = vmatprep.subr.bf16.mxu0 0
    %4923 = vmatpush1.bf16.msra.mxu0 %v4613
    %4924 = vmatprep.subr.bf16.mxu0 0
    %4925 = vmatpush1.bf16.msra.mxu0 %v4614
    %4926 = vmatprep.subr.bf16.mxu0 0
    %4927 = vmatpush1.bf16.msra.mxu0 %v4615
    %4928 = vmatprep.subr.bf16.mxu0 0
    %4929 = vmatpush1.bf16.msra.mxu0 %v4616
    %4930 = vmatprep.subr.bf16.mxu0 0
    %4931 = vmatpush1.bf16.msra.mxu0 %v4617
    %4932 = vmatprep.subr.bf16.mxu0 0
    %4933 = vmatpush1.bf16.msra.mxu0 %v4618
    %4934 = vmatprep.subr.bf16.mxu0 0
    %4935 = vmatpush1.bf16.msra.mxu0 %v4619
    %4936 = vmatprep.subr.bf16.mxu0 0
    %4937 = vmatpush1.bf16.msra.mxu0 %v4620
    %4938 = vmatprep.subr.bf16.mxu0 0
    %4939 = vmatpush1.bf16.msra.mxu0 %v4621
    %4940 = vmatprep.subr.bf16.mxu0 0
    %4941 = vmatpush1.bf16.msra.mxu0 %v4622
    %4942 = vmatprep.subr.bf16.mxu0 0
    %4943 = vmatpush1.bf16.msra.mxu0 %v4623
    %4944 = vmatprep.subr.bf16.mxu0 0
    %4945 = vmatpush1.bf16.msra.mxu0 %v4624
    %4946 = vmatprep.subr.bf16.mxu0 0
    %4947 = vmatpush1.bf16.msra.mxu0 %v4625
    %4948 = vmatprep.mubr.bf16.mxu0 %v4018
    %4949 = vmatmul.mubr.bf16.gmra.mrb[0].mxu0 %v3986
    %v4950 = vpop.f32.mrb[0].mxu0
    %v4951 = vadd.f32 %v4854, %v4950
    %v4952 = vpop.f32.mrb[0].mxu0
    %v4953 = vpop.f32.mrb[0].mxu0
    %v4954 = vadd.f32 %v4857, %v4953
    %v4955 = vpop.f32.mrb[0].mxu0
    %4956 = vmatprep.mubr.bf16.mxu0 %v4019
    %4957 = vmatmul.mubr.bf16.gmra.mrb[0].mxu0 %v3987
    %v4958 = vpop.f32.mrb[0].mxu0
    %v4959 = vadd.f32 %v4862, %v4958
    %v4960 = vpop.f32.mrb[0].mxu0
    %v4961 = vpop.f32.mrb[0].mxu0
    %v4962 = vadd.f32 %v4865, %v4961
    %v4963 = vpop.f32.mrb[0].mxu0
    %4964 = vmatprep.mubr.bf16.mxu0 %v4020
    %4965 = vmatmul.mubr.bf16.gmra.mrb[0].mxu0 %v3988
    %v4966 = vpop.f32.mrb[0].mxu0
    %v4967 = vadd.f32 %v4870, %v4966
    %v4968 = vpop.f32.mrb[0].mxu0
    %v4969 = vpop.f32.mrb[0].mxu0
    %v4970 = vadd.f32 %v4873, %v4969
    %v4971 = vpop.f32.mrb[0].mxu0
    %4972 = vmatprep.mubr.bf16.mxu0 %v4021
    %4973 = vmatmul.mubr.bf16.gmra.mrb[0].mxu0 %v3989
    %v4974 = vpop.f32.mrb[0].mxu0
    %v4975 = vadd.f32 %v4878, %v4974
    %v4976 = vpop.f32.mrb[0].mxu0
    %v4977 = vpop.f32.mrb[0].mxu0
    %v4978 = vadd.f32 %v4881, %v4977
    %v4979 = vpop.f32.mrb[0].mxu0
    %4980 = vmatprep.mubr.bf16.mxu0 %v4022
    %4981 = vmatmul.mubr.bf16.gmra.mrb[0].mxu0 %v3990
    %v4982 = vpop.f32.mrb[0].mxu0
    %v4983 = vadd.f32 %v4886, %v4982
    %v4984 = vpop.f32.mrb[0].mxu0
    %v4985 = vpop.f32.mrb[0].mxu0
    %v4986 = vadd.f32 %v4889, %v4985
    %v4987 = vpop.f32.mrb[0].mxu0
    %4988 = vmatprep.mubr.bf16.mxu0 %v4023
    %4989 = vmatmul.mubr.bf16.gmra.mrb[0].mxu0 %v3991
    %v4990 = vpop.f32.mrb[0].mxu0
    %v4991 = vadd.f32 %v4894, %v4990
    %v4992 = vpop.f32.mrb[0].mxu0
    %v4993 = vpop.f32.mrb[0].mxu0
    %v4994 = vadd.f32 %v4897, %v4993
    %v4995 = vpop.f32.mrb[0].mxu0
    %4996 = vmatprep.mubr.bf16.mxu0 %v4024
    %4997 = vmatmul.mubr.bf16.gmra.mrb[0].mxu0 %v3992
    %v4998 = vpop.f32.mrb[0].mxu0
    %v4999 = vadd.f32 %v4902, %v4998
    %v5000 = vpop.f32.mrb[0].mxu0
    %v5001 = vpop.f32.mrb[0].mxu0
    %v5002 = vadd.f32 %v4905, %v5001
    %v5003 = vpop.f32.mrb[0].mxu0
    %5004 = vmatprep.mubr.bf16.mxu0 %v4025
    %5005 = vmatmul.mubr.bf16.gmra.mrb[0].mxu0 %v3993
    %v5006 = vpop.f32.mrb[0].mxu0
    %v5007 = vadd.f32 %v4910, %v5006
    %v5008 = vpop.f32.mrb[0].mxu0
    %v5009 = vpop.f32.mrb[0].mxu0
    %v5010 = vadd.f32 %v4913, %v5009
    %v5011 = vpop.f32.mrb[0].mxu0
    %5012 = vdwg.mxu0
    %5013 = vmatprep.subr.bf16.mxu0 0
    %5014 = vmatpush1.bf16.msra.mxu0 %v4626
    %5015 = vmatprep.subr.bf16.mxu0 0
    %5016 = vmatpush1.bf16.msra.mxu0 %v4627
    %5017 = vmatprep.subr.bf16.mxu0 0
    %5018 = vmatpush1.bf16.msra.mxu0 %v4628
    %5019 = vmatprep.subr.bf16.mxu0 0
    %5020 = vmatpush1.bf16.msra.mxu0 %v4629
    %5021 = vmatprep.subr.bf16.mxu0 0
    %5022 = vmatpush1.bf16.msra.mxu0 %v4630
    %5023 = vmatprep.subr.bf16.mxu0 0
    %5024 = vmatpush1.bf16.msra.mxu0 %v4631
    %5025 = vmatprep.subr.bf16.mxu0 0
    %5026 = vmatpush1.bf16.msra.mxu0 %v4632
    %5027 = vmatprep.subr.bf16.mxu0 0
    %5028 = vmatpush1.bf16.msra.mxu0 %v4633
    %5029 = vmatprep.subr.bf16.mxu0 0
    %5030 = vmatpush1.bf16.msra.mxu0 %v4634
    %5031 = vmatprep.subr.bf16.mxu0 0
    %5032 = vmatpush1.bf16.msra.mxu0 %v4635
    %5033 = vmatprep.subr.bf16.mxu0 0
    %5034 = vmatpush1.bf16.msra.mxu0 %v4636
    %5035 = vmatprep.subr.bf16.mxu0 0
    %5036 = vmatpush1.bf16.msra.mxu0 %v4637
    %5037 = vmatprep.subr.bf16.mxu0 0
    %5038 = vmatpush1.bf16.msra.mxu0 %v4638
    %5039 = vmatprep.subr.bf16.mxu0 0
    %5040 = vmatpush1.bf16.msra.mxu0 %v4639
    %5041 = vmatprep.subr.bf16.mxu0 0
    %5042 = vmatpush1.bf16.msra.mxu0 %v4640
    %5043 = vmatprep.subr.bf16.mxu0 0
    %5044 = vmatpush1.bf16.msra.mxu0 %v4641
    %5045 = vmatprep.mubr.bf16.mxu0 %v4098
    %5046 = vmatmul.mubr.bf16.gmra.mrb[0].mxu0 %v4066
    %v5047 = vpop.f32.mrb[0].mxu0
    %v5048 = vadd.f32 %v4951, %v5047
    %v5049 = vpop.f32.mrb[0].mxu0
    %v5050 = vpop.f32.mrb[0].mxu0
    %v5051 = vadd.f32 %v4954, %v5050
    %v5052 = vpop.f32.mrb[0].mxu0
    %5053 = vmatprep.mubr.bf16.mxu0 %v4099
    %5054 = vmatmul.mubr.bf16.gmra.mrb[0].mxu0 %v4067
    %v5055 = vpop.f32.mrb[0].mxu0
    %v5056 = vadd.f32 %v4959, %v5055
    %v5057 = vpop.f32.mrb[0].mxu0
    %v5058 = vpop.f32.mrb[0].mxu0
    %v5059 = vadd.f32 %v4962, %v5058
    %v5060 = vpop.f32.mrb[0].mxu0
    %5061 = vmatprep.mubr.bf16.mxu0 %v4100
    %5062 = vmatmul.mubr.bf16.gmra.mrb[0].mxu0 %v4068
    %v5063 = vpop.f32.mrb[0].mxu0
    %v5064 = vadd.f32 %v4967, %v5063
    %v5065 = vpop.f32.mrb[0].mxu0
    %v5066 = vpop.f32.mrb[0].mxu0
    %v5067 = vadd.f32 %v4970, %v5066
    %v5068 = vpop.f32.mrb[0].mxu0
    %5069 = vmatprep.mubr.bf16.mxu0 %v4101
    %5070 = vmatmul.mubr.bf16.gmra.mrb[0].mxu0 %v4069
    %v5071 = vpop.f32.mrb[0].mxu0
    %v5072 = vadd.f32 %v4975, %v5071
    %v5073 = vpop.f32.mrb[0].mxu0
    %v5074 = vpop.f32.mrb[0].mxu0
    %v5075 = vadd.f32 %v4978, %v5074
    %v5076 = vpop.f32.mrb[0].mxu0
    %5077 = vmatprep.mubr.bf16.mxu0 %v4102
    %5078 = vmatmul.mubr.bf16.gmra.mrb[0].mxu0 %v4070
    %v5079 = vpop.f32.mrb[0].mxu0
    %v5080 = vadd.f32 %v4983, %v5079
    %v5081 = vpop.f32.mrb[0].mxu0
    %v5082 = vpop.f32.mrb[0].mxu0
    %v5083 = vadd.f32 %v4986, %v5082
    %v5084 = vpop.f32.mrb[0].mxu0
    %5085 = vmatprep.mubr.bf16.mxu0 %v4103
    %5086 = vmatmul.mubr.bf16.gmra.mrb[0].mxu0 %v4071
    %v5087 = vpop.f32.mrb[0].mxu0
    %v5088 = vadd.f32 %v4991, %v5087
    %v5089 = vpop.f32.mrb[0].mxu0
    %v5090 = vpop.f32.mrb[0].mxu0
    %v5091 = vadd.f32 %v4994, %v5090
    %v5092 = vpop.f32.mrb[0].mxu0
    %5093 = vmatprep.mubr.bf16.mxu0 %v4104
    %5094 = vmatmul.mubr.bf16.gmra.mrb[0].mxu0 %v4072
    %v5095 = vpop.f32.mrb[0].mxu0
    %v5096 = vadd.f32 %v4999, %v5095
    %v5097 = vpop.f32.mrb[0].mxu0
    %v5098 = vpop.f32.mrb[0].mxu0
    %v5099 = vadd.f32 %v5002, %v5098
    %v5100 = vpop.f32.mrb[0].mxu0
    %5101 = vmatprep.mubr.bf16.mxu0 %v4105
    %5102 = vmatmul.mubr.bf16.gmra.mrb[0].mxu0 %v4073
    %v5103 = vpop.f32.mrb[0].mxu0
    %v5104 = vadd.f32 %v5007, %v5103
    %v5105 = vpop.f32.mrb[0].mxu0
    %v5106 = vpop.f32.mrb[0].mxu0
    %v5107 = vadd.f32 %v5010, %v5106
    %v5108 = vpop.f32.mrb[0].mxu0
    %5109 = vdwg.mxu0
    %5110 = vmatprep.subr.bf16.mxu0 0
    %5111 = vmatpush1.bf16.msra.mxu0 %v4642
    %5112 = vmatprep.subr.bf16.mxu0 0
    %5113 = vmatpush1.bf16.msra.mxu0 %v4643
    %5114 = vmatprep.subr.bf16.mxu0 0
    %5115 = vmatpush1.bf16.msra.mxu0 %v4644
    %5116 = vmatprep.subr.bf16.mxu0 0
    %5117 = vmatpush1.bf16.msra.mxu0 %v4645
    %5118 = vmatprep.subr.bf16.mxu0 0
    %5119 = vmatpush1.bf16.msra.mxu0 %v4646
    %5120 = vmatprep.subr.bf16.mxu0 0
    %5121 = vmatpush1.bf16.msra.mxu0 %v4647
    %5122 = vmatprep.subr.bf16.mxu0 0
    %5123 = vmatpush1.bf16.msra.mxu0 %v4648
    %5124 = vmatprep.subr.bf16.mxu0 0
    %5125 = vmatpush1.bf16.msra.mxu0 %v4649
    %5126 = vmatprep.subr.bf16.mxu0 0
    %5127 = vmatpush1.bf16.msra.mxu0 0
    %5128 = vmatprep.subr.bf16.mxu0 0
    %5129 = vmatpush1.bf16.msra.mxu0 0
    %5130 = vmatprep.subr.bf16.mxu0 0
    %5131 = vmatpush1.bf16.msra.mxu0 0
    %5132 = vmatprep.subr.bf16.mxu0 0
    %5133 = vmatpush1.bf16.msra.mxu0 0
    %5134 = vmatprep.subr.bf16.mxu0 0
    %5135 = vmatpush1.bf16.msra.mxu0 0
    %5136 = vmatprep.subr.bf16.mxu0 0
    %5137 = vmatpush1.bf16.msra.mxu0 0
    %5138 = vmatprep.subr.bf16.mxu0 0
    %5139 = vmatpush1.bf16.msra.mxu0 0
    %5140 = vmatprep.subr.bf16.mxu0 0
    %5141 = vmatpush1.bf16.msra.mxu0 0
    %5142 = vmatprep.mubr.bf16.mxu0 0
    %5143 = vmatmul.mubr.bf16.gmra.mrb[0].mxu0 %v4130
    %v5144 = vpop.f32.mrb[0].mxu0
    %v5145 = vadd.f32 %v5048, %v5144
    %v5146 = vpop.f32.mrb[0].mxu0
    %v5147 = vpop.f32.mrb[0].mxu0
    %v5148 = vadd.f32 %v5051, %v5147
    %v5149 = vpop.f32.mrb[0].mxu0
    %5150 = vmatprep.mubr.bf16.mxu0 0
    %5151 = vmatmul.mubr.bf16.gmra.mrb[0].mxu0 %v4131
    %v5152 = vpop.f32.mrb[0].mxu0
    %v5153 = vadd.f32 %v5056, %v5152
    %v5154 = vpop.f32.mrb[0].mxu0
    %v5155 = vpop.f32.mrb[0].mxu0
    %v5156 = vadd.f32 %v5059, %v5155
    %v5157 = vpop.f32.mrb[0].mxu0
    %5158 = vmatprep.mubr.bf16.mxu0 0
    %5159 = vmatmul.mubr.bf16.gmra.mrb[0].mxu0 %v4132
    %v5160 = vpop.f32.mrb[0].mxu0
    %v5161 = vadd.f32 %v5064, %v5160
    %v5162 = vpop.f32.mrb[0].mxu0
    %v5163 = vpop.f32.mrb[0].mxu0
    %v5164 = vadd.f32 %v5067, %v5163
    %v5165 = vpop.f32.mrb[0].mxu0
    %5166 = vmatprep.mubr.bf16.mxu0 0
    %5167 = vmatmul.mubr.bf16.gmra.mrb[0].mxu0 %v4133
    %v5168 = vpop.f32.mrb[0].mxu0
    %v5169 = vadd.f32 %v5072, %v5168
    %v5170 = vpop.f32.mrb[0].mxu0
    %v5171 = vpop.f32.mrb[0].mxu0
    %v5172 = vadd.f32 %v5075, %v5171
    %v5173 = vpop.f32.mrb[0].mxu0
    %5174 = vmatprep.mubr.bf16.mxu0 0
    %5175 = vmatmul.mubr.bf16.gmra.mrb[0].mxu0 %v4134
    %v5176 = vpop.f32.mrb[0].mxu0
    %v5177 = vadd.f32 %v5080, %v5176
    %v5178 = vpop.f32.mrb[0].mxu0
    %v5179 = vpop.f32.mrb[0].mxu0
    %v5180 = vadd.f32 %v5083, %v5179
    %v5181 = vpop.f32.mrb[0].mxu0
    %5182 = vmatprep.mubr.bf16.mxu0 0
    %5183 = vmatmul.mubr.bf16.gmra.mrb[0].mxu0 %v4135
    %v5184 = vpop.f32.mrb[0].mxu0
    %v5185 = vadd.f32 %v5088, %v5184
    %v5186 = vpop.f32.mrb[0].mxu0
    %v5187 = vpop.f32.mrb[0].mxu0
    %v5188 = vadd.f32 %v5091, %v5187
    %v5189 = vpop.f32.mrb[0].mxu0
    %5190 = vmatprep.mubr.bf16.mxu0 0
    %5191 = vmatmul.mubr.bf16.gmra.mrb[0].mxu0 %v4136
    %v5192 = vpop.f32.mrb[0].mxu0
    %v5193 = vadd.f32 %v5096, %v5192
    %v5194 = vpop.f32.mrb[0].mxu0
    %v5195 = vpop.f32.mrb[0].mxu0
    %v5196 = vadd.f32 %v5099, %v5195
    %v5197 = vpop.f32.mrb[0].mxu0
    %5198 = vmatprep.mubr.bf16.mxu0 0
    %5199 = vmatmul.mubr.bf16.gmra.mrb[0].mxu0 %v4137
    %v5200 = vpop.f32.mrb[0].mxu0
    %v5201 = vadd.f32 %v5104, %v5200
    %v5202 = vpop.f32.mrb[0].mxu0
    %v5203 = vpop.f32.mrb[0].mxu0
    %v5204 = vadd.f32 %v5107, %v5203
    %v5205 = vpop.f32.mrb[0].mxu0
    %5206 = vdwg.mxu0
    %v5207 = vld [vmem:[%s4] sm:$0x1]
    %v5208 = vld [vmem:[%s5] sm:$0x1]
    %v5209 = vadd.f32 %v5145, %v5148
    %v5210 = vadd.f32 %v5209, %v5153
    %v5211 = vadd.f32 %v5210, %v5156
    %v5212 = vadd.f32 %v5211, %v5161
    %v5213 = vadd.f32 %v5212, %v5164
    %v5214 = vadd.f32 %v5213, %v5169
    %v5215 = vadd.f32 %v5214, %v5172
    %v5216 = vadd.f32 %v5215, %v5177
    %v5217 = vadd.f32 %v5216, %v5180
    %v5218 = vadd.f32 %v5217, %v5185
    %v5219 = vadd.f32 %v5218, %v5188
    %v5220 = vadd.f32 %v5219, %v5193
    %v5221 = vadd.f32 %v5220, %v5196
    %v5222 = vadd.f32 %v5221, %v5201
    %v5223 = vadd.f32 %v5222, %v5204
    %v5224 = vrot.slane %v5223, 4
    %v5225 = vadd.f32 %v5223, %v5224
    %v5226 = vrot.slane %v5225, 2
    %v5227 = vadd.f32 %v5225, %v5226
    %v5228 = vrot.slane %v5227, 1
    %v5229 = vadd.f32 %v5227, %v5228
    %v5230 = vmul.f32 %v5229, 0.0078125
    %v5231 = vsub.f32 %v5145, %v5230
    %v5232 = vsub.f32 %v5148, %v5230
    %v5233 = vsub.f32 %v5153, %v5230
    %v5234 = vsub.f32 %v5156, %v5230
    %v5235 = vsub.f32 %v5161, %v5230
    %v5236 = vsub.f32 %v5164, %v5230
    %v5237 = vsub.f32 %v5169, %v5230
    %v5238 = vsub.f32 %v5172, %v5230
    %v5239 = vsub.f32 %v5177, %v5230
    %v5240 = vsub.f32 %v5180, %v5230
    %v5241 = vsub.f32 %v5185, %v5230
    %v5242 = vsub.f32 %v5188, %v5230
    %v5243 = vsub.f32 %v5193, %v5230
    %v5244 = vsub.f32 %v5196, %v5230
    %v5245 = vsub.f32 %v5201, %v5230
    %v5246 = vsub.f32 %v5204, %v5230
    %v5247 = vmul.f32 %v5231, %v5231
    %v5248 = vmul.f32 %v5232, %v5232
    %v5249 = vmul.f32 %v5233, %v5233
    %v5250 = vmul.f32 %v5234, %v5234
    %v5251 = vmul.f32 %v5235, %v5235
    %v5252 = vmul.f32 %v5236, %v5236
    %v5253 = vmul.f32 %v5237, %v5237
    %v5254 = vmul.f32 %v5238, %v5238
    %v5255 = vmul.f32 %v5239, %v5239
    %v5256 = vmul.f32 %v5240, %v5240
    %v5257 = vmul.f32 %v5241, %v5241
    %v5258 = vmul.f32 %v5242, %v5242
    %v5259 = vmul.f32 %v5243, %v5243
    %v5260 = vmul.f32 %v5244, %v5244
    %v5261 = vmul.f32 %v5245, %v5245
    %v5262 = vmul.f32 %v5246, %v5246
    %v5263 = vadd.f32 %v5247, %v5248
    %v5264 = vadd.f32 %v5263, %v5249
    %v5265 = vadd.f32 %v5264, %v5250
    %v5266 = vadd.f32 %v5265, %v5251
    %v5267 = vadd.f32 %v5266, %v5252
    %v5268 = vadd.f32 %v5267, %v5253
    %v5269 = vadd.f32 %v5268, %v5254
    %v5270 = vadd.f32 %v5269, %v5255
    %v5271 = vadd.f32 %v5270, %v5256
    %v5272 = vadd.f32 %v5271, %v5257
    %v5273 = vadd.f32 %v5272, %v5258
    %v5274 = vadd.f32 %v5273, %v5259
    %v5275 = vadd.f32 %v5274, %v5260
    %v5276 = vadd.f32 %v5275, %v5261
    %v5277 = vadd.f32 %v5276, %v5262
    %v5278 = vrot.slane %v5277, 4
    %v5279 = vadd.f32 %v5277, %v5278
    %v5280 = vrot.slane %v5279, 2
    %v5281 = vadd.f32 %v5279, %v5280
    %v5282 = vrot.slane %v5281, 1
    %v5283 = vadd.f32 %v5281, %v5282
    %v5284 = vmul.f32 %v5283, 0.0078125
    %v5285 = vadd.f32 %v5284, 1e-05
    %v5286 = vrsqrt.pop %v5285
    %v5287 = vmul.f32 %v5231, %v5286
    %v5288 = vmul.f32 %v5232, %v5286
    %v5289 = vmul.f32 %v5233, %v5286
    %v5290 = vmul.f32 %v5234, %v5286
    %v5291 = vmul.f32 %v5235, %v5286
    %v5292 = vmul.f32 %v5236, %v5286
    %v5293 = vmul.f32 %v5237, %v5286
    %v5294 = vmul.f32 %v5238, %v5286
    %v5295 = vmul.f32 %v5239, %v5286
    %v5296 = vmul.f32 %v5240, %v5286
    %v5297 = vmul.f32 %v5241, %v5286
    %v5298 = vmul.f32 %v5242, %v5286
    %v5299 = vmul.f32 %v5243, %v5286
    %v5300 = vmul.f32 %v5244, %v5286
    %v5301 = vmul.f32 %v5245, %v5286
    %v5302 = vmul.f32 %v5246, %v5286
    %v5304 = vlaneseq
    %v5305 = vshrl.u32 %v5304, 7
    %v5306 = vsub.s32 0, %v5305
    %v5307 = vrot.slane %v5207, %v5306
    %v5309 = vmul.f32 %v5287, %v5307
    %v5310 = vmul.f32 %v5288, %v5307
    %v5311 = vmul.f32 %v5289, %v5307
    %v5312 = vmul.f32 %v5290, %v5307
    %v5313 = vmul.f32 %v5291, %v5307
    %v5314 = vmul.f32 %v5292, %v5307
    %v5315 = vmul.f32 %v5293, %v5307
    %v5316 = vmul.f32 %v5294, %v5307
    %v5317 = vmul.f32 %v5295, %v5307
    %v5318 = vmul.f32 %v5296, %v5307
    %v5319 = vmul.f32 %v5297, %v5307
    %v5320 = vmul.f32 %v5298, %v5307
    %v5321 = vmul.f32 %v5299, %v5307
    %v5322 = vmul.f32 %v5300, %v5307
    %v5323 = vmul.f32 %v5301, %v5307
    %v5324 = vmul.f32 %v5302, %v5307
    %v5326 = vlaneseq
    %v5327 = vshrl.u32 %v5326, 7
    %v5328 = vsub.s32 0, %v5327
    %v5329 = vrot.slane %v5208, %v5328
    %v5331 = vadd.f32 %v5309, %v5329
    %v5332 = vadd.f32 %v5310, %v5329
    %v5333 = vadd.f32 %v5311, %v5329
    %v5334 = vadd.f32 %v5312, %v5329
    %v5335 = vadd.f32 %v5313, %v5329
    %v5336 = vadd.f32 %v5314, %v5329
    %v5337 = vadd.f32 %v5315, %v5329
    %v5338 = vadd.f32 %v5316, %v5329
    %v5339 = vadd.f32 %v5317, %v5329
    %v5340 = vadd.f32 %v5318, %v5329
    %v5341 = vadd.f32 %v5319, %v5329
    %v5342 = vadd.f32 %v5320, %v5329
    %v5343 = vadd.f32 %v5321, %v5329
    %v5344 = vadd.f32 %v5322, %v5329
    %v5345 = vadd.f32 %v5323, %v5329
    %v5346 = vadd.f32 %v5324, %v5329
    %vm5347 = vcmp.gt.f32.partialorder %v5331, 0.0
    %vm5348 = vcmp.gt.f32.partialorder %v5332, 0.0
    %vm5349 = vcmp.gt.f32.partialorder %v5333, 0.0
    %vm5350 = vcmp.gt.f32.partialorder %v5334, 0.0
    %vm5351 = vcmp.gt.f32.partialorder %v5335, 0.0
    %vm5352 = vcmp.gt.f32.partialorder %v5336, 0.0
    %vm5353 = vcmp.gt.f32.partialorder %v5337, 0.0
    %vm5354 = vcmp.gt.f32.partialorder %v5338, 0.0
    %vm5355 = vcmp.gt.f32.partialorder %v5339, 0.0
    %vm5356 = vcmp.gt.f32.partialorder %v5340, 0.0
    %vm5357 = vcmp.gt.f32.partialorder %v5341, 0.0
    %vm5358 = vcmp.gt.f32.partialorder %v5342, 0.0
    %vm5359 = vcmp.gt.f32.partialorder %v5343, 0.0
    %vm5360 = vcmp.gt.f32.partialorder %v5344, 0.0
    %vm5361 = vcmp.gt.f32.partialorder %v5345, 0.0
    %vm5362 = vcmp.gt.f32.partialorder %v5346, 0.0
    %v5363 = vmul.f32 %v5331, 0.01
    %v5364 = vmul.f32 %v5332, 0.01
    %v5365 = vmul.f32 %v5333, 0.01
    %v5366 = vmul.f32 %v5334, 0.01
    %v5367 = vmul.f32 %v5335, 0.01
    %v5368 = vmul.f32 %v5336, 0.01
    %v5369 = vmul.f32 %v5337, 0.01
    %v5370 = vmul.f32 %v5338, 0.01
    %v5371 = vmul.f32 %v5339, 0.01
    %v5372 = vmul.f32 %v5340, 0.01
    %v5373 = vmul.f32 %v5341, 0.01
    %v5374 = vmul.f32 %v5342, 0.01
    %v5375 = vmul.f32 %v5343, 0.01
    %v5376 = vmul.f32 %v5344, 0.01
    %v5377 = vmul.f32 %v5345, 0.01
    %v5378 = vmul.f32 %v5346, 0.01
    %v5379 = vsel %vm5347, %v5331, %v5363
    %v5380 = vsel %vm5348, %v5332, %v5364
    %v5381 = vsel %vm5349, %v5333, %v5365
    %v5382 = vsel %vm5350, %v5334, %v5366
    %v5383 = vsel %vm5351, %v5335, %v5367
    %v5384 = vsel %vm5352, %v5336, %v5368
    %v5385 = vsel %vm5353, %v5337, %v5369
    %v5386 = vsel %vm5354, %v5338, %v5370
    %v5387 = vsel %vm5355, %v5339, %v5371
    %v5388 = vsel %vm5356, %v5340, %v5372
    %v5389 = vsel %vm5357, %v5341, %v5373
    %v5390 = vsel %vm5358, %v5342, %v5374
    %v5391 = vsel %vm5359, %v5343, %v5375
    %v5392 = vsel %vm5360, %v5344, %v5376
    %v5393 = vsel %vm5361, %v5345, %v5377
    %v5394 = vsel %vm5362, %v5346, %v5378
    %v5395 = vpack.c.bf16 %v5380, %v5379
    %v5396 = vpack.c.bf16 %v5382, %v5381
    %v5397 = vpack.c.bf16 %v5384, %v5383
    %v5398 = vpack.c.bf16 %v5386, %v5385
    %v5399 = vpack.c.bf16 %v5388, %v5387
    %v5400 = vpack.c.bf16 %v5390, %v5389
    %v5401 = vpack.c.bf16 %v5392, %v5391
    %v5402 = vpack.c.bf16 %v5394, %v5393
    %v5411 = vunpack.c.l.b16 %v5395
    %v5412 = vunpack.c.h.b16 %v5395
    %v5413 = vunpack.c.l.b16 %v5396
    %v5414 = vunpack.c.h.b16 %v5396
    %v5415 = vunpack.c.l.b16 %v5397
    %v5416 = vunpack.c.h.b16 %v5397
    %v5417 = vunpack.c.l.b16 %v5398
    %v5418 = vunpack.c.h.b16 %v5398
    %v5419 = vunpack.c.l.b16 %v5399
    %v5420 = vunpack.c.h.b16 %v5399
    %v5421 = vunpack.c.l.b16 %v5400
    %v5422 = vunpack.c.h.b16 %v5400
    %v5423 = vunpack.c.l.b16 %v5401
    %v5424 = vunpack.c.h.b16 %v5401
    %v5425 = vunpack.c.l.b16 %v5402
    %v5426 = vunpack.c.h.b16 %v5402
    %v5427 = vpack.c.b16 %v5411, %v5411
    %v5428 = vpack.c.b16 %v5412, %v5412
    %v5429 = vpack.c.b16 %v5413, %v5413
    %v5430 = vpack.c.b16 %v5414, %v5414
    %v5431 = vpack.c.b16 %v5415, %v5415
    %v5432 = vpack.c.b16 %v5416, %v5416
    %v5433 = vpack.c.b16 %v5417, %v5417
    %v5434 = vpack.c.b16 %v5418, %v5418
    %v5435 = vpack.c.b16 %v5419, %v5419
    %v5436 = vpack.c.b16 %v5420, %v5420
    %v5437 = vpack.c.b16 %v5421, %v5421
    %v5438 = vpack.c.b16 %v5422, %v5422
    %v5439 = vpack.c.b16 %v5423, %v5423
    %v5440 = vpack.c.b16 %v5424, %v5424
    %v5441 = vpack.c.b16 %v5425, %v5425
    %v5442 = vpack.c.b16 %v5426, %v5426
    %v5444 = vshrl.u32 %v5427, 16
    %v5446 = vrot.slane %v5444, 7
    %v5447 = vshll.u32 %v5427, 16
    %v5449 = vor.u32 %v5446, %v5447
    %v5450 = vrot.slane %v5446, 4
    %v5452 = vshrl.u32 %v5428, 16
    %v5454 = vrot.slane %v5452, 7
    %v5455 = vshll.u32 %v5428, 16
    %v5457 = vor.u32 %v5454, %v5455
    %v5458 = vrot.slane %v5454, 4
    %v5460 = vshrl.u32 %v5429, 16
    %v5462 = vrot.slane %v5460, 7
    %v5463 = vshll.u32 %v5429, 16
    %v5465 = vor.u32 %v5462, %v5463
    %v5466 = vrot.slane %v5462, 4
    %v5468 = vshrl.u32 %v5430, 16
    %v5470 = vrot.slane %v5468, 7
    %v5471 = vshll.u32 %v5430, 16
    %v5473 = vor.u32 %v5470, %v5471
    %v5474 = vrot.slane %v5470, 4
    %v5476 = vshrl.u32 %v5431, 16
    %v5478 = vrot.slane %v5476, 7
    %v5479 = vshll.u32 %v5431, 16
    %v5481 = vor.u32 %v5478, %v5479
    %v5482 = vrot.slane %v5478, 4
    %v5484 = vshrl.u32 %v5432, 16
    %v5486 = vrot.slane %v5484, 7
    %v5487 = vshll.u32 %v5432, 16
    %v5489 = vor.u32 %v5486, %v5487
    %v5490 = vrot.slane %v5486, 4
    %v5492 = vshrl.u32 %v5433, 16
    %v5494 = vrot.slane %v5492, 7
    %v5495 = vshll.u32 %v5433, 16
    %v5497 = vor.u32 %v5494, %v5495
    %v5498 = vrot.slane %v5494, 4
    %v5500 = vshrl.u32 %v5434, 16
    %v5502 = vrot.slane %v5500, 7
    %v5503 = vshll.u32 %v5434, 16
    %v5505 = vor.u32 %v5502, %v5503
    %v5506 = vrot.slane %v5502, 4
    %v5508 = vshrl.u32 %v5435, 16
    %v5510 = vrot.slane %v5508, 7
    %v5511 = vshll.u32 %v5435, 16
    %v5513 = vor.u32 %v5510, %v5511
    %v5514 = vrot.slane %v5510, 4
    %v5516 = vshrl.u32 %v5436, 16
    %v5518 = vrot.slane %v5516, 7
    %v5519 = vshll.u32 %v5436, 16
    %v5521 = vor.u32 %v5518, %v5519
    %v5522 = vrot.slane %v5518, 4
    %v5524 = vshrl.u32 %v5437, 16
    %v5526 = vrot.slane %v5524, 7
    %v5527 = vshll.u32 %v5437, 16
    %v5529 = vor.u32 %v5526, %v5527
    %v5530 = vrot.slane %v5526, 4
    %v5532 = vshrl.u32 %v5438, 16
    %v5534 = vrot.slane %v5532, 7
    %v5535 = vshll.u32 %v5438, 16
    %v5537 = vor.u32 %v5534, %v5535
    %v5538 = vrot.slane %v5534, 4
    %v5540 = vshrl.u32 %v5439, 16
    %v5542 = vrot.slane %v5540, 7
    %v5543 = vshll.u32 %v5439, 16
    %v5545 = vor.u32 %v5542, %v5543
    %v5546 = vrot.slane %v5542, 4
    %v5548 = vshrl.u32 %v5440, 16
    %v5550 = vrot.slane %v5548, 7
    %v5551 = vshll.u32 %v5440, 16
    %v5553 = vor.u32 %v5550, %v5551
    %v5554 = vrot.slane %v5550, 4
    %v5556 = vshrl.u32 %v5441, 16
    %v5558 = vrot.slane %v5556, 7
    %v5559 = vshll.u32 %v5441, 16
    %v5561 = vor.u32 %v5558, %v5559
    %v5562 = vrot.slane %v5558, 4
    %v5564 = vshrl.u32 %v5442, 16
    %v5566 = vrot.slane %v5564, 7
    %v5567 = vshll.u32 %v5442, 16
    %v5569 = vor.u32 %v5566, %v5567
    %v5570 = vrot.slane %v5566, 4
    %s5603 = scalar_lea.vmem [#allocation3], 8
    %v5604 = vld [vmem:[%s5603] sm:$0xf]
    %v5605 = vsel %vm1281, %v5449, %v5604
    %5606 = vst [vmem:[%s5603] sm:$0xf] %v5605
    %v5607 = vld [vmem:[%s5603 + $0x4] sm:$0x1]
    %v5608 = vsel %vm52, %v5450, %v5607
    %5609 = vst [vmem:[%s5603 + $0x4] sm:$0x1] %v5608
    %v5610 = vld [vmem:[%s5603 + $0x8] sm:$0xf]
    %v5611 = vsel %vm1281, %v5457, %v5610
    %5612 = vst [vmem:[%s5603 + $0x8] sm:$0xf] %v5611
    %v5613 = vld [vmem:[%s5603 + $0xc] sm:$0x1]
    %v5614 = vsel %vm52, %v5458, %v5613
    %5615 = vst [vmem:[%s5603 + $0xc] sm:$0x1] %v5614
    %v5616 = vld [vmem:[%s5603 + $0x10] sm:$0xf]
    %v5617 = vsel %vm1281, %v5465, %v5616
    %5618 = vst [vmem:[%s5603 + $0x10] sm:$0xf] %v5617
    %v5619 = vld [vmem:[%s5603 + $0x14] sm:$0x1]
    %v5620 = vsel %vm52, %v5466, %v5619
    %5621 = vst [vmem:[%s5603 + $0x14] sm:$0x1] %v5620
    %v5622 = vld [vmem:[%s5603 + $0x18] sm:$0xf]
    %v5623 = vsel %vm1281, %v5473, %v5622
    %5624 = vst [vmem:[%s5603 + $0x18] sm:$0xf] %v5623
    %v5625 = vld [vmem:[%s5603 + $0x1c] sm:$0x1]
    %v5626 = vsel %vm52, %v5474, %v5625
    %5627 = vst [vmem:[%s5603 + $0x1c] sm:$0x1] %v5626
    %v5628 = vld [vmem:[%s5603 + $0x20] sm:$0xf]
    %v5629 = vsel %vm1281, %v5481, %v5628
    %5630 = vst [vmem:[%s5603 + $0x20] sm:$0xf] %v5629
    %v5631 = vld [vmem:[%s5603 + $0x24] sm:$0x1]
    %v5632 = vsel %vm52, %v5482, %v5631
    %5633 = vst [vmem:[%s5603 + $0x24] sm:$0x1] %v5632
    %v5634 = vld [vmem:[%s5603 + $0x28] sm:$0xf]
    %v5635 = vsel %vm1281, %v5489, %v5634
    %5636 = vst [vmem:[%s5603 + $0x28] sm:$0xf] %v5635
    %v5637 = vld [vmem:[%s5603 + $0x2c] sm:$0x1]
    %v5638 = vsel %vm52, %v5490, %v5637
    %5639 = vst [vmem:[%s5603 + $0x2c] sm:$0x1] %v5638
    %v5640 = vld [vmem:[%s5603 + $0x30] sm:$0xf]
    %v5641 = vsel %vm1281, %v5497, %v5640
    %5642 = vst [vmem:[%s5603 + $0x30] sm:$0xf] %v5641
    %v5643 = vld [vmem:[%s5603 + $0x34] sm:$0x1]
    %v5644 = vsel %vm52, %v5498, %v5643
    %5645 = vst [vmem:[%s5603 + $0x34] sm:$0x1] %v5644
    %v5646 = vld [vmem:[%s5603 + $0x38] sm:$0xf]
    %v5647 = vsel %vm1281, %v5505, %v5646
    %5648 = vst [vmem:[%s5603 + $0x38] sm:$0xf] %v5647
    %v5649 = vld [vmem:[%s5603 + $0x3c] sm:$0x1]
    %v5650 = vsel %vm52, %v5506, %v5649
    %5651 = vst [vmem:[%s5603 + $0x3c] sm:$0x1] %v5650
    %v5652 = vld [vmem:[%s5603 + $0x50] sm:$0xf]
    %v5653 = vsel %vm1281, %v5513, %v5652
    %5654 = vst [vmem:[%s5603 + $0x50] sm:$0xf] %v5653
    %v5655 = vld [vmem:[%s5603 + $0x54] sm:$0x1]
    %v5656 = vsel %vm52, %v5514, %v5655
    %5657 = vst [vmem:[%s5603 + $0x54] sm:$0x1] %v5656
    %v5658 = vld [vmem:[%s5603 + $0x58] sm:$0xf]
    %v5659 = vsel %vm1281, %v5521, %v5658
    %5660 = vst [vmem:[%s5603 + $0x58] sm:$0xf] %v5659
    %v5661 = vld [vmem:[%s5603 + $0x5c] sm:$0x1]
    %v5662 = vsel %vm52, %v5522, %v5661
    %5663 = vst [vmem:[%s5603 + $0x5c] sm:$0x1] %v5662
    %v5664 = vld [vmem:[%s5603 + $0x60] sm:$0xf]
    %v5665 = vsel %vm1281, %v5529, %v5664
    %5666 = vst [vmem:[%s5603 + $0x60] sm:$0xf] %v5665
    %v5667 = vld [vmem:[%s5603 + $0x64] sm:$0x1]
    %v5668 = vsel %vm52, %v5530, %v5667
    %5669 = vst [vmem:[%s5603 + $0x64] sm:$0x1] %v5668
    %v5670 = vld [vmem:[%s5603 + $0x68] sm:$0xf]
    %v5671 = vsel %vm1281, %v5537, %v5670
    %5672 = vst [vmem:[%s5603 + $0x68] sm:$0xf] %v5671
    %v5673 = vld [vmem:[%s5603 + $0x6c] sm:$0x1]
    %v5674 = vsel %vm52, %v5538, %v5673
    %5675 = vst [vmem:[%s5603 + $0x6c] sm:$0x1] %v5674
    %v5676 = vld [vmem:[%s5603 + $0x70] sm:$0xf]
    %v5677 = vsel %vm1281, %v5545, %v5676
    %5678 = vst [vmem:[%s5603 + $0x70] sm:$0xf] %v5677
    %v5679 = vld [vmem:[%s5603 + $0x74] sm:$0x1]
    %v5680 = vsel %vm52, %v5546, %v5679
    %5681 = vst [vmem:[%s5603 + $0x74] sm:$0x1] %v5680
    %v5682 = vld [vmem:[%s5603 + $0x78] sm:$0xf]
    %v5683 = vsel %vm1281, %v5553, %v5682
    %5684 = vst [vmem:[%s5603 + $0x78] sm:$0xf] %v5683
    %v5685 = vld [vmem:[%s5603 + $0x7c] sm:$0x1]
    %v5686 = vsel %vm52, %v5554, %v5685
    %5687 = vst [vmem:[%s5603 + $0x7c] sm:$0x1] %v5686
    %v5688 = vld [vmem:[%s5603 + $0x80] sm:$0xf]
    %v5689 = vsel %vm1281, %v5561, %v5688
    %5690 = vst [vmem:[%s5603 + $0x80] sm:$0xf] %v5689
    %v5691 = vld [vmem:[%s5603 + $0x84] sm:$0x1]
    %v5692 = vsel %vm52, %v5562, %v5691
    %5693 = vst [vmem:[%s5603 + $0x84] sm:$0x1] %v5692
    %v5694 = vld [vmem:[%s5603 + $0x88] sm:$0xf]
    %v5695 = vsel %vm1281, %v5569, %v5694
    %5696 = vst [vmem:[%s5603 + $0x88] sm:$0xf] %v5695
    %v5697 = vld [vmem:[%s5603 + $0x8c] sm:$0x1]
    %v5698 = vsel %vm52, %v5570, %v5697
    %5699 = vst [vmem:[%s5603 + $0x8c] sm:$0x1] %v5698
    %v5700 = vld [vmem:[#allocation3] sm:$0xf]
    %v5701 = vld [vmem:[#allocation3 + $0x8] sm:$0xf]
    %v5702 = vld [vmem:[#allocation3 + $0x10] sm:$0xf]
    %v5703 = vld [vmem:[#allocation3 + $0x18] sm:$0xf]
    %v5704 = vld [vmem:[#allocation3 + $0x20] sm:$0xf]
    %v5705 = vld [vmem:[#allocation3 + $0x28] sm:$0xf]
    %v5706 = vld [vmem:[#allocation3 + $0x30] sm:$0xf]
    %v5707 = vld [vmem:[#allocation3 + $0x38] sm:$0xf]
    %v5708 = vld [vmem:[#allocation3 + $0x50] sm:$0xf]
    %v5709 = vld [vmem:[#allocation3 + $0x58] sm:$0xf]
    %v5710 = vld [vmem:[#allocation3 + $0x60] sm:$0xf]
    %v5711 = vld [vmem:[#allocation3 + $0x68] sm:$0xf]
    %v5712 = vld [vmem:[#allocation3 + $0x70] sm:$0xf]
    %v5713 = vld [vmem:[#allocation3 + $0x78] sm:$0xf]
    %v5714 = vld [vmem:[#allocation3 + $0x80] sm:$0xf]
    %v5715 = vld [vmem:[#allocation3 + $0x88] sm:$0xf]
    %v5716 = vld [vmem:[#allocation3 + $0x4] sm:$0x1]
    %v5717 = vld [vmem:[#allocation3 + $0xc] sm:$0x1]
    %v5718 = vld [vmem:[#allocation3 + $0x14] sm:$0x1]
    %v5719 = vld [vmem:[#allocation3 + $0x1c] sm:$0x1]
    %v5720 = vld [vmem:[#allocation3 + $0x24] sm:$0x1]
    %v5721 = vld [vmem:[#allocation3 + $0x2c] sm:$0x1]
    %v5722 = vld [vmem:[#allocation3 + $0x34] sm:$0x1]
    %v5723 = vld [vmem:[#allocation3 + $0x3c] sm:$0x1]
    %v5724 = vld [vmem:[#allocation3 + $0x54] sm:$0x1]
    %v5725 = vld [vmem:[#allocation3 + $0x5c] sm:$0x1]
    %v5726 = vld [vmem:[#allocation3 + $0x64] sm:$0x1]
    %v5727 = vld [vmem:[#allocation3 + $0x6c] sm:$0x1]
    %v5728 = vld [vmem:[#allocation3 + $0x74] sm:$0x1]
    %v5729 = vld [vmem:[#allocation3 + $0x7c] sm:$0x1]
    %v5730 = vld [vmem:[#allocation3 + $0x84] sm:$0x1]
    %v5731 = vld [vmem:[#allocation3 + $0x8c] sm:$0x1]
    %v5733 = vshrl.u32 %v5700, 16
    %v5735 = vrot.slane %v5733, 4
    %v5736 = vshll.u32 %v5700, 16
    %v5738 = vrot.slane %v5736, 5
    %v5739 = vor.u32 %v5735, %v5738
    %v5740 = vrot.slane %v5739, 4
    %v5742 = vshll.u32 %v5716, 16
    %v5744 = vrot.slane %v5742, 5
    %v5745 = vsel %vm2321, %v5740, %v5744
    %v5747 = vshrl.u32 %v5701, 16
    %v5749 = vrot.slane %v5747, 4
    %v5750 = vshll.u32 %v5701, 16
    %v5752 = vrot.slane %v5750, 5
    %v5753 = vor.u32 %v5749, %v5752
    %v5754 = vrot.slane %v5753, 4
    %v5756 = vshll.u32 %v5717, 16
    %v5758 = vrot.slane %v5756, 5
    %v5759 = vsel %vm2321, %v5754, %v5758
    %v5761 = vshrl.u32 %v5702, 16
    %v5763 = vrot.slane %v5761, 4
    %v5764 = vshll.u32 %v5702, 16
    %v5766 = vrot.slane %v5764, 5
    %v5767 = vor.u32 %v5763, %v5766
    %v5768 = vrot.slane %v5767, 4
    %v5770 = vshll.u32 %v5718, 16
    %v5772 = vrot.slane %v5770, 5
    %v5773 = vsel %vm2321, %v5768, %v5772
    %v5775 = vshrl.u32 %v5703, 16
    %v5777 = vrot.slane %v5775, 4
    %v5778 = vshll.u32 %v5703, 16
    %v5780 = vrot.slane %v5778, 5
    %v5781 = vor.u32 %v5777, %v5780
    %v5782 = vrot.slane %v5781, 4
    %v5784 = vshll.u32 %v5719, 16
    %v5786 = vrot.slane %v5784, 5
    %v5787 = vsel %vm2321, %v5782, %v5786
    %v5789 = vshrl.u32 %v5704, 16
    %v5791 = vrot.slane %v5789, 4
    %v5792 = vshll.u32 %v5704, 16
    %v5794 = vrot.slane %v5792, 5
    %v5795 = vor.u32 %v5791, %v5794
    %v5796 = vrot.slane %v5795, 4
    %v5798 = vshll.u32 %v5720, 16
    %v5800 = vrot.slane %v5798, 5
    %v5801 = vsel %vm2321, %v5796, %v5800
    %v5803 = vshrl.u32 %v5705, 16
    %v5805 = vrot.slane %v5803, 4
    %v5806 = vshll.u32 %v5705, 16
    %v5808 = vrot.slane %v5806, 5
    %v5809 = vor.u32 %v5805, %v5808
    %v5810 = vrot.slane %v5809, 4
    %v5812 = vshll.u32 %v5721, 16
    %v5814 = vrot.slane %v5812, 5
    %v5815 = vsel %vm2321, %v5810, %v5814
    %v5817 = vshrl.u32 %v5706, 16
    %v5819 = vrot.slane %v5817, 4
    %v5820 = vshll.u32 %v5706, 16
    %v5822 = vrot.slane %v5820, 5
    %v5823 = vor.u32 %v5819, %v5822
    %v5824 = vrot.slane %v5823, 4
    %v5826 = vshll.u32 %v5722, 16
    %v5828 = vrot.slane %v5826, 5
    %v5829 = vsel %vm2321, %v5824, %v5828
    %v5831 = vshrl.u32 %v5707, 16
    %v5833 = vrot.slane %v5831, 4
    %v5834 = vshll.u32 %v5707, 16
    %v5836 = vrot.slane %v5834, 5
    %v5837 = vor.u32 %v5833, %v5836
    %v5838 = vrot.slane %v5837, 4
    %v5840 = vshll.u32 %v5723, 16
    %v5842 = vrot.slane %v5840, 5
    %v5843 = vsel %vm2321, %v5838, %v5842
    %v5845 = vshrl.u32 %v5708, 16
    %v5847 = vrot.slane %v5845, 4
    %v5848 = vshll.u32 %v5708, 16
    %v5850 = vrot.slane %v5848, 5
    %v5851 = vor.u32 %v5847, %v5850
    %v5852 = vrot.slane %v5851, 4
    %v5854 = vshll.u32 %v5724, 16
    %v5856 = vrot.slane %v5854, 5
    %v5857 = vsel %vm2321, %v5852, %v5856
    %v5859 = vshrl.u32 %v5709, 16
    %v5861 = vrot.slane %v5859, 4
    %v5862 = vshll.u32 %v5709, 16
    %v5864 = vrot.slane %v5862, 5
    %v5865 = vor.u32 %v5861, %v5864
    %v5866 = vrot.slane %v5865, 4
    %v5868 = vshll.u32 %v5725, 16
    %v5870 = vrot.slane %v5868, 5
    %v5871 = vsel %vm2321, %v5866, %v5870
    %v5873 = vshrl.u32 %v5710, 16
    %v5875 = vrot.slane %v5873, 4
    %v5876 = vshll.u32 %v5710, 16
    %v5878 = vrot.slane %v5876, 5
    %v5879 = vor.u32 %v5875, %v5878
    %v5880 = vrot.slane %v5879, 4
    %v5882 = vshll.u32 %v5726, 16
    %v5884 = vrot.slane %v5882, 5
    %v5885 = vsel %vm2321, %v5880, %v5884
    %v5887 = vshrl.u32 %v5711, 16
    %v5889 = vrot.slane %v5887, 4
    %v5890 = vshll.u32 %v5711, 16
    %v5892 = vrot.slane %v5890, 5
    %v5893 = vor.u32 %v5889, %v5892
    %v5894 = vrot.slane %v5893, 4
    %v5896 = vshll.u32 %v5727, 16
    %v5898 = vrot.slane %v5896, 5
    %v5899 = vsel %vm2321, %v5894, %v5898
    %v5901 = vshrl.u32 %v5712, 16
    %v5903 = vrot.slane %v5901, 4
    %v5904 = vshll.u32 %v5712, 16
    %v5906 = vrot.slane %v5904, 5
    %v5907 = vor.u32 %v5903, %v5906
    %v5908 = vrot.slane %v5907, 4
    %v5910 = vshll.u32 %v5728, 16
    %v5912 = vrot.slane %v5910, 5
    %v5913 = vsel %vm2321, %v5908, %v5912
    %v5915 = vshrl.u32 %v5713, 16
    %v5917 = vrot.slane %v5915, 4
    %v5918 = vshll.u32 %v5713, 16
    %v5920 = vrot.slane %v5918, 5
    %v5921 = vor.u32 %v5917, %v5920
    %v5922 = vrot.slane %v5921, 4
    %v5924 = vshll.u32 %v5729, 16
    %v5926 = vrot.slane %v5924, 5
    %v5927 = vsel %vm2321, %v5922, %v5926
    %v5929 = vshrl.u32 %v5714, 16
    %v5931 = vrot.slane %v5929, 4
    %v5932 = vshll.u32 %v5714, 16
    %v5934 = vrot.slane %v5932, 5
    %v5935 = vor.u32 %v5931, %v5934
    %v5936 = vrot.slane %v5935, 4
    %v5938 = vshll.u32 %v5730, 16
    %v5940 = vrot.slane %v5938, 5
    %v5941 = vsel %vm2321, %v5936, %v5940
    %v5943 = vshrl.u32 %v5715, 16
    %v5945 = vrot.slane %v5943, 4
    %v5946 = vshll.u32 %v5715, 16
    %v5948 = vrot.slane %v5946, 5
    %v5949 = vor.u32 %v5945, %v5948
    %v5950 = vrot.slane %v5949, 4
    %v5952 = vshll.u32 %v5731, 16
    %v5954 = vrot.slane %v5952, 5
    %v5955 = vsel %vm2321, %v5950, %v5954
    %v5956 = vld [vmem:[#allocation3] sm:$0xe]
    %v5957 = vld [vmem:[#allocation3 + $0x8] sm:$0xe]
    %v5958 = vld [vmem:[#allocation3 + $0x10] sm:$0xe]
    %v5959 = vld [vmem:[#allocation3 + $0x18] sm:$0xe]
    %v5960 = vld [vmem:[#allocation3 + $0x20] sm:$0xe]
    %v5961 = vld [vmem:[#allocation3 + $0x28] sm:$0xe]
    %v5962 = vld [vmem:[#allocation3 + $0x30] sm:$0xe]
    %v5963 = vld [vmem:[#allocation3 + $0x38] sm:$0xe]
    %v5964 = vld [vmem:[#allocation3 + $0x50] sm:$0xe]
    %v5965 = vld [vmem:[#allocation3 + $0x58] sm:$0xe]
    %v5966 = vld [vmem:[#allocation3 + $0x60] sm:$0xe]
    %v5967 = vld [vmem:[#allocation3 + $0x68] sm:$0xe]
    %v5968 = vld [vmem:[#allocation3 + $0x70] sm:$0xe]
    %v5969 = vld [vmem:[#allocation3 + $0x78] sm:$0xe]
    %v5970 = vld [vmem:[#allocation3 + $0x80] sm:$0xe]
    %v5971 = vld [vmem:[#allocation3 + $0x88] sm:$0xe]
    %vm6004 = vcmask 1042432
    %vm6005 = vcmask 1046532
    %vm6006 = vmor %vm6004, %vm6005
    %v6007 = vrot.slane %v5956, 5
    %v6008 = vrot.slane %v6007, 4
    %v6009 = vrot.slane %v5716, 5
    %v6010 = vsel %vm6006, %v6008, %v6009
    %v6011 = vrot.slane %v5957, 5
    %v6012 = vrot.slane %v6011, 4
    %v6013 = vrot.slane %v5717, 5
    %v6014 = vsel %vm6006, %v6012, %v6013
    %v6015 = vrot.slane %v5958, 5
    %v6016 = vrot.slane %v6015, 4
    %v6017 = vrot.slane %v5718, 5
    %v6018 = vsel %vm6006, %v6016, %v6017
    %v6019 = vrot.slane %v5959, 5
    %v6020 = vrot.slane %v6019, 4
    %v6021 = vrot.slane %v5719, 5
    %v6022 = vsel %vm6006, %v6020, %v6021
    %v6023 = vrot.slane %v5960, 5
    %v6024 = vrot.slane %v6023, 4
    %v6025 = vrot.slane %v5720, 5
    %v6026 = vsel %vm6006, %v6024, %v6025
    %v6027 = vrot.slane %v5961, 5
    %v6028 = vrot.slane %v6027, 4
    %v6029 = vrot.slane %v5721, 5
    %v6030 = vsel %vm6006, %v6028, %v6029
    %v6031 = vrot.slane %v5962, 5
    %v6032 = vrot.slane %v6031, 4
    %v6033 = vrot.slane %v5722, 5
    %v6034 = vsel %vm6006, %v6032, %v6033
    %v6035 = vrot.slane %v5963, 5
    %v6036 = vrot.slane %v6035, 4
    %v6037 = vrot.slane %v5723, 5
    %v6038 = vsel %vm6006, %v6036, %v6037
    %v6039 = vrot.slane %v5964, 5
    %v6040 = vrot.slane %v6039, 4
    %v6041 = vrot.slane %v5724, 5
    %v6042 = vsel %vm6006, %v6040, %v6041
    %v6043 = vrot.slane %v5965, 5
    %v6044 = vrot.slane %v6043, 4
    %v6045 = vrot.slane %v5725, 5
    %v6046 = vsel %vm6006, %v6044, %v6045
    %v6047 = vrot.slane %v5966, 5
    %v6048 = vrot.slane %v6047, 4
    %v6049 = vrot.slane %v5726, 5
    %v6050 = vsel %vm6006, %v6048, %v6049
    %v6051 = vrot.slane %v5967, 5
    %v6052 = vrot.slane %v6051, 4
    %v6053 = vrot.slane %v5727, 5
    %v6054 = vsel %vm6006, %v6052, %v6053
    %v6055 = vrot.slane %v5968, 5
    %v6056 = vrot.slane %v6055, 4
    %v6057 = vrot.slane %v5728, 5
    %v6058 = vsel %vm6006, %v6056, %v6057
    %v6059 = vrot.slane %v5969, 5
    %v6060 = vrot.slane %v6059, 4
    %v6061 = vrot.slane %v5729, 5
    %v6062 = vsel %vm6006, %v6060, %v6061
    %v6063 = vrot.slane %v5970, 5
    %v6064 = vrot.slane %v6063, 4
    %v6065 = vrot.slane %v5730, 5
    %v6066 = vsel %vm6006, %v6064, %v6065
    %v6067 = vrot.slane %v5971, 5
    %v6068 = vrot.slane %v6067, 4
    %v6069 = vrot.slane %v5731, 5
    %v6070 = vsel %vm6006, %v6068, %v6069
    %v6071 = vld [vmem:[%s5603] sm:$0xf]
    %v6072 = vld [vmem:[%s5603 + $0x8] sm:$0xf]
    %v6073 = vld [vmem:[%s5603 + $0x10] sm:$0xf]
    %v6074 = vld [vmem:[%s5603 + $0x18] sm:$0xf]
    %v6075 = vld [vmem:[%s5603 + $0x20] sm:$0xf]
    %v6076 = vld [vmem:[%s5603 + $0x28] sm:$0xf]
    %v6077 = vld [vmem:[%s5603 + $0x30] sm:$0xf]
    %v6078 = vld [vmem:[%s5603 + $0x38] sm:$0xf]
    %v6079 = vld [vmem:[%s5603 + $0x50] sm:$0xf]
    %v6080 = vld [vmem:[%s5603 + $0x58] sm:$0xf]
    %v6081 = vld [vmem:[%s5603 + $0x60] sm:$0xf]
    %v6082 = vld [vmem:[%s5603 + $0x68] sm:$0xf]
    %v6083 = vld [vmem:[%s5603 + $0x70] sm:$0xf]
    %v6084 = vld [vmem:[%s5603 + $0x78] sm:$0xf]
    %v6085 = vld [vmem:[%s5603 + $0x80] sm:$0xf]
    %v6086 = vld [vmem:[%s5603 + $0x88] sm:$0xf]
    %v6087 = vld [vmem:[%s5603 + $0x4] sm:$0x1]
    %v6088 = vld [vmem:[%s5603 + $0xc] sm:$0x1]
    %v6089 = vld [vmem:[%s5603 + $0x14] sm:$0x1]
    %v6090 = vld [vmem:[%s5603 + $0x1c] sm:$0x1]
    %v6091 = vld [vmem:[%s5603 + $0x24] sm:$0x1]
    %v6092 = vld [vmem:[%s5603 + $0x2c] sm:$0x1]
    %v6093 = vld [vmem:[%s5603 + $0x34] sm:$0x1]
    %v6094 = vld [vmem:[%s5603 + $0x3c] sm:$0x1]
    %v6095 = vld [vmem:[%s5603 + $0x54] sm:$0x1]
    %v6096 = vld [vmem:[%s5603 + $0x5c] sm:$0x1]
    %v6097 = vld [vmem:[%s5603 + $0x64] sm:$0x1]
    %v6098 = vld [vmem:[%s5603 + $0x6c] sm:$0x1]
    %v6099 = vld [vmem:[%s5603 + $0x74] sm:$0x1]
    %v6100 = vld [vmem:[%s5603 + $0x7c] sm:$0x1]
    %v6101 = vld [vmem:[%s5603 + $0x84] sm:$0x1]
    %v6102 = vld [vmem:[%s5603 + $0x8c] sm:$0x1]
    %v6104 = vshrl.u32 %v6071, 16
    %v6106 = vrot.slane %v6104, 4
    %v6107 = vshll.u32 %v6071, 16
    %v6109 = vrot.slane %v6107, 5
    %v6110 = vor.u32 %v6106, %v6109
    %v6111 = vrot.slane %v6110, 4
    %v6113 = vshll.u32 %v6087, 16
    %v6115 = vrot.slane %v6113, 5
    %v6116 = vsel %vm2321, %v6111, %v6115
    %v6118 = vshrl.u32 %v6072, 16
    %v6120 = vrot.slane %v6118, 4
    %v6121 = vshll.u32 %v6072, 16
    %v6123 = vrot.slane %v6121, 5
    %v6124 = vor.u32 %v6120, %v6123
    %v6125 = vrot.slane %v6124, 4
    %v6127 = vshll.u32 %v6088, 16
    %v6129 = vrot.slane %v6127, 5
    %v6130 = vsel %vm2321, %v6125, %v6129
    %v6132 = vshrl.u32 %v6073, 16
    %v6134 = vrot.slane %v6132, 4
    %v6135 = vshll.u32 %v6073, 16
    %v6137 = vrot.slane %v6135, 5
    %v6138 = vor.u32 %v6134, %v6137
    %v6139 = vrot.slane %v6138, 4
    %v6141 = vshll.u32 %v6089, 16
    %v6143 = vrot.slane %v6141, 5
    %v6144 = vsel %vm2321, %v6139, %v6143
    %v6146 = vshrl.u32 %v6074, 16
    %v6148 = vrot.slane %v6146, 4
    %v6149 = vshll.u32 %v6074, 16
    %v6151 = vrot.slane %v6149, 5
    %v6152 = vor.u32 %v6148, %v6151
    %v6153 = vrot.slane %v6152, 4
    %v6155 = vshll.u32 %v6090, 16
    %v6157 = vrot.slane %v6155, 5
    %v6158 = vsel %vm2321, %v6153, %v6157
    %v6160 = vshrl.u32 %v6075, 16
    %v6162 = vrot.slane %v6160, 4
    %v6163 = vshll.u32 %v6075, 16
    %v6165 = vrot.slane %v6163, 5
    %v6166 = vor.u32 %v6162, %v6165
    %v6167 = vrot.slane %v6166, 4
    %v6169 = vshll.u32 %v6091, 16
    %v6171 = vrot.slane %v6169, 5
    %v6172 = vsel %vm2321, %v6167, %v6171
    %v6174 = vshrl.u32 %v6076, 16
    %v6176 = vrot.slane %v6174, 4
    %v6177 = vshll.u32 %v6076, 16
    %v6179 = vrot.slane %v6177, 5
    %v6180 = vor.u32 %v6176, %v6179
    %v6181 = vrot.slane %v6180, 4
    %v6183 = vshll.u32 %v6092, 16
    %v6185 = vrot.slane %v6183, 5
    %v6186 = vsel %vm2321, %v6181, %v6185
    %v6188 = vshrl.u32 %v6077, 16
    %v6190 = vrot.slane %v6188, 4
    %v6191 = vshll.u32 %v6077, 16
    %v6193 = vrot.slane %v6191, 5
    %v6194 = vor.u32 %v6190, %v6193
    %v6195 = vrot.slane %v6194, 4
    %v6197 = vshll.u32 %v6093, 16
    %v6199 = vrot.slane %v6197, 5
    %v6200 = vsel %vm2321, %v6195, %v6199
    %v6202 = vshrl.u32 %v6078, 16
    %v6204 = vrot.slane %v6202, 4
    %v6205 = vshll.u32 %v6078, 16
    %v6207 = vrot.slane %v6205, 5
    %v6208 = vor.u32 %v6204, %v6207
    %v6209 = vrot.slane %v6208, 4
    %v6211 = vshll.u32 %v6094, 16
    %v6213 = vrot.slane %v6211, 5
    %v6214 = vsel %vm2321, %v6209, %v6213
    %v6216 = vshrl.u32 %v6079, 16
    %v6218 = vrot.slane %v6216, 4
    %v6219 = vshll.u32 %v6079, 16
    %v6221 = vrot.slane %v6219, 5
    %v6222 = vor.u32 %v6218, %v6221
    %v6223 = vrot.slane %v6222, 4
    %v6225 = vshll.u32 %v6095, 16
    %v6227 = vrot.slane %v6225, 5
    %v6228 = vsel %vm2321, %v6223, %v6227
    %v6230 = vshrl.u32 %v6080, 16
    %v6232 = vrot.slane %v6230, 4
    %v6233 = vshll.u32 %v6080, 16
    %v6235 = vrot.slane %v6233, 5
    %v6236 = vor.u32 %v6232, %v6235
    %v6237 = vrot.slane %v6236, 4
    %v6239 = vshll.u32 %v6096, 16
    %v6241 = vrot.slane %v6239, 5
    %v6242 = vsel %vm2321, %v6237, %v6241
    %v6244 = vshrl.u32 %v6081, 16
    %v6246 = vrot.slane %v6244, 4
    %v6247 = vshll.u32 %v6081, 16
    %v6249 = vrot.slane %v6247, 5
    %v6250 = vor.u32 %v6246, %v6249
    %v6251 = vrot.slane %v6250, 4
    %v6253 = vshll.u32 %v6097, 16
    %v6255 = vrot.slane %v6253, 5
    %v6256 = vsel %vm2321, %v6251, %v6255
    %v6258 = vshrl.u32 %v6082, 16
    %v6260 = vrot.slane %v6258, 4
    %v6261 = vshll.u32 %v6082, 16
    %v6263 = vrot.slane %v6261, 5
    %v6264 = vor.u32 %v6260, %v6263
    %v6265 = vrot.slane %v6264, 4
    %v6267 = vshll.u32 %v6098, 16
    %v6269 = vrot.slane %v6267, 5
    %v6270 = vsel %vm2321, %v6265, %v6269
    %v6272 = vshrl.u32 %v6083, 16
    %v6274 = vrot.slane %v6272, 4
    %v6275 = vshll.u32 %v6083, 16
    %v6277 = vrot.slane %v6275, 5
    %v6278 = vor.u32 %v6274, %v6277
    %v6279 = vrot.slane %v6278, 4
    %v6281 = vshll.u32 %v6099, 16
    %v6283 = vrot.slane %v6281, 5
    %v6284 = vsel %vm2321, %v6279, %v6283
    %v6286 = vshrl.u32 %v6084, 16
    %v6288 = vrot.slane %v6286, 4
    %v6289 = vshll.u32 %v6084, 16
    %v6291 = vrot.slane %v6289, 5
    %v6292 = vor.u32 %v6288, %v6291
    %v6293 = vrot.slane %v6292, 4
    %v6295 = vshll.u32 %v6100, 16
    %v6297 = vrot.slane %v6295, 5
    %v6298 = vsel %vm2321, %v6293, %v6297
    %v6300 = vshrl.u32 %v6085, 16
    %v6302 = vrot.slane %v6300, 4
    %v6303 = vshll.u32 %v6085, 16
    %v6305 = vrot.slane %v6303, 5
    %v6306 = vor.u32 %v6302, %v6305
    %v6307 = vrot.slane %v6306, 4
    %v6309 = vshll.u32 %v6101, 16
    %v6311 = vrot.slane %v6309, 5
    %v6312 = vsel %vm2321, %v6307, %v6311
    %v6314 = vshrl.u32 %v6086, 16
    %v6316 = vrot.slane %v6314, 4
    %v6317 = vshll.u32 %v6086, 16
    %v6319 = vrot.slane %v6317, 5
    %v6320 = vor.u32 %v6316, %v6319
    %v6321 = vrot.slane %v6320, 4
    %v6323 = vshll.u32 %v6102, 16
    %v6325 = vrot.slane %v6323, 5
    %v6326 = vsel %vm2321, %v6321, %v6325
    %v6327 = vld [vmem:[%s5603] sm:$0xe]
    %v6328 = vld [vmem:[%s5603 + $0x8] sm:$0xe]
    %v6329 = vld [vmem:[%s5603 + $0x10] sm:$0xe]
    %v6330 = vld [vmem:[%s5603 + $0x18] sm:$0xe]
    %v6331 = vld [vmem:[%s5603 + $0x20] sm:$0xe]
    %v6332 = vld [vmem:[%s5603 + $0x28] sm:$0xe]
    %v6333 = vld [vmem:[%s5603 + $0x30] sm:$0xe]
    %v6334 = vld [vmem:[%s5603 + $0x38] sm:$0xe]
    %v6335 = vld [vmem:[%s5603 + $0x50] sm:$0xe]
    %v6336 = vld [vmem:[%s5603 + $0x58] sm:$0xe]
    %v6337 = vld [vmem:[%s5603 + $0x60] sm:$0xe]
    %v6338 = vld [vmem:[%s5603 + $0x68] sm:$0xe]
    %v6339 = vld [vmem:[%s5603 + $0x70] sm:$0xe]
    %v6340 = vld [vmem:[%s5603 + $0x78] sm:$0xe]
    %v6341 = vld [vmem:[%s5603 + $0x80] sm:$0xe]
    %v6342 = vld [vmem:[%s5603 + $0x88] sm:$0xe]
    %v6375 = vrot.slane %v6327, 5
    %v6376 = vrot.slane %v6375, 4
    %v6377 = vrot.slane %v6087, 5
    %v6378 = vsel %vm6006, %v6376, %v6377
    %v6379 = vrot.slane %v6328, 5
    %v6380 = vrot.slane %v6379, 4
    %v6381 = vrot.slane %v6088, 5
    %v6382 = vsel %vm6006, %v6380, %v6381
    %v6383 = vrot.slane %v6329, 5
    %v6384 = vrot.slane %v6383, 4
    %v6385 = vrot.slane %v6089, 5
    %v6386 = vsel %vm6006, %v6384, %v6385
    %v6387 = vrot.slane %v6330, 5
    %v6388 = vrot.slane %v6387, 4
    %v6389 = vrot.slane %v6090, 5
    %v6390 = vsel %vm6006, %v6388, %v6389
    %v6391 = vrot.slane %v6331, 5
    %v6392 = vrot.slane %v6391, 4
    %v6393 = vrot.slane %v6091, 5
    %v6394 = vsel %vm6006, %v6392, %v6393
    %v6395 = vrot.slane %v6332, 5
    %v6396 = vrot.slane %v6395, 4
    %v6397 = vrot.slane %v6092, 5
    %v6398 = vsel %vm6006, %v6396, %v6397
    %v6399 = vrot.slane %v6333, 5
    %v6400 = vrot.slane %v6399, 4
    %v6401 = vrot.slane %v6093, 5
    %v6402 = vsel %vm6006, %v6400, %v6401
    %v6403 = vrot.slane %v6334, 5
    %v6404 = vrot.slane %v6403, 4
    %v6405 = vrot.slane %v6094, 5
    %v6406 = vsel %vm6006, %v6404, %v6405
    %v6407 = vrot.slane %v6335, 5
    %v6408 = vrot.slane %v6407, 4
    %v6409 = vrot.slane %v6095, 5
    %v6410 = vsel %vm6006, %v6408, %v6409
    %v6411 = vrot.slane %v6336, 5
    %v6412 = vrot.slane %v6411, 4
    %v6413 = vrot.slane %v6096, 5
    %v6414 = vsel %vm6006, %v6412, %v6413
    %v6415 = vrot.slane %v6337, 5
    %v6416 = vrot.slane %v6415, 4
    %v6417 = vrot.slane %v6097, 5
    %v6418 = vsel %vm6006, %v6416, %v6417
    %v6419 = vrot.slane %v6338, 5
    %v6420 = vrot.slane %v6419, 4
    %v6421 = vrot.slane %v6098, 5
    %v6422 = vsel %vm6006, %v6420, %v6421
    %v6423 = vrot.slane %v6339, 5
    %v6424 = vrot.slane %v6423, 4
    %v6425 = vrot.slane %v6099, 5
    %v6426 = vsel %vm6006, %v6424, %v6425
    %v6427 = vrot.slane %v6340, 5
    %v6428 = vrot.slane %v6427, 4
    %v6429 = vrot.slane %v6100, 5
    %v6430 = vsel %vm6006, %v6428, %v6429
    %v6431 = vrot.slane %v6341, 5
    %v6432 = vrot.slane %v6431, 4
    %v6433 = vrot.slane %v6101, 5
    %v6434 = vsel %vm6006, %v6432, %v6433
    %v6435 = vrot.slane %v6342, 5
    %v6436 = vrot.slane %v6435, 4
    %v6437 = vrot.slane %v6102, 5
    %v6438 = vsel %vm6006, %v6436, %v6437
    %s6439 = scalar_lea.vmem [#allocation3], 16
    %v6440 = vld [vmem:[%s6439] sm:$0xf]
    %v6441 = vld [vmem:[%s6439 + $0x8] sm:$0xf]
    %v6442 = vld [vmem:[%s6439 + $0x10] sm:$0xf]
    %v6443 = vld [vmem:[%s6439 + $0x18] sm:$0xf]
    %v6444 = vld [vmem:[%s6439 + $0x20] sm:$0xf]
    %v6445 = vld [vmem:[%s6439 + $0x28] sm:$0xf]
    %v6446 = vld [vmem:[%s6439 + $0x30] sm:$0xf]
    %v6447 = vld [vmem:[%s6439 + $0x38] sm:$0xf]
    %v6448 = vld [vmem:[%s6439 + $0x50] sm:$0xf]
    %v6449 = vld [vmem:[%s6439 + $0x58] sm:$0xf]
    %v6450 = vld [vmem:[%s6439 + $0x60] sm:$0xf]
    %v6451 = vld [vmem:[%s6439 + $0x68] sm:$0xf]
    %v6452 = vld [vmem:[%s6439 + $0x70] sm:$0xf]
    %v6453 = vld [vmem:[%s6439 + $0x78] sm:$0xf]
    %v6454 = vld [vmem:[%s6439 + $0x80] sm:$0xf]
    %v6455 = vld [vmem:[%s6439 + $0x88] sm:$0xf]
    %v6456 = vld [vmem:[%s6439 + $0x4] sm:$0x1]
    %v6457 = vld [vmem:[%s6439 + $0xc] sm:$0x1]
    %v6458 = vld [vmem:[%s6439 + $0x14] sm:$0x1]
    %v6459 = vld [vmem:[%s6439 + $0x1c] sm:$0x1]
    %v6460 = vld [vmem:[%s6439 + $0x24] sm:$0x1]
    %v6461 = vld [vmem:[%s6439 + $0x2c] sm:$0x1]
    %v6462 = vld [vmem:[%s6439 + $0x34] sm:$0x1]
    %v6463 = vld [vmem:[%s6439 + $0x3c] sm:$0x1]
    %v6464 = vld [vmem:[%s6439 + $0x54] sm:$0x1]
    %v6465 = vld [vmem:[%s6439 + $0x5c] sm:$0x1]
    %v6466 = vld [vmem:[%s6439 + $0x64] sm:$0x1]
    %v6467 = vld [vmem:[%s6439 + $0x6c] sm:$0x1]
    %v6468 = vld [vmem:[%s6439 + $0x74] sm:$0x1]
    %v6469 = vld [vmem:[%s6439 + $0x7c] sm:$0x1]
    %v6470 = vld [vmem:[%s6439 + $0x84] sm:$0x1]
    %v6471 = vld [vmem:[%s6439 + $0x8c] sm:$0x1]
    %v6473 = vshrl.u32 %v6440, 16
    %v6475 = vrot.slane %v6473, 4
    %v6476 = vshll.u32 %v6440, 16
    %v6478 = vrot.slane %v6476, 5
    %v6479 = vor.u32 %v6475, %v6478
    %v6480 = vrot.slane %v6479, 4
    %v6482 = vshll.u32 %v6456, 16
    %v6484 = vrot.slane %v6482, 5
    %v6485 = vsel %vm2321, %v6480, %v6484
    %v6487 = vshrl.u32 %v6441, 16
    %v6489 = vrot.slane %v6487, 4
    %v6490 = vshll.u32 %v6441, 16
    %v6492 = vrot.slane %v6490, 5
    %v6493 = vor.u32 %v6489, %v6492
    %v6494 = vrot.slane %v6493, 4
    %v6496 = vshll.u32 %v6457, 16
    %v6498 = vrot.slane %v6496, 5
    %v6499 = vsel %vm2321, %v6494, %v6498
    %v6501 = vshrl.u32 %v6442, 16
    %v6503 = vrot.slane %v6501, 4
    %v6504 = vshll.u32 %v6442, 16
    %v6506 = vrot.slane %v6504, 5
    %v6507 = vor.u32 %v6503, %v6506
    %v6508 = vrot.slane %v6507, 4
    %v6510 = vshll.u32 %v6458, 16
    %v6512 = vrot.slane %v6510, 5
    %v6513 = vsel %vm2321, %v6508, %v6512
    %v6515 = vshrl.u32 %v6443, 16
    %v6517 = vrot.slane %v6515, 4
    %v6518 = vshll.u32 %v6443, 16
    %v6520 = vrot.slane %v6518, 5
    %v6521 = vor.u32 %v6517, %v6520
    %v6522 = vrot.slane %v6521, 4
    %v6524 = vshll.u32 %v6459, 16
    %v6526 = vrot.slane %v6524, 5
    %v6527 = vsel %vm2321, %v6522, %v6526
    %v6529 = vshrl.u32 %v6444, 16
    %v6531 = vrot.slane %v6529, 4
    %v6532 = vshll.u32 %v6444, 16
    %v6534 = vrot.slane %v6532, 5
    %v6535 = vor.u32 %v6531, %v6534
    %v6536 = vrot.slane %v6535, 4
    %v6538 = vshll.u32 %v6460, 16
    %v6540 = vrot.slane %v6538, 5
    %v6541 = vsel %vm2321, %v6536, %v6540
    %v6543 = vshrl.u32 %v6445, 16
    %v6545 = vrot.slane %v6543, 4
    %v6546 = vshll.u32 %v6445, 16
    %v6548 = vrot.slane %v6546, 5
    %v6549 = vor.u32 %v6545, %v6548
    %v6550 = vrot.slane %v6549, 4
    %v6552 = vshll.u32 %v6461, 16
    %v6554 = vrot.slane %v6552, 5
    %v6555 = vsel %vm2321, %v6550, %v6554
    %v6557 = vshrl.u32 %v6446, 16
    %v6559 = vrot.slane %v6557, 4
    %v6560 = vshll.u32 %v6446, 16
    %v6562 = vrot.slane %v6560, 5
    %v6563 = vor.u32 %v6559, %v6562
    %v6564 = vrot.slane %v6563, 4
    %v6566 = vshll.u32 %v6462, 16
    %v6568 = vrot.slane %v6566, 5
    %v6569 = vsel %vm2321, %v6564, %v6568
    %v6571 = vshrl.u32 %v6447, 16
    %v6573 = vrot.slane %v6571, 4
    %v6574 = vshll.u32 %v6447, 16
    %v6576 = vrot.slane %v6574, 5
    %v6577 = vor.u32 %v6573, %v6576
    %v6578 = vrot.slane %v6577, 4
    %v6580 = vshll.u32 %v6463, 16
    %v6582 = vrot.slane %v6580, 5
    %v6583 = vsel %vm2321, %v6578, %v6582
    %v6585 = vshrl.u32 %v6448, 16
    %v6587 = vrot.slane %v6585, 4
    %v6588 = vshll.u32 %v6448, 16
    %v6590 = vrot.slane %v6588, 5
    %v6591 = vor.u32 %v6587, %v6590
    %v6592 = vrot.slane %v6591, 4
    %v6594 = vshll.u32 %v6464, 16
    %v6596 = vrot.slane %v6594, 5
    %v6597 = vsel %vm2321, %v6592, %v6596
    %v6599 = vshrl.u32 %v6449, 16
    %v6601 = vrot.slane %v6599, 4
    %v6602 = vshll.u32 %v6449, 16
    %v6604 = vrot.slane %v6602, 5
    %v6605 = vor.u32 %v6601, %v6604
    %v6606 = vrot.slane %v6605, 4
    %v6608 = vshll.u32 %v6465, 16
    %v6610 = vrot.slane %v6608, 5
    %v6611 = vsel %vm2321, %v6606, %v6610
    %v6613 = vshrl.u32 %v6450, 16
    %v6615 = vrot.slane %v6613, 4
    %v6616 = vshll.u32 %v6450, 16
    %v6618 = vrot.slane %v6616, 5
    %v6619 = vor.u32 %v6615, %v6618
    %v6620 = vrot.slane %v6619, 4
    %v6622 = vshll.u32 %v6466, 16
    %v6624 = vrot.slane %v6622, 5
    %v6625 = vsel %vm2321, %v6620, %v6624
    %v6627 = vshrl.u32 %v6451, 16
    %v6629 = vrot.slane %v6627, 4
    %v6630 = vshll.u32 %v6451, 16
    %v6632 = vrot.slane %v6630, 5
    %v6633 = vor.u32 %v6629, %v6632
    %v6634 = vrot.slane %v6633, 4
    %v6636 = vshll.u32 %v6467, 16
    %v6638 = vrot.slane %v6636, 5
    %v6639 = vsel %vm2321, %v6634, %v6638
    %v6641 = vshrl.u32 %v6452, 16
    %v6643 = vrot.slane %v6641, 4
    %v6644 = vshll.u32 %v6452, 16
    %v6646 = vrot.slane %v6644, 5
    %v6647 = vor.u32 %v6643, %v6646
    %v6648 = vrot.slane %v6647, 4
    %v6650 = vshll.u32 %v6468, 16
    %v6652 = vrot.slane %v6650, 5
    %v6653 = vsel %vm2321, %v6648, %v6652
    %v6655 = vshrl.u32 %v6453, 16
    %v6657 = vrot.slane %v6655, 4
    %v6658 = vshll.u32 %v6453, 16
    %v6660 = vrot.slane %v6658, 5
    %v6661 = vor.u32 %v6657, %v6660
    %v6662 = vrot.slane %v6661, 4
    %v6664 = vshll.u32 %v6469, 16
    %v6666 = vrot.slane %v6664, 5
    %v6667 = vsel %vm2321, %v6662, %v6666
    %v6669 = vshrl.u32 %v6454, 16
    %v6671 = vrot.slane %v6669, 4
    %v6672 = vshll.u32 %v6454, 16
    %v6674 = vrot.slane %v6672, 5
    %v6675 = vor.u32 %v6671, %v6674
    %v6676 = vrot.slane %v6675, 4
    %v6678 = vshll.u32 %v6470, 16
    %v6680 = vrot.slane %v6678, 5
    %v6681 = vsel %vm2321, %v6676, %v6680
    %v6683 = vshrl.u32 %v6455, 16
    %v6685 = vrot.slane %v6683, 4
    %v6686 = vshll.u32 %v6455, 16
    %v6688 = vrot.slane %v6686, 5
    %v6689 = vor.u32 %v6685, %v6688
    %v6690 = vrot.slane %v6689, 4
    %v6692 = vshll.u32 %v6471, 16
    %v6694 = vrot.slane %v6692, 5
    %v6695 = vsel %vm2321, %v6690, %v6694
    %v6696 = vld [vmem:[%s6439] sm:$0xe]
    %v6697 = vld [vmem:[%s6439 + $0x8] sm:$0xe]
    %v6698 = vld [vmem:[%s6439 + $0x10] sm:$0xe]
    %v6699 = vld [vmem:[%s6439 + $0x18] sm:$0xe]
    %v6700 = vld [vmem:[%s6439 + $0x20] sm:$0xe]
    %v6701 = vld [vmem:[%s6439 + $0x28] sm:$0xe]
    %v6702 = vld [vmem:[%s6439 + $0x30] sm:$0xe]
    %v6703 = vld [vmem:[%s6439 + $0x38] sm:$0xe]
    %v6704 = vld [vmem:[%s6439 + $0x50] sm:$0xe]
    %v6705 = vld [vmem:[%s6439 + $0x58] sm:$0xe]
    %v6706 = vld [vmem:[%s6439 + $0x60] sm:$0xe]
    %v6707 = vld [vmem:[%s6439 + $0x68] sm:$0xe]
    %v6708 = vld [vmem:[%s6439 + $0x70] sm:$0xe]
    %v6709 = vld [vmem:[%s6439 + $0x78] sm:$0xe]
    %v6710 = vld [vmem:[%s6439 + $0x80] sm:$0xe]
    %v6711 = vld [vmem:[%s6439 + $0x88] sm:$0xe]
    %v6744 = vrot.slane %v6696, 5
    %v6745 = vrot.slane %v6744, 4
    %v6746 = vrot.slane %v6456, 5
    %v6747 = vsel %vm6006, %v6745, %v6746
    %v6748 = vrot.slane %v6697, 5
    %v6749 = vrot.slane %v6748, 4
    %v6750 = vrot.slane %v6457, 5
    %v6751 = vsel %vm6006, %v6749, %v6750
    %v6752 = vrot.slane %v6698, 5
    %v6753 = vrot.slane %v6752, 4
    %v6754 = vrot.slane %v6458, 5
    %v6755 = vsel %vm6006, %v6753, %v6754
    %v6756 = vrot.slane %v6699, 5
    %v6757 = vrot.slane %v6756, 4
    %v6758 = vrot.slane %v6459, 5
    %v6759 = vsel %vm6006, %v6757, %v6758
    %v6760 = vrot.slane %v6700, 5
    %v6761 = vrot.slane %v6760, 4
    %v6762 = vrot.slane %v6460, 5
    %v6763 = vsel %vm6006, %v6761, %v6762
    %v6764 = vrot.slane %v6701, 5
    %v6765 = vrot.slane %v6764, 4
    %v6766 = vrot.slane %v6461, 5
    %v6767 = vsel %vm6006, %v6765, %v6766
    %v6768 = vrot.slane %v6702, 5
    %v6769 = vrot.slane %v6768, 4
    %v6770 = vrot.slane %v6462, 5
    %v6771 = vsel %vm6006, %v6769, %v6770
    %v6772 = vrot.slane %v6703, 5
    %v6773 = vrot.slane %v6772, 4
    %v6774 = vrot.slane %v6463, 5
    %v6775 = vsel %vm6006, %v6773, %v6774
    %v6776 = vrot.slane %v6704, 5
    %v6777 = vrot.slane %v6776, 4
    %v6778 = vrot.slane %v6464, 5
    %v6779 = vsel %vm6006, %v6777, %v6778
    %v6780 = vrot.slane %v6705, 5
    %v6781 = vrot.slane %v6780, 4
    %v6782 = vrot.slane %v6465, 5
    %v6783 = vsel %vm6006, %v6781, %v6782
    %v6784 = vrot.slane %v6706, 5
    %v6785 = vrot.slane %v6784, 4
    %v6786 = vrot.slane %v6466, 5
    %v6787 = vsel %vm6006, %v6785, %v6786
    %v6788 = vrot.slane %v6707, 5
    %v6789 = vrot.slane %v6788, 4
    %v6790 = vrot.slane %v6467, 5
    %v6791 = vsel %vm6006, %v6789, %v6790
    %v6792 = vrot.slane %v6708, 5
    %v6793 = vrot.slane %v6792, 4
    %v6794 = vrot.slane %v6468, 5
    %v6795 = vsel %vm6006, %v6793, %v6794
    %v6796 = vrot.slane %v6709, 5
    %v6797 = vrot.slane %v6796, 4
    %v6798 = vrot.slane %v6469, 5
    %v6799 = vsel %vm6006, %v6797, %v6798
    %v6800 = vrot.slane %v6710, 5
    %v6801 = vrot.slane %v6800, 4
    %v6802 = vrot.slane %v6470, 5
    %v6803 = vsel %vm6006, %v6801, %v6802
    %v6804 = vrot.slane %v6711, 5
    %v6805 = vrot.slane %v6804, 4
    %v6806 = vrot.slane %v6471, 5
    %v6807 = vsel %vm6006, %v6805, %v6806
    %v6824 = vunpack.c.l.b16 %v5700
    %v6825 = vunpack.c.l.b16 %v5701
    %v6826 = vunpack.c.l.b16 %v5702
    %v6827 = vunpack.c.l.b16 %v5703
    %v6828 = vunpack.c.l.b16 %v5704
    %v6829 = vunpack.c.l.b16 %v5705
    %v6830 = vunpack.c.l.b16 %v5706
    %v6831 = vunpack.c.l.b16 %v5707
    %v6832 = vunpack.c.l.b16 %v5708
    %v6833 = vunpack.c.l.b16 %v5709
    %v6834 = vunpack.c.l.b16 %v5710
    %v6835 = vunpack.c.l.b16 %v5711
    %v6836 = vunpack.c.l.b16 %v5712
    %v6837 = vunpack.c.l.b16 %v5713
    %v6838 = vunpack.c.l.b16 %v5714
    %v6839 = vunpack.c.l.b16 %v5715
    %v6840 = vpack.c.b16 %v6825, %v6824
    %v6841 = vpack.c.b16 %v6827, %v6826
    %v6842 = vpack.c.b16 %v6829, %v6828
    %v6843 = vpack.c.b16 %v6831, %v6830
    %v6844 = vpack.c.b16 %v6833, %v6832
    %v6845 = vpack.c.b16 %v6835, %v6834
    %v6846 = vpack.c.b16 %v6837, %v6836
    %v6847 = vpack.c.b16 %v6839, %v6838
    %v6856 = vunpack.c.l.b16 %v5745
    %v6857 = vunpack.c.l.b16 %v5759
    %v6858 = vunpack.c.l.b16 %v5773
    %v6859 = vunpack.c.l.b16 %v5787
    %v6860 = vunpack.c.l.b16 %v5801
    %v6861 = vunpack.c.l.b16 %v5815
    %v6862 = vunpack.c.l.b16 %v5829
    %v6863 = vunpack.c.l.b16 %v5843
    %v6864 = vunpack.c.l.b16 %v5857
    %v6865 = vunpack.c.l.b16 %v5871
    %v6866 = vunpack.c.l.b16 %v5885
    %v6867 = vunpack.c.l.b16 %v5899
    %v6868 = vunpack.c.l.b16 %v5913
    %v6869 = vunpack.c.l.b16 %v5927
    %v6870 = vunpack.c.l.b16 %v5941
    %v6871 = vunpack.c.l.b16 %v5955
    %v6872 = vpack.c.b16 %v6857, %v6856
    %v6873 = vpack.c.b16 %v6859, %v6858
    %v6874 = vpack.c.b16 %v6861, %v6860
    %v6875 = vpack.c.b16 %v6863, %v6862
    %v6876 = vpack.c.b16 %v6865, %v6864
    %v6877 = vpack.c.b16 %v6867, %v6866
    %v6878 = vpack.c.b16 %v6869, %v6868
    %v6879 = vpack.c.b16 %v6871, %v6870
    %v6888 = vunpack.c.l.b16 %v6010
    %v6889 = vunpack.c.l.b16 %v6014
    %v6890 = vunpack.c.l.b16 %v6018
    %v6891 = vunpack.c.l.b16 %v6022
    %v6892 = vunpack.c.l.b16 %v6026
    %v6893 = vunpack.c.l.b16 %v6030
    %v6894 = vunpack.c.l.b16 %v6034
    %v6895 = vunpack.c.l.b16 %v6038
    %v6896 = vunpack.c.l.b16 %v6042
    %v6897 = vunpack.c.l.b16 %v6046
    %v6898 = vunpack.c.l.b16 %v6050
    %v6899 = vunpack.c.l.b16 %v6054
    %v6900 = vunpack.c.l.b16 %v6058
    %v6901 = vunpack.c.l.b16 %v6062
    %v6902 = vunpack.c.l.b16 %v6066
    %v6903 = vunpack.c.l.b16 %v6070
    %v6904 = vpack.c.b16 %v6889, %v6888
    %v6905 = vpack.c.b16 %v6891, %v6890
    %v6906 = vpack.c.b16 %v6893, %v6892
    %v6907 = vpack.c.b16 %v6895, %v6894
    %v6908 = vpack.c.b16 %v6897, %v6896
    %v6909 = vpack.c.b16 %v6899, %v6898
    %v6910 = vpack.c.b16 %v6901, %v6900
    %v6911 = vpack.c.b16 %v6903, %v6902
    %v6936 = vunpack.c.l.b16 %v6071
    %v6937 = vunpack.c.l.b16 %v6072
    %v6938 = vunpack.c.l.b16 %v6073
    %v6939 = vunpack.c.l.b16 %v6074
    %v6940 = vunpack.c.l.b16 %v6075
    %v6941 = vunpack.c.l.b16 %v6076
    %v6942 = vunpack.c.l.b16 %v6077
    %v6943 = vunpack.c.l.b16 %v6078
    %v6944 = vunpack.c.l.b16 %v6079
    %v6945 = vunpack.c.l.b16 %v6080
    %v6946 = vunpack.c.l.b16 %v6081
    %v6947 = vunpack.c.l.b16 %v6082
    %v6948 = vunpack.c.l.b16 %v6083
    %v6949 = vunpack.c.l.b16 %v6084
    %v6950 = vunpack.c.l.b16 %v6085
    %v6951 = vunpack.c.l.b16 %v6086
    %v6952 = vpack.c.b16 %v6937, %v6936
    %v6953 = vpack.c.b16 %v6939, %v6938
    %v6954 = vpack.c.b16 %v6941, %v6940
    %v6955 = vpack.c.b16 %v6943, %v6942
    %v6956 = vpack.c.b16 %v6945, %v6944
    %v6957 = vpack.c.b16 %v6947, %v6946
    %v6958 = vpack.c.b16 %v6949, %v6948
    %v6959 = vpack.c.b16 %v6951, %v6950
    %v6968 = vunpack.c.l.b16 %v6116
    %v6969 = vunpack.c.l.b16 %v6130
    %v6970 = vunpack.c.l.b16 %v6144
    %v6971 = vunpack.c.l.b16 %v6158
    %v6972 = vunpack.c.l.b16 %v6172
    %v6973 = vunpack.c.l.b16 %v6186
    %v6974 = vunpack.c.l.b16 %v6200
    %v6975 = vunpack.c.l.b16 %v6214
    %v6976 = vunpack.c.l.b16 %v6228
    %v6977 = vunpack.c.l.b16 %v6242
    %v6978 = vunpack.c.l.b16 %v6256
    %v6979 = vunpack.c.l.b16 %v6270
    %v6980 = vunpack.c.l.b16 %v6284
    %v6981 = vunpack.c.l.b16 %v6298
    %v6982 = vunpack.c.l.b16 %v6312
    %v6983 = vunpack.c.l.b16 %v6326
    %v6984 = vpack.c.b16 %v6969, %v6968
    %v6985 = vpack.c.b16 %v6971, %v6970
    %v6986 = vpack.c.b16 %v6973, %v6972
    %v6987 = vpack.c.b16 %v6975, %v6974
    %v6988 = vpack.c.b16 %v6977, %v6976
    %v6989 = vpack.c.b16 %v6979, %v6978
    %v6990 = vpack.c.b16 %v6981, %v6980
    %v6991 = vpack.c.b16 %v6983, %v6982
    %v7000 = vunpack.c.l.b16 %v6378
    %v7001 = vunpack.c.l.b16 %v6382
    %v7002 = vunpack.c.l.b16 %v6386
    %v7003 = vunpack.c.l.b16 %v6390
    %v7004 = vunpack.c.l.b16 %v6394
    %v7005 = vunpack.c.l.b16 %v6398
    %v7006 = vunpack.c.l.b16 %v6402
    %v7007 = vunpack.c.l.b16 %v6406
    %v7008 = vunpack.c.l.b16 %v6410
    %v7009 = vunpack.c.l.b16 %v6414
    %v7010 = vunpack.c.l.b16 %v6418
    %v7011 = vunpack.c.l.b16 %v6422
    %v7012 = vunpack.c.l.b16 %v6426
    %v7013 = vunpack.c.l.b16 %v6430
    %v7014 = vunpack.c.l.b16 %v6434
    %v7015 = vunpack.c.l.b16 %v6438
    %v7016 = vpack.c.b16 %v7001, %v7000
    %v7017 = vpack.c.b16 %v7003, %v7002
    %v7018 = vpack.c.b16 %v7005, %v7004
    %v7019 = vpack.c.b16 %v7007, %v7006
    %v7020 = vpack.c.b16 %v7009, %v7008
    %v7021 = vpack.c.b16 %v7011, %v7010
    %v7022 = vpack.c.b16 %v7013, %v7012
    %v7023 = vpack.c.b16 %v7015, %v7014
    %v7048 = vunpack.c.l.b16 %v6440
    %v7049 = vunpack.c.l.b16 %v6441
    %v7050 = vunpack.c.l.b16 %v6442
    %v7051 = vunpack.c.l.b16 %v6443
    %v7052 = vunpack.c.l.b16 %v6444
    %v7053 = vunpack.c.l.b16 %v6445
    %v7054 = vunpack.c.l.b16 %v6446
    %v7055 = vunpack.c.l.b16 %v6447
    %v7056 = vunpack.c.l.b16 %v6448
    %v7057 = vunpack.c.l.b16 %v6449
    %v7058 = vunpack.c.l.b16 %v6450
    %v7059 = vunpack.c.l.b16 %v6451
    %v7060 = vunpack.c.l.b16 %v6452
    %v7061 = vunpack.c.l.b16 %v6453
    %v7062 = vunpack.c.l.b16 %v6454
    %v7063 = vunpack.c.l.b16 %v6455
    %v7064 = vpack.c.b16 %v7049, %v7048
    %v7065 = vpack.c.b16 %v7051, %v7050
    %v7066 = vpack.c.b16 %v7053, %v7052
    %v7067 = vpack.c.b16 %v7055, %v7054
    %v7068 = vpack.c.b16 %v7057, %v7056
    %v7069 = vpack.c.b16 %v7059, %v7058
    %v7070 = vpack.c.b16 %v7061, %v7060
    %v7071 = vpack.c.b16 %v7063, %v7062
    %v7080 = vunpack.c.l.b16 %v6485
    %v7081 = vunpack.c.l.b16 %v6499
    %v7082 = vunpack.c.l.b16 %v6513
    %v7083 = vunpack.c.l.b16 %v6527
    %v7084 = vunpack.c.l.b16 %v6541
    %v7085 = vunpack.c.l.b16 %v6555
    %v7086 = vunpack.c.l.b16 %v6569
    %v7087 = vunpack.c.l.b16 %v6583
    %v7088 = vunpack.c.l.b16 %v6597
    %v7089 = vunpack.c.l.b16 %v6611
    %v7090 = vunpack.c.l.b16 %v6625
    %v7091 = vunpack.c.l.b16 %v6639
    %v7092 = vunpack.c.l.b16 %v6653
    %v7093 = vunpack.c.l.b16 %v6667
    %v7094 = vunpack.c.l.b16 %v6681
    %v7095 = vunpack.c.l.b16 %v6695
    %v7096 = vpack.c.b16 %v7081, %v7080
    %v7097 = vpack.c.b16 %v7083, %v7082
    %v7098 = vpack.c.b16 %v7085, %v7084
    %v7099 = vpack.c.b16 %v7087, %v7086
    %v7100 = vpack.c.b16 %v7089, %v7088
    %v7101 = vpack.c.b16 %v7091, %v7090
    %v7102 = vpack.c.b16 %v7093, %v7092
    %v7103 = vpack.c.b16 %v7095, %v7094
    %v7112 = vunpack.c.l.b16 %v6747
    %v7113 = vunpack.c.l.b16 %v6751
    %v7114 = vunpack.c.l.b16 %v6755
    %v7115 = vunpack.c.l.b16 %v6759
    %v7116 = vunpack.c.l.b16 %v6763
    %v7117 = vunpack.c.l.b16 %v6767
    %v7118 = vunpack.c.l.b16 %v6771
    %v7119 = vunpack.c.l.b16 %v6775
    %v7120 = vunpack.c.l.b16 %v6779
    %v7121 = vunpack.c.l.b16 %v6783
    %v7122 = vunpack.c.l.b16 %v6787
    %v7123 = vunpack.c.l.b16 %v6791
    %v7124 = vunpack.c.l.b16 %v6795
    %v7125 = vunpack.c.l.b16 %v6799
    %v7126 = vunpack.c.l.b16 %v6803
    %v7127 = vunpack.c.l.b16 %v6807
    %v7128 = vpack.c.b16 %v7113, %v7112
    %v7129 = vpack.c.b16 %v7115, %v7114
    %v7130 = vpack.c.b16 %v7117, %v7116
    %v7131 = vpack.c.b16 %v7119, %v7118
    %v7132 = vpack.c.b16 %v7121, %v7120
    %v7133 = vpack.c.b16 %v7123, %v7122
    %v7134 = vpack.c.b16 %v7125, %v7124
    %v7135 = vpack.c.b16 %v7127, %v7126
    %v7144 = vld [vmem:[%s6] sm:$0xf]
    %v7145 = vld [vmem:[%s6 + $0x4] sm:$0xf]
    %v7146 = vld [vmem:[%s6 + $0x8] sm:$0xf]
    %v7147 = vld [vmem:[%s6 + $0xc] sm:$0xf]
    %v7148 = vld [vmem:[%s6 + $0x10] sm:$0xf]
    %v7149 = vld [vmem:[%s6 + $0x14] sm:$0xf]
    %v7150 = vld [vmem:[%s6 + $0x18] sm:$0xf]
    %v7151 = vld [vmem:[%s6 + $0x1c] sm:$0xf]
    %v7152 = vld [vmem:[%s6 + $0x20] sm:$0xf]
    %v7153 = vld [vmem:[%s6 + $0x24] sm:$0xf]
    %v7154 = vld [vmem:[%s6 + $0x28] sm:$0xf]
    %v7155 = vld [vmem:[%s6 + $0x2c] sm:$0xf]
    %v7156 = vld [vmem:[%s6 + $0x30] sm:$0xf]
    %v7157 = vld [vmem:[%s6 + $0x34] sm:$0xf]
    %v7158 = vld [vmem:[%s6 + $0x38] sm:$0xf]
    %v7159 = vld [vmem:[%s6 + $0x3c] sm:$0xf]
    %v7160 = vld [vmem:[%s6 + $0x40] sm:$0xf]
    %v7161 = vld [vmem:[%s6 + $0x44] sm:$0xf]
    %v7162 = vld [vmem:[%s6 + $0x48] sm:$0xf]
    %v7163 = vld [vmem:[%s6 + $0x4c] sm:$0xf]
    %v7164 = vld [vmem:[%s6 + $0x50] sm:$0xf]
    %v7165 = vld [vmem:[%s6 + $0x54] sm:$0xf]
    %v7166 = vld [vmem:[%s6 + $0x58] sm:$0xf]
    %v7167 = vld [vmem:[%s6 + $0x5c] sm:$0xf]
    %v7168 = vld [vmem:[%s6 + $0x60] sm:$0xf]
    %v7169 = vld [vmem:[%s6 + $0x64] sm:$0xf]
    %v7170 = vld [vmem:[%s6 + $0x68] sm:$0xf]
    %v7171 = vld [vmem:[%s6 + $0x6c] sm:$0xf]
    %v7172 = vld [vmem:[%s6 + $0x70] sm:$0xf]
    %v7173 = vld [vmem:[%s6 + $0x74] sm:$0xf]
    %v7174 = vld [vmem:[%s6 + $0x78] sm:$0xf]
    %v7175 = vld [vmem:[%s6 + $0x7c] sm:$0xf]
    %v7176 = vld [vmem:[%s6 + $0x80] sm:$0xf]
    %v7177 = vld [vmem:[%s6 + $0x84] sm:$0xf]
    %v7178 = vld [vmem:[%s6 + $0x88] sm:$0xf]
    %v7179 = vld [vmem:[%s6 + $0x8c] sm:$0xf]
    %v7180 = vld [vmem:[%s6 + $0x90] sm:$0xf]
    %v7181 = vld [vmem:[%s6 + $0x94] sm:$0xf]
    %v7182 = vld [vmem:[%s6 + $0x98] sm:$0xf]
    %v7183 = vld [vmem:[%s6 + $0x9c] sm:$0xf]
    %v7184 = vld [vmem:[%s6 + $0xa0] sm:$0xf]
    %v7185 = vld [vmem:[%s6 + $0xa4] sm:$0xf]
    %v7186 = vld [vmem:[%s6 + $0xa8] sm:$0xf]
    %v7187 = vld [vmem:[%s6 + $0xac] sm:$0xf]
    %v7188 = vld [vmem:[%s6 + $0xb0] sm:$0xf]
    %v7189 = vld [vmem:[%s6 + $0xb4] sm:$0xf]
    %v7190 = vld [vmem:[%s6 + $0xb8] sm:$0xf]
    %v7191 = vld [vmem:[%s6 + $0xbc] sm:$0xf]
    %v7192 = vld [vmem:[%s6 + $0xc0] sm:$0xf]
    %v7193 = vld [vmem:[%s6 + $0xc4] sm:$0xf]
    %v7194 = vld [vmem:[%s6 + $0xc8] sm:$0xf]
    %v7195 = vld [vmem:[%s6 + $0xcc] sm:$0xf]
    %v7196 = vld [vmem:[%s6 + $0xd0] sm:$0xf]
    %v7197 = vld [vmem:[%s6 + $0xd4] sm:$0xf]
    %v7198 = vld [vmem:[%s6 + $0xd8] sm:$0xf]
    %v7199 = vld [vmem:[%s6 + $0xdc] sm:$0xf]
    %v7200 = vld [vmem:[%s6 + $0xe0] sm:$0xf]
    %v7201 = vld [vmem:[%s6 + $0xe4] sm:$0xf]
    %v7202 = vld [vmem:[%s6 + $0xe8] sm:$0xf]
    %v7203 = vld [vmem:[%s6 + $0xec] sm:$0xf]
    %v7204 = vld [vmem:[%s6 + $0xf0] sm:$0xf]
    %v7205 = vld [vmem:[%s6 + $0xf4] sm:$0xf]
    %v7206 = vld [vmem:[%s6 + $0xf8] sm:$0xf]
    %v7207 = vld [vmem:[%s6 + $0xfc] sm:$0xf]
    %v7208 = vld [vmem:[%s6 + $0x100] sm:$0xf]
    %v7209 = vld [vmem:[%s6 + $0x104] sm:$0xf]
    %v7210 = vld [vmem:[%s6 + $0x108] sm:$0xf]
    %v7211 = vld [vmem:[%s6 + $0x10c] sm:$0xf]
    %v7212 = vld [vmem:[%s6 + $0x110] sm:$0xf]
    %v7213 = vld [vmem:[%s6 + $0x114] sm:$0xf]
    %v7214 = vld [vmem:[%s6 + $0x118] sm:$0xf]
    %v7215 = vld [vmem:[%s6 + $0x11c] sm:$0xf]
    %v7216 = vld [vmem:[%s6 + $0x120] sm:$0xf]
    %v7217 = vld [vmem:[%s6 + $0x124] sm:$0xf]
    %v7218 = vld [vmem:[%s6 + $0x128] sm:$0xf]
    %v7219 = vld [vmem:[%s6 + $0x12c] sm:$0xf]
    %v7220 = vld [vmem:[%s6 + $0x130] sm:$0xf]
    %v7221 = vld [vmem:[%s6 + $0x134] sm:$0xf]
    %v7222 = vld [vmem:[%s6 + $0x138] sm:$0xf]
    %v7223 = vld [vmem:[%s6 + $0x13c] sm:$0xf]
    %v7224 = vld [vmem:[%s6 + $0x140] sm:$0xf]
    %v7225 = vld [vmem:[%s6 + $0x144] sm:$0xf]
    %v7226 = vld [vmem:[%s6 + $0x148] sm:$0xf]
    %v7227 = vld [vmem:[%s6 + $0x14c] sm:$0xf]
    %v7228 = vld [vmem:[%s6 + $0x150] sm:$0xf]
    %v7229 = vld [vmem:[%s6 + $0x154] sm:$0xf]
    %v7230 = vld [vmem:[%s6 + $0x158] sm:$0xf]
    %v7231 = vld [vmem:[%s6 + $0x15c] sm:$0xf]
    %v7232 = vld [vmem:[%s6 + $0x160] sm:$0xf]
    %v7233 = vld [vmem:[%s6 + $0x164] sm:$0xf]
    %v7234 = vld [vmem:[%s6 + $0x168] sm:$0xf]
    %v7235 = vld [vmem:[%s6 + $0x16c] sm:$0xf]
    %v7236 = vld [vmem:[%s6 + $0x170] sm:$0xf]
    %v7237 = vld [vmem:[%s6 + $0x174] sm:$0xf]
    %v7238 = vld [vmem:[%s6 + $0x178] sm:$0xf]
    %v7239 = vld [vmem:[%s6 + $0x17c] sm:$0xf]
    %v7240 = vld [vmem:[%s6 + $0x180] sm:$0xf]
    %v7241 = vld [vmem:[%s6 + $0x184] sm:$0xf]
    %v7242 = vld [vmem:[%s6 + $0x188] sm:$0xf]
    %v7243 = vld [vmem:[%s6 + $0x18c] sm:$0xf]
    %v7244 = vld [vmem:[%s6 + $0x190] sm:$0xf]
    %v7245 = vld [vmem:[%s6 + $0x194] sm:$0xf]
    %v7246 = vld [vmem:[%s6 + $0x198] sm:$0xf]
    %v7247 = vld [vmem:[%s6 + $0x19c] sm:$0xf]
    %v7248 = vld [vmem:[%s6 + $0x1a0] sm:$0xf]
    %v7249 = vld [vmem:[%s6 + $0x1a4] sm:$0xf]
    %v7250 = vld [vmem:[%s6 + $0x1a8] sm:$0xf]
    %v7251 = vld [vmem:[%s6 + $0x1ac] sm:$0xf]
    %v7252 = vld [vmem:[%s6 + $0x1b0] sm:$0xf]
    %v7253 = vld [vmem:[%s6 + $0x1b4] sm:$0xf]
    %v7254 = vld [vmem:[%s6 + $0x1b8] sm:$0xf]
    %v7255 = vld [vmem:[%s6 + $0x1bc] sm:$0xf]
    %v7256 = vld [vmem:[%s6 + $0x1c0] sm:$0xf]
    %v7257 = vld [vmem:[%s6 + $0x1c4] sm:$0xf]
    %v7258 = vld [vmem:[%s6 + $0x1c8] sm:$0xf]
    %v7259 = vld [vmem:[%s6 + $0x1cc] sm:$0xf]
    %v7260 = vld [vmem:[%s6 + $0x1d0] sm:$0xf]
    %v7261 = vld [vmem:[%s6 + $0x1d4] sm:$0xf]
    %v7262 = vld [vmem:[%s6 + $0x1d8] sm:$0xf]
    %v7263 = vld [vmem:[%s6 + $0x1dc] sm:$0xf]
    %v7264 = vld [vmem:[%s6 + $0x1e0] sm:$0xf]
    %v7265 = vld [vmem:[%s6 + $0x1e4] sm:$0xf]
    %v7266 = vld [vmem:[%s6 + $0x1e8] sm:$0xf]
    %v7267 = vld [vmem:[%s6 + $0x1ec] sm:$0xf]
    %v7268 = vld [vmem:[%s6 + $0x1f0] sm:$0xf]
    %v7269 = vld [vmem:[%s6 + $0x1f4] sm:$0xf]
    %v7270 = vld [vmem:[%s6 + $0x1f8] sm:$0xf]
    %v7271 = vld [vmem:[%s6 + $0x1fc] sm:$0xf]
    %v7272 = vld [vmem:[%s6 + $0x200] sm:$0xf]
    %v7273 = vld [vmem:[%s6 + $0x204] sm:$0xf]
    %v7274 = vld [vmem:[%s6 + $0x208] sm:$0xf]
    %v7275 = vld [vmem:[%s6 + $0x20c] sm:$0xf]
    %v7276 = vld [vmem:[%s6 + $0x210] sm:$0xf]
    %v7277 = vld [vmem:[%s6 + $0x214] sm:$0xf]
    %v7278 = vld [vmem:[%s6 + $0x218] sm:$0xf]
    %v7279 = vld [vmem:[%s6 + $0x21c] sm:$0xf]
    %v7280 = vld [vmem:[%s6 + $0x220] sm:$0xf]
    %v7281 = vld [vmem:[%s6 + $0x224] sm:$0xf]
    %v7282 = vld [vmem:[%s6 + $0x228] sm:$0xf]
    %v7283 = vld [vmem:[%s6 + $0x22c] sm:$0xf]
    %v7284 = vld [vmem:[%s6 + $0x230] sm:$0xf]
    %v7285 = vld [vmem:[%s6 + $0x234] sm:$0xf]
    %v7286 = vld [vmem:[%s6 + $0x238] sm:$0xf]
    %v7287 = vld [vmem:[%s6 + $0x23c] sm:$0xf]
    %v7432 = vunpack.c.l.b16 %v7144
    %v7433 = vunpack.c.l.b16 %v7145
    %v7434 = vunpack.c.l.b16 %v7146
    %v7435 = vunpack.c.l.b16 %v7147
    %v7436 = vunpack.c.l.b16 %v7148
    %v7437 = vunpack.c.l.b16 %v7149
    %v7438 = vunpack.c.l.b16 %v7150
    %v7439 = vunpack.c.l.b16 %v7151
    %v7440 = vunpack.c.l.b16 %v7152
    %v7441 = vunpack.c.l.b16 %v7153
    %v7442 = vunpack.c.l.b16 %v7154
    %v7443 = vunpack.c.l.b16 %v7155
    %v7444 = vunpack.c.l.b16 %v7156
    %v7445 = vunpack.c.l.b16 %v7157
    %v7446 = vunpack.c.l.b16 %v7158
    %v7447 = vunpack.c.l.b16 %v7159
    %v7448 = vunpack.c.l.b16 %v7160
    %v7449 = vunpack.c.l.b16 %v7161
    %v7450 = vunpack.c.l.b16 %v7162
    %v7451 = vunpack.c.l.b16 %v7163
    %v7452 = vunpack.c.l.b16 %v7164
    %v7453 = vunpack.c.l.b16 %v7165
    %v7454 = vunpack.c.l.b16 %v7166
    %v7455 = vunpack.c.l.b16 %v7167
    %v7456 = vunpack.c.l.b16 %v7168
    %v7457 = vunpack.c.l.b16 %v7169
    %v7458 = vunpack.c.l.b16 %v7170
    %v7459 = vunpack.c.l.b16 %v7171
    %v7460 = vunpack.c.l.b16 %v7172
    %v7461 = vunpack.c.l.b16 %v7173
    %v7462 = vunpack.c.l.b16 %v7174
    %v7463 = vunpack.c.l.b16 %v7175
    %v7464 = vunpack.c.l.b16 %v7176
    %v7465 = vunpack.c.l.b16 %v7177
    %v7466 = vunpack.c.l.b16 %v7178
    %v7467 = vunpack.c.l.b16 %v7179
    %v7468 = vunpack.c.l.b16 %v7180
    %v7469 = vunpack.c.l.b16 %v7181
    %v7470 = vunpack.c.l.b16 %v7182
    %v7471 = vunpack.c.l.b16 %v7183
    %v7472 = vunpack.c.l.b16 %v7184
    %v7473 = vunpack.c.l.b16 %v7185
    %v7474 = vunpack.c.l.b16 %v7186
    %v7475 = vunpack.c.l.b16 %v7187
    %v7476 = vunpack.c.l.b16 %v7188
    %v7477 = vunpack.c.l.b16 %v7189
    %v7478 = vunpack.c.l.b16 %v7190
    %v7479 = vunpack.c.l.b16 %v7191
    %v7480 = vunpack.c.l.b16 %v7192
    %v7481 = vunpack.c.l.b16 %v7193
    %v7482 = vunpack.c.l.b16 %v7194
    %v7483 = vunpack.c.l.b16 %v7195
    %v7484 = vunpack.c.l.b16 %v7196
    %v7485 = vunpack.c.l.b16 %v7197
    %v7486 = vunpack.c.l.b16 %v7198
    %v7487 = vunpack.c.l.b16 %v7199
    %v7488 = vunpack.c.l.b16 %v7200
    %v7489 = vunpack.c.l.b16 %v7201
    %v7490 = vunpack.c.l.b16 %v7202
    %v7491 = vunpack.c.l.b16 %v7203
    %v7492 = vunpack.c.l.b16 %v7204
    %v7493 = vunpack.c.l.b16 %v7205
    %v7494 = vunpack.c.l.b16 %v7206
    %v7495 = vunpack.c.l.b16 %v7207
    %v7496 = vunpack.c.l.b16 %v7208
    %v7497 = vunpack.c.l.b16 %v7209
    %v7498 = vunpack.c.l.b16 %v7210
    %v7499 = vunpack.c.l.b16 %v7211
    %v7500 = vunpack.c.l.b16 %v7212
    %v7501 = vunpack.c.l.b16 %v7213
    %v7502 = vunpack.c.l.b16 %v7214
    %v7503 = vunpack.c.l.b16 %v7215
    %v7504 = vunpack.c.l.b16 %v7216
    %v7505 = vunpack.c.l.b16 %v7217
    %v7506 = vunpack.c.l.b16 %v7218
    %v7507 = vunpack.c.l.b16 %v7219
    %v7508 = vunpack.c.l.b16 %v7220
    %v7509 = vunpack.c.l.b16 %v7221
    %v7510 = vunpack.c.l.b16 %v7222
    %v7511 = vunpack.c.l.b16 %v7223
    %v7512 = vunpack.c.l.b16 %v7224
    %v7513 = vunpack.c.l.b16 %v7225
    %v7514 = vunpack.c.l.b16 %v7226
    %v7515 = vunpack.c.l.b16 %v7227
    %v7516 = vunpack.c.l.b16 %v7228
    %v7517 = vunpack.c.l.b16 %v7229
    %v7518 = vunpack.c.l.b16 %v7230
    %v7519 = vunpack.c.l.b16 %v7231
    %v7520 = vunpack.c.l.b16 %v7232
    %v7521 = vunpack.c.l.b16 %v7233
    %v7522 = vunpack.c.l.b16 %v7234
    %v7523 = vunpack.c.l.b16 %v7235
    %v7524 = vunpack.c.l.b16 %v7236
    %v7525 = vunpack.c.l.b16 %v7237
    %v7526 = vunpack.c.l.b16 %v7238
    %v7527 = vunpack.c.l.b16 %v7239
    %v7528 = vunpack.c.l.b16 %v7240
    %v7529 = vunpack.c.l.b16 %v7241
    %v7530 = vunpack.c.l.b16 %v7242
    %v7531 = vunpack.c.l.b16 %v7243
    %v7532 = vunpack.c.l.b16 %v7244
    %v7533 = vunpack.c.l.b16 %v7245
    %v7534 = vunpack.c.l.b16 %v7246
    %v7535 = vunpack.c.l.b16 %v7247
    %v7536 = vunpack.c.l.b16 %v7248
    %v7537 = vunpack.c.l.b16 %v7249
    %v7538 = vunpack.c.l.b16 %v7250
    %v7539 = vunpack.c.l.b16 %v7251
    %v7540 = vunpack.c.l.b16 %v7252
    %v7541 = vunpack.c.l.b16 %v7253
    %v7542 = vunpack.c.l.b16 %v7254
    %v7543 = vunpack.c.l.b16 %v7255
    %v7544 = vunpack.c.l.b16 %v7256
    %v7545 = vunpack.c.l.b16 %v7257
    %v7546 = vunpack.c.l.b16 %v7258
    %v7547 = vunpack.c.l.b16 %v7259
    %v7548 = vunpack.c.l.b16 %v7260
    %v7549 = vunpack.c.l.b16 %v7261
    %v7550 = vunpack.c.l.b16 %v7262
    %v7551 = vunpack.c.l.b16 %v7263
    %v7552 = vunpack.c.l.b16 %v7264
    %v7553 = vunpack.c.l.b16 %v7265
    %v7554 = vunpack.c.l.b16 %v7266
    %v7555 = vunpack.c.l.b16 %v7267
    %v7556 = vunpack.c.l.b16 %v7268
    %v7557 = vunpack.c.l.b16 %v7269
    %v7558 = vunpack.c.l.b16 %v7270
    %v7559 = vunpack.c.l.b16 %v7271
    %v7560 = vunpack.c.l.b16 %v7272
    %v7561 = vunpack.c.l.b16 %v7273
    %v7562 = vunpack.c.l.b16 %v7274
    %v7563 = vunpack.c.l.b16 %v7275
    %v7564 = vunpack.c.l.b16 %v7276
    %v7565 = vunpack.c.l.b16 %v7277
    %v7566 = vunpack.c.l.b16 %v7278
    %v7567 = vunpack.c.l.b16 %v7279
    %v7568 = vunpack.c.l.b16 %v7280
    %v7569 = vunpack.c.l.b16 %v7281
    %v7570 = vunpack.c.l.b16 %v7282
    %v7571 = vunpack.c.l.b16 %v7283
    %v7572 = vunpack.c.l.b16 %v7284
    %v7573 = vunpack.c.l.b16 %v7285
    %v7574 = vunpack.c.l.b16 %v7286
    %v7575 = vunpack.c.l.b16 %v7287
    %v7576 = vpack.c.b16 %v7433, %v7432
    %v7577 = vpack.c.b16 %v7435, %v7434
    %v7578 = vpack.c.b16 %v7437, %v7436
    %v7579 = vpack.c.b16 %v7439, %v7438
    %v7580 = vpack.c.b16 %v7441, %v7440
    %v7581 = vpack.c.b16 %v7443, %v7442
    %v7582 = vpack.c.b16 %v7445, %v7444
    %v7583 = vpack.c.b16 %v7447, %v7446
    %v7584 = vpack.c.b16 %v7449, %v7448
    %v7585 = vpack.c.b16 %v7451, %v7450
    %v7586 = vpack.c.b16 %v7453, %v7452
    %v7587 = vpack.c.b16 %v7455, %v7454
    %v7588 = vpack.c.b16 %v7457, %v7456
    %v7589 = vpack.c.b16 %v7459, %v7458
    %v7590 = vpack.c.b16 %v7461, %v7460
    %v7591 = vpack.c.b16 %v7463, %v7462
    %v7592 = vpack.c.b16 %v7465, %v7464
    %v7593 = vpack.c.b16 %v7467, %v7466
    %v7594 = vpack.c.b16 %v7469, %v7468
    %v7595 = vpack.c.b16 %v7471, %v7470
    %v7596 = vpack.c.b16 %v7473, %v7472
    %v7597 = vpack.c.b16 %v7475, %v7474
    %v7598 = vpack.c.b16 %v7477, %v7476
    %v7599 = vpack.c.b16 %v7479, %v7478
    %v7600 = vpack.c.b16 %v7481, %v7480
    %v7601 = vpack.c.b16 %v7483, %v7482
    %v7602 = vpack.c.b16 %v7485, %v7484
    %v7603 = vpack.c.b16 %v7487, %v7486
    %v7604 = vpack.c.b16 %v7489, %v7488
    %v7605 = vpack.c.b16 %v7491, %v7490
    %v7606 = vpack.c.b16 %v7493, %v7492
    %v7607 = vpack.c.b16 %v7495, %v7494
    %v7608 = vpack.c.b16 %v7497, %v7496
    %v7609 = vpack.c.b16 %v7499, %v7498
    %v7610 = vpack.c.b16 %v7501, %v7500
    %v7611 = vpack.c.b16 %v7503, %v7502
    %v7612 = vpack.c.b16 %v7505, %v7504
    %v7613 = vpack.c.b16 %v7507, %v7506
    %v7614 = vpack.c.b16 %v7509, %v7508
    %v7615 = vpack.c.b16 %v7511, %v7510
    %v7616 = vpack.c.b16 %v7513, %v7512
    %v7617 = vpack.c.b16 %v7515, %v7514
    %v7618 = vpack.c.b16 %v7517, %v7516
    %v7619 = vpack.c.b16 %v7519, %v7518
    %v7620 = vpack.c.b16 %v7521, %v7520
    %v7621 = vpack.c.b16 %v7523, %v7522
    %v7622 = vpack.c.b16 %v7525, %v7524
    %v7623 = vpack.c.b16 %v7527, %v7526
    %v7624 = vpack.c.b16 %v7529, %v7528
    %v7625 = vpack.c.b16 %v7531, %v7530
    %v7626 = vpack.c.b16 %v7533, %v7532
    %v7627 = vpack.c.b16 %v7535, %v7534
    %v7628 = vpack.c.b16 %v7537, %v7536
    %v7629 = vpack.c.b16 %v7539, %v7538
    %v7630 = vpack.c.b16 %v7541, %v7540
    %v7631 = vpack.c.b16 %v7543, %v7542
    %v7632 = vpack.c.b16 %v7545, %v7544
    %v7633 = vpack.c.b16 %v7547, %v7546
    %v7634 = vpack.c.b16 %v7549, %v7548
    %v7635 = vpack.c.b16 %v7551, %v7550
    %v7636 = vpack.c.b16 %v7553, %v7552
    %v7637 = vpack.c.b16 %v7555, %v7554
    %v7638 = vpack.c.b16 %v7557, %v7556
    %v7639 = vpack.c.b16 %v7559, %v7558
    %v7640 = vpack.c.b16 %v7561, %v7560
    %v7641 = vpack.c.b16 %v7563, %v7562
    %v7642 = vpack.c.b16 %v7565, %v7564
    %v7643 = vpack.c.b16 %v7567, %v7566
    %v7644 = vpack.c.b16 %v7569, %v7568
    %v7645 = vpack.c.b16 %v7571, %v7570
    %v7646 = vpack.c.b16 %v7573, %v7572
    %v7647 = vpack.c.b16 %v7575, %v7574
    %7720 = vmatprep.subr.bf16.mxu0 0
    %7721 = vmatpush1.bf16.msra.mxu0 %v7576
    %7722 = vmatprep.subr.bf16.mxu0 0
    %7723 = vmatpush1.bf16.msra.mxu0 %v7577
    %7724 = vmatprep.subr.bf16.mxu0 0
    %7725 = vmatpush1.bf16.msra.mxu0 %v7578
    %7726 = vmatprep.subr.bf16.mxu0 0
    %7727 = vmatpush1.bf16.msra.mxu0 %v7579
    %7728 = vmatprep.subr.bf16.mxu0 0
    %7729 = vmatpush1.bf16.msra.mxu0 %v7580
    %7730 = vmatprep.subr.bf16.mxu0 0
    %7731 = vmatpush1.bf16.msra.mxu0 %v7581
    %7732 = vmatprep.subr.bf16.mxu0 0
    %7733 = vmatpush1.bf16.msra.mxu0 %v7582
    %7734 = vmatprep.subr.bf16.mxu0 0
    %7735 = vmatpush1.bf16.msra.mxu0 %v7583
    %7736 = vmatprep.subr.bf16.mxu0 0
    %7737 = vmatpush1.bf16.msra.mxu0 %v7584
    %7738 = vmatprep.subr.bf16.mxu0 0
    %7739 = vmatpush1.bf16.msra.mxu0 %v7585
    %7740 = vmatprep.subr.bf16.mxu0 0
    %7741 = vmatpush1.bf16.msra.mxu0 %v7586
    %7742 = vmatprep.subr.bf16.mxu0 0
    %7743 = vmatpush1.bf16.msra.mxu0 %v7587
    %7744 = vmatprep.subr.bf16.mxu0 0
    %7745 = vmatpush1.bf16.msra.mxu0 %v7588
    %7746 = vmatprep.subr.bf16.mxu0 0
    %7747 = vmatpush1.bf16.msra.mxu0 %v7589
    %7748 = vmatprep.subr.bf16.mxu0 0
    %7749 = vmatpush1.bf16.msra.mxu0 %v7590
    %7750 = vmatprep.subr.bf16.mxu0 0
    %7751 = vmatpush1.bf16.msra.mxu0 %v7591
    %7752 = vmatprep.mubr.bf16.mxu0 %v6872
    %7753 = vmatmul.mubr.bf16.gmra.mrb[0].mxu0 %v6840
    %v7754 = vpop.f32.mrb[0].mxu0
    %v7755 = vadd.f32 0.0, %v7754
    %v7756 = vpop.f32.mrb[0].mxu0
    %v7757 = vpop.f32.mrb[0].mxu0
    %v7758 = vadd.f32 0.0, %v7757
    %v7759 = vpop.f32.mrb[0].mxu0
    %7760 = vmatprep.mubr.bf16.mxu0 %v6873
    %7761 = vmatmul.mubr.bf16.gmra.mrb[0].mxu0 %v6841
    %v7762 = vpop.f32.mrb[0].mxu0
    %v7763 = vadd.f32 0.0, %v7762
    %v7764 = vpop.f32.mrb[0].mxu0
    %v7765 = vpop.f32.mrb[0].mxu0
    %v7766 = vadd.f32 0.0, %v7765
    %v7767 = vpop.f32.mrb[0].mxu0
    %7768 = vmatprep.mubr.bf16.mxu0 %v6874
    %7769 = vmatmul.mubr.bf16.gmra.mrb[0].mxu0 %v6842
    %v7770 = vpop.f32.mrb[0].mxu0
    %v7771 = vadd.f32 0.0, %v7770
    %v7772 = vpop.f32.mrb[0].mxu0
    %v7773 = vpop.f32.mrb[0].mxu0
    %v7774 = vadd.f32 0.0, %v7773
    %v7775 = vpop.f32.mrb[0].mxu0
    %7776 = vmatprep.mubr.bf16.mxu0 %v6875
    %7777 = vmatmul.mubr.bf16.gmra.mrb[0].mxu0 %v6843
    %v7778 = vpop.f32.mrb[0].mxu0
    %v7779 = vadd.f32 0.0, %v7778
    %v7780 = vpop.f32.mrb[0].mxu0
    %v7781 = vpop.f32.mrb[0].mxu0
    %v7782 = vadd.f32 0.0, %v7781
    %v7783 = vpop.f32.mrb[0].mxu0
    %7784 = vmatprep.mubr.bf16.mxu0 %v6876
    %7785 = vmatmul.mubr.bf16.gmra.mrb[0].mxu0 %v6844
    %v7786 = vpop.f32.mrb[0].mxu0
    %v7787 = vadd.f32 0.0, %v7786
    %v7788 = vpop.f32.mrb[0].mxu0
    %v7789 = vpop.f32.mrb[0].mxu0
    %v7790 = vadd.f32 0.0, %v7789
    %v7791 = vpop.f32.mrb[0].mxu0
    %7792 = vmatprep.mubr.bf16.mxu0 %v6877
    %7793 = vmatmul.mubr.bf16.gmra.mrb[0].mxu0 %v6845
    %v7794 = vpop.f32.mrb[0].mxu0
    %v7795 = vadd.f32 0.0, %v7794
    %v7796 = vpop.f32.mrb[0].mxu0
    %v7797 = vpop.f32.mrb[0].mxu0
    %v7798 = vadd.f32 0.0, %v7797
    %v7799 = vpop.f32.mrb[0].mxu0
    %7800 = vmatprep.mubr.bf16.mxu0 %v6878
    %7801 = vmatmul.mubr.bf16.gmra.mrb[0].mxu0 %v6846
    %v7802 = vpop.f32.mrb[0].mxu0
    %v7803 = vadd.f32 0.0, %v7802
    %v7804 = vpop.f32.mrb[0].mxu0
    %v7805 = vpop.f32.mrb[0].mxu0
    %v7806 = vadd.f32 0.0, %v7805
    %v7807 = vpop.f32.mrb[0].mxu0
    %7808 = vmatprep.mubr.bf16.mxu0 %v6879
    %7809 = vmatmul.mubr.bf16.gmra.mrb[0].mxu0 %v6847
    %v7810 = vpop.f32.mrb[0].mxu0
    %v7811 = vadd.f32 0.0, %v7810
    %v7812 = vpop.f32.mrb[0].mxu0
    %v7813 = vpop.f32.mrb[0].mxu0
    %v7814 = vadd.f32 0.0, %v7813
    %v7815 = vpop.f32.mrb[0].mxu0
    %7816 = vdwg.mxu0
    %7817 = vmatprep.subr.bf16.mxu0 0
    %7818 = vmatpush1.bf16.msra.mxu0 %v7592
    %7819 = vmatprep.subr.bf16.mxu0 0
    %7820 = vmatpush1.bf16.msra.mxu0 %v7593
    %7821 = vmatprep.subr.bf16.mxu0 0
    %7822 = vmatpush1.bf16.msra.mxu0 %v7594
    %7823 = vmatprep.subr.bf16.mxu0 0
    %7824 = vmatpush1.bf16.msra.mxu0 %v7595
    %7825 = vmatprep.subr.bf16.mxu0 0
    %7826 = vmatpush1.bf16.msra.mxu0 %v7596
    %7827 = vmatprep.subr.bf16.mxu0 0
    %7828 = vmatpush1.bf16.msra.mxu0 %v7597
    %7829 = vmatprep.subr.bf16.mxu0 0
    %7830 = vmatpush1.bf16.msra.mxu0 %v7598
    %7831 = vmatprep.subr.bf16.mxu0 0
    %7832 = vmatpush1.bf16.msra.mxu0 %v7599
    %7833 = vmatprep.subr.bf16.mxu0 0
    %7834 = vmatpush1.bf16.msra.mxu0 %v7600
    %7835 = vmatprep.subr.bf16.mxu0 0
    %7836 = vmatpush1.bf16.msra.mxu0 %v7601
    %7837 = vmatprep.subr.bf16.mxu0 0
    %7838 = vmatpush1.bf16.msra.mxu0 %v7602
    %7839 = vmatprep.subr.bf16.mxu0 0
    %7840 = vmatpush1.bf16.msra.mxu0 %v7603
    %7841 = vmatprep.subr.bf16.mxu0 0
    %7842 = vmatpush1.bf16.msra.mxu0 %v7604
    %7843 = vmatprep.subr.bf16.mxu0 0
    %7844 = vmatpush1.bf16.msra.mxu0 %v7605
    %7845 = vmatprep.subr.bf16.mxu0 0
    %7846 = vmatpush1.bf16.msra.mxu0 %v7606
    %7847 = vmatprep.subr.bf16.mxu0 0
    %7848 = vmatpush1.bf16.msra.mxu0 %v7607
    %7849 = vmatprep.mubr.bf16.mxu0 %v6952
    %7850 = vmatmul.mubr.bf16.gmra.mrb[0].mxu0 %v6904
    %v7851 = vpop.f32.mrb[0].mxu0
    %v7852 = vadd.f32 %v7755, %v7851
    %v7853 = vpop.f32.mrb[0].mxu0
    %v7854 = vpop.f32.mrb[0].mxu0
    %v7855 = vadd.f32 %v7758, %v7854
    %v7856 = vpop.f32.mrb[0].mxu0
    %7857 = vmatprep.mubr.bf16.mxu0 %v6953
    %7858 = vmatmul.mubr.bf16.gmra.mrb[0].mxu0 %v6905
    %v7859 = vpop.f32.mrb[0].mxu0
    %v7860 = vadd.f32 %v7763, %v7859
    %v7861 = vpop.f32.mrb[0].mxu0
    %v7862 = vpop.f32.mrb[0].mxu0
    %v7863 = vadd.f32 %v7766, %v7862
    %v7864 = vpop.f32.mrb[0].mxu0
    %7865 = vmatprep.mubr.bf16.mxu0 %v6954
    %7866 = vmatmul.mubr.bf16.gmra.mrb[0].mxu0 %v6906
    %v7867 = vpop.f32.mrb[0].mxu0
    %v7868 = vadd.f32 %v7771, %v7867
    %v7869 = vpop.f32.mrb[0].mxu0
    %v7870 = vpop.f32.mrb[0].mxu0
    %v7871 = vadd.f32 %v7774, %v7870
    %v7872 = vpop.f32.mrb[0].mxu0
    %7873 = vmatprep.mubr.bf16.mxu0 %v6955
    %7874 = vmatmul.mubr.bf16.gmra.mrb[0].mxu0 %v6907
    %v7875 = vpop.f32.mrb[0].mxu0
    %v7876 = vadd.f32 %v7779, %v7875
    %v7877 = vpop.f32.mrb[0].mxu0
    %v7878 = vpop.f32.mrb[0].mxu0
    %v7879 = vadd.f32 %v7782, %v7878
    %v7880 = vpop.f32.mrb[0].mxu0
    %7881 = vmatprep.mubr.bf16.mxu0 %v6956
    %7882 = vmatmul.mubr.bf16.gmra.mrb[0].mxu0 %v6908
    %v7883 = vpop.f32.mrb[0].mxu0
    %v7884 = vadd.f32 %v7787, %v7883
    %v7885 = vpop.f32.mrb[0].mxu0
    %v7886 = vpop.f32.mrb[0].mxu0
    %v7887 = vadd.f32 %v7790, %v7886
    %v7888 = vpop.f32.mrb[0].mxu0
    %7889 = vmatprep.mubr.bf16.mxu0 %v6957
    %7890 = vmatmul.mubr.bf16.gmra.mrb[0].mxu0 %v6909
    %v7891 = vpop.f32.mrb[0].mxu0
    %v7892 = vadd.f32 %v7795, %v7891
    %v7893 = vpop.f32.mrb[0].mxu0
    %v7894 = vpop.f32.mrb[0].mxu0
    %v7895 = vadd.f32 %v7798, %v7894
    %v7896 = vpop.f32.mrb[0].mxu0
    %7897 = vmatprep.mubr.bf16.mxu0 %v6958
    %7898 = vmatmul.mubr.bf16.gmra.mrb[0].mxu0 %v6910
    %v7899 = vpop.f32.mrb[0].mxu0
    %v7900 = vadd.f32 %v7803, %v7899
    %v7901 = vpop.f32.mrb[0].mxu0
    %v7902 = vpop.f32.mrb[0].mxu0
    %v7903 = vadd.f32 %v7806, %v7902
    %v7904 = vpop.f32.mrb[0].mxu0
    %7905 = vmatprep.mubr.bf16.mxu0 %v6959
    %7906 = vmatmul.mubr.bf16.gmra.mrb[0].mxu0 %v6911
    %v7907 = vpop.f32.mrb[0].mxu0
    %v7908 = vadd.f32 %v7811, %v7907
    %v7909 = vpop.f32.mrb[0].mxu0
    %v7910 = vpop.f32.mrb[0].mxu0
    %v7911 = vadd.f32 %v7814, %v7910
    %v7912 = vpop.f32.mrb[0].mxu0
    %7913 = vdwg.mxu0
    %7914 = vmatprep.subr.bf16.mxu0 0
    %7915 = vmatpush1.bf16.msra.mxu0 %v7608
    %7916 = vmatprep.subr.bf16.mxu0 0
    %7917 = vmatpush1.bf16.msra.mxu0 %v7609
    %7918 = vmatprep.subr.bf16.mxu0 0
    %7919 = vmatpush1.bf16.msra.mxu0 %v7610
    %7920 = vmatprep.subr.bf16.mxu0 0
    %7921 = vmatpush1.bf16.msra.mxu0 %v7611
    %7922 = vmatprep.subr.bf16.mxu0 0
    %7923 = vmatpush1.bf16.msra.mxu0 %v7612
    %7924 = vmatprep.subr.bf16.mxu0 0
    %7925 = vmatpush1.bf16.msra.mxu0 %v7613
    %7926 = vmatprep.subr.bf16.mxu0 0
    %7927 = vmatpush1.bf16.msra.mxu0 %v7614
    %7928 = vmatprep.subr.bf16.mxu0 0
    %7929 = vmatpush1.bf16.msra.mxu0 %v7615
    %7930 = vmatprep.subr.bf16.mxu0 0
    %7931 = vmatpush1.bf16.msra.mxu0 %v7616
    %7932 = vmatprep.subr.bf16.mxu0 0
    %7933 = vmatpush1.bf16.msra.mxu0 %v7617
    %7934 = vmatprep.subr.bf16.mxu0 0
    %7935 = vmatpush1.bf16.msra.mxu0 %v7618
    %7936 = vmatprep.subr.bf16.mxu0 0
    %7937 = vmatpush1.bf16.msra.mxu0 %v7619
    %7938 = vmatprep.subr.bf16.mxu0 0
    %7939 = vmatpush1.bf16.msra.mxu0 %v7620
    %7940 = vmatprep.subr.bf16.mxu0 0
    %7941 = vmatpush1.bf16.msra.mxu0 %v7621
    %7942 = vmatprep.subr.bf16.mxu0 0
    %7943 = vmatpush1.bf16.msra.mxu0 %v7622
    %7944 = vmatprep.subr.bf16.mxu0 0
    %7945 = vmatpush1.bf16.msra.mxu0 %v7623
    %7946 = vmatprep.mubr.bf16.mxu0 %v7016
    %7947 = vmatmul.mubr.bf16.gmra.mrb[0].mxu0 %v6984
    %v7948 = vpop.f32.mrb[0].mxu0
    %v7949 = vadd.f32 %v7852, %v7948
    %v7950 = vpop.f32.mrb[0].mxu0
    %v7951 = vpop.f32.mrb[0].mxu0
    %v7952 = vadd.f32 %v7855, %v7951
    %v7953 = vpop.f32.mrb[0].mxu0
    %7954 = vmatprep.mubr.bf16.mxu0 %v7017
    %7955 = vmatmul.mubr.bf16.gmra.mrb[0].mxu0 %v6985
    %v7956 = vpop.f32.mrb[0].mxu0
    %v7957 = vadd.f32 %v7860, %v7956
    %v7958 = vpop.f32.mrb[0].mxu0
    %v7959 = vpop.f32.mrb[0].mxu0
    %v7960 = vadd.f32 %v7863, %v7959
    %v7961 = vpop.f32.mrb[0].mxu0
    %7962 = vmatprep.mubr.bf16.mxu0 %v7018
    %7963 = vmatmul.mubr.bf16.gmra.mrb[0].mxu0 %v6986
    %v7964 = vpop.f32.mrb[0].mxu0
    %v7965 = vadd.f32 %v7868, %v7964
    %v7966 = vpop.f32.mrb[0].mxu0
    %v7967 = vpop.f32.mrb[0].mxu0
    %v7968 = vadd.f32 %v7871, %v7967
    %v7969 = vpop.f32.mrb[0].mxu0
    %7970 = vmatprep.mubr.bf16.mxu0 %v7019
    %7971 = vmatmul.mubr.bf16.gmra.mrb[0].mxu0 %v6987
    %v7972 = vpop.f32.mrb[0].mxu0
    %v7973 = vadd.f32 %v7876, %v7972
    %v7974 = vpop.f32.mrb[0].mxu0
    %v7975 = vpop.f32.mrb[0].mxu0
    %v7976 = vadd.f32 %v7879, %v7975
    %v7977 = vpop.f32.mrb[0].mxu0
    %7978 = vmatprep.mubr.bf16.mxu0 %v7020
    %7979 = vmatmul.mubr.bf16.gmra.mrb[0].mxu0 %v6988
    %v7980 = vpop.f32.mrb[0].mxu0
    %v7981 = vadd.f32 %v7884, %v7980
    %v7982 = vpop.f32.mrb[0].mxu0
    %v7983 = vpop.f32.mrb[0].mxu0
    %v7984 = vadd.f32 %v7887, %v7983
    %v7985 = vpop.f32.mrb[0].mxu0
    %7986 = vmatprep.mubr.bf16.mxu0 %v7021
    %7987 = vmatmul.mubr.bf16.gmra.mrb[0].mxu0 %v6989
    %v7988 = vpop.f32.mrb[0].mxu0
    %v7989 = vadd.f32 %v7892, %v7988
    %v7990 = vpop.f32.mrb[0].mxu0
    %v7991 = vpop.f32.mrb[0].mxu0
    %v7992 = vadd.f32 %v7895, %v7991
    %v7993 = vpop.f32.mrb[0].mxu0
    %7994 = vmatprep.mubr.bf16.mxu0 %v7022
    %7995 = vmatmul.mubr.bf16.gmra.mrb[0].mxu0 %v6990
    %v7996 = vpop.f32.mrb[0].mxu0
    %v7997 = vadd.f32 %v7900, %v7996
    %v7998 = vpop.f32.mrb[0].mxu0
    %v7999 = vpop.f32.mrb[0].mxu0
    %v8000 = vadd.f32 %v7903, %v7999
    %v8001 = vpop.f32.mrb[0].mxu0
    %8002 = vmatprep.mubr.bf16.mxu0 %v7023
    %8003 = vmatmul.mubr.bf16.gmra.mrb[0].mxu0 %v6991
    %v8004 = vpop.f32.mrb[0].mxu0
    %v8005 = vadd.f32 %v7908, %v8004
    %v8006 = vpop.f32.mrb[0].mxu0
    %v8007 = vpop.f32.mrb[0].mxu0
    %v8008 = vadd.f32 %v7911, %v8007
    %v8009 = vpop.f32.mrb[0].mxu0
    %8010 = vdwg.mxu0
    %8011 = vmatprep.subr.bf16.mxu0 0
    %8012 = vmatpush1.bf16.msra.mxu0 %v7624
    %8013 = vmatprep.subr.bf16.mxu0 0
    %8014 = vmatpush1.bf16.msra.mxu0 %v7625
    %8015 = vmatprep.subr.bf16.mxu0 0
    %8016 = vmatpush1.bf16.msra.mxu0 %v7626
    %8017 = vmatprep.subr.bf16.mxu0 0
    %8018 = vmatpush1.bf16.msra.mxu0 %v7627
    %8019 = vmatprep.subr.bf16.mxu0 0
    %8020 = vmatpush1.bf16.msra.mxu0 %v7628
    %8021 = vmatprep.subr.bf16.mxu0 0
    %8022 = vmatpush1.bf16.msra.mxu0 %v7629
    %8023 = vmatprep.subr.bf16.mxu0 0
    %8024 = vmatpush1.bf16.msra.mxu0 %v7630
    %8025 = vmatprep.subr.bf16.mxu0 0
    %8026 = vmatpush1.bf16.msra.mxu0 %v7631
    %8027 = vmatprep.subr.bf16.mxu0 0
    %8028 = vmatpush1.bf16.msra.mxu0 %v7632
    %8029 = vmatprep.subr.bf16.mxu0 0
    %8030 = vmatpush1.bf16.msra.mxu0 %v7633
    %8031 = vmatprep.subr.bf16.mxu0 0
    %8032 = vmatpush1.bf16.msra.mxu0 %v7634
    %8033 = vmatprep.subr.bf16.mxu0 0
    %8034 = vmatpush1.bf16.msra.mxu0 %v7635
    %8035 = vmatprep.subr.bf16.mxu0 0
    %8036 = vmatpush1.bf16.msra.mxu0 %v7636
    %8037 = vmatprep.subr.bf16.mxu0 0
    %8038 = vmatpush1.bf16.msra.mxu0 %v7637
    %8039 = vmatprep.subr.bf16.mxu0 0
    %8040 = vmatpush1.bf16.msra.mxu0 %v7638
    %8041 = vmatprep.subr.bf16.mxu0 0
    %8042 = vmatpush1.bf16.msra.mxu0 %v7639
    %8043 = vmatprep.mubr.bf16.mxu0 %v7096
    %8044 = vmatmul.mubr.bf16.gmra.mrb[0].mxu0 %v7064
    %v8045 = vpop.f32.mrb[0].mxu0
    %v8046 = vadd.f32 %v7949, %v8045
    %v8047 = vpop.f32.mrb[0].mxu0
    %v8048 = vpop.f32.mrb[0].mxu0
    %v8049 = vadd.f32 %v7952, %v8048
    %v8050 = vpop.f32.mrb[0].mxu0
    %8051 = vmatprep.mubr.bf16.mxu0 %v7097
    %8052 = vmatmul.mubr.bf16.gmra.mrb[0].mxu0 %v7065
    %v8053 = vpop.f32.mrb[0].mxu0
    %v8054 = vadd.f32 %v7957, %v8053
    %v8055 = vpop.f32.mrb[0].mxu0
    %v8056 = vpop.f32.mrb[0].mxu0
    %v8057 = vadd.f32 %v7960, %v8056
    %v8058 = vpop.f32.mrb[0].mxu0
    %8059 = vmatprep.mubr.bf16.mxu0 %v7098
    %8060 = vmatmul.mubr.bf16.gmra.mrb[0].mxu0 %v7066
    %v8061 = vpop.f32.mrb[0].mxu0
    %v8062 = vadd.f32 %v7965, %v8061
    %v8063 = vpop.f32.mrb[0].mxu0
    %v8064 = vpop.f32.mrb[0].mxu0
    %v8065 = vadd.f32 %v7968, %v8064
    %v8066 = vpop.f32.mrb[0].mxu0
    %8067 = vmatprep.mubr.bf16.mxu0 %v7099
    %8068 = vmatmul.mubr.bf16.gmra.mrb[0].mxu0 %v7067
    %v8069 = vpop.f32.mrb[0].mxu0
    %v8070 = vadd.f32 %v7973, %v8069
    %v8071 = vpop.f32.mrb[0].mxu0
    %v8072 = vpop.f32.mrb[0].mxu0
    %v8073 = vadd.f32 %v7976, %v8072
    %v8074 = vpop.f32.mrb[0].mxu0
    %8075 = vmatprep.mubr.bf16.mxu0 %v7100
    %8076 = vmatmul.mubr.bf16.gmra.mrb[0].mxu0 %v7068
    %v8077 = vpop.f32.mrb[0].mxu0
    %v8078 = vadd.f32 %v7981, %v8077
    %v8079 = vpop.f32.mrb[0].mxu0
    %v8080 = vpop.f32.mrb[0].mxu0
    %v8081 = vadd.f32 %v7984, %v8080
    %v8082 = vpop.f32.mrb[0].mxu0
    %8083 = vmatprep.mubr.bf16.mxu0 %v7101
    %8084 = vmatmul.mubr.bf16.gmra.mrb[0].mxu0 %v7069
    %v8085 = vpop.f32.mrb[0].mxu0
    %v8086 = vadd.f32 %v7989, %v8085
    %v8087 = vpop.f32.mrb[0].mxu0
    %v8088 = vpop.f32.mrb[0].mxu0
    %v8089 = vadd.f32 %v7992, %v8088
    %v8090 = vpop.f32.mrb[0].mxu0
    %8091 = vmatprep.mubr.bf16.mxu0 %v7102
    %8092 = vmatmul.mubr.bf16.gmra.mrb[0].mxu0 %v7070
    %v8093 = vpop.f32.mrb[0].mxu0
    %v8094 = vadd.f32 %v7997, %v8093
    %v8095 = vpop.f32.mrb[0].mxu0
    %v8096 = vpop.f32.mrb[0].mxu0
    %v8097 = vadd.f32 %v8000, %v8096
    %v8098 = vpop.f32.mrb[0].mxu0
    %8099 = vmatprep.mubr.bf16.mxu0 %v7103
    %8100 = vmatmul.mubr.bf16.gmra.mrb[0].mxu0 %v7071
    %v8101 = vpop.f32.mrb[0].mxu0
    %v8102 = vadd.f32 %v8005, %v8101
    %v8103 = vpop.f32.mrb[0].mxu0
    %v8104 = vpop.f32.mrb[0].mxu0
    %v8105 = vadd.f32 %v8008, %v8104
    %v8106 = vpop.f32.mrb[0].mxu0
    %8107 = vdwg.mxu0
    %8108 = vmatprep.subr.bf16.mxu0 0
    %8109 = vmatpush1.bf16.msra.mxu0 %v7640
    %8110 = vmatprep.subr.bf16.mxu0 0
    %8111 = vmatpush1.bf16.msra.mxu0 %v7641
    %8112 = vmatprep.subr.bf16.mxu0 0
    %8113 = vmatpush1.bf16.msra.mxu0 %v7642
    %8114 = vmatprep.subr.bf16.mxu0 0
    %8115 = vmatpush1.bf16.msra.mxu0 %v7643
    %8116 = vmatprep.subr.bf16.mxu0 0
    %8117 = vmatpush1.bf16.msra.mxu0 %v7644
    %8118 = vmatprep.subr.bf16.mxu0 0
    %8119 = vmatpush1.bf16.msra.mxu0 %v7645
    %8120 = vmatprep.subr.bf16.mxu0 0
    %8121 = vmatpush1.bf16.msra.mxu0 %v7646
    %8122 = vmatprep.subr.bf16.mxu0 0
    %8123 = vmatpush1.bf16.msra.mxu0 %v7647
    %8124 = vmatprep.subr.bf16.mxu0 0
    %8125 = vmatpush1.bf16.msra.mxu0 0
    %8126 = vmatprep.subr.bf16.mxu0 0
    %8127 = vmatpush1.bf16.msra.mxu0 0
    %8128 = vmatprep.subr.bf16.mxu0 0
    %8129 = vmatpush1.bf16.msra.mxu0 0
    %8130 = vmatprep.subr.bf16.mxu0 0
    %8131 = vmatpush1.bf16.msra.mxu0 0
    %8132 = vmatprep.subr.bf16.mxu0 0
    %8133 = vmatpush1.bf16.msra.mxu0 0
    %8134 = vmatprep.subr.bf16.mxu0 0
    %8135 = vmatpush1.bf16.msra.mxu0 0
    %8136 = vmatprep.subr.bf16.mxu0 0
    %8137 = vmatpush1.bf16.msra.mxu0 0
    %8138 = vmatprep.subr.bf16.mxu0 0
    %8139 = vmatpush1.bf16.msra.mxu0 0
    %8140 = vmatprep.mubr.bf16.mxu0 0
    %8141 = vmatmul.mubr.bf16.gmra.mrb[0].mxu0 %v7128
    %v8142 = vpop.f32.mrb[0].mxu0
    %v8143 = vadd.f32 %v8046, %v8142
    %v8144 = vpop.f32.mrb[0].mxu0
    %v8145 = vpop.f32.mrb[0].mxu0
    %v8146 = vadd.f32 %v8049, %v8145
    %v8147 = vpop.f32.mrb[0].mxu0
    %8148 = vmatprep.mubr.bf16.mxu0 0
    %8149 = vmatmul.mubr.bf16.gmra.mrb[0].mxu0 %v7129
    %v8150 = vpop.f32.mrb[0].mxu0
    %v8151 = vadd.f32 %v8054, %v8150
    %v8152 = vpop.f32.mrb[0].mxu0
    %v8153 = vpop.f32.mrb[0].mxu0
    %v8154 = vadd.f32 %v8057, %v8153
    %v8155 = vpop.f32.mrb[0].mxu0
    %8156 = vmatprep.mubr.bf16.mxu0 0
    %8157 = vmatmul.mubr.bf16.gmra.mrb[0].mxu0 %v7130
    %v8158 = vpop.f32.mrb[0].mxu0
    %v8159 = vadd.f32 %v8062, %v8158
    %v8160 = vpop.f32.mrb[0].mxu0
    %v8161 = vpop.f32.mrb[0].mxu0
    %v8162 = vadd.f32 %v8065, %v8161
    %v8163 = vpop.f32.mrb[0].mxu0
    %8164 = vmatprep.mubr.bf16.mxu0 0
    %8165 = vmatmul.mubr.bf16.gmra.mrb[0].mxu0 %v7131
    %v8166 = vpop.f32.mrb[0].mxu0
    %v8167 = vadd.f32 %v8070, %v8166
    %v8168 = vpop.f32.mrb[0].mxu0
    %v8169 = vpop.f32.mrb[0].mxu0
    %v8170 = vadd.f32 %v8073, %v8169
    %v8171 = vpop.f32.mrb[0].mxu0
    %8172 = vmatprep.mubr.bf16.mxu0 0
    %8173 = vmatmul.mubr.bf16.gmra.mrb[0].mxu0 %v7132
    %v8174 = vpop.f32.mrb[0].mxu0
    %v8175 = vadd.f32 %v8078, %v8174
    %v8176 = vpop.f32.mrb[0].mxu0
    %v8177 = vpop.f32.mrb[0].mxu0
    %v8178 = vadd.f32 %v8081, %v8177
    %v8179 = vpop.f32.mrb[0].mxu0
    %8180 = vmatprep.mubr.bf16.mxu0 0
    %8181 = vmatmul.mubr.bf16.gmra.mrb[0].mxu0 %v7133
    %v8182 = vpop.f32.mrb[0].mxu0
    %v8183 = vadd.f32 %v8086, %v8182
    %v8184 = vpop.f32.mrb[0].mxu0
    %v8185 = vpop.f32.mrb[0].mxu0
    %v8186 = vadd.f32 %v8089, %v8185
    %v8187 = vpop.f32.mrb[0].mxu0
    %8188 = vmatprep.mubr.bf16.mxu0 0
    %8189 = vmatmul.mubr.bf16.gmra.mrb[0].mxu0 %v7134
    %v8190 = vpop.f32.mrb[0].mxu0
    %v8191 = vadd.f32 %v8094, %v8190
    %v8192 = vpop.f32.mrb[0].mxu0
    %v8193 = vpop.f32.mrb[0].mxu0
    %v8194 = vadd.f32 %v8097, %v8193
    %v8195 = vpop.f32.mrb[0].mxu0
    %8196 = vmatprep.mubr.bf16.mxu0 0
    %8197 = vmatmul.mubr.bf16.gmra.mrb[0].mxu0 %v7135
    %v8198 = vpop.f32.mrb[0].mxu0
    %v8199 = vadd.f32 %v8102, %v8198
    %v8200 = vpop.f32.mrb[0].mxu0
    %v8201 = vpop.f32.mrb[0].mxu0
    %v8202 = vadd.f32 %v8105, %v8201
    %v8203 = vpop.f32.mrb[0].mxu0
    %8204 = vdwg.mxu0
    %v8205 = vld [vmem:[%s7] sm:$0x1]
    %v8206 = vld [vmem:[%s8] sm:$0x1]
    %v8207 = vadd.f32 %v8143, %v8146
    %v8208 = vadd.f32 %v8207, %v8151
    %v8209 = vadd.f32 %v8208, %v8154
    %v8210 = vadd.f32 %v8209, %v8159
    %v8211 = vadd.f32 %v8210, %v8162
    %v8212 = vadd.f32 %v8211, %v8167
    %v8213 = vadd.f32 %v8212, %v8170
    %v8214 = vadd.f32 %v8213, %v8175
    %v8215 = vadd.f32 %v8214, %v8178
    %v8216 = vadd.f32 %v8215, %v8183
    %v8217 = vadd.f32 %v8216, %v8186
    %v8218 = vadd.f32 %v8217, %v8191
    %v8219 = vadd.f32 %v8218, %v8194
    %v8220 = vadd.f32 %v8219, %v8199
    %v8221 = vadd.f32 %v8220, %v8202
    %v8222 = vrot.slane %v8221, 4
    %v8223 = vadd.f32 %v8221, %v8222
    %v8224 = vrot.slane %v8223, 2
    %v8225 = vadd.f32 %v8223, %v8224
    %v8226 = vrot.slane %v8225, 1
    %v8227 = vadd.f32 %v8225, %v8226
    %v8228 = vmul.f32 %v8227, 0.0078125
    %v8229 = vsub.f32 %v8143, %v8228
    %v8230 = vsub.f32 %v8146, %v8228
    %v8231 = vsub.f32 %v8151, %v8228
    %v8232 = vsub.f32 %v8154, %v8228
    %v8233 = vsub.f32 %v8159, %v8228
    %v8234 = vsub.f32 %v8162, %v8228
    %v8235 = vsub.f32 %v8167, %v8228
    %v8236 = vsub.f32 %v8170, %v8228
    %v8237 = vsub.f32 %v8175, %v8228
    %v8238 = vsub.f32 %v8178, %v8228
    %v8239 = vsub.f32 %v8183, %v8228
    %v8240 = vsub.f32 %v8186, %v8228
    %v8241 = vsub.f32 %v8191, %v8228
    %v8242 = vsub.f32 %v8194, %v8228
    %v8243 = vsub.f32 %v8199, %v8228
    %v8244 = vsub.f32 %v8202, %v8228
    %v8245 = vmul.f32 %v8229, %v8229
    %v8246 = vmul.f32 %v8230, %v8230
    %v8247 = vmul.f32 %v8231, %v8231
    %v8248 = vmul.f32 %v8232, %v8232
    %v8249 = vmul.f32 %v8233, %v8233
    %v8250 = vmul.f32 %v8234, %v8234
    %v8251 = vmul.f32 %v8235, %v8235
    %v8252 = vmul.f32 %v8236, %v8236
    %v8253 = vmul.f32 %v8237, %v8237
    %v8254 = vmul.f32 %v8238, %v8238
    %v8255 = vmul.f32 %v8239, %v8239
    %v8256 = vmul.f32 %v8240, %v8240
    %v8257 = vmul.f32 %v8241, %v8241
    %v8258 = vmul.f32 %v8242, %v8242
    %v8259 = vmul.f32 %v8243, %v8243
    %v8260 = vmul.f32 %v8244, %v8244
    %v8261 = vadd.f32 %v8245, %v8246
    %v8262 = vadd.f32 %v8261, %v8247
    %v8263 = vadd.f32 %v8262, %v8248
    %v8264 = vadd.f32 %v8263, %v8249
    %v8265 = vadd.f32 %v8264, %v8250
    %v8266 = vadd.f32 %v8265, %v8251
    %v8267 = vadd.f32 %v8266, %v8252
    %v8268 = vadd.f32 %v8267, %v8253
    %v8269 = vadd.f32 %v8268, %v8254
    %v8270 = vadd.f32 %v8269, %v8255
    %v8271 = vadd.f32 %v8270, %v8256
    %v8272 = vadd.f32 %v8271, %v8257
    %v8273 = vadd.f32 %v8272, %v8258
    %v8274 = vadd.f32 %v8273, %v8259
    %v8275 = vadd.f32 %v8274, %v8260
    %v8276 = vrot.slane %v8275, 4
    %v8277 = vadd.f32 %v8275, %v8276
    %v8278 = vrot.slane %v8277, 2
    %v8279 = vadd.f32 %v8277, %v8278
    %v8280 = vrot.slane %v8279, 1
    %v8281 = vadd.f32 %v8279, %v8280
    %v8282 = vmul.f32 %v8281, 0.0078125
    %v8283 = vadd.f32 %v8282, 1e-05
    %v8284 = vrsqrt.pop %v8283
    %v8285 = vmul.f32 %v8229, %v8284
    %v8286 = vmul.f32 %v8230, %v8284
    %v8287 = vmul.f32 %v8231, %v8284
    %v8288 = vmul.f32 %v8232, %v8284
    %v8289 = vmul.f32 %v8233, %v8284
    %v8290 = vmul.f32 %v8234, %v8284
    %v8291 = vmul.f32 %v8235, %v8284
    %v8292 = vmul.f32 %v8236, %v8284
    %v8293 = vmul.f32 %v8237, %v8284
    %v8294 = vmul.f32 %v8238, %v8284
    %v8295 = vmul.f32 %v8239, %v8284
    %v8296 = vmul.f32 %v8240, %v8284
    %v8297 = vmul.f32 %v8241, %v8284
    %v8298 = vmul.f32 %v8242, %v8284
    %v8299 = vmul.f32 %v8243, %v8284
    %v8300 = vmul.f32 %v8244, %v8284
    %v8302 = vlaneseq
    %v8303 = vshrl.u32 %v8302, 7
    %v8304 = vsub.s32 0, %v8303
    %v8305 = vrot.slane %v8205, %v8304
    %v8307 = vmul.f32 %v8285, %v8305
    %v8308 = vmul.f32 %v8286, %v8305
    %v8309 = vmul.f32 %v8287, %v8305
    %v8310 = vmul.f32 %v8288, %v8305
    %v8311 = vmul.f32 %v8289, %v8305
    %v8312 = vmul.f32 %v8290, %v8305
    %v8313 = vmul.f32 %v8291, %v8305
    %v8314 = vmul.f32 %v8292, %v8305
    %v8315 = vmul.f32 %v8293, %v8305
    %v8316 = vmul.f32 %v8294, %v8305
    %v8317 = vmul.f32 %v8295, %v8305
    %v8318 = vmul.f32 %v8296, %v8305
    %v8319 = vmul.f32 %v8297, %v8305
    %v8320 = vmul.f32 %v8298, %v8305
    %v8321 = vmul.f32 %v8299, %v8305
    %v8322 = vmul.f32 %v8300, %v8305
    %v8324 = vlaneseq
    %v8325 = vshrl.u32 %v8324, 7
    %v8326 = vsub.s32 0, %v8325
    %v8327 = vrot.slane %v8206, %v8326
    %v8329 = vadd.f32 %v8307, %v8327
    %v8330 = vadd.f32 %v8308, %v8327
    %v8331 = vadd.f32 %v8309, %v8327
    %v8332 = vadd.f32 %v8310, %v8327
    %v8333 = vadd.f32 %v8311, %v8327
    %v8334 = vadd.f32 %v8312, %v8327
    %v8335 = vadd.f32 %v8313, %v8327
    %v8336 = vadd.f32 %v8314, %v8327
    %v8337 = vadd.f32 %v8315, %v8327
    %v8338 = vadd.f32 %v8316, %v8327
    %v8339 = vadd.f32 %v8317, %v8327
    %v8340 = vadd.f32 %v8318, %v8327
    %v8341 = vadd.f32 %v8319, %v8327
    %v8342 = vadd.f32 %v8320, %v8327
    %v8343 = vadd.f32 %v8321, %v8327
    %v8344 = vadd.f32 %v8322, %v8327
    %vm8345 = vcmp.gt.f32.partialorder %v8329, 0.0
    %vm8346 = vcmp.gt.f32.partialorder %v8330, 0.0
    %vm8347 = vcmp.gt.f32.partialorder %v8331, 0.0
    %vm8348 = vcmp.gt.f32.partialorder %v8332, 0.0
    %vm8349 = vcmp.gt.f32.partialorder %v8333, 0.0
    %vm8350 = vcmp.gt.f32.partialorder %v8334, 0.0
    %vm8351 = vcmp.gt.f32.partialorder %v8335, 0.0
    %vm8352 = vcmp.gt.f32.partialorder %v8336, 0.0
    %vm8353 = vcmp.gt.f32.partialorder %v8337, 0.0
    %vm8354 = vcmp.gt.f32.partialorder %v8338, 0.0
    %vm8355 = vcmp.gt.f32.partialorder %v8339, 0.0
    %vm8356 = vcmp.gt.f32.partialorder %v8340, 0.0
    %vm8357 = vcmp.gt.f32.partialorder %v8341, 0.0
    %vm8358 = vcmp.gt.f32.partialorder %v8342, 0.0
    %vm8359 = vcmp.gt.f32.partialorder %v8343, 0.0
    %vm8360 = vcmp.gt.f32.partialorder %v8344, 0.0
    %v8361 = vmul.f32 %v8329, 0.01
    %v8362 = vmul.f32 %v8330, 0.01
    %v8363 = vmul.f32 %v8331, 0.01
    %v8364 = vmul.f32 %v8332, 0.01
    %v8365 = vmul.f32 %v8333, 0.01
    %v8366 = vmul.f32 %v8334, 0.01
    %v8367 = vmul.f32 %v8335, 0.01
    %v8368 = vmul.f32 %v8336, 0.01
    %v8369 = vmul.f32 %v8337, 0.01
    %v8370 = vmul.f32 %v8338, 0.01
    %v8371 = vmul.f32 %v8339, 0.01
    %v8372 = vmul.f32 %v8340, 0.01
    %v8373 = vmul.f32 %v8341, 0.01
    %v8374 = vmul.f32 %v8342, 0.01
    %v8375 = vmul.f32 %v8343, 0.01
    %v8376 = vmul.f32 %v8344, 0.01
    %v8377 = vsel %vm8345, %v8329, %v8361
    %v8378 = vsel %vm8346, %v8330, %v8362
    %v8379 = vsel %vm8347, %v8331, %v8363
    %v8380 = vsel %vm8348, %v8332, %v8364
    %v8381 = vsel %vm8349, %v8333, %v8365
    %v8382 = vsel %vm8350, %v8334, %v8366
    %v8383 = vsel %vm8351, %v8335, %v8367
    %v8384 = vsel %vm8352, %v8336, %v8368
    %v8385 = vsel %vm8353, %v8337, %v8369
    %v8386 = vsel %vm8354, %v8338, %v8370
    %v8387 = vsel %vm8355, %v8339, %v8371
    %v8388 = vsel %vm8356, %v8340, %v8372
    %v8389 = vsel %vm8357, %v8341, %v8373
    %v8390 = vsel %vm8358, %v8342, %v8374
    %v8391 = vsel %vm8359, %v8343, %v8375
    %v8392 = vsel %vm8360, %v8344, %v8376
    %v8393 = vadd.f32 %v5379, %v8377
    %v8394 = vadd.f32 %v5380, %v8378
    %v8395 = vadd.f32 %v5381, %v8379
    %v8396 = vadd.f32 %v5382, %v8380
    %v8397 = vadd.f32 %v5383, %v8381
    %v8398 = vadd.f32 %v5384, %v8382
    %v8399 = vadd.f32 %v5385, %v8383
    %v8400 = vadd.f32 %v5386, %v8384
    %v8401 = vadd.f32 %v5387, %v8385
    %v8402 = vadd.f32 %v5388, %v8386
    %v8403 = vadd.f32 %v5389, %v8387
    %v8404 = vadd.f32 %v5390, %v8388
    %v8405 = vadd.f32 %v5391, %v8389
    %v8406 = vadd.f32 %v5392, %v8390
    %v8407 = vadd.f32 %v5393, %v8391
    %v8408 = vadd.f32 %v5394, %v8392
    %v8409 = vpack.c.bf16 %v8394, %v8393
    %v8410 = vpack.c.bf16 %v8396, %v8395
    %v8411 = vpack.c.bf16 %v8398, %v8397
    %v8412 = vpack.c.bf16 %v8400, %v8399
    %v8413 = vpack.c.bf16 %v8402, %v8401
    %v8414 = vpack.c.bf16 %v8404, %v8403
    %v8415 = vpack.c.bf16 %v8406, %v8405
    %v8416 = vpack.c.bf16 %v8408, %v8407
    %v8425 = vunpack.c.l.b16 %v8409
    %v8426 = vunpack.c.h.b16 %v8409
    %v8427 = vunpack.c.l.b16 %v8410
    %v8428 = vunpack.c.h.b16 %v8410
    %v8429 = vunpack.c.l.b16 %v8411
    %v8430 = vunpack.c.h.b16 %v8411
    %v8431 = vunpack.c.l.b16 %v8412
    %v8432 = vunpack.c.h.b16 %v8412
    %v8433 = vunpack.c.l.b16 %v8413
    %v8434 = vunpack.c.h.b16 %v8413
    %v8435 = vunpack.c.l.b16 %v8414
    %v8436 = vunpack.c.h.b16 %v8414
    %v8437 = vunpack.c.l.b16 %v8415
    %v8438 = vunpack.c.h.b16 %v8415
    %v8439 = vunpack.c.l.b16 %v8416
    %v8440 = vunpack.c.h.b16 %v8416
    %v8441 = vpack.c.b16 %v8425, %v8425
    %v8442 = vpack.c.b16 %v8426, %v8426
    %v8443 = vpack.c.b16 %v8427, %v8427
    %v8444 = vpack.c.b16 %v8428, %v8428
    %v8445 = vpack.c.b16 %v8429, %v8429
    %v8446 = vpack.c.b16 %v8430, %v8430
    %v8447 = vpack.c.b16 %v8431, %v8431
    %v8448 = vpack.c.b16 %v8432, %v8432
    %v8449 = vpack.c.b16 %v8433, %v8433
    %v8450 = vpack.c.b16 %v8434, %v8434
    %v8451 = vpack.c.b16 %v8435, %v8435
    %v8452 = vpack.c.b16 %v8436, %v8436
    %v8453 = vpack.c.b16 %v8437, %v8437
    %v8454 = vpack.c.b16 %v8438, %v8438
    %v8455 = vpack.c.b16 %v8439, %v8439
    %v8456 = vpack.c.b16 %v8440, %v8440
    %v8458 = vshrl.u32 %v8441, 16
    %v8460 = vrot.slane %v8458, 7
    %v8461 = vshll.u32 %v8441, 16
    %v8463 = vor.u32 %v8460, %v8461
    %v8464 = vrot.slane %v8460, 4
    %v8466 = vshrl.u32 %v8442, 16
    %v8468 = vrot.slane %v8466, 7
    %v8469 = vshll.u32 %v8442, 16
    %v8471 = vor.u32 %v8468, %v8469
    %v8472 = vrot.slane %v8468, 4
    %v8474 = vshrl.u32 %v8443, 16
    %v8476 = vrot.slane %v8474, 7
    %v8477 = vshll.u32 %v8443, 16
    %v8479 = vor.u32 %v8476, %v8477
    %v8480 = vrot.slane %v8476, 4
    %v8482 = vshrl.u32 %v8444, 16
    %v8484 = vrot.slane %v8482, 7
    %v8485 = vshll.u32 %v8444, 16
    %v8487 = vor.u32 %v8484, %v8485
    %v8488 = vrot.slane %v8484, 4
    %v8490 = vshrl.u32 %v8445, 16
    %v8492 = vrot.slane %v8490, 7
    %v8493 = vshll.u32 %v8445, 16
    %v8495 = vor.u32 %v8492, %v8493
    %v8496 = vrot.slane %v8492, 4
    %v8498 = vshrl.u32 %v8446, 16
    %v8500 = vrot.slane %v8498, 7
    %v8501 = vshll.u32 %v8446, 16
    %v8503 = vor.u32 %v8500, %v8501
    %v8504 = vrot.slane %v8500, 4
    %v8506 = vshrl.u32 %v8447, 16
    %v8508 = vrot.slane %v8506, 7
    %v8509 = vshll.u32 %v8447, 16
    %v8511 = vor.u32 %v8508, %v8509
    %v8512 = vrot.slane %v8508, 4
    %v8514 = vshrl.u32 %v8448, 16
    %v8516 = vrot.slane %v8514, 7
    %v8517 = vshll.u32 %v8448, 16
    %v8519 = vor.u32 %v8516, %v8517
    %v8520 = vrot.slane %v8516, 4
    %v8522 = vshrl.u32 %v8449, 16
    %v8524 = vrot.slane %v8522, 7
    %v8525 = vshll.u32 %v8449, 16
    %v8527 = vor.u32 %v8524, %v8525
    %v8528 = vrot.slane %v8524, 4
    %v8530 = vshrl.u32 %v8450, 16
    %v8532 = vrot.slane %v8530, 7
    %v8533 = vshll.u32 %v8450, 16
    %v8535 = vor.u32 %v8532, %v8533
    %v8536 = vrot.slane %v8532, 4
    %v8538 = vshrl.u32 %v8451, 16
    %v8540 = vrot.slane %v8538, 7
    %v8541 = vshll.u32 %v8451, 16
    %v8543 = vor.u32 %v8540, %v8541
    %v8544 = vrot.slane %v8540, 4
    %v8546 = vshrl.u32 %v8452, 16
    %v8548 = vrot.slane %v8546, 7
    %v8549 = vshll.u32 %v8452, 16
    %v8551 = vor.u32 %v8548, %v8549
    %v8552 = vrot.slane %v8548, 4
    %v8554 = vshrl.u32 %v8453, 16
    %v8556 = vrot.slane %v8554, 7
    %v8557 = vshll.u32 %v8453, 16
    %v8559 = vor.u32 %v8556, %v8557
    %v8560 = vrot.slane %v8556, 4
    %v8562 = vshrl.u32 %v8454, 16
    %v8564 = vrot.slane %v8562, 7
    %v8565 = vshll.u32 %v8454, 16
    %v8567 = vor.u32 %v8564, %v8565
    %v8568 = vrot.slane %v8564, 4
    %v8570 = vshrl.u32 %v8455, 16
    %v8572 = vrot.slane %v8570, 7
    %v8573 = vshll.u32 %v8455, 16
    %v8575 = vor.u32 %v8572, %v8573
    %v8576 = vrot.slane %v8572, 4
    %v8578 = vshrl.u32 %v8456, 16
    %v8580 = vrot.slane %v8578, 7
    %v8581 = vshll.u32 %v8456, 16
    %v8583 = vor.u32 %v8580, %v8581
    %v8584 = vrot.slane %v8580, 4
    %v8617 = vsel %vm1281, %v8463, %v6071
    %8618 = vst [vmem:[%s5603] sm:$0xf] %v8617
    %v8619 = vld [vmem:[%s5603 + $0x4] sm:$0x1]
    %v8620 = vsel %vm52, %v8464, %v8619
    %8621 = vst [vmem:[%s5603 + $0x4] sm:$0x1] %v8620
    %v8622 = vld [vmem:[%s5603 + $0x8] sm:$0xf]
    %v8623 = vsel %vm1281, %v8471, %v8622
    %8624 = vst [vmem:[%s5603 + $0x8] sm:$0xf] %v8623
    %v8625 = vld [vmem:[%s5603 + $0xc] sm:$0x1]
    %v8626 = vsel %vm52, %v8472, %v8625
    %8627 = vst [vmem:[%s5603 + $0xc] sm:$0x1] %v8626
    %v8628 = vld [vmem:[%s5603 + $0x10] sm:$0xf]
    %v8629 = vsel %vm1281, %v8479, %v8628
    %8630 = vst [vmem:[%s5603 + $0x10] sm:$0xf] %v8629
    %v8631 = vld [vmem:[%s5603 + $0x14] sm:$0x1]
    %v8632 = vsel %vm52, %v8480, %v8631
    %8633 = vst [vmem:[%s5603 + $0x14] sm:$0x1] %v8632
    %v8634 = vld [vmem:[%s5603 + $0x18] sm:$0xf]
    %v8635 = vsel %vm1281, %v8487, %v8634
    %8636 = vst [vmem:[%s5603 + $0x18] sm:$0xf] %v8635
    %v8637 = vld [vmem:[%s5603 + $0x1c] sm:$0x1]
    %v8638 = vsel %vm52, %v8488, %v8637
    %8639 = vst [vmem:[%s5603 + $0x1c] sm:$0x1] %v8638
    %v8640 = vld [vmem:[%s5603 + $0x20] sm:$0xf]
    %v8641 = vsel %vm1281, %v8495, %v8640
    %8642 = vst [vmem:[%s5603 + $0x20] sm:$0xf] %v8641
    %v8643 = vld [vmem:[%s5603 + $0x24] sm:$0x1]
    %v8644 = vsel %vm52, %v8496, %v8643
    %8645 = vst [vmem:[%s5603 + $0x24] sm:$0x1] %v8644
    %v8646 = vld [vmem:[%s5603 + $0x28] sm:$0xf]
    %v8647 = vsel %vm1281, %v8503, %v8646
    %8648 = vst [vmem:[%s5603 + $0x28] sm:$0xf] %v8647
    %v8649 = vld [vmem:[%s5603 + $0x2c] sm:$0x1]
    %v8650 = vsel %vm52, %v8504, %v8649
    %8651 = vst [vmem:[%s5603 + $0x2c] sm:$0x1] %v8650
    %v8652 = vld [vmem:[%s5603 + $0x30] sm:$0xf]
    %v8653 = vsel %vm1281, %v8511, %v8652
    %8654 = vst [vmem:[%s5603 + $0x30] sm:$0xf] %v8653
    %v8655 = vld [vmem:[%s5603 + $0x34] sm:$0x1]
    %v8656 = vsel %vm52, %v8512, %v8655
    %8657 = vst [vmem:[%s5603 + $0x34] sm:$0x1] %v8656
    %v8658 = vld [vmem:[%s5603 + $0x38] sm:$0xf]
    %v8659 = vsel %vm1281, %v8519, %v8658
    %8660 = vst [vmem:[%s5603 + $0x38] sm:$0xf] %v8659
    %v8661 = vld [vmem:[%s5603 + $0x3c] sm:$0x1]
    %v8662 = vsel %vm52, %v8520, %v8661
    %8663 = vst [vmem:[%s5603 + $0x3c] sm:$0x1] %v8662
    %v8664 = vld [vmem:[%s5603 + $0x50] sm:$0xf]
    %v8665 = vsel %vm1281, %v8527, %v8664
    %8666 = vst [vmem:[%s5603 + $0x50] sm:$0xf] %v8665
    %v8667 = vld [vmem:[%s5603 + $0x54] sm:$0x1]
    %v8668 = vsel %vm52, %v8528, %v8667
    %8669 = vst [vmem:[%s5603 + $0x54] sm:$0x1] %v8668
    %v8670 = vld [vmem:[%s5603 + $0x58] sm:$0xf]
    %v8671 = vsel %vm1281, %v8535, %v8670
    %8672 = vst [vmem:[%s5603 + $0x58] sm:$0xf] %v8671
    %v8673 = vld [vmem:[%s5603 + $0x5c] sm:$0x1]
    %v8674 = vsel %vm52, %v8536, %v8673
    %8675 = vst [vmem:[%s5603 + $0x5c] sm:$0x1] %v8674
    %v8676 = vld [vmem:[%s5603 + $0x60] sm:$0xf]
    %v8677 = vsel %vm1281, %v8543, %v8676
    %8678 = vst [vmem:[%s5603 + $0x60] sm:$0xf] %v8677
    %v8679 = vld [vmem:[%s5603 + $0x64] sm:$0x1]
    %v8680 = vsel %vm52, %v8544, %v8679
    %8681 = vst [vmem:[%s5603 + $0x64] sm:$0x1] %v8680
    %v8682 = vld [vmem:[%s5603 + $0x68] sm:$0xf]
    %v8683 = vsel %vm1281, %v8551, %v8682
    %8684 = vst [vmem:[%s5603 + $0x68] sm:$0xf] %v8683
    %v8685 = vld [vmem:[%s5603 + $0x6c] sm:$0x1]
    %v8686 = vsel %vm52, %v8552, %v8685
    %8687 = vst [vmem:[%s5603 + $0x6c] sm:$0x1] %v8686
    %v8688 = vld [vmem:[%s5603 + $0x70] sm:$0xf]
    %v8689 = vsel %vm1281, %v8559, %v8688
    %8690 = vst [vmem:[%s5603 + $0x70] sm:$0xf] %v8689
    %v8691 = vld [vmem:[%s5603 + $0x74] sm:$0x1]
    %v8692 = vsel %vm52, %v8560, %v8691
    %8693 = vst [vmem:[%s5603 + $0x74] sm:$0x1] %v8692
    %v8694 = vld [vmem:[%s5603 + $0x78] sm:$0xf]
    %v8695 = vsel %vm1281, %v8567, %v8694
    %8696 = vst [vmem:[%s5603 + $0x78] sm:$0xf] %v8695
    %v8697 = vld [vmem:[%s5603 + $0x7c] sm:$0x1]
    %v8698 = vsel %vm52, %v8568, %v8697
    %8699 = vst [vmem:[%s5603 + $0x7c] sm:$0x1] %v8698
    %v8700 = vld [vmem:[%s5603 + $0x80] sm:$0xf]
    %v8701 = vsel %vm1281, %v8575, %v8700
    %8702 = vst [vmem:[%s5603 + $0x80] sm:$0xf] %v8701
    %v8703 = vld [vmem:[%s5603 + $0x84] sm:$0x1]
    %v8704 = vsel %vm52, %v8576, %v8703
    %8705 = vst [vmem:[%s5603 + $0x84] sm:$0x1] %v8704
    %v8706 = vld [vmem:[%s5603 + $0x88] sm:$0xf]
    %v8707 = vsel %vm1281, %v8583, %v8706
    %8708 = vst [vmem:[%s5603 + $0x88] sm:$0xf] %v8707
    %v8709 = vld [vmem:[%s5603 + $0x8c] sm:$0x1]
    %v8710 = vsel %vm52, %v8584, %v8709
    %8711 = vst [vmem:[%s5603 + $0x8c] sm:$0x1] %v8710
    %v8712 = vld [vmem:[#allocation3] sm:$0xf]
    %v8713 = vld [vmem:[#allocation3 + $0x8] sm:$0xf]
    %v8714 = vld [vmem:[#allocation3 + $0x10] sm:$0xf]
    %v8715 = vld [vmem:[#allocation3 + $0x18] sm:$0xf]
    %v8716 = vld [vmem:[#allocation3 + $0x20] sm:$0xf]
    %v8717 = vld [vmem:[#allocation3 + $0x28] sm:$0xf]
    %v8718 = vld [vmem:[#allocation3 + $0x30] sm:$0xf]
    %v8719 = vld [vmem:[#allocation3 + $0x38] sm:$0xf]
    %v8720 = vld [vmem:[#allocation3 + $0x50] sm:$0xf]
    %v8721 = vld [vmem:[#allocation3 + $0x58] sm:$0xf]
    %v8722 = vld [vmem:[#allocation3 + $0x60] sm:$0xf]
    %v8723 = vld [vmem:[#allocation3 + $0x68] sm:$0xf]
    %v8724 = vld [vmem:[#allocation3 + $0x70] sm:$0xf]
    %v8725 = vld [vmem:[#allocation3 + $0x78] sm:$0xf]
    %v8726 = vld [vmem:[#allocation3 + $0x80] sm:$0xf]
    %v8727 = vld [vmem:[#allocation3 + $0x88] sm:$0xf]
    %v8728 = vld [vmem:[#allocation3 + $0x4] sm:$0x1]
    %v8729 = vld [vmem:[#allocation3 + $0xc] sm:$0x1]
    %v8730 = vld [vmem:[#allocation3 + $0x14] sm:$0x1]
    %v8731 = vld [vmem:[#allocation3 + $0x1c] sm:$0x1]
    %v8732 = vld [vmem:[#allocation3 + $0x24] sm:$0x1]
    %v8733 = vld [vmem:[#allocation3 + $0x2c] sm:$0x1]
    %v8734 = vld [vmem:[#allocation3 + $0x34] sm:$0x1]
    %v8735 = vld [vmem:[#allocation3 + $0x3c] sm:$0x1]
    %v8736 = vld [vmem:[#allocation3 + $0x54] sm:$0x1]
    %v8737 = vld [vmem:[#allocation3 + $0x5c] sm:$0x1]
    %v8738 = vld [vmem:[#allocation3 + $0x64] sm:$0x1]
    %v8739 = vld [vmem:[#allocation3 + $0x6c] sm:$0x1]
    %v8740 = vld [vmem:[#allocation3 + $0x74] sm:$0x1]
    %v8741 = vld [vmem:[#allocation3 + $0x7c] sm:$0x1]
    %v8742 = vld [vmem:[#allocation3 + $0x84] sm:$0x1]
    %v8743 = vld [vmem:[#allocation3 + $0x8c] sm:$0x1]
    %v8745 = vshrl.u32 %v8712, 16
    %v8747 = vrot.slane %v8745, 4
    %v8748 = vshll.u32 %v8712, 16
    %v8750 = vrot.slane %v8748, 5
    %v8751 = vor.u32 %v8747, %v8750
    %v8752 = vrot.slane %v8751, 4
    %v8754 = vshll.u32 %v8728, 16
    %v8756 = vrot.slane %v8754, 5
    %v8757 = vsel %vm2321, %v8752, %v8756
    %v8759 = vshrl.u32 %v8713, 16
    %v8761 = vrot.slane %v8759, 4
    %v8762 = vshll.u32 %v8713, 16
    %v8764 = vrot.slane %v8762, 5
    %v8765 = vor.u32 %v8761, %v8764
    %v8766 = vrot.slane %v8765, 4
    %v8768 = vshll.u32 %v8729, 16
    %v8770 = vrot.slane %v8768, 5
    %v8771 = vsel %vm2321, %v8766, %v8770
    %v8773 = vshrl.u32 %v8714, 16
    %v8775 = vrot.slane %v8773, 4
    %v8776 = vshll.u32 %v8714, 16
    %v8778 = vrot.slane %v8776, 5
    %v8779 = vor.u32 %v8775, %v8778
    %v8780 = vrot.slane %v8779, 4
    %v8782 = vshll.u32 %v8730, 16
    %v8784 = vrot.slane %v8782, 5
    %v8785 = vsel %vm2321, %v8780, %v8784
    %v8787 = vshrl.u32 %v8715, 16
    %v8789 = vrot.slane %v8787, 4
    %v8790 = vshll.u32 %v8715, 16
    %v8792 = vrot.slane %v8790, 5
    %v8793 = vor.u32 %v8789, %v8792
    %v8794 = vrot.slane %v8793, 4
    %v8796 = vshll.u32 %v8731, 16
    %v8798 = vrot.slane %v8796, 5
    %v8799 = vsel %vm2321, %v8794, %v8798
    %v8801 = vshrl.u32 %v8716, 16
    %v8803 = vrot.slane %v8801, 4
    %v8804 = vshll.u32 %v8716, 16
    %v8806 = vrot.slane %v8804, 5
    %v8807 = vor.u32 %v8803, %v8806
    %v8808 = vrot.slane %v8807, 4
    %v8810 = vshll.u32 %v8732, 16
    %v8812 = vrot.slane %v8810, 5
    %v8813 = vsel %vm2321, %v8808, %v8812
    %v8815 = vshrl.u32 %v8717, 16
    %v8817 = vrot.slane %v8815, 4
    %v8818 = vshll.u32 %v8717, 16
    %v8820 = vrot.slane %v8818, 5
    %v8821 = vor.u32 %v8817, %v8820
    %v8822 = vrot.slane %v8821, 4
    %v8824 = vshll.u32 %v8733, 16
    %v8826 = vrot.slane %v8824, 5
    %v8827 = vsel %vm2321, %v8822, %v8826
    %v8829 = vshrl.u32 %v8718, 16
    %v8831 = vrot.slane %v8829, 4
    %v8832 = vshll.u32 %v8718, 16
    %v8834 = vrot.slane %v8832, 5
    %v8835 = vor.u32 %v8831, %v8834
    %v8836 = vrot.slane %v8835, 4
    %v8838 = vshll.u32 %v8734, 16
    %v8840 = vrot.slane %v8838, 5
    %v8841 = vsel %vm2321, %v8836, %v8840
    %v8843 = vshrl.u32 %v8719, 16
    %v8845 = vrot.slane %v8843, 4
    %v8846 = vshll.u32 %v8719, 16
    %v8848 = vrot.slane %v8846, 5
    %v8849 = vor.u32 %v8845, %v8848
    %v8850 = vrot.slane %v8849, 4
    %v8852 = vshll.u32 %v8735, 16
    %v8854 = vrot.slane %v8852, 5
    %v8855 = vsel %vm2321, %v8850, %v8854
    %v8857 = vshrl.u32 %v8720, 16
    %v8859 = vrot.slane %v8857, 4
    %v8860 = vshll.u32 %v8720, 16
    %v8862 = vrot.slane %v8860, 5
    %v8863 = vor.u32 %v8859, %v8862
    %v8864 = vrot.slane %v8863, 4
    %v8866 = vshll.u32 %v8736, 16
    %v8868 = vrot.slane %v8866, 5
    %v8869 = vsel %vm2321, %v8864, %v8868
    %v8871 = vshrl.u32 %v8721, 16
    %v8873 = vrot.slane %v8871, 4
    %v8874 = vshll.u32 %v8721, 16
    %v8876 = vrot.slane %v8874, 5
    %v8877 = vor.u32 %v8873, %v8876
    %v8878 = vrot.slane %v8877, 4
    %v8880 = vshll.u32 %v8737, 16
    %v8882 = vrot.slane %v8880, 5
    %v8883 = vsel %vm2321, %v8878, %v8882
    %v8885 = vshrl.u32 %v8722, 16
    %v8887 = vrot.slane %v8885, 4
    %v8888 = vshll.u32 %v8722, 16
    %v8890 = vrot.slane %v8888, 5
    %v8891 = vor.u32 %v8887, %v8890
    %v8892 = vrot.slane %v8891, 4
    %v8894 = vshll.u32 %v8738, 16
    %v8896 = vrot.slane %v8894, 5
    %v8897 = vsel %vm2321, %v8892, %v8896
    %v8899 = vshrl.u32 %v8723, 16
    %v8901 = vrot.slane %v8899, 4
    %v8902 = vshll.u32 %v8723, 16
    %v8904 = vrot.slane %v8902, 5
    %v8905 = vor.u32 %v8901, %v8904
    %v8906 = vrot.slane %v8905, 4
    %v8908 = vshll.u32 %v8739, 16
    %v8910 = vrot.slane %v8908, 5
    %v8911 = vsel %vm2321, %v8906, %v8910
    %v8913 = vshrl.u32 %v8724, 16
    %v8915 = vrot.slane %v8913, 4
    %v8916 = vshll.u32 %v8724, 16
    %v8918 = vrot.slane %v8916, 5
    %v8919 = vor.u32 %v8915, %v8918
    %v8920 = vrot.slane %v8919, 4
    %v8922 = vshll.u32 %v8740, 16
    %v8924 = vrot.slane %v8922, 5
    %v8925 = vsel %vm2321, %v8920, %v8924
    %v8927 = vshrl.u32 %v8725, 16
    %v8929 = vrot.slane %v8927, 4
    %v8930 = vshll.u32 %v8725, 16
    %v8932 = vrot.slane %v8930, 5
    %v8933 = vor.u32 %v8929, %v8932
    %v8934 = vrot.slane %v8933, 4
    %v8936 = vshll.u32 %v8741, 16
    %v8938 = vrot.slane %v8936, 5
    %v8939 = vsel %vm2321, %v8934, %v8938
    %v8941 = vshrl.u32 %v8726, 16
    %v8943 = vrot.slane %v8941, 4
    %v8944 = vshll.u32 %v8726, 16
    %v8946 = vrot.slane %v8944, 5
    %v8947 = vor.u32 %v8943, %v8946
    %v8948 = vrot.slane %v8947, 4
    %v8950 = vshll.u32 %v8742, 16
    %v8952 = vrot.slane %v8950, 5
    %v8953 = vsel %vm2321, %v8948, %v8952
    %v8955 = vshrl.u32 %v8727, 16
    %v8957 = vrot.slane %v8955, 4
    %v8958 = vshll.u32 %v8727, 16
    %v8960 = vrot.slane %v8958, 5
    %v8961 = vor.u32 %v8957, %v8960
    %v8962 = vrot.slane %v8961, 4
    %v8964 = vshll.u32 %v8743, 16
    %v8966 = vrot.slane %v8964, 5
    %v8967 = vsel %vm2321, %v8962, %v8966
    %v8968 = vld [vmem:[#allocation3] sm:$0xe]
    %v8969 = vld [vmem:[#allocation3 + $0x8] sm:$0xe]
    %v8970 = vld [vmem:[#allocation3 + $0x10] sm:$0xe]
    %v8971 = vld [vmem:[#allocation3 + $0x18] sm:$0xe]
    %v8972 = vld [vmem:[#allocation3 + $0x20] sm:$0xe]
    %v8973 = vld [vmem:[#allocation3 + $0x28] sm:$0xe]
    %v8974 = vld [vmem:[#allocation3 + $0x30] sm:$0xe]
    %v8975 = vld [vmem:[#allocation3 + $0x38] sm:$0xe]
    %v8976 = vld [vmem:[#allocation3 + $0x50] sm:$0xe]
    %v8977 = vld [vmem:[#allocation3 + $0x58] sm:$0xe]
    %v8978 = vld [vmem:[#allocation3 + $0x60] sm:$0xe]
    %v8979 = vld [vmem:[#allocation3 + $0x68] sm:$0xe]
    %v8980 = vld [vmem:[#allocation3 + $0x70] sm:$0xe]
    %v8981 = vld [vmem:[#allocation3 + $0x78] sm:$0xe]
    %v8982 = vld [vmem:[#allocation3 + $0x80] sm:$0xe]
    %v8983 = vld [vmem:[#allocation3 + $0x88] sm:$0xe]
    %v9016 = vrot.slane %v8968, 5
    %v9017 = vrot.slane %v9016, 4
    %v9018 = vrot.slane %v8728, 5
    %v9019 = vsel %vm6006, %v9017, %v9018
    %v9020 = vrot.slane %v8969, 5
    %v9021 = vrot.slane %v9020, 4
    %v9022 = vrot.slane %v8729, 5
    %v9023 = vsel %vm6006, %v9021, %v9022
    %v9024 = vrot.slane %v8970, 5
    %v9025 = vrot.slane %v9024, 4
    %v9026 = vrot.slane %v8730, 5
    %v9027 = vsel %vm6006, %v9025, %v9026
    %v9028 = vrot.slane %v8971, 5
    %v9029 = vrot.slane %v9028, 4
    %v9030 = vrot.slane %v8731, 5
    %v9031 = vsel %vm6006, %v9029, %v9030
    %v9032 = vrot.slane %v8972, 5
    %v9033 = vrot.slane %v9032, 4
    %v9034 = vrot.slane %v8732, 5
    %v9035 = vsel %vm6006, %v9033, %v9034
    %v9036 = vrot.slane %v8973, 5
    %v9037 = vrot.slane %v9036, 4
    %v9038 = vrot.slane %v8733, 5
    %v9039 = vsel %vm6006, %v9037, %v9038
    %v9040 = vrot.slane %v8974, 5
    %v9041 = vrot.slane %v9040, 4
    %v9042 = vrot.slane %v8734, 5
    %v9043 = vsel %vm6006, %v9041, %v9042
    %v9044 = vrot.slane %v8975, 5
    %v9045 = vrot.slane %v9044, 4
    %v9046 = vrot.slane %v8735, 5
    %v9047 = vsel %vm6006, %v9045, %v9046
    %v9048 = vrot.slane %v8976, 5
    %v9049 = vrot.slane %v9048, 4
    %v9050 = vrot.slane %v8736, 5
    %v9051 = vsel %vm6006, %v9049, %v9050
    %v9052 = vrot.slane %v8977, 5
    %v9053 = vrot.slane %v9052, 4
    %v9054 = vrot.slane %v8737, 5
    %v9055 = vsel %vm6006, %v9053, %v9054
    %v9056 = vrot.slane %v8978, 5
    %v9057 = vrot.slane %v9056, 4
    %v9058 = vrot.slane %v8738, 5
    %v9059 = vsel %vm6006, %v9057, %v9058
    %v9060 = vrot.slane %v8979, 5
    %v9061 = vrot.slane %v9060, 4
    %v9062 = vrot.slane %v8739, 5
    %v9063 = vsel %vm6006, %v9061, %v9062
    %v9064 = vrot.slane %v8980, 5
    %v9065 = vrot.slane %v9064, 4
    %v9066 = vrot.slane %v8740, 5
    %v9067 = vsel %vm6006, %v9065, %v9066
    %v9068 = vrot.slane %v8981, 5
    %v9069 = vrot.slane %v9068, 4
    %v9070 = vrot.slane %v8741, 5
    %v9071 = vsel %vm6006, %v9069, %v9070
    %v9072 = vrot.slane %v8982, 5
    %v9073 = vrot.slane %v9072, 4
    %v9074 = vrot.slane %v8742, 5
    %v9075 = vsel %vm6006, %v9073, %v9074
    %v9076 = vrot.slane %v8983, 5
    %v9077 = vrot.slane %v9076, 4
    %v9078 = vrot.slane %v8743, 5
    %v9079 = vsel %vm6006, %v9077, %v9078
    %v9080 = vld [vmem:[%s5603] sm:$0xf]
    %v9081 = vld [vmem:[%s5603 + $0x8] sm:$0xf]
    %v9082 = vld [vmem:[%s5603 + $0x10] sm:$0xf]
    %v9083 = vld [vmem:[%s5603 + $0x18] sm:$0xf]
    %v9084 = vld [vmem:[%s5603 + $0x20] sm:$0xf]
    %v9085 = vld [vmem:[%s5603 + $0x28] sm:$0xf]
    %v9086 = vld [vmem:[%s5603 + $0x30] sm:$0xf]
    %v9087 = vld [vmem:[%s5603 + $0x38] sm:$0xf]
    %v9088 = vld [vmem:[%s5603 + $0x50] sm:$0xf]
    %v9089 = vld [vmem:[%s5603 + $0x58] sm:$0xf]
    %v9090 = vld [vmem:[%s5603 + $0x60] sm:$0xf]
    %v9091 = vld [vmem:[%s5603 + $0x68] sm:$0xf]
    %v9092 = vld [vmem:[%s5603 + $0x70] sm:$0xf]
    %v9093 = vld [vmem:[%s5603 + $0x78] sm:$0xf]
    %v9094 = vld [vmem:[%s5603 + $0x80] sm:$0xf]
    %v9095 = vld [vmem:[%s5603 + $0x88] sm:$0xf]
    %v9096 = vld [vmem:[%s5603 + $0x4] sm:$0x1]
    %v9097 = vld [vmem:[%s5603 + $0xc] sm:$0x1]
    %v9098 = vld [vmem:[%s5603 + $0x14] sm:$0x1]
    %v9099 = vld [vmem:[%s5603 + $0x1c] sm:$0x1]
    %v9100 = vld [vmem:[%s5603 + $0x24] sm:$0x1]
    %v9101 = vld [vmem:[%s5603 + $0x2c] sm:$0x1]
    %v9102 = vld [vmem:[%s5603 + $0x34] sm:$0x1]
    %v9103 = vld [vmem:[%s5603 + $0x3c] sm:$0x1]
    %v9104 = vld [vmem:[%s5603 + $0x54] sm:$0x1]
    %v9105 = vld [vmem:[%s5603 + $0x5c] sm:$0x1]
    %v9106 = vld [vmem:[%s5603 + $0x64] sm:$0x1]
    %v9107 = vld [vmem:[%s5603 + $0x6c] sm:$0x1]
    %v9108 = vld [vmem:[%s5603 + $0x74] sm:$0x1]
    %v9109 = vld [vmem:[%s5603 + $0x7c] sm:$0x1]
    %v9110 = vld [vmem:[%s5603 + $0x84] sm:$0x1]
    %v9111 = vld [vmem:[%s5603 + $0x8c] sm:$0x1]
    %v9113 = vshrl.u32 %v9080, 16
    %v9115 = vrot.slane %v9113, 4
    %v9116 = vshll.u32 %v9080, 16
    %v9118 = vrot.slane %v9116, 5
    %v9119 = vor.u32 %v9115, %v9118
    %v9120 = vrot.slane %v9119, 4
    %v9122 = vshll.u32 %v9096, 16
    %v9124 = vrot.slane %v9122, 5
    %v9125 = vsel %vm2321, %v9120, %v9124
    %v9127 = vshrl.u32 %v9081, 16
    %v9129 = vrot.slane %v9127, 4
    %v9130 = vshll.u32 %v9081, 16
    %v9132 = vrot.slane %v9130, 5
    %v9133 = vor.u32 %v9129, %v9132
    %v9134 = vrot.slane %v9133, 4
    %v9136 = vshll.u32 %v9097, 16
    %v9138 = vrot.slane %v9136, 5
    %v9139 = vsel %vm2321, %v9134, %v9138
    %v9141 = vshrl.u32 %v9082, 16
    %v9143 = vrot.slane %v9141, 4
    %v9144 = vshll.u32 %v9082, 16
    %v9146 = vrot.slane %v9144, 5
    %v9147 = vor.u32 %v9143, %v9146
    %v9148 = vrot.slane %v9147, 4
    %v9150 = vshll.u32 %v9098, 16
    %v9152 = vrot.slane %v9150, 5
    %v9153 = vsel %vm2321, %v9148, %v9152
    %v9155 = vshrl.u32 %v9083, 16
    %v9157 = vrot.slane %v9155, 4
    %v9158 = vshll.u32 %v9083, 16
    %v9160 = vrot.slane %v9158, 5
    %v9161 = vor.u32 %v9157, %v9160
    %v9162 = vrot.slane %v9161, 4
    %v9164 = vshll.u32 %v9099, 16
    %v9166 = vrot.slane %v9164, 5
    %v9167 = vsel %vm2321, %v9162, %v9166
    %v9169 = vshrl.u32 %v9084, 16
    %v9171 = vrot.slane %v9169, 4
    %v9172 = vshll.u32 %v9084, 16
    %v9174 = vrot.slane %v9172, 5
    %v9175 = vor.u32 %v9171, %v9174
    %v9176 = vrot.slane %v9175, 4
    %v9178 = vshll.u32 %v9100, 16
    %v9180 = vrot.slane %v9178, 5
    %v9181 = vsel %vm2321, %v9176, %v9180
    %v9183 = vshrl.u32 %v9085, 16
    %v9185 = vrot.slane %v9183, 4
    %v9186 = vshll.u32 %v9085, 16
    %v9188 = vrot.slane %v9186, 5
    %v9189 = vor.u32 %v9185, %v9188
    %v9190 = vrot.slane %v9189, 4
    %v9192 = vshll.u32 %v9101, 16
    %v9194 = vrot.slane %v9192, 5
    %v9195 = vsel %vm2321, %v9190, %v9194
    %v9197 = vshrl.u32 %v9086, 16
    %v9199 = vrot.slane %v9197, 4
    %v9200 = vshll.u32 %v9086, 16
    %v9202 = vrot.slane %v9200, 5
    %v9203 = vor.u32 %v9199, %v9202
    %v9204 = vrot.slane %v9203, 4
    %v9206 = vshll.u32 %v9102, 16
    %v9208 = vrot.slane %v9206, 5
    %v9209 = vsel %vm2321, %v9204, %v9208
    %v9211 = vshrl.u32 %v9087, 16
    %v9213 = vrot.slane %v9211, 4
    %v9214 = vshll.u32 %v9087, 16
    %v9216 = vrot.slane %v9214, 5
    %v9217 = vor.u32 %v9213, %v9216
    %v9218 = vrot.slane %v9217, 4
    %v9220 = vshll.u32 %v9103, 16
    %v9222 = vrot.slane %v9220, 5
    %v9223 = vsel %vm2321, %v9218, %v9222
    %v9225 = vshrl.u32 %v9088, 16
    %v9227 = vrot.slane %v9225, 4
    %v9228 = vshll.u32 %v9088, 16
    %v9230 = vrot.slane %v9228, 5
    %v9231 = vor.u32 %v9227, %v9230
    %v9232 = vrot.slane %v9231, 4
    %v9234 = vshll.u32 %v9104, 16
    %v9236 = vrot.slane %v9234, 5
    %v9237 = vsel %vm2321, %v9232, %v9236
    %v9239 = vshrl.u32 %v9089, 16
    %v9241 = vrot.slane %v9239, 4
    %v9242 = vshll.u32 %v9089, 16
    %v9244 = vrot.slane %v9242, 5
    %v9245 = vor.u32 %v9241, %v9244
    %v9246 = vrot.slane %v9245, 4
    %v9248 = vshll.u32 %v9105, 16
    %v9250 = vrot.slane %v9248, 5
    %v9251 = vsel %vm2321, %v9246, %v9250
    %v9253 = vshrl.u32 %v9090, 16
    %v9255 = vrot.slane %v9253, 4
    %v9256 = vshll.u32 %v9090, 16
    %v9258 = vrot.slane %v9256, 5
    %v9259 = vor.u32 %v9255, %v9258
    %v9260 = vrot.slane %v9259, 4
    %v9262 = vshll.u32 %v9106, 16
    %v9264 = vrot.slane %v9262, 5
    %v9265 = vsel %vm2321, %v9260, %v9264
    %v9267 = vshrl.u32 %v9091, 16
    %v9269 = vrot.slane %v9267, 4
    %v9270 = vshll.u32 %v9091, 16
    %v9272 = vrot.slane %v9270, 5
    %v9273 = vor.u32 %v9269, %v9272
    %v9274 = vrot.slane %v9273, 4
    %v9276 = vshll.u32 %v9107, 16
    %v9278 = vrot.slane %v9276, 5
    %v9279 = vsel %vm2321, %v9274, %v9278
    %v9281 = vshrl.u32 %v9092, 16
    %v9283 = vrot.slane %v9281, 4
    %v9284 = vshll.u32 %v9092, 16
    %v9286 = vrot.slane %v9284, 5
    %v9287 = vor.u32 %v9283, %v9286
    %v9288 = vrot.slane %v9287, 4
    %v9290 = vshll.u32 %v9108, 16
    %v9292 = vrot.slane %v9290, 5
    %v9293 = vsel %vm2321, %v9288, %v9292
    %v9295 = vshrl.u32 %v9093, 16
    %v9297 = vrot.slane %v9295, 4
    %v9298 = vshll.u32 %v9093, 16
    %v9300 = vrot.slane %v9298, 5
    %v9301 = vor.u32 %v9297, %v9300
    %v9302 = vrot.slane %v9301, 4
    %v9304 = vshll.u32 %v9109, 16
    %v9306 = vrot.slane %v9304, 5
    %v9307 = vsel %vm2321, %v9302, %v9306
    %v9309 = vshrl.u32 %v9094, 16
    %v9311 = vrot.slane %v9309, 4
    %v9312 = vshll.u32 %v9094, 16
    %v9314 = vrot.slane %v9312, 5
    %v9315 = vor.u32 %v9311, %v9314
    %v9316 = vrot.slane %v9315, 4
    %v9318 = vshll.u32 %v9110, 16
    %v9320 = vrot.slane %v9318, 5
    %v9321 = vsel %vm2321, %v9316, %v9320
    %v9323 = vshrl.u32 %v9095, 16
    %v9325 = vrot.slane %v9323, 4
    %v9326 = vshll.u32 %v9095, 16
    %v9328 = vrot.slane %v9326, 5
    %v9329 = vor.u32 %v9325, %v9328
    %v9330 = vrot.slane %v9329, 4
    %v9332 = vshll.u32 %v9111, 16
    %v9334 = vrot.slane %v9332, 5
    %v9335 = vsel %vm2321, %v9330, %v9334
    %v9336 = vld [vmem:[%s5603] sm:$0xe]
    %v9337 = vld [vmem:[%s5603 + $0x8] sm:$0xe]
    %v9338 = vld [vmem:[%s5603 + $0x10] sm:$0xe]
    %v9339 = vld [vmem:[%s5603 + $0x18] sm:$0xe]
    %v9340 = vld [vmem:[%s5603 + $0x20] sm:$0xe]
    %v9341 = vld [vmem:[%s5603 + $0x28] sm:$0xe]
    %v9342 = vld [vmem:[%s5603 + $0x30] sm:$0xe]
    %v9343 = vld [vmem:[%s5603 + $0x38] sm:$0xe]
    %v9344 = vld [vmem:[%s5603 + $0x50] sm:$0xe]
    %v9345 = vld [vmem:[%s5603 + $0x58] sm:$0xe]
    %v9346 = vld [vmem:[%s5603 + $0x60] sm:$0xe]
    %v9347 = vld [vmem:[%s5603 + $0x68] sm:$0xe]
    %v9348 = vld [vmem:[%s5603 + $0x70] sm:$0xe]
    %v9349 = vld [vmem:[%s5603 + $0x78] sm:$0xe]
    %v9350 = vld [vmem:[%s5603 + $0x80] sm:$0xe]
    %v9351 = vld [vmem:[%s5603 + $0x88] sm:$0xe]
    %v9384 = vrot.slane %v9336, 5
    %v9385 = vrot.slane %v9384, 4
    %v9386 = vrot.slane %v9096, 5
    %v9387 = vsel %vm6006, %v9385, %v9386
    %v9388 = vrot.slane %v9337, 5
    %v9389 = vrot.slane %v9388, 4
    %v9390 = vrot.slane %v9097, 5
    %v9391 = vsel %vm6006, %v9389, %v9390
    %v9392 = vrot.slane %v9338, 5
    %v9393 = vrot.slane %v9392, 4
    %v9394 = vrot.slane %v9098, 5
    %v9395 = vsel %vm6006, %v9393, %v9394
    %v9396 = vrot.slane %v9339, 5
    %v9397 = vrot.slane %v9396, 4
    %v9398 = vrot.slane %v9099, 5
    %v9399 = vsel %vm6006, %v9397, %v9398
    %v9400 = vrot.slane %v9340, 5
    %v9401 = vrot.slane %v9400, 4
    %v9402 = vrot.slane %v9100, 5
    %v9403 = vsel %vm6006, %v9401, %v9402
    %v9404 = vrot.slane %v9341, 5
    %v9405 = vrot.slane %v9404, 4
    %v9406 = vrot.slane %v9101, 5
    %v9407 = vsel %vm6006, %v9405, %v9406
    %v9408 = vrot.slane %v9342, 5
    %v9409 = vrot.slane %v9408, 4
    %v9410 = vrot.slane %v9102, 5
    %v9411 = vsel %vm6006, %v9409, %v9410
    %v9412 = vrot.slane %v9343, 5
    %v9413 = vrot.slane %v9412, 4
    %v9414 = vrot.slane %v9103, 5
    %v9415 = vsel %vm6006, %v9413, %v9414
    %v9416 = vrot.slane %v9344, 5
    %v9417 = vrot.slane %v9416, 4
    %v9418 = vrot.slane %v9104, 5
    %v9419 = vsel %vm6006, %v9417, %v9418
    %v9420 = vrot.slane %v9345, 5
    %v9421 = vrot.slane %v9420, 4
    %v9422 = vrot.slane %v9105, 5
    %v9423 = vsel %vm6006, %v9421, %v9422
    %v9424 = vrot.slane %v9346, 5
    %v9425 = vrot.slane %v9424, 4
    %v9426 = vrot.slane %v9106, 5
    %v9427 = vsel %vm6006, %v9425, %v9426
    %v9428 = vrot.slane %v9347, 5
    %v9429 = vrot.slane %v9428, 4
    %v9430 = vrot.slane %v9107, 5
    %v9431 = vsel %vm6006, %v9429, %v9430
    %v9432 = vrot.slane %v9348, 5
    %v9433 = vrot.slane %v9432, 4
    %v9434 = vrot.slane %v9108, 5
    %v9435 = vsel %vm6006, %v9433, %v9434
    %v9436 = vrot.slane %v9349, 5
    %v9437 = vrot.slane %v9436, 4
    %v9438 = vrot.slane %v9109, 5
    %v9439 = vsel %vm6006, %v9437, %v9438
    %v9440 = vrot.slane %v9350, 5
    %v9441 = vrot.slane %v9440, 4
    %v9442 = vrot.slane %v9110, 5
    %v9443 = vsel %vm6006, %v9441, %v9442
    %v9444 = vrot.slane %v9351, 5
    %v9445 = vrot.slane %v9444, 4
    %v9446 = vrot.slane %v9111, 5
    %v9447 = vsel %vm6006, %v9445, %v9446
    %v9448 = vld [vmem:[%s6439] sm:$0xf]
    %v9449 = vld [vmem:[%s6439 + $0x8] sm:$0xf]
    %v9450 = vld [vmem:[%s6439 + $0x10] sm:$0xf]
    %v9451 = vld [vmem:[%s6439 + $0x18] sm:$0xf]
    %v9452 = vld [vmem:[%s6439 + $0x20] sm:$0xf]
    %v9453 = vld [vmem:[%s6439 + $0x28] sm:$0xf]
    %v9454 = vld [vmem:[%s6439 + $0x30] sm:$0xf]
    %v9455 = vld [vmem:[%s6439 + $0x38] sm:$0xf]
    %v9456 = vld [vmem:[%s6439 + $0x50] sm:$0xf]
    %v9457 = vld [vmem:[%s6439 + $0x58] sm:$0xf]
    %v9458 = vld [vmem:[%s6439 + $0x60] sm:$0xf]
    %v9459 = vld [vmem:[%s6439 + $0x68] sm:$0xf]
    %v9460 = vld [vmem:[%s6439 + $0x70] sm:$0xf]
    %v9461 = vld [vmem:[%s6439 + $0x78] sm:$0xf]
    %v9462 = vld [vmem:[%s6439 + $0x80] sm:$0xf]
    %v9463 = vld [vmem:[%s6439 + $0x88] sm:$0xf]
    %v9464 = vld [vmem:[%s6439 + $0x4] sm:$0x1]
    %v9465 = vld [vmem:[%s6439 + $0xc] sm:$0x1]
    %v9466 = vld [vmem:[%s6439 + $0x14] sm:$0x1]
    %v9467 = vld [vmem:[%s6439 + $0x1c] sm:$0x1]
    %v9468 = vld [vmem:[%s6439 + $0x24] sm:$0x1]
    %v9469 = vld [vmem:[%s6439 + $0x2c] sm:$0x1]
    %v9470 = vld [vmem:[%s6439 + $0x34] sm:$0x1]
    %v9471 = vld [vmem:[%s6439 + $0x3c] sm:$0x1]
    %v9472 = vld [vmem:[%s6439 + $0x54] sm:$0x1]
    %v9473 = vld [vmem:[%s6439 + $0x5c] sm:$0x1]
    %v9474 = vld [vmem:[%s6439 + $0x64] sm:$0x1]
    %v9475 = vld [vmem:[%s6439 + $0x6c] sm:$0x1]
    %v9476 = vld [vmem:[%s6439 + $0x74] sm:$0x1]
    %v9477 = vld [vmem:[%s6439 + $0x7c] sm:$0x1]
    %v9478 = vld [vmem:[%s6439 + $0x84] sm:$0x1]
    %v9479 = vld [vmem:[%s6439 + $0x8c] sm:$0x1]
    %v9481 = vshrl.u32 %v9448, 16
    %v9483 = vrot.slane %v9481, 4
    %v9484 = vshll.u32 %v9448, 16
    %v9486 = vrot.slane %v9484, 5
    %v9487 = vor.u32 %v9483, %v9486
    %v9488 = vrot.slane %v9487, 4
    %v9490 = vshll.u32 %v9464, 16
    %v9492 = vrot.slane %v9490, 5
    %v9493 = vsel %vm2321, %v9488, %v9492
    %v9495 = vshrl.u32 %v9449, 16
    %v9497 = vrot.slane %v9495, 4
    %v9498 = vshll.u32 %v9449, 16
    %v9500 = vrot.slane %v9498, 5
    %v9501 = vor.u32 %v9497, %v9500
    %v9502 = vrot.slane %v9501, 4
    %v9504 = vshll.u32 %v9465, 16
    %v9506 = vrot.slane %v9504, 5
    %v9507 = vsel %vm2321, %v9502, %v9506
    %v9509 = vshrl.u32 %v9450, 16
    %v9511 = vrot.slane %v9509, 4
    %v9512 = vshll.u32 %v9450, 16
    %v9514 = vrot.slane %v9512, 5
    %v9515 = vor.u32 %v9511, %v9514
    %v9516 = vrot.slane %v9515, 4
    %v9518 = vshll.u32 %v9466, 16
    %v9520 = vrot.slane %v9518, 5
    %v9521 = vsel %vm2321, %v9516, %v9520
    %v9523 = vshrl.u32 %v9451, 16
    %v9525 = vrot.slane %v9523, 4
    %v9526 = vshll.u32 %v9451, 16
    %v9528 = vrot.slane %v9526, 5
    %v9529 = vor.u32 %v9525, %v9528
    %v9530 = vrot.slane %v9529, 4
    %v9532 = vshll.u32 %v9467, 16
    %v9534 = vrot.slane %v9532, 5
    %v9535 = vsel %vm2321, %v9530, %v9534
    %v9537 = vshrl.u32 %v9452, 16
    %v9539 = vrot.slane %v9537, 4
    %v9540 = vshll.u32 %v9452, 16
    %v9542 = vrot.slane %v9540, 5
    %v9543 = vor.u32 %v9539, %v9542
    %v9544 = vrot.slane %v9543, 4
    %v9546 = vshll.u32 %v9468, 16
    %v9548 = vrot.slane %v9546, 5
    %v9549 = vsel %vm2321, %v9544, %v9548
    %v9551 = vshrl.u32 %v9453, 16
    %v9553 = vrot.slane %v9551, 4
    %v9554 = vshll.u32 %v9453, 16
    %v9556 = vrot.slane %v9554, 5
    %v9557 = vor.u32 %v9553, %v9556
    %v9558 = vrot.slane %v9557, 4
    %v9560 = vshll.u32 %v9469, 16
    %v9562 = vrot.slane %v9560, 5
    %v9563 = vsel %vm2321, %v9558, %v9562
    %v9565 = vshrl.u32 %v9454, 16
    %v9567 = vrot.slane %v9565, 4
    %v9568 = vshll.u32 %v9454, 16
    %v9570 = vrot.slane %v9568, 5
    %v9571 = vor.u32 %v9567, %v9570
    %v9572 = vrot.slane %v9571, 4
    %v9574 = vshll.u32 %v9470, 16
    %v9576 = vrot.slane %v9574, 5
    %v9577 = vsel %vm2321, %v9572, %v9576
    %v9579 = vshrl.u32 %v9455, 16
    %v9581 = vrot.slane %v9579, 4
    %v9582 = vshll.u32 %v9455, 16
    %v9584 = vrot.slane %v9582, 5
    %v9585 = vor.u32 %v9581, %v9584
    %v9586 = vrot.slane %v9585, 4
    %v9588 = vshll.u32 %v9471, 16
    %v9590 = vrot.slane %v9588, 5
    %v9591 = vsel %vm2321, %v9586, %v9590
    %v9593 = vshrl.u32 %v9456, 16
    %v9595 = vrot.slane %v9593, 4
    %v9596 = vshll.u32 %v9456, 16
    %v9598 = vrot.slane %v9596, 5
    %v9599 = vor.u32 %v9595, %v9598
    %v9600 = vrot.slane %v9599, 4
    %v9602 = vshll.u32 %v9472, 16
    %v9604 = vrot.slane %v9602, 5
    %v9605 = vsel %vm2321, %v9600, %v9604
    %v9607 = vshrl.u32 %v9457, 16
    %v9609 = vrot.slane %v9607, 4
    %v9610 = vshll.u32 %v9457, 16
    %v9612 = vrot.slane %v9610, 5
    %v9613 = vor.u32 %v9609, %v9612
    %v9614 = vrot.slane %v9613, 4
    %v9616 = vshll.u32 %v9473, 16
    %v9618 = vrot.slane %v9616, 5
    %v9619 = vsel %vm2321, %v9614, %v9618
    %v9621 = vshrl.u32 %v9458, 16
    %v9623 = vrot.slane %v9621, 4
    %v9624 = vshll.u32 %v9458, 16
    %v9626 = vrot.slane %v9624, 5
    %v9627 = vor.u32 %v9623, %v9626
    %v9628 = vrot.slane %v9627, 4
    %v9630 = vshll.u32 %v9474, 16
    %v9632 = vrot.slane %v9630, 5
    %v9633 = vsel %vm2321, %v9628, %v9632
    %v9635 = vshrl.u32 %v9459, 16
    %v9637 = vrot.slane %v9635, 4
    %v9638 = vshll.u32 %v9459, 16
    %v9640 = vrot.slane %v9638, 5
    %v9641 = vor.u32 %v9637, %v9640
    %v9642 = vrot.slane %v9641, 4
    %v9644 = vshll.u32 %v9475, 16
    %v9646 = vrot.slane %v9644, 5
    %v9647 = vsel %vm2321, %v9642, %v9646
    %v9649 = vshrl.u32 %v9460, 16
    %v9651 = vrot.slane %v9649, 4
    %v9652 = vshll.u32 %v9460, 16
    %v9654 = vrot.slane %v9652, 5
    %v9655 = vor.u32 %v9651, %v9654
    %v9656 = vrot.slane %v9655, 4
    %v9658 = vshll.u32 %v9476, 16
    %v9660 = vrot.slane %v9658, 5
    %v9661 = vsel %vm2321, %v9656, %v9660
    %v9663 = vshrl.u32 %v9461, 16
    %v9665 = vrot.slane %v9663, 4
    %v9666 = vshll.u32 %v9461, 16
    %v9668 = vrot.slane %v9666, 5
    %v9669 = vor.u32 %v9665, %v9668
    %v9670 = vrot.slane %v9669, 4
    %v9672 = vshll.u32 %v9477, 16
    %v9674 = vrot.slane %v9672, 5
    %v9675 = vsel %vm2321, %v9670, %v9674
    %v9677 = vshrl.u32 %v9462, 16
    %v9679 = vrot.slane %v9677, 4
    %v9680 = vshll.u32 %v9462, 16
    %v9682 = vrot.slane %v9680, 5
    %v9683 = vor.u32 %v9679, %v9682
    %v9684 = vrot.slane %v9683, 4
    %v9686 = vshll.u32 %v9478, 16
    %v9688 = vrot.slane %v9686, 5
    %v9689 = vsel %vm2321, %v9684, %v9688
    %v9691 = vshrl.u32 %v9463, 16
    %v9693 = vrot.slane %v9691, 4
    %v9694 = vshll.u32 %v9463, 16
    %v9696 = vrot.slane %v9694, 5
    %v9697 = vor.u32 %v9693, %v9696
    %v9698 = vrot.slane %v9697, 4
    %v9700 = vshll.u32 %v9479, 16
    %v9702 = vrot.slane %v9700, 5
    %v9703 = vsel %vm2321, %v9698, %v9702
    %v9704 = vld [vmem:[%s6439] sm:$0xe]
    %v9705 = vld [vmem:[%s6439 + $0x8] sm:$0xe]
    %v9706 = vld [vmem:[%s6439 + $0x10] sm:$0xe]
    %v9707 = vld [vmem:[%s6439 + $0x18] sm:$0xe]
    %v9708 = vld [vmem:[%s6439 + $0x20] sm:$0xe]
    %v9709 = vld [vmem:[%s6439 + $0x28] sm:$0xe]
    %v9710 = vld [vmem:[%s6439 + $0x30] sm:$0xe]
    %v9711 = vld [vmem:[%s6439 + $0x38] sm:$0xe]
    %v9712 = vld [vmem:[%s6439 + $0x50] sm:$0xe]
    %v9713 = vld [vmem:[%s6439 + $0x58] sm:$0xe]
    %v9714 = vld [vmem:[%s6439 + $0x60] sm:$0xe]
    %v9715 = vld [vmem:[%s6439 + $0x68] sm:$0xe]
    %v9716 = vld [vmem:[%s6439 + $0x70] sm:$0xe]
    %v9717 = vld [vmem:[%s6439 + $0x78] sm:$0xe]
    %v9718 = vld [vmem:[%s6439 + $0x80] sm:$0xe]
    %v9719 = vld [vmem:[%s6439 + $0x88] sm:$0xe]
    %v9752 = vrot.slane %v9704, 5
    %v9753 = vrot.slane %v9752, 4
    %v9754 = vrot.slane %v9464, 5
    %v9755 = vsel %vm6006, %v9753, %v9754
    %v9756 = vrot.slane %v9705, 5
    %v9757 = vrot.slane %v9756, 4
    %v9758 = vrot.slane %v9465, 5
    %v9759 = vsel %vm6006, %v9757, %v9758
    %v9760 = vrot.slane %v9706, 5
    %v9761 = vrot.slane %v9760, 4
    %v9762 = vrot.slane %v9466, 5
    %v9763 = vsel %vm6006, %v9761, %v9762
    %v9764 = vrot.slane %v9707, 5
    %v9765 = vrot.slane %v9764, 4
    %v9766 = vrot.slane %v9467, 5
    %v9767 = vsel %vm6006, %v9765, %v9766
    %v9768 = vrot.slane %v9708, 5
    %v9769 = vrot.slane %v9768, 4
    %v9770 = vrot.slane %v9468, 5
    %v9771 = vsel %vm6006, %v9769, %v9770
    %v9772 = vrot.slane %v9709, 5
    %v9773 = vrot.slane %v9772, 4
    %v9774 = vrot.slane %v9469, 5
    %v9775 = vsel %vm6006, %v9773, %v9774
    %v9776 = vrot.slane %v9710, 5
    %v9777 = vrot.slane %v9776, 4
    %v9778 = vrot.slane %v9470, 5
    %v9779 = vsel %vm6006, %v9777, %v9778
    %v9780 = vrot.slane %v9711, 5
    %v9781 = vrot.slane %v9780, 4
    %v9782 = vrot.slane %v9471, 5
    %v9783 = vsel %vm6006, %v9781, %v9782
    %v9784 = vrot.slane %v9712, 5
    %v9785 = vrot.slane %v9784, 4
    %v9786 = vrot.slane %v9472, 5
    %v9787 = vsel %vm6006, %v9785, %v9786
    %v9788 = vrot.slane %v9713, 5
    %v9789 = vrot.slane %v9788, 4
    %v9790 = vrot.slane %v9473, 5
    %v9791 = vsel %vm6006, %v9789, %v9790
    %v9792 = vrot.slane %v9714, 5
    %v9793 = vrot.slane %v9792, 4
    %v9794 = vrot.slane %v9474, 5
    %v9795 = vsel %vm6006, %v9793, %v9794
    %v9796 = vrot.slane %v9715, 5
    %v9797 = vrot.slane %v9796, 4
    %v9798 = vrot.slane %v9475, 5
    %v9799 = vsel %vm6006, %v9797, %v9798
    %v9800 = vrot.slane %v9716, 5
    %v9801 = vrot.slane %v9800, 4
    %v9802 = vrot.slane %v9476, 5
    %v9803 = vsel %vm6006, %v9801, %v9802
    %v9804 = vrot.slane %v9717, 5
    %v9805 = vrot.slane %v9804, 4
    %v9806 = vrot.slane %v9477, 5
    %v9807 = vsel %vm6006, %v9805, %v9806
    %v9808 = vrot.slane %v9718, 5
    %v9809 = vrot.slane %v9808, 4
    %v9810 = vrot.slane %v9478, 5
    %v9811 = vsel %vm6006, %v9809, %v9810
    %v9812 = vrot.slane %v9719, 5
    %v9813 = vrot.slane %v9812, 4
    %v9814 = vrot.slane %v9479, 5
    %v9815 = vsel %vm6006, %v9813, %v9814
    %v9832 = vunpack.c.l.b16 %v8712
    %v9833 = vunpack.c.l.b16 %v8713
    %v9834 = vunpack.c.l.b16 %v8714
    %v9835 = vunpack.c.l.b16 %v8715
    %v9836 = vunpack.c.l.b16 %v8716
    %v9837 = vunpack.c.l.b16 %v8717
    %v9838 = vunpack.c.l.b16 %v8718
    %v9839 = vunpack.c.l.b16 %v8719
    %v9840 = vunpack.c.l.b16 %v8720
    %v9841 = vunpack.c.l.b16 %v8721
    %v9842 = vunpack.c.l.b16 %v8722
    %v9843 = vunpack.c.l.b16 %v8723
    %v9844 = vunpack.c.l.b16 %v8724
    %v9845 = vunpack.c.l.b16 %v8725
    %v9846 = vunpack.c.l.b16 %v8726
    %v9847 = vunpack.c.l.b16 %v8727
    %v9848 = vpack.c.b16 %v9833, %v9832
    %v9849 = vpack.c.b16 %v9835, %v9834
    %v9850 = vpack.c.b16 %v9837, %v9836
    %v9851 = vpack.c.b16 %v9839, %v9838
    %v9852 = vpack.c.b16 %v9841, %v9840
    %v9853 = vpack.c.b16 %v9843, %v9842
    %v9854 = vpack.c.b16 %v9845, %v9844
    %v9855 = vpack.c.b16 %v9847, %v9846
    %v9864 = vunpack.c.l.b16 %v8757
    %v9865 = vunpack.c.l.b16 %v8771
    %v9866 = vunpack.c.l.b16 %v8785
    %v9867 = vunpack.c.l.b16 %v8799
    %v9868 = vunpack.c.l.b16 %v8813
    %v9869 = vunpack.c.l.b16 %v8827
    %v9870 = vunpack.c.l.b16 %v8841
    %v9871 = vunpack.c.l.b16 %v8855
    %v9872 = vunpack.c.l.b16 %v8869
    %v9873 = vunpack.c.l.b16 %v8883
    %v9874 = vunpack.c.l.b16 %v8897
    %v9875 = vunpack.c.l.b16 %v8911
    %v9876 = vunpack.c.l.b16 %v8925
    %v9877 = vunpack.c.l.b16 %v8939
    %v9878 = vunpack.c.l.b16 %v8953
    %v9879 = vunpack.c.l.b16 %v8967
    %v9880 = vpack.c.b16 %v9865, %v9864
    %v9881 = vpack.c.b16 %v9867, %v9866
    %v9882 = vpack.c.b16 %v9869, %v9868
    %v9883 = vpack.c.b16 %v9871, %v9870
    %v9884 = vpack.c.b16 %v9873, %v9872
    %v9885 = vpack.c.b16 %v9875, %v9874
    %v9886 = vpack.c.b16 %v9877, %v9876
    %v9887 = vpack.c.b16 %v9879, %v9878
    %v9896 = vunpack.c.l.b16 %v9019
    %v9897 = vunpack.c.l.b16 %v9023
    %v9898 = vunpack.c.l.b16 %v9027
    %v9899 = vunpack.c.l.b16 %v9031
    %v9900 = vunpack.c.l.b16 %v9035
    %v9901 = vunpack.c.l.b16 %v9039
    %v9902 = vunpack.c.l.b16 %v9043
    %v9903 = vunpack.c.l.b16 %v9047
    %v9904 = vunpack.c.l.b16 %v9051
    %v9905 = vunpack.c.l.b16 %v9055
    %v9906 = vunpack.c.l.b16 %v9059
    %v9907 = vunpack.c.l.b16 %v9063
    %v9908 = vunpack.c.l.b16 %v9067
    %v9909 = vunpack.c.l.b16 %v9071
    %v9910 = vunpack.c.l.b16 %v9075
    %v9911 = vunpack.c.l.b16 %v9079
    %v9912 = vpack.c.b16 %v9897, %v9896
    %v9913 = vpack.c.b16 %v9899, %v9898
    %v9914 = vpack.c.b16 %v9901, %v9900
    %v9915 = vpack.c.b16 %v9903, %v9902
    %v9916 = vpack.c.b16 %v9905, %v9904
    %v9917 = vpack.c.b16 %v9907, %v9906
    %v9918 = vpack.c.b16 %v9909, %v9908
    %v9919 = vpack.c.b16 %v9911, %v9910
    %v9944 = vunpack.c.l.b16 %v9080
    %v9945 = vunpack.c.l.b16 %v9081
    %v9946 = vunpack.c.l.b16 %v9082
    %v9947 = vunpack.c.l.b16 %v9083
    %v9948 = vunpack.c.l.b16 %v9084
    %v9949 = vunpack.c.l.b16 %v9085
    %v9950 = vunpack.c.l.b16 %v9086
    %v9951 = vunpack.c.l.b16 %v9087
    %v9952 = vunpack.c.l.b16 %v9088
    %v9953 = vunpack.c.l.b16 %v9089
    %v9954 = vunpack.c.l.b16 %v9090
    %v9955 = vunpack.c.l.b16 %v9091
    %v9956 = vunpack.c.l.b16 %v9092
    %v9957 = vunpack.c.l.b16 %v9093
    %v9958 = vunpack.c.l.b16 %v9094
    %v9959 = vunpack.c.l.b16 %v9095
    %v9960 = vpack.c.b16 %v9945, %v9944
    %v9961 = vpack.c.b16 %v9947, %v9946
    %v9962 = vpack.c.b16 %v9949, %v9948
    %v9963 = vpack.c.b16 %v9951, %v9950
    %v9964 = vpack.c.b16 %v9953, %v9952
    %v9965 = vpack.c.b16 %v9955, %v9954
    %v9966 = vpack.c.b16 %v9957, %v9956
    %v9967 = vpack.c.b16 %v9959, %v9958
    %v9976 = vunpack.c.l.b16 %v9125
    %v9977 = vunpack.c.l.b16 %v9139
    %v9978 = vunpack.c.l.b16 %v9153
    %v9979 = vunpack.c.l.b16 %v9167
    %v9980 = vunpack.c.l.b16 %v9181
    %v9981 = vunpack.c.l.b16 %v9195
    %v9982 = vunpack.c.l.b16 %v9209
    %v9983 = vunpack.c.l.b16 %v9223
    %v9984 = vunpack.c.l.b16 %v9237
    %v9985 = vunpack.c.l.b16 %v9251
    %v9986 = vunpack.c.l.b16 %v9265
    %v9987 = vunpack.c.l.b16 %v9279
    %v9988 = vunpack.c.l.b16 %v9293
    %v9989 = vunpack.c.l.b16 %v9307
    %v9990 = vunpack.c.l.b16 %v9321
    %v9991 = vunpack.c.l.b16 %v9335
    %v9992 = vpack.c.b16 %v9977, %v9976
    %v9993 = vpack.c.b16 %v9979, %v9978
    %v9994 = vpack.c.b16 %v9981, %v9980
    %v9995 = vpack.c.b16 %v9983, %v9982
    %v9996 = vpack.c.b16 %v9985, %v9984
    %v9997 = vpack.c.b16 %v9987, %v9986
    %v9998 = vpack.c.b16 %v9989, %v9988
    %v9999 = vpack.c.b16 %v9991, %v9990
    %v10008 = vunpack.c.l.b16 %v9387
    %v10009 = vunpack.c.l.b16 %v9391
    %v10010 = vunpack.c.l.b16 %v9395
    %v10011 = vunpack.c.l.b16 %v9399
    %v10012 = vunpack.c.l.b16 %v9403
    %v10013 = vunpack.c.l.b16 %v9407
    %v10014 = vunpack.c.l.b16 %v9411
    %v10015 = vunpack.c.l.b16 %v9415
    %v10016 = vunpack.c.l.b16 %v9419
    %v10017 = vunpack.c.l.b16 %v9423
    %v10018 = vunpack.c.l.b16 %v9427
    %v10019 = vunpack.c.l.b16 %v9431
    %v10020 = vunpack.c.l.b16 %v9435
    %v10021 = vunpack.c.l.b16 %v9439
    %v10022 = vunpack.c.l.b16 %v9443
    %v10023 = vunpack.c.l.b16 %v9447
    %v10024 = vpack.c.b16 %v10009, %v10008
    %v10025 = vpack.c.b16 %v10011, %v10010
    %v10026 = vpack.c.b16 %v10013, %v10012
    %v10027 = vpack.c.b16 %v10015, %v10014
    %v10028 = vpack.c.b16 %v10017, %v10016
    %v10029 = vpack.c.b16 %v10019, %v10018
    %v10030 = vpack.c.b16 %v10021, %v10020
    %v10031 = vpack.c.b16 %v10023, %v10022
    %v10056 = vunpack.c.l.b16 %v9448
    %v10057 = vunpack.c.l.b16 %v9449
    %v10058 = vunpack.c.l.b16 %v9450
    %v10059 = vunpack.c.l.b16 %v9451
    %v10060 = vunpack.c.l.b16 %v9452
    %v10061 = vunpack.c.l.b16 %v9453
    %v10062 = vunpack.c.l.b16 %v9454
    %v10063 = vunpack.c.l.b16 %v9455
    %v10064 = vunpack.c.l.b16 %v9456
    %v10065 = vunpack.c.l.b16 %v9457
    %v10066 = vunpack.c.l.b16 %v9458
    %v10067 = vunpack.c.l.b16 %v9459
    %v10068 = vunpack.c.l.b16 %v9460
    %v10069 = vunpack.c.l.b16 %v9461
    %v10070 = vunpack.c.l.b16 %v9462
    %v10071 = vunpack.c.l.b16 %v9463
    %v10072 = vpack.c.b16 %v10057, %v10056
    %v10073 = vpack.c.b16 %v10059, %v10058
    %v10074 = vpack.c.b16 %v10061, %v10060
    %v10075 = vpack.c.b16 %v10063, %v10062
    %v10076 = vpack.c.b16 %v10065, %v10064
    %v10077 = vpack.c.b16 %v10067, %v10066
    %v10078 = vpack.c.b16 %v10069, %v10068
    %v10079 = vpack.c.b16 %v10071, %v10070
    %v10088 = vunpack.c.l.b16 %v9493
    %v10089 = vunpack.c.l.b16 %v9507
    %v10090 = vunpack.c.l.b16 %v9521
    %v10091 = vunpack.c.l.b16 %v9535
    %v10092 = vunpack.c.l.b16 %v9549
    %v10093 = vunpack.c.l.b16 %v9563
    %v10094 = vunpack.c.l.b16 %v9577
    %v10095 = vunpack.c.l.b16 %v9591
    %v10096 = vunpack.c.l.b16 %v9605
    %v10097 = vunpack.c.l.b16 %v9619
    %v10098 = vunpack.c.l.b16 %v9633
    %v10099 = vunpack.c.l.b16 %v9647
    %v10100 = vunpack.c.l.b16 %v9661
    %v10101 = vunpack.c.l.b16 %v9675
    %v10102 = vunpack.c.l.b16 %v9689
    %v10103 = vunpack.c.l.b16 %v9703
    %v10104 = vpack.c.b16 %v10089, %v10088
    %v10105 = vpack.c.b16 %v10091, %v10090
    %v10106 = vpack.c.b16 %v10093, %v10092
    %v10107 = vpack.c.b16 %v10095, %v10094
    %v10108 = vpack.c.b16 %v10097, %v10096
    %v10109 = vpack.c.b16 %v10099, %v10098
    %v10110 = vpack.c.b16 %v10101, %v10100
    %v10111 = vpack.c.b16 %v10103, %v10102
    %v10120 = vunpack.c.l.b16 %v9755
    %v10121 = vunpack.c.l.b16 %v9759
    %v10122 = vunpack.c.l.b16 %v9763
    %v10123 = vunpack.c.l.b16 %v9767
    %v10124 = vunpack.c.l.b16 %v9771
    %v10125 = vunpack.c.l.b16 %v9775
    %v10126 = vunpack.c.l.b16 %v9779
    %v10127 = vunpack.c.l.b16 %v9783
    %v10128 = vunpack.c.l.b16 %v9787
    %v10129 = vunpack.c.l.b16 %v9791
    %v10130 = vunpack.c.l.b16 %v9795
    %v10131 = vunpack.c.l.b16 %v9799
    %v10132 = vunpack.c.l.b16 %v9803
    %v10133 = vunpack.c.l.b16 %v9807
    %v10134 = vunpack.c.l.b16 %v9811
    %v10135 = vunpack.c.l.b16 %v9815
    %v10136 = vpack.c.b16 %v10121, %v10120
    %v10137 = vpack.c.b16 %v10123, %v10122
    %v10138 = vpack.c.b16 %v10125, %v10124
    %v10139 = vpack.c.b16 %v10127, %v10126
    %v10140 = vpack.c.b16 %v10129, %v10128
    %v10141 = vpack.c.b16 %v10131, %v10130
    %v10142 = vpack.c.b16 %v10133, %v10132
    %v10143 = vpack.c.b16 %v10135, %v10134
    %v10152 = vld [vmem:[%s9] sm:$0xf]
    %v10153 = vld [vmem:[%s9 + $0x4] sm:$0xf]
    %v10154 = vld [vmem:[%s9 + $0x8] sm:$0xf]
    %v10155 = vld [vmem:[%s9 + $0xc] sm:$0xf]
    %v10156 = vld [vmem:[%s9 + $0x10] sm:$0xf]
    %v10157 = vld [vmem:[%s9 + $0x14] sm:$0xf]
    %v10158 = vld [vmem:[%s9 + $0x18] sm:$0xf]
    %v10159 = vld [vmem:[%s9 + $0x1c] sm:$0xf]
    %v10160 = vld [vmem:[%s9 + $0x20] sm:$0xf]
    %v10161 = vld [vmem:[%s9 + $0x24] sm:$0xf]
    %v10162 = vld [vmem:[%s9 + $0x28] sm:$0xf]
    %v10163 = vld [vmem:[%s9 + $0x2c] sm:$0xf]
    %v10164 = vld [vmem:[%s9 + $0x30] sm:$0xf]
    %v10165 = vld [vmem:[%s9 + $0x34] sm:$0xf]
    %v10166 = vld [vmem:[%s9 + $0x38] sm:$0xf]
    %v10167 = vld [vmem:[%s9 + $0x3c] sm:$0xf]
    %v10168 = vld [vmem:[%s9 + $0x40] sm:$0xf]
    %v10169 = vld [vmem:[%s9 + $0x44] sm:$0xf]
    %v10170 = vld [vmem:[%s9 + $0x48] sm:$0xf]
    %v10171 = vld [vmem:[%s9 + $0x4c] sm:$0xf]
    %v10172 = vld [vmem:[%s9 + $0x50] sm:$0xf]
    %v10173 = vld [vmem:[%s9 + $0x54] sm:$0xf]
    %v10174 = vld [vmem:[%s9 + $0x58] sm:$0xf]
    %v10175 = vld [vmem:[%s9 + $0x5c] sm:$0xf]
    %v10176 = vld [vmem:[%s9 + $0x60] sm:$0xf]
    %v10177 = vld [vmem:[%s9 + $0x64] sm:$0xf]
    %v10178 = vld [vmem:[%s9 + $0x68] sm:$0xf]
    %v10179 = vld [vmem:[%s9 + $0x6c] sm:$0xf]
    %v10180 = vld [vmem:[%s9 + $0x70] sm:$0xf]
    %v10181 = vld [vmem:[%s9 + $0x74] sm:$0xf]
    %v10182 = vld [vmem:[%s9 + $0x78] sm:$0xf]
    %v10183 = vld [vmem:[%s9 + $0x7c] sm:$0xf]
    %v10184 = vld [vmem:[%s9 + $0x80] sm:$0xf]
    %v10185 = vld [vmem:[%s9 + $0x84] sm:$0xf]
    %v10186 = vld [vmem:[%s9 + $0x88] sm:$0xf]
    %v10187 = vld [vmem:[%s9 + $0x8c] sm:$0xf]
    %v10188 = vld [vmem:[%s9 + $0x90] sm:$0xf]
    %v10189 = vld [vmem:[%s9 + $0x94] sm:$0xf]
    %v10190 = vld [vmem:[%s9 + $0x98] sm:$0xf]
    %v10191 = vld [vmem:[%s9 + $0x9c] sm:$0xf]
    %v10192 = vld [vmem:[%s9 + $0xa0] sm:$0xf]
    %v10193 = vld [vmem:[%s9 + $0xa4] sm:$0xf]
    %v10194 = vld [vmem:[%s9 + $0xa8] sm:$0xf]
    %v10195 = vld [vmem:[%s9 + $0xac] sm:$0xf]
    %v10196 = vld [vmem:[%s9 + $0xb0] sm:$0xf]
    %v10197 = vld [vmem:[%s9 + $0xb4] sm:$0xf]
    %v10198 = vld [vmem:[%s9 + $0xb8] sm:$0xf]
    %v10199 = vld [vmem:[%s9 + $0xbc] sm:$0xf]
    %v10200 = vld [vmem:[%s9 + $0xc0] sm:$0xf]
    %v10201 = vld [vmem:[%s9 + $0xc4] sm:$0xf]
    %v10202 = vld [vmem:[%s9 + $0xc8] sm:$0xf]
    %v10203 = vld [vmem:[%s9 + $0xcc] sm:$0xf]
    %v10204 = vld [vmem:[%s9 + $0xd0] sm:$0xf]
    %v10205 = vld [vmem:[%s9 + $0xd4] sm:$0xf]
    %v10206 = vld [vmem:[%s9 + $0xd8] sm:$0xf]
    %v10207 = vld [vmem:[%s9 + $0xdc] sm:$0xf]
    %v10208 = vld [vmem:[%s9 + $0xe0] sm:$0xf]
    %v10209 = vld [vmem:[%s9 + $0xe4] sm:$0xf]
    %v10210 = vld [vmem:[%s9 + $0xe8] sm:$0xf]
    %v10211 = vld [vmem:[%s9 + $0xec] sm:$0xf]
    %v10212 = vld [vmem:[%s9 + $0xf0] sm:$0xf]
    %v10213 = vld [vmem:[%s9 + $0xf4] sm:$0xf]
    %v10214 = vld [vmem:[%s9 + $0xf8] sm:$0xf]
    %v10215 = vld [vmem:[%s9 + $0xfc] sm:$0xf]
    %v10216 = vld [vmem:[%s9 + $0x100] sm:$0xf]
    %v10217 = vld [vmem:[%s9 + $0x104] sm:$0xf]
    %v10218 = vld [vmem:[%s9 + $0x108] sm:$0xf]
    %v10219 = vld [vmem:[%s9 + $0x10c] sm:$0xf]
    %v10220 = vld [vmem:[%s9 + $0x110] sm:$0xf]
    %v10221 = vld [vmem:[%s9 + $0x114] sm:$0xf]
    %v10222 = vld [vmem:[%s9 + $0x118] sm:$0xf]
    %v10223 = vld [vmem:[%s9 + $0x11c] sm:$0xf]
    %v10224 = vld [vmem:[%s9 + $0x120] sm:$0xf]
    %v10225 = vld [vmem:[%s9 + $0x124] sm:$0xf]
    %v10226 = vld [vmem:[%s9 + $0x128] sm:$0xf]
    %v10227 = vld [vmem:[%s9 + $0x12c] sm:$0xf]
    %v10228 = vld [vmem:[%s9 + $0x130] sm:$0xf]
    %v10229 = vld [vmem:[%s9 + $0x134] sm:$0xf]
    %v10230 = vld [vmem:[%s9 + $0x138] sm:$0xf]
    %v10231 = vld [vmem:[%s9 + $0x13c] sm:$0xf]
    %v10232 = vld [vmem:[%s9 + $0x140] sm:$0xf]
    %v10233 = vld [vmem:[%s9 + $0x144] sm:$0xf]
    %v10234 = vld [vmem:[%s9 + $0x148] sm:$0xf]
    %v10235 = vld [vmem:[%s9 + $0x14c] sm:$0xf]
    %v10236 = vld [vmem:[%s9 + $0x150] sm:$0xf]
    %v10237 = vld [vmem:[%s9 + $0x154] sm:$0xf]
    %v10238 = vld [vmem:[%s9 + $0x158] sm:$0xf]
    %v10239 = vld [vmem:[%s9 + $0x15c] sm:$0xf]
    %v10240 = vld [vmem:[%s9 + $0x160] sm:$0xf]
    %v10241 = vld [vmem:[%s9 + $0x164] sm:$0xf]
    %v10242 = vld [vmem:[%s9 + $0x168] sm:$0xf]
    %v10243 = vld [vmem:[%s9 + $0x16c] sm:$0xf]
    %v10244 = vld [vmem:[%s9 + $0x170] sm:$0xf]
    %v10245 = vld [vmem:[%s9 + $0x174] sm:$0xf]
    %v10246 = vld [vmem:[%s9 + $0x178] sm:$0xf]
    %v10247 = vld [vmem:[%s9 + $0x17c] sm:$0xf]
    %v10248 = vld [vmem:[%s9 + $0x180] sm:$0xf]
    %v10249 = vld [vmem:[%s9 + $0x184] sm:$0xf]
    %v10250 = vld [vmem:[%s9 + $0x188] sm:$0xf]
    %v10251 = vld [vmem:[%s9 + $0x18c] sm:$0xf]
    %v10252 = vld [vmem:[%s9 + $0x190] sm:$0xf]
    %v10253 = vld [vmem:[%s9 + $0x194] sm:$0xf]
    %v10254 = vld [vmem:[%s9 + $0x198] sm:$0xf]
    %v10255 = vld [vmem:[%s9 + $0x19c] sm:$0xf]
    %v10256 = vld [vmem:[%s9 + $0x1a0] sm:$0xf]
    %v10257 = vld [vmem:[%s9 + $0x1a4] sm:$0xf]
    %v10258 = vld [vmem:[%s9 + $0x1a8] sm:$0xf]
    %v10259 = vld [vmem:[%s9 + $0x1ac] sm:$0xf]
    %v10260 = vld [vmem:[%s9 + $0x1b0] sm:$0xf]
    %v10261 = vld [vmem:[%s9 + $0x1b4] sm:$0xf]
    %v10262 = vld [vmem:[%s9 + $0x1b8] sm:$0xf]
    %v10263 = vld [vmem:[%s9 + $0x1bc] sm:$0xf]
    %v10264 = vld [vmem:[%s9 + $0x1c0] sm:$0xf]
    %v10265 = vld [vmem:[%s9 + $0x1c4] sm:$0xf]
    %v10266 = vld [vmem:[%s9 + $0x1c8] sm:$0xf]
    %v10267 = vld [vmem:[%s9 + $0x1cc] sm:$0xf]
    %v10268 = vld [vmem:[%s9 + $0x1d0] sm:$0xf]
    %v10269 = vld [vmem:[%s9 + $0x1d4] sm:$0xf]
    %v10270 = vld [vmem:[%s9 + $0x1d8] sm:$0xf]
    %v10271 = vld [vmem:[%s9 + $0x1dc] sm:$0xf]
    %v10272 = vld [vmem:[%s9 + $0x1e0] sm:$0xf]
    %v10273 = vld [vmem:[%s9 + $0x1e4] sm:$0xf]
    %v10274 = vld [vmem:[%s9 + $0x1e8] sm:$0xf]
    %v10275 = vld [vmem:[%s9 + $0x1ec] sm:$0xf]
    %v10276 = vld [vmem:[%s9 + $0x1f0] sm:$0xf]
    %v10277 = vld [vmem:[%s9 + $0x1f4] sm:$0xf]
    %v10278 = vld [vmem:[%s9 + $0x1f8] sm:$0xf]
    %v10279 = vld [vmem:[%s9 + $0x1fc] sm:$0xf]
    %v10280 = vld [vmem:[%s9 + $0x200] sm:$0xf]
    %v10281 = vld [vmem:[%s9 + $0x204] sm:$0xf]
    %v10282 = vld [vmem:[%s9 + $0x208] sm:$0xf]
    %v10283 = vld [vmem:[%s9 + $0x20c] sm:$0xf]
    %v10284 = vld [vmem:[%s9 + $0x210] sm:$0xf]
    %v10285 = vld [vmem:[%s9 + $0x214] sm:$0xf]
    %v10286 = vld [vmem:[%s9 + $0x218] sm:$0xf]
    %v10287 = vld [vmem:[%s9 + $0x21c] sm:$0xf]
    %v10288 = vld [vmem:[%s9 + $0x220] sm:$0xf]
    %v10289 = vld [vmem:[%s9 + $0x224] sm:$0xf]
    %v10290 = vld [vmem:[%s9 + $0x228] sm:$0xf]
    %v10291 = vld [vmem:[%s9 + $0x22c] sm:$0xf]
    %v10292 = vld [vmem:[%s9 + $0x230] sm:$0xf]
    %v10293 = vld [vmem:[%s9 + $0x234] sm:$0xf]
    %v10294 = vld [vmem:[%s9 + $0x238] sm:$0xf]
    %v10295 = vld [vmem:[%s9 + $0x23c] sm:$0xf]
    %v10440 = vunpack.c.l.b16 %v10152
    %v10441 = vunpack.c.l.b16 %v10153
    %v10442 = vunpack.c.l.b16 %v10154
    %v10443 = vunpack.c.l.b16 %v10155
    %v10444 = vunpack.c.l.b16 %v10156
    %v10445 = vunpack.c.l.b16 %v10157
    %v10446 = vunpack.c.l.b16 %v10158
    %v10447 = vunpack.c.l.b16 %v10159
    %v10448 = vunpack.c.l.b16 %v10160
    %v10449 = vunpack.c.l.b16 %v10161
    %v10450 = vunpack.c.l.b16 %v10162
    %v10451 = vunpack.c.l.b16 %v10163
    %v10452 = vunpack.c.l.b16 %v10164
    %v10453 = vunpack.c.l.b16 %v10165
    %v10454 = vunpack.c.l.b16 %v10166
    %v10455 = vunpack.c.l.b16 %v10167
    %v10456 = vunpack.c.l.b16 %v10168
    %v10457 = vunpack.c.l.b16 %v10169
    %v10458 = vunpack.c.l.b16 %v10170
    %v10459 = vunpack.c.l.b16 %v10171
    %v10460 = vunpack.c.l.b16 %v10172
    %v10461 = vunpack.c.l.b16 %v10173
    %v10462 = vunpack.c.l.b16 %v10174
    %v10463 = vunpack.c.l.b16 %v10175
    %v10464 = vunpack.c.l.b16 %v10176
    %v10465 = vunpack.c.l.b16 %v10177
    %v10466 = vunpack.c.l.b16 %v10178
    %v10467 = vunpack.c.l.b16 %v10179
    %v10468 = vunpack.c.l.b16 %v10180
    %v10469 = vunpack.c.l.b16 %v10181
    %v10470 = vunpack.c.l.b16 %v10182
    %v10471 = vunpack.c.l.b16 %v10183
    %v10472 = vunpack.c.l.b16 %v10184
    %v10473 = vunpack.c.l.b16 %v10185
    %v10474 = vunpack.c.l.b16 %v10186
    %v10475 = vunpack.c.l.b16 %v10187
    %v10476 = vunpack.c.l.b16 %v10188
    %v10477 = vunpack.c.l.b16 %v10189
    %v10478 = vunpack.c.l.b16 %v10190
    %v10479 = vunpack.c.l.b16 %v10191
    %v10480 = vunpack.c.l.b16 %v10192
    %v10481 = vunpack.c.l.b16 %v10193
    %v10482 = vunpack.c.l.b16 %v10194
    %v10483 = vunpack.c.l.b16 %v10195
    %v10484 = vunpack.c.l.b16 %v10196
    %v10485 = vunpack.c.l.b16 %v10197
    %v10486 = vunpack.c.l.b16 %v10198
    %v10487 = vunpack.c.l.b16 %v10199
    %v10488 = vunpack.c.l.b16 %v10200
    %v10489 = vunpack.c.l.b16 %v10201
    %v10490 = vunpack.c.l.b16 %v10202
    %v10491 = vunpack.c.l.b16 %v10203
    %v10492 = vunpack.c.l.b16 %v10204
    %v10493 = vunpack.c.l.b16 %v10205
    %v10494 = vunpack.c.l.b16 %v10206
    %v10495 = vunpack.c.l.b16 %v10207
    %v10496 = vunpack.c.l.b16 %v10208
    %v10497 = vunpack.c.l.b16 %v10209
    %v10498 = vunpack.c.l.b16 %v10210
    %v10499 = vunpack.c.l.b16 %v10211
    %v10500 = vunpack.c.l.b16 %v10212
    %v10501 = vunpack.c.l.b16 %v10213
    %v10502 = vunpack.c.l.b16 %v10214
    %v10503 = vunpack.c.l.b16 %v10215
    %v10504 = vunpack.c.l.b16 %v10216
    %v10505 = vunpack.c.l.b16 %v10217
    %v10506 = vunpack.c.l.b16 %v10218
    %v10507 = vunpack.c.l.b16 %v10219
    %v10508 = vunpack.c.l.b16 %v10220
    %v10509 = vunpack.c.l.b16 %v10221
    %v10510 = vunpack.c.l.b16 %v10222
    %v10511 = vunpack.c.l.b16 %v10223
    %v10512 = vunpack.c.l.b16 %v10224
    %v10513 = vunpack.c.l.b16 %v10225
    %v10514 = vunpack.c.l.b16 %v10226
    %v10515 = vunpack.c.l.b16 %v10227
    %v10516 = vunpack.c.l.b16 %v10228
    %v10517 = vunpack.c.l.b16 %v10229
    %v10518 = vunpack.c.l.b16 %v10230
    %v10519 = vunpack.c.l.b16 %v10231
    %v10520 = vunpack.c.l.b16 %v10232
    %v10521 = vunpack.c.l.b16 %v10233
    %v10522 = vunpack.c.l.b16 %v10234
    %v10523 = vunpack.c.l.b16 %v10235
    %v10524 = vunpack.c.l.b16 %v10236
    %v10525 = vunpack.c.l.b16 %v10237
    %v10526 = vunpack.c.l.b16 %v10238
    %v10527 = vunpack.c.l.b16 %v10239
    %v10528 = vunpack.c.l.b16 %v10240
    %v10529 = vunpack.c.l.b16 %v10241
    %v10530 = vunpack.c.l.b16 %v10242
    %v10531 = vunpack.c.l.b16 %v10243
    %v10532 = vunpack.c.l.b16 %v10244
    %v10533 = vunpack.c.l.b16 %v10245
    %v10534 = vunpack.c.l.b16 %v10246
    %v10535 = vunpack.c.l.b16 %v10247
    %v10536 = vunpack.c.l.b16 %v10248
    %v10537 = vunpack.c.l.b16 %v10249
    %v10538 = vunpack.c.l.b16 %v10250
    %v10539 = vunpack.c.l.b16 %v10251
    %v10540 = vunpack.c.l.b16 %v10252
    %v10541 = vunpack.c.l.b16 %v10253
    %v10542 = vunpack.c.l.b16 %v10254
    %v10543 = vunpack.c.l.b16 %v10255
    %v10544 = vunpack.c.l.b16 %v10256
    %v10545 = vunpack.c.l.b16 %v10257
    %v10546 = vunpack.c.l.b16 %v10258
    %v10547 = vunpack.c.l.b16 %v10259
    %v10548 = vunpack.c.l.b16 %v10260
    %v10549 = vunpack.c.l.b16 %v10261
    %v10550 = vunpack.c.l.b16 %v10262
    %v10551 = vunpack.c.l.b16 %v10263
    %v10552 = vunpack.c.l.b16 %v10264
    %v10553 = vunpack.c.l.b16 %v10265
    %v10554 = vunpack.c.l.b16 %v10266
    %v10555 = vunpack.c.l.b16 %v10267
    %v10556 = vunpack.c.l.b16 %v10268
    %v10557 = vunpack.c.l.b16 %v10269
    %v10558 = vunpack.c.l.b16 %v10270
    %v10559 = vunpack.c.l.b16 %v10271
    %v10560 = vunpack.c.l.b16 %v10272
    %v10561 = vunpack.c.l.b16 %v10273
    %v10562 = vunpack.c.l.b16 %v10274
    %v10563 = vunpack.c.l.b16 %v10275
    %v10564 = vunpack.c.l.b16 %v10276
    %v10565 = vunpack.c.l.b16 %v10277
    %v10566 = vunpack.c.l.b16 %v10278
    %v10567 = vunpack.c.l.b16 %v10279
    %v10568 = vunpack.c.l.b16 %v10280
    %v10569 = vunpack.c.l.b16 %v10281
    %v10570 = vunpack.c.l.b16 %v10282
    %v10571 = vunpack.c.l.b16 %v10283
    %v10572 = vunpack.c.l.b16 %v10284
    %v10573 = vunpack.c.l.b16 %v10285
    %v10574 = vunpack.c.l.b16 %v10286
    %v10575 = vunpack.c.l.b16 %v10287
    %v10576 = vunpack.c.l.b16 %v10288
    %v10577 = vunpack.c.l.b16 %v10289
    %v10578 = vunpack.c.l.b16 %v10290
    %v10579 = vunpack.c.l.b16 %v10291
    %v10580 = vunpack.c.l.b16 %v10292
    %v10581 = vunpack.c.l.b16 %v10293
    %v10582 = vunpack.c.l.b16 %v10294
    %v10583 = vunpack.c.l.b16 %v10295
    %v10584 = vpack.c.b16 %v10441, %v10440
    %v10585 = vpack.c.b16 %v10443, %v10442
    %v10586 = vpack.c.b16 %v10445, %v10444
    %v10587 = vpack.c.b16 %v10447, %v10446
    %v10588 = vpack.c.b16 %v10449, %v10448
    %v10589 = vpack.c.b16 %v10451, %v10450
    %v10590 = vpack.c.b16 %v10453, %v10452
    %v10591 = vpack.c.b16 %v10455, %v10454
    %v10592 = vpack.c.b16 %v10457, %v10456
    %v10593 = vpack.c.b16 %v10459, %v10458
    %v10594 = vpack.c.b16 %v10461, %v10460
    %v10595 = vpack.c.b16 %v10463, %v10462
    %v10596 = vpack.c.b16 %v10465, %v10464
    %v10597 = vpack.c.b16 %v10467, %v10466
    %v10598 = vpack.c.b16 %v10469, %v10468
    %v10599 = vpack.c.b16 %v10471, %v10470
    %v10600 = vpack.c.b16 %v10473, %v10472
    %v10601 = vpack.c.b16 %v10475, %v10474
    %v10602 = vpack.c.b16 %v10477, %v10476
    %v10603 = vpack.c.b16 %v10479, %v10478
    %v10604 = vpack.c.b16 %v10481, %v10480
    %v10605 = vpack.c.b16 %v10483, %v10482
    %v10606 = vpack.c.b16 %v10485, %v10484
    %v10607 = vpack.c.b16 %v10487, %v10486
    %v10608 = vpack.c.b16 %v10489, %v10488
    %v10609 = vpack.c.b16 %v10491, %v10490
    %v10610 = vpack.c.b16 %v10493, %v10492
    %v10611 = vpack.c.b16 %v10495, %v10494
    %v10612 = vpack.c.b16 %v10497, %v10496
    %v10613 = vpack.c.b16 %v10499, %v10498
    %v10614 = vpack.c.b16 %v10501, %v10500
    %v10615 = vpack.c.b16 %v10503, %v10502
    %v10616 = vpack.c.b16 %v10505, %v10504
    %v10617 = vpack.c.b16 %v10507, %v10506
    %v10618 = vpack.c.b16 %v10509, %v10508
    %v10619 = vpack.c.b16 %v10511, %v10510
    %v10620 = vpack.c.b16 %v10513, %v10512
    %v10621 = vpack.c.b16 %v10515, %v10514
    %v10622 = vpack.c.b16 %v10517, %v10516
    %v10623 = vpack.c.b16 %v10519, %v10518
    %v10624 = vpack.c.b16 %v10521, %v10520
    %v10625 = vpack.c.b16 %v10523, %v10522
    %v10626 = vpack.c.b16 %v10525, %v10524
    %v10627 = vpack.c.b16 %v10527, %v10526
    %v10628 = vpack.c.b16 %v10529, %v10528
    %v10629 = vpack.c.b16 %v10531, %v10530
    %v10630 = vpack.c.b16 %v10533, %v10532
    %v10631 = vpack.c.b16 %v10535, %v10534
    %v10632 = vpack.c.b16 %v10537, %v10536
    %v10633 = vpack.c.b16 %v10539, %v10538
    %v10634 = vpack.c.b16 %v10541, %v10540
    %v10635 = vpack.c.b16 %v10543, %v10542
    %v10636 = vpack.c.b16 %v10545, %v10544
    %v10637 = vpack.c.b16 %v10547, %v10546
    %v10638 = vpack.c.b16 %v10549, %v10548
    %v10639 = vpack.c.b16 %v10551, %v10550
    %v10640 = vpack.c.b16 %v10553, %v10552
    %v10641 = vpack.c.b16 %v10555, %v10554
    %v10642 = vpack.c.b16 %v10557, %v10556
    %v10643 = vpack.c.b16 %v10559, %v10558
    %v10644 = vpack.c.b16 %v10561, %v10560
    %v10645 = vpack.c.b16 %v10563, %v10562
    %v10646 = vpack.c.b16 %v10565, %v10564
    %v10647 = vpack.c.b16 %v10567, %v10566
    %v10648 = vpack.c.b16 %v10569, %v10568
    %v10649 = vpack.c.b16 %v10571, %v10570
    %v10650 = vpack.c.b16 %v10573, %v10572
    %v10651 = vpack.c.b16 %v10575, %v10574
    %v10652 = vpack.c.b16 %v10577, %v10576
    %v10653 = vpack.c.b16 %v10579, %v10578
    %v10654 = vpack.c.b16 %v10581, %v10580
    %v10655 = vpack.c.b16 %v10583, %v10582
    %10728 = vmatprep.subr.bf16.mxu0 0
    %10729 = vmatpush1.bf16.msra.mxu0 %v10584
    %10730 = vmatprep.subr.bf16.mxu0 0
    %10731 = vmatpush1.bf16.msra.mxu0 %v10585
    %10732 = vmatprep.subr.bf16.mxu0 0
    %10733 = vmatpush1.bf16.msra.mxu0 %v10586
    %10734 = vmatprep.subr.bf16.mxu0 0
    %10735 = vmatpush1.bf16.msra.mxu0 %v10587
    %10736 = vmatprep.subr.bf16.mxu0 0
    %10737 = vmatpush1.bf16.msra.mxu0 %v10588
    %10738 = vmatprep.subr.bf16.mxu0 0
    %10739 = vmatpush1.bf16.msra.mxu0 %v10589
    %10740 = vmatprep.subr.bf16.mxu0 0
    %10741 = vmatpush1.bf16.msra.mxu0 %v10590
    %10742 = vmatprep.subr.bf16.mxu0 0
    %10743 = vmatpush1.bf16.msra.mxu0 %v10591
    %10744 = vmatprep.subr.bf16.mxu0 0
    %10745 = vmatpush1.bf16.msra.mxu0 %v10592
    %10746 = vmatprep.subr.bf16.mxu0 0
    %10747 = vmatpush1.bf16.msra.mxu0 %v10593
    %10748 = vmatprep.subr.bf16.mxu0 0
    %10749 = vmatpush1.bf16.msra.mxu0 %v10594
    %10750 = vmatprep.subr.bf16.mxu0 0
    %10751 = vmatpush1.bf16.msra.mxu0 %v10595
    %10752 = vmatprep.subr.bf16.mxu0 0
    %10753 = vmatpush1.bf16.msra.mxu0 %v10596
    %10754 = vmatprep.subr.bf16.mxu0 0
    %10755 = vmatpush1.bf16.msra.mxu0 %v10597
    %10756 = vmatprep.subr.bf16.mxu0 0
    %10757 = vmatpush1.bf16.msra.mxu0 %v10598
    %10758 = vmatprep.subr.bf16.mxu0 0
    %10759 = vmatpush1.bf16.msra.mxu0 %v10599
    %10760 = vmatprep.mubr.bf16.mxu0 %v9880
    %10761 = vmatmul.mubr.bf16.gmra.mrb[0].mxu0 %v9848
    %v10762 = vpop.f32.mrb[0].mxu0
    %v10763 = vadd.f32 0.0, %v10762
    %v10764 = vpop.f32.mrb[0].mxu0
    %v10765 = vpop.f32.mrb[0].mxu0
    %v10766 = vadd.f32 0.0, %v10765
    %v10767 = vpop.f32.mrb[0].mxu0
    %10768 = vmatprep.mubr.bf16.mxu0 %v9881
    %10769 = vmatmul.mubr.bf16.gmra.mrb[0].mxu0 %v9849
    %v10770 = vpop.f32.mrb[0].mxu0
    %v10771 = vadd.f32 0.0, %v10770
    %v10772 = vpop.f32.mrb[0].mxu0
    %v10773 = vpop.f32.mrb[0].mxu0
    %v10774 = vadd.f32 0.0, %v10773
    %v10775 = vpop.f32.mrb[0].mxu0
    %10776 = vmatprep.mubr.bf16.mxu0 %v9882
    %10777 = vmatmul.mubr.bf16.gmra.mrb[0].mxu0 %v9850
    %v10778 = vpop.f32.mrb[0].mxu0
    %v10779 = vadd.f32 0.0, %v10778
    %v10780 = vpop.f32.mrb[0].mxu0
    %v10781 = vpop.f32.mrb[0].mxu0
    %v10782 = vadd.f32 0.0, %v10781
    %v10783 = vpop.f32.mrb[0].mxu0
    %10784 = vmatprep.mubr.bf16.mxu0 %v9883
    %10785 = vmatmul.mubr.bf16.gmra.mrb[0].mxu0 %v9851
    %v10786 = vpop.f32.mrb[0].mxu0
    %v10787 = vadd.f32 0.0, %v10786
    %v10788 = vpop.f32.mrb[0].mxu0
    %v10789 = vpop.f32.mrb[0].mxu0
    %v10790 = vadd.f32 0.0, %v10789
    %v10791 = vpop.f32.mrb[0].mxu0
    %10792 = vmatprep.mubr.bf16.mxu0 %v9884
    %10793 = vmatmul.mubr.bf16.gmra.mrb[0].mxu0 %v9852
    %v10794 = vpop.f32.mrb[0].mxu0
    %v10795 = vadd.f32 0.0, %v10794
    %v10796 = vpop.f32.mrb[0].mxu0
    %v10797 = vpop.f32.mrb[0].mxu0
    %v10798 = vadd.f32 0.0, %v10797
    %v10799 = vpop.f32.mrb[0].mxu0
    %10800 = vmatprep.mubr.bf16.mxu0 %v9885
    %10801 = vmatmul.mubr.bf16.gmra.mrb[0].mxu0 %v9853
    %v10802 = vpop.f32.mrb[0].mxu0
    %v10803 = vadd.f32 0.0, %v10802
    %v10804 = vpop.f32.mrb[0].mxu0
    %v10805 = vpop.f32.mrb[0].mxu0
    %v10806 = vadd.f32 0.0, %v10805
    %v10807 = vpop.f32.mrb[0].mxu0
    %10808 = vmatprep.mubr.bf16.mxu0 %v9886
    %10809 = vmatmul.mubr.bf16.gmra.mrb[0].mxu0 %v9854
    %v10810 = vpop.f32.mrb[0].mxu0
    %v10811 = vadd.f32 0.0, %v10810
    %v10812 = vpop.f32.mrb[0].mxu0
    %v10813 = vpop.f32.mrb[0].mxu0
    %v10814 = vadd.f32 0.0, %v10813
    %v10815 = vpop.f32.mrb[0].mxu0
    %10816 = vmatprep.mubr.bf16.mxu0 %v9887
    %10817 = vmatmul.mubr.bf16.gmra.mrb[0].mxu0 %v9855
    %v10818 = vpop.f32.mrb[0].mxu0
    %v10819 = vadd.f32 0.0, %v10818
    %v10820 = vpop.f32.mrb[0].mxu0
    %v10821 = vpop.f32.mrb[0].mxu0
    %v10822 = vadd.f32 0.0, %v10821
    %v10823 = vpop.f32.mrb[0].mxu0
    %10824 = vdwg.mxu0
    %10825 = vmatprep.subr.bf16.mxu0 0
    %10826 = vmatpush1.bf16.msra.mxu0 %v10600
    %10827 = vmatprep.subr.bf16.mxu0 0
    %10828 = vmatpush1.bf16.msra.mxu0 %v10601
    %10829 = vmatprep.subr.bf16.mxu0 0
    %10830 = vmatpush1.bf16.msra.mxu0 %v10602
    %10831 = vmatprep.subr.bf16.mxu0 0
    %10832 = vmatpush1.bf16.msra.mxu0 %v10603
    %10833 = vmatprep.subr.bf16.mxu0 0
    %10834 = vmatpush1.bf16.msra.mxu0 %v10604
    %10835 = vmatprep.subr.bf16.mxu0 0
    %10836 = vmatpush1.bf16.msra.mxu0 %v10605
    %10837 = vmatprep.subr.bf16.mxu0 0
    %10838 = vmatpush1.bf16.msra.mxu0 %v10606
    %10839 = vmatprep.subr.bf16.mxu0 0
    %10840 = vmatpush1.bf16.msra.mxu0 %v10607
    %10841 = vmatprep.subr.bf16.mxu0 0
    %10842 = vmatpush1.bf16.msra.mxu0 %v10608
    %10843 = vmatprep.subr.bf16.mxu0 0
    %10844 = vmatpush1.bf16.msra.mxu0 %v10609
    %10845 = vmatprep.subr.bf16.mxu0 0
    %10846 = vmatpush1.bf16.msra.mxu0 %v10610
    %10847 = vmatprep.subr.bf16.mxu0 0
    %10848 = vmatpush1.bf16.msra.mxu0 %v10611
    %10849 = vmatprep.subr.bf16.mxu0 0
    %10850 = vmatpush1.bf16.msra.mxu0 %v10612
    %10851 = vmatprep.subr.bf16.mxu0 0
    %10852 = vmatpush1.bf16.msra.mxu0 %v10613
    %10853 = vmatprep.subr.bf16.mxu0 0
    %10854 = vmatpush1.bf16.msra.mxu0 %v10614
    %10855 = vmatprep.subr.bf16.mxu0 0
    %10856 = vmatpush1.bf16.msra.mxu0 %v10615
    %10857 = vmatprep.mubr.bf16.mxu0 %v9960
    %10858 = vmatmul.mubr.bf16.gmra.mrb[0].mxu0 %v9912
    %v10859 = vpop.f32.mrb[0].mxu0
    %v10860 = vadd.f32 %v10763, %v10859
    %v10861 = vpop.f32.mrb[0].mxu0
    %v10862 = vpop.f32.mrb[0].mxu0
    %v10863 = vadd.f32 %v10766, %v10862
    %v10864 = vpop.f32.mrb[0].mxu0
    %10865 = vmatprep.mubr.bf16.mxu0 %v9961
    %10866 = vmatmul.mubr.bf16.gmra.mrb[0].mxu0 %v9913
    %v10867 = vpop.f32.mrb[0].mxu0
    %v10868 = vadd.f32 %v10771, %v10867
    %v10869 = vpop.f32.mrb[0].mxu0
    %v10870 = vpop.f32.mrb[0].mxu0
    %v10871 = vadd.f32 %v10774, %v10870
    %v10872 = vpop.f32.mrb[0].mxu0
    %10873 = vmatprep.mubr.bf16.mxu0 %v9962
    %10874 = vmatmul.mubr.bf16.gmra.mrb[0].mxu0 %v9914
    %v10875 = vpop.f32.mrb[0].mxu0
    %v10876 = vadd.f32 %v10779, %v10875
    %v10877 = vpop.f32.mrb[0].mxu0
    %v10878 = vpop.f32.mrb[0].mxu0
    %v10879 = vadd.f32 %v10782, %v10878
    %v10880 = vpop.f32.mrb[0].mxu0
    %10881 = vmatprep.mubr.bf16.mxu0 %v9963
    %10882 = vmatmul.mubr.bf16.gmra.mrb[0].mxu0 %v9915
    %v10883 = vpop.f32.mrb[0].mxu0
    %v10884 = vadd.f32 %v10787, %v10883
    %v10885 = vpop.f32.mrb[0].mxu0
    %v10886 = vpop.f32.mrb[0].mxu0
    %v10887 = vadd.f32 %v10790, %v10886
    %v10888 = vpop.f32.mrb[0].mxu0
    %10889 = vmatprep.mubr.bf16.mxu0 %v9964
    %10890 = vmatmul.mubr.bf16.gmra.mrb[0].mxu0 %v9916
    %v10891 = vpop.f32.mrb[0].mxu0
    %v10892 = vadd.f32 %v10795, %v10891
    %v10893 = vpop.f32.mrb[0].mxu0
    %v10894 = vpop.f32.mrb[0].mxu0
    %v10895 = vadd.f32 %v10798, %v10894
    %v10896 = vpop.f32.mrb[0].mxu0
    %10897 = vmatprep.mubr.bf16.mxu0 %v9965
    %10898 = vmatmul.mubr.bf16.gmra.mrb[0].mxu0 %v9917
    %v10899 = vpop.f32.mrb[0].mxu0
    %v10900 = vadd.f32 %v10803, %v10899
    %v10901 = vpop.f32.mrb[0].mxu0
    %v10902 = vpop.f32.mrb[0].mxu0
    %v10903 = vadd.f32 %v10806, %v10902
    %v10904 = vpop.f32.mrb[0].mxu0
    %10905 = vmatprep.mubr.bf16.mxu0 %v9966
    %10906 = vmatmul.mubr.bf16.gmra.mrb[0].mxu0 %v9918
    %v10907 = vpop.f32.mrb[0].mxu0
    %v10908 = vadd.f32 %v10811, %v10907
    %v10909 = vpop.f32.mrb[0].mxu0
    %v10910 = vpop.f32.mrb[0].mxu0
    %v10911 = vadd.f32 %v10814, %v10910
    %v10912 = vpop.f32.mrb[0].mxu0
    %10913 = vmatprep.mubr.bf16.mxu0 %v9967
    %10914 = vmatmul.mubr.bf16.gmra.mrb[0].mxu0 %v9919
    %v10915 = vpop.f32.mrb[0].mxu0
    %v10916 = vadd.f32 %v10819, %v10915
    %v10917 = vpop.f32.mrb[0].mxu0
    %v10918 = vpop.f32.mrb[0].mxu0
    %v10919 = vadd.f32 %v10822, %v10918
    %v10920 = vpop.f32.mrb[0].mxu0
    %10921 = vdwg.mxu0
    %10922 = vmatprep.subr.bf16.mxu0 0
    %10923 = vmatpush1.bf16.msra.mxu0 %v10616
    %10924 = vmatprep.subr.bf16.mxu0 0
    %10925 = vmatpush1.bf16.msra.mxu0 %v10617
    %10926 = vmatprep.subr.bf16.mxu0 0
    %10927 = vmatpush1.bf16.msra.mxu0 %v10618
    %10928 = vmatprep.subr.bf16.mxu0 0
    %10929 = vmatpush1.bf16.msra.mxu0 %v10619
    %10930 = vmatprep.subr.bf16.mxu0 0
    %10931 = vmatpush1.bf16.msra.mxu0 %v10620
    %10932 = vmatprep.subr.bf16.mxu0 0
    %10933 = vmatpush1.bf16.msra.mxu0 %v10621
    %10934 = vmatprep.subr.bf16.mxu0 0
    %10935 = vmatpush1.bf16.msra.mxu0 %v10622
    %10936 = vmatprep.subr.bf16.mxu0 0
    %10937 = vmatpush1.bf16.msra.mxu0 %v10623
    %10938 = vmatprep.subr.bf16.mxu0 0
    %10939 = vmatpush1.bf16.msra.mxu0 %v10624
    %10940 = vmatprep.subr.bf16.mxu0 0
    %10941 = vmatpush1.bf16.msra.mxu0 %v10625
    %10942 = vmatprep.subr.bf16.mxu0 0
    %10943 = vmatpush1.bf16.msra.mxu0 %v10626
    %10944 = vmatprep.subr.bf16.mxu0 0
    %10945 = vmatpush1.bf16.msra.mxu0 %v10627
    %10946 = vmatprep.subr.bf16.mxu0 0
    %10947 = vmatpush1.bf16.msra.mxu0 %v10628
    %10948 = vmatprep.subr.bf16.mxu0 0
    %10949 = vmatpush1.bf16.msra.mxu0 %v10629
    %10950 = vmatprep.subr.bf16.mxu0 0
    %10951 = vmatpush1.bf16.msra.mxu0 %v10630
    %10952 = vmatprep.subr.bf16.mxu0 0
    %10953 = vmatpush1.bf16.msra.mxu0 %v10631
    %10954 = vmatprep.mubr.bf16.mxu0 %v10024
    %10955 = vmatmul.mubr.bf16.gmra.mrb[0].mxu0 %v9992
    %v10956 = vpop.f32.mrb[0].mxu0
    %v10957 = vadd.f32 %v10860, %v10956
    %v10958 = vpop.f32.mrb[0].mxu0
    %v10959 = vpop.f32.mrb[0].mxu0
    %v10960 = vadd.f32 %v10863, %v10959
    %v10961 = vpop.f32.mrb[0].mxu0
    %10962 = vmatprep.mubr.bf16.mxu0 %v10025
    %10963 = vmatmul.mubr.bf16.gmra.mrb[0].mxu0 %v9993
    %v10964 = vpop.f32.mrb[0].mxu0
    %v10965 = vadd.f32 %v10868, %v10964
    %v10966 = vpop.f32.mrb[0].mxu0
    %v10967 = vpop.f32.mrb[0].mxu0
    %v10968 = vadd.f32 %v10871, %v10967
    %v10969 = vpop.f32.mrb[0].mxu0
    %10970 = vmatprep.mubr.bf16.mxu0 %v10026
    %10971 = vmatmul.mubr.bf16.gmra.mrb[0].mxu0 %v9994
    %v10972 = vpop.f32.mrb[0].mxu0
    %v10973 = vadd.f32 %v10876, %v10972
    %v10974 = vpop.f32.mrb[0].mxu0
    %v10975 = vpop.f32.mrb[0].mxu0
    %v10976 = vadd.f32 %v10879, %v10975
    %v10977 = vpop.f32.mrb[0].mxu0
    %10978 = vmatprep.mubr.bf16.mxu0 %v10027
    %10979 = vmatmul.mubr.bf16.gmra.mrb[0].mxu0 %v9995
    %v10980 = vpop.f32.mrb[0].mxu0
    %v10981 = vadd.f32 %v10884, %v10980
    %v10982 = vpop.f32.mrb[0].mxu0
    %v10983 = vpop.f32.mrb[0].mxu0
    %v10984 = vadd.f32 %v10887, %v10983
    %v10985 = vpop.f32.mrb[0].mxu0
    %10986 = vmatprep.mubr.bf16.mxu0 %v10028
    %10987 = vmatmul.mubr.bf16.gmra.mrb[0].mxu0 %v9996
    %v10988 = vpop.f32.mrb[0].mxu0
    %v10989 = vadd.f32 %v10892, %v10988
    %v10990 = vpop.f32.mrb[0].mxu0
    %v10991 = vpop.f32.mrb[0].mxu0
    %v10992 = vadd.f32 %v10895, %v10991
    %v10993 = vpop.f32.mrb[0].mxu0
    %10994 = vmatprep.mubr.bf16.mxu0 %v10029
    %10995 = vmatmul.mubr.bf16.gmra.mrb[0].mxu0 %v9997
    %v10996 = vpop.f32.mrb[0].mxu0
    %v10997 = vadd.f32 %v10900, %v10996
    %v10998 = vpop.f32.mrb[0].mxu0
    %v10999 = vpop.f32.mrb[0].mxu0
    %v11000 = vadd.f32 %v10903, %v10999
    %v11001 = vpop.f32.mrb[0].mxu0
    %11002 = vmatprep.mubr.bf16.mxu0 %v10030
    %11003 = vmatmul.mubr.bf16.gmra.mrb[0].mxu0 %v9998
    %v11004 = vpop.f32.mrb[0].mxu0
    %v11005 = vadd.f32 %v10908, %v11004
    %v11006 = vpop.f32.mrb[0].mxu0
    %v11007 = vpop.f32.mrb[0].mxu0
    %v11008 = vadd.f32 %v10911, %v11007
    %v11009 = vpop.f32.mrb[0].mxu0
    %11010 = vmatprep.mubr.bf16.mxu0 %v10031
    %11011 = vmatmul.mubr.bf16.gmra.mrb[0].mxu0 %v9999
    %v11012 = vpop.f32.mrb[0].mxu0
    %v11013 = vadd.f32 %v10916, %v11012
    %v11014 = vpop.f32.mrb[0].mxu0
    %v11015 = vpop.f32.mrb[0].mxu0
    %v11016 = vadd.f32 %v10919, %v11015
    %v11017 = vpop.f32.mrb[0].mxu0
    %11018 = vdwg.mxu0
    %11019 = vmatprep.subr.bf16.mxu0 0
    %11020 = vmatpush1.bf16.msra.mxu0 %v10632
    %11021 = vmatprep.subr.bf16.mxu0 0
    %11022 = vmatpush1.bf16.msra.mxu0 %v10633
    %11023 = vmatprep.subr.bf16.mxu0 0
    %11024 = vmatpush1.bf16.msra.mxu0 %v10634
    %11025 = vmatprep.subr.bf16.mxu0 0
    %11026 = vmatpush1.bf16.msra.mxu0 %v10635
    %11027 = vmatprep.subr.bf16.mxu0 0
    %11028 = vmatpush1.bf16.msra.mxu0 %v10636
    %11029 = vmatprep.subr.bf16.mxu0 0
    %11030 = vmatpush1.bf16.msra.mxu0 %v10637
    %11031 = vmatprep.subr.bf16.mxu0 0
    %11032 = vmatpush1.bf16.msra.mxu0 %v10638
    %11033 = vmatprep.subr.bf16.mxu0 0
    %11034 = vmatpush1.bf16.msra.mxu0 %v10639
    %11035 = vmatprep.subr.bf16.mxu0 0
    %11036 = vmatpush1.bf16.msra.mxu0 %v10640
    %11037 = vmatprep.subr.bf16.mxu0 0
    %11038 = vmatpush1.bf16.msra.mxu0 %v10641
    %11039 = vmatprep.subr.bf16.mxu0 0
    %11040 = vmatpush1.bf16.msra.mxu0 %v10642
    %11041 = vmatprep.subr.bf16.mxu0 0
    %11042 = vmatpush1.bf16.msra.mxu0 %v10643
    %11043 = vmatprep.subr.bf16.mxu0 0
    %11044 = vmatpush1.bf16.msra.mxu0 %v10644
    %11045 = vmatprep.subr.bf16.mxu0 0
    %11046 = vmatpush1.bf16.msra.mxu0 %v10645
    %11047 = vmatprep.subr.bf16.mxu0 0
    %11048 = vmatpush1.bf16.msra.mxu0 %v10646
    %11049 = vmatprep.subr.bf16.mxu0 0
    %11050 = vmatpush1.bf16.msra.mxu0 %v10647
    %11051 = vmatprep.mubr.bf16.mxu0 %v10104
    %11052 = vmatmul.mubr.bf16.gmra.mrb[0].mxu0 %v10072
    %v11053 = vpop.f32.mrb[0].mxu0
    %v11054 = vadd.f32 %v10957, %v11053
    %v11055 = vpop.f32.mrb[0].mxu0
    %v11056 = vpop.f32.mrb[0].mxu0
    %v11057 = vadd.f32 %v10960, %v11056
    %v11058 = vpop.f32.mrb[0].mxu0
    %11059 = vmatprep.mubr.bf16.mxu0 %v10105
    %11060 = vmatmul.mubr.bf16.gmra.mrb[0].mxu0 %v10073
    %v11061 = vpop.f32.mrb[0].mxu0
    %v11062 = vadd.f32 %v10965, %v11061
    %v11063 = vpop.f32.mrb[0].mxu0
    %v11064 = vpop.f32.mrb[0].mxu0
    %v11065 = vadd.f32 %v10968, %v11064
    %v11066 = vpop.f32.mrb[0].mxu0
    %11067 = vmatprep.mubr.bf16.mxu0 %v10106
    %11068 = vmatmul.mubr.bf16.gmra.mrb[0].mxu0 %v10074
    %v11069 = vpop.f32.mrb[0].mxu0
    %v11070 = vadd.f32 %v10973, %v11069
    %v11071 = vpop.f32.mrb[0].mxu0
    %v11072 = vpop.f32.mrb[0].mxu0
    %v11073 = vadd.f32 %v10976, %v11072
    %v11074 = vpop.f32.mrb[0].mxu0
    %11075 = vmatprep.mubr.bf16.mxu0 %v10107
    %11076 = vmatmul.mubr.bf16.gmra.mrb[0].mxu0 %v10075
    %v11077 = vpop.f32.mrb[0].mxu0
    %v11078 = vadd.f32 %v10981, %v11077
    %v11079 = vpop.f32.mrb[0].mxu0
    %v11080 = vpop.f32.mrb[0].mxu0
    %v11081 = vadd.f32 %v10984, %v11080
    %v11082 = vpop.f32.mrb[0].mxu0
    %11083 = vmatprep.mubr.bf16.mxu0 %v10108
    %11084 = vmatmul.mubr.bf16.gmra.mrb[0].mxu0 %v10076
    %v11085 = vpop.f32.mrb[0].mxu0
    %v11086 = vadd.f32 %v10989, %v11085
    %v11087 = vpop.f32.mrb[0].mxu0
    %v11088 = vpop.f32.mrb[0].mxu0
    %v11089 = vadd.f32 %v10992, %v11088
    %v11090 = vpop.f32.mrb[0].mxu0
    %11091 = vmatprep.mubr.bf16.mxu0 %v10109
    %11092 = vmatmul.mubr.bf16.gmra.mrb[0].mxu0 %v10077
    %v11093 = vpop.f32.mrb[0].mxu0
    %v11094 = vadd.f32 %v10997, %v11093
    %v11095 = vpop.f32.mrb[0].mxu0
    %v11096 = vpop.f32.mrb[0].mxu0
    %v11097 = vadd.f32 %v11000, %v11096
    %v11098 = vpop.f32.mrb[0].mxu0
    %11099 = vmatprep.mubr.bf16.mxu0 %v10110
    %11100 = vmatmul.mubr.bf16.gmra.mrb[0].mxu0 %v10078
    %v11101 = vpop.f32.mrb[0].mxu0
    %v11102 = vadd.f32 %v11005, %v11101
    %v11103 = vpop.f32.mrb[0].mxu0
    %v11104 = vpop.f32.mrb[0].mxu0
    %v11105 = vadd.f32 %v11008, %v11104
    %v11106 = vpop.f32.mrb[0].mxu0
    %11107 = vmatprep.mubr.bf16.mxu0 %v10111
    %11108 = vmatmul.mubr.bf16.gmra.mrb[0].mxu0 %v10079
    %v11109 = vpop.f32.mrb[0].mxu0
    %v11110 = vadd.f32 %v11013, %v11109
    %v11111 = vpop.f32.mrb[0].mxu0
    %v11112 = vpop.f32.mrb[0].mxu0
    %v11113 = vadd.f32 %v11016, %v11112
    %v11114 = vpop.f32.mrb[0].mxu0
    %11115 = vdwg.mxu0
    %11116 = vmatprep.subr.bf16.mxu0 0
    %11117 = vmatpush1.bf16.msra.mxu0 %v10648
    %11118 = vmatprep.subr.bf16.mxu0 0
    %11119 = vmatpush1.bf16.msra.mxu0 %v10649
    %11120 = vmatprep.subr.bf16.mxu0 0
    %11121 = vmatpush1.bf16.msra.mxu0 %v10650
    %11122 = vmatprep.subr.bf16.mxu0 0
    %11123 = vmatpush1.bf16.msra.mxu0 %v10651
    %11124 = vmatprep.subr.bf16.mxu0 0
    %11125 = vmatpush1.bf16.msra.mxu0 %v10652
    %11126 = vmatprep.subr.bf16.mxu0 0
    %11127 = vmatpush1.bf16.msra.mxu0 %v10653
    %11128 = vmatprep.subr.bf16.mxu0 0
    %11129 = vmatpush1.bf16.msra.mxu0 %v10654
    %11130 = vmatprep.subr.bf16.mxu0 0
    %11131 = vmatpush1.bf16.msra.mxu0 %v10655
    %11132 = vmatprep.subr.bf16.mxu0 0
    %11133 = vmatpush1.bf16.msra.mxu0 0
    %11134 = vmatprep.subr.bf16.mxu0 0
    %11135 = vmatpush1.bf16.msra.mxu0 0
    %11136 = vmatprep.subr.bf16.mxu0 0
    %11137 = vmatpush1.bf16.msra.mxu0 0
    %11138 = vmatprep.subr.bf16.mxu0 0
    %11139 = vmatpush1.bf16.msra.mxu0 0
    %11140 = vmatprep.subr.bf16.mxu0 0
    %11141 = vmatpush1.bf16.msra.mxu0 0
    %11142 = vmatprep.subr.bf16.mxu0 0
    %11143 = vmatpush1.bf16.msra.mxu0 0
    %11144 = vmatprep.subr.bf16.mxu0 0
    %11145 = vmatpush1.bf16.msra.mxu0 0
    %11146 = vmatprep.subr.bf16.mxu0 0
    %11147 = vmatpush1.bf16.msra.mxu0 0
    %11148 = vmatprep.mubr.bf16.mxu0 0
    %11149 = vmatmul.mubr.bf16.gmra.mrb[0].mxu0 %v10136
    %v11150 = vpop.f32.mrb[0].mxu0
    %v11151 = vadd.f32 %v11054, %v11150
    %v11152 = vpop.f32.mrb[0].mxu0
    %v11153 = vpop.f32.mrb[0].mxu0
    %v11154 = vadd.f32 %v11057, %v11153
    %v11155 = vpop.f32.mrb[0].mxu0
    %11156 = vmatprep.mubr.bf16.mxu0 0
    %11157 = vmatmul.mubr.bf16.gmra.mrb[0].mxu0 %v10137
    %v11158 = vpop.f32.mrb[0].mxu0
    %v11159 = vadd.f32 %v11062, %v11158
    %v11160 = vpop.f32.mrb[0].mxu0
    %v11161 = vpop.f32.mrb[0].mxu0
    %v11162 = vadd.f32 %v11065, %v11161
    %v11163 = vpop.f32.mrb[0].mxu0
    %11164 = vmatprep.mubr.bf16.mxu0 0
    %11165 = vmatmul.mubr.bf16.gmra.mrb[0].mxu0 %v10138
    %v11166 = vpop.f32.mrb[0].mxu0
    %v11167 = vadd.f32 %v11070, %v11166
    %v11168 = vpop.f32.mrb[0].mxu0
    %v11169 = vpop.f32.mrb[0].mxu0
    %v11170 = vadd.f32 %v11073, %v11169
    %v11171 = vpop.f32.mrb[0].mxu0
    %11172 = vmatprep.mubr.bf16.mxu0 0
    %11173 = vmatmul.mubr.bf16.gmra.mrb[0].mxu0 %v10139
    %v11174 = vpop.f32.mrb[0].mxu0
    %v11175 = vadd.f32 %v11078, %v11174
    %v11176 = vpop.f32.mrb[0].mxu0
    %v11177 = vpop.f32.mrb[0].mxu0
    %v11178 = vadd.f32 %v11081, %v11177
    %v11179 = vpop.f32.mrb[0].mxu0
    %11180 = vmatprep.mubr.bf16.mxu0 0
    %11181 = vmatmul.mubr.bf16.gmra.mrb[0].mxu0 %v10140
    %v11182 = vpop.f32.mrb[0].mxu0
    %v11183 = vadd.f32 %v11086, %v11182
    %v11184 = vpop.f32.mrb[0].mxu0
    %v11185 = vpop.f32.mrb[0].mxu0
    %v11186 = vadd.f32 %v11089, %v11185
    %v11187 = vpop.f32.mrb[0].mxu0
    %11188 = vmatprep.mubr.bf16.mxu0 0
    %11189 = vmatmul.mubr.bf16.gmra.mrb[0].mxu0 %v10141
    %v11190 = vpop.f32.mrb[0].mxu0
    %v11191 = vadd.f32 %v11094, %v11190
    %v11192 = vpop.f32.mrb[0].mxu0
    %v11193 = vpop.f32.mrb[0].mxu0
    %v11194 = vadd.f32 %v11097, %v11193
    %v11195 = vpop.f32.mrb[0].mxu0
    %11196 = vmatprep.mubr.bf16.mxu0 0
    %11197 = vmatmul.mubr.bf16.gmra.mrb[0].mxu0 %v10142
    %v11198 = vpop.f32.mrb[0].mxu0
    %v11199 = vadd.f32 %v11102, %v11198
    %v11200 = vpop.f32.mrb[0].mxu0
    %v11201 = vpop.f32.mrb[0].mxu0
    %v11202 = vadd.f32 %v11105, %v11201
    %v11203 = vpop.f32.mrb[0].mxu0
    %11204 = vmatprep.mubr.bf16.mxu0 0
    %11205 = vmatmul.mubr.bf16.gmra.mrb[0].mxu0 %v10143
    %v11206 = vpop.f32.mrb[0].mxu0
    %v11207 = vadd.f32 %v11110, %v11206
    %v11208 = vpop.f32.mrb[0].mxu0
    %v11209 = vpop.f32.mrb[0].mxu0
    %v11210 = vadd.f32 %v11113, %v11209
    %v11211 = vpop.f32.mrb[0].mxu0
    %11212 = vdwg.mxu0
    %v11213 = vld [vmem:[%s10] sm:$0x1]
    %v11214 = vld [vmem:[%s11] sm:$0x1]
    %v11215 = vadd.f32 %v11151, %v11154
    %v11216 = vadd.f32 %v11215, %v11159
    %v11217 = vadd.f32 %v11216, %v11162
    %v11218 = vadd.f32 %v11217, %v11167
    %v11219 = vadd.f32 %v11218, %v11170
    %v11220 = vadd.f32 %v11219, %v11175
    %v11221 = vadd.f32 %v11220, %v11178
    %v11222 = vadd.f32 %v11221, %v11183
    %v11223 = vadd.f32 %v11222, %v11186
    %v11224 = vadd.f32 %v11223, %v11191
    %v11225 = vadd.f32 %v11224, %v11194
    %v11226 = vadd.f32 %v11225, %v11199
    %v11227 = vadd.f32 %v11226, %v11202
    %v11228 = vadd.f32 %v11227, %v11207
    %v11229 = vadd.f32 %v11228, %v11210
    %v11230 = vrot.slane %v11229, 4
    %v11231 = vadd.f32 %v11229, %v11230
    %v11232 = vrot.slane %v11231, 2
    %v11233 = vadd.f32 %v11231, %v11232
    %v11234 = vrot.slane %v11233, 1
    %v11235 = vadd.f32 %v11233, %v11234
    %v11236 = vmul.f32 %v11235, 0.0078125
    %v11237 = vsub.f32 %v11151, %v11236
    %v11238 = vsub.f32 %v11154, %v11236
    %v11239 = vsub.f32 %v11159, %v11236
    %v11240 = vsub.f32 %v11162, %v11236
    %v11241 = vsub.f32 %v11167, %v11236
    %v11242 = vsub.f32 %v11170, %v11236
    %v11243 = vsub.f32 %v11175, %v11236
    %v11244 = vsub.f32 %v11178, %v11236
    %v11245 = vsub.f32 %v11183, %v11236
    %v11246 = vsub.f32 %v11186, %v11236
    %v11247 = vsub.f32 %v11191, %v11236
    %v11248 = vsub.f32 %v11194, %v11236
    %v11249 = vsub.f32 %v11199, %v11236
    %v11250 = vsub.f32 %v11202, %v11236
    %v11251 = vsub.f32 %v11207, %v11236
    %v11252 = vsub.f32 %v11210, %v11236
    %v11253 = vmul.f32 %v11237, %v11237
    %v11254 = vmul.f32 %v11238, %v11238
    %v11255 = vmul.f32 %v11239, %v11239
    %v11256 = vmul.f32 %v11240, %v11240
    %v11257 = vmul.f32 %v11241, %v11241
    %v11258 = vmul.f32 %v11242, %v11242
    %v11259 = vmul.f32 %v11243, %v11243
    %v11260 = vmul.f32 %v11244, %v11244
    %v11261 = vmul.f32 %v11245, %v11245
    %v11262 = vmul.f32 %v11246, %v11246
    %v11263 = vmul.f32 %v11247, %v11247
    %v11264 = vmul.f32 %v11248, %v11248
    %v11265 = vmul.f32 %v11249, %v11249
    %v11266 = vmul.f32 %v11250, %v11250
    %v11267 = vmul.f32 %v11251, %v11251
    %v11268 = vmul.f32 %v11252, %v11252
    %v11269 = vadd.f32 %v11253, %v11254
    %v11270 = vadd.f32 %v11269, %v11255
    %v11271 = vadd.f32 %v11270, %v11256
    %v11272 = vadd.f32 %v11271, %v11257
    %v11273 = vadd.f32 %v11272, %v11258
    %v11274 = vadd.f32 %v11273, %v11259
    %v11275 = vadd.f32 %v11274, %v11260
    %v11276 = vadd.f32 %v11275, %v11261
    %v11277 = vadd.f32 %v11276, %v11262
    %v11278 = vadd.f32 %v11277, %v11263
    %v11279 = vadd.f32 %v11278, %v11264
    %v11280 = vadd.f32 %v11279, %v11265
    %v11281 = vadd.f32 %v11280, %v11266
    %v11282 = vadd.f32 %v11281, %v11267
    %v11283 = vadd.f32 %v11282, %v11268
    %v11284 = vrot.slane %v11283, 4
    %v11285 = vadd.f32 %v11283, %v11284
    %v11286 = vrot.slane %v11285, 2
    %v11287 = vadd.f32 %v11285, %v11286
    %v11288 = vrot.slane %v11287, 1
    %v11289 = vadd.f32 %v11287, %v11288
    %v11290 = vmul.f32 %v11289, 0.0078125
    %v11291 = vadd.f32 %v11290, 1e-05
    %v11292 = vrsqrt.pop %v11291
    %v11293 = vmul.f32 %v11237, %v11292
    %v11294 = vmul.f32 %v11238, %v11292
    %v11295 = vmul.f32 %v11239, %v11292
    %v11296 = vmul.f32 %v11240, %v11292
    %v11297 = vmul.f32 %v11241, %v11292
    %v11298 = vmul.f32 %v11242, %v11292
    %v11299 = vmul.f32 %v11243, %v11292
    %v11300 = vmul.f32 %v11244, %v11292
    %v11301 = vmul.f32 %v11245, %v11292
    %v11302 = vmul.f32 %v11246, %v11292
    %v11303 = vmul.f32 %v11247, %v11292
    %v11304 = vmul.f32 %v11248, %v11292
    %v11305 = vmul.f32 %v11249, %v11292
    %v11306 = vmul.f32 %v11250, %v11292
    %v11307 = vmul.f32 %v11251, %v11292
    %v11308 = vmul.f32 %v11252, %v11292
    %v11310 = vlaneseq
    %v11311 = vshrl.u32 %v11310, 7
    %v11312 = vsub.s32 0, %v11311
    %v11313 = vrot.slane %v11213, %v11312
    %v11315 = vmul.f32 %v11293, %v11313
    %v11316 = vmul.f32 %v11294, %v11313
    %v11317 = vmul.f32 %v11295, %v11313
    %v11318 = vmul.f32 %v11296, %v11313
    %v11319 = vmul.f32 %v11297, %v11313
    %v11320 = vmul.f32 %v11298, %v11313
    %v11321 = vmul.f32 %v11299, %v11313
    %v11322 = vmul.f32 %v11300, %v11313
    %v11323 = vmul.f32 %v11301, %v11313
    %v11324 = vmul.f32 %v11302, %v11313
    %v11325 = vmul.f32 %v11303, %v11313
    %v11326 = vmul.f32 %v11304, %v11313
    %v11327 = vmul.f32 %v11305, %v11313
    %v11328 = vmul.f32 %v11306, %v11313
    %v11329 = vmul.f32 %v11307, %v11313
    %v11330 = vmul.f32 %v11308, %v11313
    %v11332 = vlaneseq
    %v11333 = vshrl.u32 %v11332, 7
    %v11334 = vsub.s32 0, %v11333
    %v11335 = vrot.slane %v11214, %v11334
    %v11337 = vadd.f32 %v11315, %v11335
    %v11338 = vadd.f32 %v11316, %v11335
    %v11339 = vadd.f32 %v11317, %v11335
    %v11340 = vadd.f32 %v11318, %v11335
    %v11341 = vadd.f32 %v11319, %v11335
    %v11342 = vadd.f32 %v11320, %v11335
    %v11343 = vadd.f32 %v11321, %v11335
    %v11344 = vadd.f32 %v11322, %v11335
    %v11345 = vadd.f32 %v11323, %v11335
    %v11346 = vadd.f32 %v11324, %v11335
    %v11347 = vadd.f32 %v11325, %v11335
    %v11348 = vadd.f32 %v11326, %v11335
    %v11349 = vadd.f32 %v11327, %v11335
    %v11350 = vadd.f32 %v11328, %v11335
    %v11351 = vadd.f32 %v11329, %v11335
    %v11352 = vadd.f32 %v11330, %v11335
    %vm11353 = vcmp.gt.f32.partialorder %v11337, 0.0
    %vm11354 = vcmp.gt.f32.partialorder %v11338, 0.0
    %vm11355 = vcmp.gt.f32.partialorder %v11339, 0.0
    %vm11356 = vcmp.gt.f32.partialorder %v11340, 0.0
    %vm11357 = vcmp.gt.f32.partialorder %v11341, 0.0
    %vm11358 = vcmp.gt.f32.partialorder %v11342, 0.0
    %vm11359 = vcmp.gt.f32.partialorder %v11343, 0.0
    %vm11360 = vcmp.gt.f32.partialorder %v11344, 0.0
    %vm11361 = vcmp.gt.f32.partialorder %v11345, 0.0
    %vm11362 = vcmp.gt.f32.partialorder %v11346, 0.0
    %vm11363 = vcmp.gt.f32.partialorder %v11347, 0.0
    %vm11364 = vcmp.gt.f32.partialorder %v11348, 0.0
    %vm11365 = vcmp.gt.f32.partialorder %v11349, 0.0
    %vm11366 = vcmp.gt.f32.partialorder %v11350, 0.0
    %vm11367 = vcmp.gt.f32.partialorder %v11351, 0.0
    %vm11368 = vcmp.gt.f32.partialorder %v11352, 0.0
    %v11369 = vmul.f32 %v11337, 0.01
    %v11370 = vmul.f32 %v11338, 0.01
    %v11371 = vmul.f32 %v11339, 0.01
    %v11372 = vmul.f32 %v11340, 0.01
    %v11373 = vmul.f32 %v11341, 0.01
    %v11374 = vmul.f32 %v11342, 0.01
    %v11375 = vmul.f32 %v11343, 0.01
    %v11376 = vmul.f32 %v11344, 0.01
    %v11377 = vmul.f32 %v11345, 0.01
    %v11378 = vmul.f32 %v11346, 0.01
    %v11379 = vmul.f32 %v11347, 0.01
    %v11380 = vmul.f32 %v11348, 0.01
    %v11381 = vmul.f32 %v11349, 0.01
    %v11382 = vmul.f32 %v11350, 0.01
    %v11383 = vmul.f32 %v11351, 0.01
    %v11384 = vmul.f32 %v11352, 0.01
    %v11385 = vsel %vm11353, %v11337, %v11369
    %v11386 = vsel %vm11354, %v11338, %v11370
    %v11387 = vsel %vm11355, %v11339, %v11371
    %v11388 = vsel %vm11356, %v11340, %v11372
    %v11389 = vsel %vm11357, %v11341, %v11373
    %v11390 = vsel %vm11358, %v11342, %v11374
    %v11391 = vsel %vm11359, %v11343, %v11375
    %v11392 = vsel %vm11360, %v11344, %v11376
    %v11393 = vsel %vm11361, %v11345, %v11377
    %v11394 = vsel %vm11362, %v11346, %v11378
    %v11395 = vsel %vm11363, %v11347, %v11379
    %v11396 = vsel %vm11364, %v11348, %v11380
    %v11397 = vsel %vm11365, %v11349, %v11381
    %v11398 = vsel %vm11366, %v11350, %v11382
    %v11399 = vsel %vm11367, %v11351, %v11383
    %v11400 = vsel %vm11368, %v11352, %v11384
    %v11401 = vadd.f32 %v8393, %v11385
    %v11402 = vadd.f32 %v8394, %v11386
    %v11403 = vadd.f32 %v8395, %v11387
    %v11404 = vadd.f32 %v8396, %v11388
    %v11405 = vadd.f32 %v8397, %v11389
    %v11406 = vadd.f32 %v8398, %v11390
    %v11407 = vadd.f32 %v8399, %v11391
    %v11408 = vadd.f32 %v8400, %v11392
    %v11409 = vadd.f32 %v8401, %v11393
    %v11410 = vadd.f32 %v8402, %v11394
    %v11411 = vadd.f32 %v8403, %v11395
    %v11412 = vadd.f32 %v8404, %v11396
    %v11413 = vadd.f32 %v8405, %v11397
    %v11414 = vadd.f32 %v8406, %v11398
    %v11415 = vadd.f32 %v8407, %v11399
    %v11416 = vadd.f32 %v8408, %v11400
    %v11417 = vmax.f32 %v11401, %v11403
    %v11418 = vmax.f32 %v11402, %v11404
    %v11419 = vmax.f32 %v11417, %v11405
    %v11420 = vmax.f32 %v11418, %v11406
    %v11421 = vmax.f32 %v11419, %v11407
    %v11422 = vmax.f32 %v11420, %v11408
    %v11423 = vmax.f32 %v11421, %v11422
    %v11424 = vrot.slane %v11423, 4
    %v11425 = vmax.f32 %v11423, %v11424
    %v11426 = vrot.slane %v11425, 2
    %v11427 = vmax.f32 %v11425, %v11426
    %v11428 = vrot.slane %v11427, 1
    %v11429 = vmax.f32 %v11427, %v11428
    %v11430 = vmax.f32 %v11409, %v11411
    %v11431 = vmax.f32 %v11410, %v11412
    %v11432 = vmax.f32 %v11430, %v11413
    %v11433 = vmax.f32 %v11431, %v11414
    %v11434 = vmax.f32 %v11432, %v11415
    %v11435 = vmax.f32 %v11433, %v11416
    %v11436 = vmax.f32 %v11434, %v11435
    %v11437 = vrot.slane %v11436, 4
    %v11438 = vmax.f32 %v11436, %v11437
    %v11439 = vrot.slane %v11438, 2
    %v11440 = vmax.f32 %v11438, %v11439
    %v11441 = vrot.slane %v11440, 1
    %v11442 = vmax.f32 %v11440, %v11441
    %v11443 = vpack.c.bf16 %v11429, %v11429
    %v11444 = vpack.c.bf16 %v11442, %v11442
    %v11445 = vld [vmem:[%s12] sm:$0xf]
    %v11446 = vld [vmem:[%s12 + $0x4] sm:$0xf]
    %v11447 = vld [vmem:[%s12 + $0x8] sm:$0xf]
    %v11448 = vld [vmem:[%s12 + $0xc] sm:$0xf]
    %v11449 = vld [vmem:[%s12 + $0x10] sm:$0xf]
    %v11450 = vld [vmem:[%s12 + $0x14] sm:$0xf]
    %v11451 = vld [vmem:[%s12 + $0x18] sm:$0xf]
    %v11452 = vld [vmem:[%s12 + $0x1c] sm:$0xf]
    %v11453 = vld [vmem:[%s12 + $0x20] sm:$0xf]
    %v11454 = vld [vmem:[%s12 + $0x24] sm:$0xf]
    %v11455 = vld [vmem:[%s12 + $0x28] sm:$0xf]
    %v11456 = vld [vmem:[%s12 + $0x2c] sm:$0xf]
    %v11457 = vld [vmem:[%s12 + $0x30] sm:$0xf]
    %v11458 = vld [vmem:[%s12 + $0x34] sm:$0xf]
    %v11459 = vld [vmem:[%s12 + $0x38] sm:$0xf]
    %v11460 = vld [vmem:[%s12 + $0x3c] sm:$0xf]
    %v11461 = vld [vmem:[%s13] sm:$0x1]
    %v11463 = vlaneseq
    %v11464 = vshrl.u32 %v11463, 7
    %v11465 = vsub.s32 0, %v11464
    %v11466 = vrot.slane %v11461, %v11465
    %v11470 = vunpack.c.l.b16 %v11443
    %v11471 = vunpack.c.l.b16 %v11444
    %vm11472 = vcmask 1041409
    %v11473 = vsel %vm11472, %v11471, %v11470
    %v11474 = vpack.c.b16 %v11473, %v11473
    %v11492 = vunpack.c.l.b16 %v11445
    %v11493 = vunpack.c.l.b16 %v11446
    %v11494 = vunpack.c.l.b16 %v11447
    %v11495 = vunpack.c.l.b16 %v11448
    %v11496 = vunpack.c.l.b16 %v11449
    %v11497 = vunpack.c.l.b16 %v11450
    %v11498 = vunpack.c.l.b16 %v11451
    %v11499 = vunpack.c.l.b16 %v11452
    %v11500 = vunpack.c.l.b16 %v11453
    %v11501 = vunpack.c.l.b16 %v11454
    %v11502 = vunpack.c.l.b16 %v11455
    %v11503 = vunpack.c.l.b16 %v11456
    %v11504 = vunpack.c.l.b16 %v11457
    %v11505 = vunpack.c.l.b16 %v11458
    %v11506 = vunpack.c.l.b16 %v11459
    %v11507 = vunpack.c.l.b16 %v11460
    %v11508 = vpack.c.b16 %v11493, %v11492
    %v11509 = vpack.c.b16 %v11495, %v11494
    %v11510 = vpack.c.b16 %v11497, %v11496
    %v11511 = vpack.c.b16 %v11499, %v11498
    %v11512 = vpack.c.b16 %v11501, %v11500
    %v11513 = vpack.c.b16 %v11503, %v11502
    %v11514 = vpack.c.b16 %v11505, %v11504
    %v11515 = vpack.c.b16 %v11507, %v11506
    %11524 = vmatprep.subr.bf16.mxu0 0
    %11525 = vmatpush1.bf16.msra.mxu0 %v11508
    %11526 = vmatprep.subr.bf16.mxu0 0
    %11527 = vmatpush1.bf16.msra.mxu0 %v11509
    %11528 = vmatprep.subr.bf16.mxu0 0
    %11529 = vmatpush1.bf16.msra.mxu0 %v11510
    %11530 = vmatprep.subr.bf16.mxu0 0
    %11531 = vmatpush1.bf16.msra.mxu0 %v11511
    %11532 = vmatprep.subr.bf16.mxu0 0
    %11533 = vmatpush1.bf16.msra.mxu0 %v11512
    %11534 = vmatprep.subr.bf16.mxu0 0
    %11535 = vmatpush1.bf16.msra.mxu0 %v11513
    %11536 = vmatprep.subr.bf16.mxu0 0
    %11537 = vmatpush1.bf16.msra.mxu0 %v11514
    %11538 = vmatprep.subr.bf16.mxu0 0
    %11539 = vmatpush1.bf16.msra.mxu0 %v11515
    %11540 = vmatprep.subr.bf16.mxu0 0
    %11541 = vmatpush1.bf16.msra.mxu0 0
    %11542 = vmatprep.subr.bf16.mxu0 0
    %11543 = vmatpush1.bf16.msra.mxu0 0
    %11544 = vmatprep.subr.bf16.mxu0 0
    %11545 = vmatpush1.bf16.msra.mxu0 0
    %11546 = vmatprep.subr.bf16.mxu0 0
    %11547 = vmatpush1.bf16.msra.mxu0 0
    %11548 = vmatprep.subr.bf16.mxu0 0
    %11549 = vmatpush1.bf16.msra.mxu0 0
    %11550 = vmatprep.subr.bf16.mxu0 0
    %11551 = vmatpush1.bf16.msra.mxu0 0
    %11552 = vmatprep.subr.bf16.mxu0 0
    %11553 = vmatpush1.bf16.msra.mxu0 0
    %11554 = vmatprep.subr.bf16.mxu0 0
    %11555 = vmatpush1.bf16.msra.mxu0 0
    %11556 = vmatprep.mubr.bf16.mxu0 0
    %11557 = vmatmul.mubr.bf16.gmra.mrb[0].mxu0 %v11474
    %v11558 = vpop.f32.mrb[0].mxu0
    %v11559 = vadd.f32 %v11466, %v11558
    %v11560 = vpop.f32.mrb[0].mxu0
    %v11561 = vpop.f32.mrb[0].mxu0
    %v11562 = vpop.f32.mrb[0].mxu0
    %11563 = vdwg.mxu0
    %v11564 = vlaneseq
    %v11565 = vand.u32 %v11564, 127
    %vm11566 = vcmp.lt.s32.totalorder %v11565, 5
    %v11567 = vsel %vm11566, %v11559, -1e+30
    %vm11568 = vcmask 1041408
    %v11569 = vsel %vm11568, %v11567, -inf
    %11570 = vmax.xlane.f32.xlu0 %v11569
    %v11571 = vpop.xlane.xlu0 %11570
    %v11572 = vsub.f32 %v11567, %v11571
    %v11573 = vmul.f32 %v11572, 1.442695
    %v11574 = vpow.pop %v11573
    %v11575 = vsel %vm11566, %v11574, 0.0
    %v11576 = vsel %vm11568, %v11575, 0.0
    %11577 = vadd.xlane.f32.xlu0 %v11576
    %v11578 = vpop.xlane.xlu0 %11577
    %v11579 = vlog2.pop %v11578
    %v11580 = vmul.f32 %v11579, 0.6931472
    %v11581 = vadd.f32 %v11580, %v11571
    %v11582 = vsub.f32 %v11567, %v11581
    %v11583 = vsel %vm11566, %v11582, 0.0
    %11584 = vst [vmem:[#allocation4] sm:$0x3] %v11583
    // Predicated region
    $region58: #{simple_resnet_forward.1} parent=1 // pred_check
      _
    $region59: #{simple_resnet_forward.1} parent=1 // pred_check_branch
      %11586 = sbr.rel (0) target = $region61
    $region60: #{simple_resnet_forward.1} parent=1 // pred_region
      %s11588 = ssub.s32 32, 32
      %11589 = vsyncadd [#allocation5], %s11588
      %s11591 = sshll.u32 [#allocation4], 4
      %s11592 = int_to_ptr.vmem [resolvable:$true] %s11591
      %11594 = dma.vmem_to_hbm [thread:$0]  %s11592, 32, %s14, [#allocation5]
    $region61: #{simple_resnet_forward.1} parent=1 // pred_fallthru
      _
    // Predicated region
    $region62: #{simple_resnet_forward.1} parent=1 // pred_check
      _
    $region63: #{simple_resnet_forward.1} parent=1 // pred_check_branch
      %11596 = sbr.rel (0) target = $region65
    $region64: #{simple_resnet_forward.1} parent=1 // pred_region
      %11597 = dma.done [#allocation5], 32
    $region65: #{simple_resnet_forward.1} parent=1 // pred_fallthru
      _
    %11598 = vsyncpa [#allocation5], 1

</llo_original>
